<compile_context>
chip_gen: v7x
topology: tpu7x:2x2x1
jax: 0.10.0
libtpu: 0.0.40
codegen_flags: <defaults>
</compile_context>

<pallas_src>
import math
import numpy as np
import jax
import jax.numpy as jnp
from jax import lax
from jax.experimental import pallas as pl
from jax.experimental.pallas import tpu as pltpu

# ------------------------- small demo configuration -------------------------
DEPTH = 2
SEQ_LEN = 16            # seq_len  (S)
D_CHANNELS = 16         # d of the (b, l, d) input  -> Mamba scan length L
HIDDEN_STATE = 8        # d_state  (N)
EXPAND = 2
FACTOR = 2.0
DW_K = 3                # depthwise conv kernel size
DT_MIN, DT_MAX, DT_FLOOR = 1e-3, 1e-1, 1e-4

S4 = int(SEQ_LEN * FACTOR)                 # spatial_proj out features
INNER = int(SEQ_LEN * EXPAND * FACTOR)     # d_inner (E)
DT_RANK = math.ceil(SEQ_LEN / 16)          # R


def _softplus(x):
    return jnp.where(x > 20.0, x, jnp.log(1.0 + jnp.exp(jnp.minimum(x, 20.0))))


def _silu_kernel(x):
    # sigmoid(x) = 0.5*(1+tanh(x/2)):  one EUP op per element (vs exp + reciprocal), exact.
    return 0.5 * x * (1.0 + jnp.tanh(0.5 * x))


def _silu_ref(x):
    return x * (1.0 / (1.0 + jnp.exp(-x)))


def _eye_f32(n):
    r = lax.broadcasted_iota(jnp.int32, (n, n), 0)
    c = lax.broadcasted_iota(jnp.int32, (n, n), 1)
    return (r == c).astype(jnp.float32)


def _mxu_transpose(mat, ident):
    # mat (R, C) -> (C, R) exactly: ident(C,C) contracted with mat on dim 1, i.e. the
    # natively supported A @ B^T MXU pattern (same dimension numbers as q @ k^T).
    return lax.dot_general(ident, mat, (((1,), (1,)), ((), ())),
                           preferred_element_type=jnp.float32)


# ------------------------------ Pallas kernel --------------------------------
def _mamba_layer_kernel(x_ref, shift_ref, w_x_ref, b_x_ref, w_z_ref, b_z_ref,
                        w_cv_ref, b_cv_ref, w_dlt_ref, b_dt_ref, w_bct_ref,
                        a_ref, t_tile_ref, r_sum_ref, d_ref, w_out_ref,
                        out_ref, hh_ref):
    f32 = jnp.float32
    Bn, S, L = x_ref.shape                      # x_ref: (B, S, L) — PyTorch (b, l, d) layout
    depth = w_x_ref.shape[0]
    K = w_cv_ref.shape[1]
    E = d_ref.shape[-1]
    NE = a_ref.shape[-1]
    BL = Bn * L

    eye_l = _eye_f32(L)
    eye_s = _eye_f32(S)
    t_tile = t_tile_ref[...]                    # (E, N*E)   replicate-along-N matrix
    r_sum = r_sum_ref[...]                      # (N*E, E)   reduce-over-N matrix
    shift = shift_ref[...]                      # (K*BL, BL) stacked block-diag causal shifts

    # (B, S, L) -> (B*L, S): per-batch in-kernel transpose on the (idle) MXU.
    x_cur = jnp.concatenate(
        [_mxu_transpose(x_ref[b].astype(f32), eye_l) for b in range(Bn)], axis=0)

    for d in range(depth):                      # depth fused in-kernel (no HBM round trip)
        # fused spatial_proj+input_proj, emitted as two lane-aligned (., E) outputs
        xpre = jnp.dot(x_cur, w_x_ref[d], preferred_element_type=f32) + b_x_ref[d]
        zgate = jnp.dot(x_cur, w_z_ref[d], preferred_element_type=f32) + b_z_ref[d]

        # causal depthwise conv: ONE stacked shift-matrix matmul, then a weighted sum
        # of the K row-slabs (all slab slices are sublane-aligned).
        taps = jnp.dot(shift, xpre, preferred_element_type=f32)          # (K*BL, E)
        wcv = w_cv_ref[d]                                                 # (K, E)
        acc = taps[0:BL, :] * wcv[0:1, :]
        for j in range(1, K):
            acc = acc + taps[j * BL:(j + 1) * BL, :] * wcv[j:j + 1, :]
        xc = _silu_kernel(acc + b_cv_ref[d])                              # (BL, E)

        # dt path (selective_proj dt-rows fused with dt_proj, exact) + softplus
        dlt = _softplus(jnp.dot(xc, w_dlt_ref[d], preferred_element_type=f32)
                        + b_dt_ref[d])                                    # (BL, E)
        # B/C emitted directly in lane-dense tiled form; split lands on a lane-tile edge
        bct = jnp.dot(xc, w_bct_ref[d], preferred_element_type=f32)      # (BL, 2*NE)
        b_til = bct[:, :NE]                                               # (BL, NE)
        c_til = bct[:, NE:]                                               # (BL, NE)

        # lane-dense decay / inject, exp hoisted out of the serial scan
        dlt_til = jnp.dot(dlt, t_tile, preferred_element_type=f32)        # (BL, NE)
        dxc_til = jnp.dot(dlt * xc, t_tile, preferred_element_type=f32)   # (BL, NE)
        decay = jnp.exp(dlt_til * a_ref[d])                                # (BL, NE)
        inject = dxc_til * b_til                                           # (BL, NE)

        # selective scan along L (per batch, unrolled; the two independent chains
        # interleave for ILP).  Body = one lane-dense FMA; h-history rows go to VMEM,
        # the C-contraction is hoisted out (one mul + one MXU reduce matmul after).
        for b in range(Bn):
            dec_b = decay[b * L:(b + 1) * L, :]
            inj_b = inject[b * L:(b + 1) * L, :]
            h = inj_b[0:1, :]                                              # h0 = 0
            hh_ref[pl.ds(b * L, 1), :] = h
            for l in range(1, L):
                h = dec_b[l:l + 1, :] * h + inj_b[l:l + 1, :]
                hh_ref[pl.ds(b * L + l, 1), :] = h

        y = jnp.dot(hh_ref[...] * c_til, r_sum, preferred_element_type=f32)  # (BL, E)
        y = (y + xc * d_ref[d]) * _silu_kernel(zgate)                        # D skip + gate
        x_cur = jnp.dot(y, w_out_ref[d], preferred_element_type=f32)         # (BL, S)

    # (B*L, S) -> (B, S, L): transpose back in-kernel, store in the PyTorch layout.
    for b in range(Bn):
        out_ref[b] = _mxu_transpose(x_cur[b * L:(b + 1) * L, :],
                                    eye_s).astype(out_ref.dtype)


# ------------------------------ wrappers --------------------------------------
def prepare_layer_params(params_list):
    """Host-side exact algebraic fusions + per-depth stacking (done once)."""
    p0 = params_list[0]
    E = p0['D'].shape[0]
    N = p0['A_log'].shape[1]
    R = p0['w_dt'].shape[1]

    def one(p):
        w_xz = p['w_sp'].T @ p['w_in'].T                       # (S, 2E)  fused proj
        b_xz = p['b_sp'] @ p['w_in'].T                         # (2E,)
        wB = p['w_sel'][R:R + N, :].T                          # (E, N)
        wC = p['w_sel'][R + N:, :].T                           # (E, N)
        # B/C weights pre-expanded to the tiled (., N*E) layout used by the scan
        w_bct = jnp.concatenate([jnp.repeat(wB, E, axis=1),
                                 jnp.repeat(wC, E, axis=1)], axis=1)   # (E, 2*N*E)
        return dict(
            w_x=w_xz[:, :E], w_z=w_xz[:, E:],                  # (S, E) each
            b_x=b_xz[None, :E], b_z=b_xz[None, E:],            # (1, E) each
            w_cv=p['w_conv'].T,                                # (K, E)
            b_cv=p['b_conv'][None, :],                         # (1, E)
            w_dlt=p['w_sel'][:R, :].T @ p['w_dt'].T,           # (E, E) fused dt proj
            b_dt=p['b_dt'][None, :],                           # (1, E)
            w_bct=w_bct,
            a_flat=(-jnp.exp(p['A_log'])).T.reshape(1, N * E),  # flat -exp(A_log)^T
            Dv=p['D'][None, :],                                # (1, E)
            w_out=p['w_out'].T,                                # (E, S)
        )

    per = [one(p) for p in params_list]
    out = {k: jnp.stack([d[k] for d in per], axis=0) for k in per[0]}
    out['t_tile'] = jnp.tile(jnp.eye(E, dtype=jnp.float32), (1, N))   # (E, N*E)
    out['r_sum'] = jnp.tile(jnp.eye(E, dtype=jnp.float32), (N, 1))    # (N*E, E)
    return out


def channel_mamba_layer_pallas(x_bsd, prep):
    """Whole ChannelMambaLayer in one pallas_call. I/O layout matches PyTorch: (b, seq_len, d)."""
    B, S, L = x_bsd.shape
    depth, _, E = prep['w_x'].shape
    K = prep['w_cv'].shape[1]
    NE = prep['a_flat'].shape[-1]
    BL = B * L

    # block-diagonal (per batch) causal shift matrices, stacked over the K taps:
    # (shift_j @ u) shifts u's rows down by (K-1-j) within each batch block, zero filled.
    shift = np.zeros((K, BL, BL), np.float32)
    for j in range(K):
        shift[j] = np.kron(np.eye(B, dtype=np.float32),
                           np.eye(L, k=-(K - 1 - j), dtype=np.float32))
    shift_all = jnp.asarray(shift.reshape(K * BL, BL))

    weights = [shift_all, prep['w_x'], prep['b_x'], prep['w_z'], prep['b_z'],
               prep['w_cv'], prep['b_cv'], prep['w_dlt'], prep['b_dt'],
               prep['w_bct'], prep['a_flat'], prep['t_tile'], prep['r_sum'],
               prep['Dv'], prep['w_out']]

    def _full(a):
        nd = a.ndim
        return pl.BlockSpec(a.shape, lambda i, _n=nd: (0,) * _n)   # resident, full block

    grid_spec = pltpu.PrefetchScalarGridSpec(
        num_scalar_prefetch=0,
        grid=(1,),                                   # batch folded into rows -> one step
        in_specs=[pl.BlockSpec((B, S, L), lambda i: (0, 0, 0))]
                 + [_full(w) for w in weights],
        out_specs=pl.BlockSpec((B, S, L), lambda i: (0, 0, 0)),
        scratch_shapes=[pltpu.VMEM((BL, NE), jnp.float32)],        # h-history (lane dense)
    )
    return pl.pallas_call(
        _mamba_layer_kernel,
        out_shape=jax.ShapeDtypeStruct((B, S, L), jnp.float32),
        grid_spec=grid_spec,
        compiler_params=pltpu.CompilerParams(dimension_semantics=("arbitrary",)),
    )(x_bsd, *weights)


# -------------------------- pure-JAX reference --------------------------------
def channel_mamba_block_ref(x_bsd, p):
    E, N, R = p['D'].shape[0], p['A_log'].shape[1], p['w_dt'].shape[1]
    K = p['w_conv'].shape[1]
    xt = jnp.transpose(x_bsd, (0, 2, 1))                           # (b, d, S)
    h1 = xt @ p['w_sp'].T + p['b_sp']
    xz = h1 @ p['w_in'].T                                          # (b, d, 2E)
    xzT = jnp.transpose(xz, (0, 2, 1))                             # (b, 2E, L)
    u, z = xzT[:, :E, :], xzT[:, E:, :]
    L = u.shape[-1]
    up = jnp.pad(u, ((0, 0), (0, 0), (K - 1, 0)))
    xc = sum(p['w_conv'][None, :, j:j + 1] * up[:, :, j:j + L] for j in range(K))
    xc = _silu_ref(xc + p['b_conv'][None, :, None])                # (b, E, L)
    dbc = jnp.einsum('bel,fe->bfl', xc, p['w_sel'])
    dt, Bm, Cm = dbc[:, :R], dbc[:, R:R + N], dbc[:, R + N:]
    dt = jnp.einsum('er,brl->bel', p['w_dt'], dt)
    delta = _softplus(dt + p['b_dt'][None, :, None])
    A = -jnp.exp(p['A_log'])                                       # (E, N)

    def step(h, inp):
        d_l, u_l, b_l, c_l = inp
        h = jnp.exp(d_l[:, :, None] * A[None]) * h \
            + d_l[:, :, None] * b_l[:, None, :] * u_l[:, :, None]
        return h, jnp.sum(h * c_l[:, None, :], axis=-1)

    h0 = jnp.zeros((x_bsd.shape[0], E, N), jnp.float32)
    _, ys = lax.scan(step, h0, (jnp.moveaxis(delta, 2, 0), jnp.moveaxis(xc, 2, 0),
                                jnp.moveaxis(Bm, 2, 0), jnp.moveaxis(Cm, 2, 0)))
    y = jnp.moveaxis(ys, 0, 2)                                     # (b, E, L)
    y = y + xc * p['D'][None, :, None]
    y = y * _silu_ref(z)
    out = jnp.einsum('bel,se->bls', y, p['w_out'])                 # (b, L, S)
    return jnp.transpose(out, (0, 2, 1))                           # (b, S, L)


# ------------------------ deterministic parameter init ------------------------
def init_block_params(key):
    ks = jax.random.split(key, 9)

    def u(k, shape, scale):
        return jax.random.uniform(k, shape, jnp.float32, -1.0, 1.0) * scale

    w_sp = u(ks[0], (S4, SEQ_LEN), 1.0 / math.sqrt(SEQ_LEN))
    b_sp = u(ks[1], (S4,), 1.0 / math.sqrt(SEQ_LEN))
    w_in = u(ks[2], (2 * INNER, S4), 1.0 / math.sqrt(S4))
    w_conv = u(ks[3], (INNER, DW_K), 1.0 / math.sqrt(DW_K))
    b_conv = u(ks[4], (INNER,), 1.0 / math.sqrt(DW_K))
    w_sel = u(ks[5], (DT_RANK + 2 * HIDDEN_STATE, INNER), 1.0 / math.sqrt(INNER))
    dt_std = DT_RANK ** -0.5
    w_dt = u(ks[6], (INNER, DT_RANK), dt_std)
    dt = jnp.exp(jax.random.uniform(ks[7], (INNER,), jnp.float32)
                 * (math.log(DT_MAX) - math.log(DT_MIN)) + math.log(DT_MIN))
    dt = jnp.maximum(dt, DT_FLOOR)
    b_dt = dt + jnp.log(-jnp.expm1(-dt))                 # inverse-softplus init
    A_log = jnp.log(jnp.tile(jnp.arange(1, HIDDEN_STATE + 1, dtype=jnp.float32)[None, :],
                             (INNER, 1)))                # (E, N)
    D = jnp.ones((INNER,), jnp.float32)
    w_out = u(ks[8], (SEQ_LEN, INNER), 1.0 / math.sqrt(INNER))
    return dict(w_sp=w_sp, b_sp=b_sp, w_in=w_in, w_conv=w_conv, b_conv=b_conv,
                w_sel=w_sel, w_dt=w_dt, b_dt=b_dt, A_log=A_log, D=D, w_out=w_out)


# ----------------------------------- main --------------------------------------
if __name__ == "__main__":
    key = jax.random.PRNGKey(0)
    kx, kp = jax.random.split(key)
    # x: (batch, seq_len, d) = (2, 16, 16)
    x = jax.random.normal(kx, (2, SEQ_LEN, D_CHANNELS), jnp.float32)
    params = [init_block_params(jax.random.fold_in(kp, i)) for i in range(DEPTH)]

    prep = prepare_layer_params(params)          # one-time weight fusion / stacking
    layer_fn = jax.jit(channel_mamba_layer_pallas)
    out = jax.block_until_ready(layer_fn(x, prep))

    ref = x
    for p in params:
        ref = channel_mamba_block_ref(ref, p)
    ref = jax.block_until_ready(ref)

    assert out.shape == x.shape
    np.testing.assert_allclose(np.asarray(out), np.asarray(ref), rtol=1e-2, atol=1e-2)
    print("KERNEL_OK")
</pallas_src>

<mosaic_0001>
module attributes {stable_mosaic.version = 11 : i64} {
  func.func @_mamba_layer_kernel(%arg0: i32, %arg1: memref<2x16x16xf32, #tpu.memory_space<vmem>>, %arg2: memref<96x32xf32, #tpu.memory_space<vmem>>, %arg3: memref<2x16x64xf32, #tpu.memory_space<vmem>>, %arg4: memref<2x1x64xf32, #tpu.memory_space<vmem>>, %arg5: memref<2x16x64xf32, #tpu.memory_space<vmem>>, %arg6: memref<2x1x64xf32, #tpu.memory_space<vmem>>, %arg7: memref<2x3x64xf32, #tpu.memory_space<vmem>>, %arg8: memref<2x1x64xf32, #tpu.memory_space<vmem>>, %arg9: memref<2x64x64xf32, #tpu.memory_space<vmem>>, %arg10: memref<2x1x64xf32, #tpu.memory_space<vmem>>, %arg11: memref<2x64x1024xf32, #tpu.memory_space<vmem>>, %arg12: memref<2x1x512xf32, #tpu.memory_space<vmem>>, %arg13: memref<64x512xf32, #tpu.memory_space<vmem>>, %arg14: memref<512x64xf32, #tpu.memory_space<vmem>>, %arg15: memref<2x1x64xf32, #tpu.memory_space<vmem>>, %arg16: memref<2x64x16xf32, #tpu.memory_space<vmem>>, %arg17: memref<2x16x16xf32, #tpu.memory_space<vmem>>, %arg18: memref<32x512xf32, #tpu.memory_space<vmem>>) attributes {dimension_semantics = [#tpu.dimension_semantics<arbitrary>], iteration_bounds = array<i64: 1>, scalar_prefetch = 0 : i64, scratch_operands = 1 : i64, tpu.core_type = #tpu.core_type<tc>, window_params = [{pipeline_mode = #tpu.pipeline_mode<synchronous>, transform_indices = @transform_0, window_bounds = array<i64: 2, 16, 16>}, {pipeline_mode = #tpu.pipeline_mode<synchronous>, transform_indices = @transform_1, window_bounds = array<i64: 96, 32>}, {pipeline_mode = #tpu.pipeline_mode<synchronous>, transform_indices = @transform_2, window_bounds = array<i64: 2, 16, 64>}, {pipeline_mode = #tpu.pipeline_mode<synchronous>, transform_indices = @transform_3, window_bounds = array<i64: 2, 1, 64>}, {pipeline_mode = #tpu.pipeline_mode<synchronous>, transform_indices = @transform_4, window_bounds = array<i64: 2, 16, 64>}, {pipeline_mode = #tpu.pipeline_mode<synchronous>, transform_indices = @transform_5, window_bounds = array<i64: 2, 1, 64>}, {pipeline_mode = #tpu.pipeline_mode<synchronous>, transform_indices = @transform_6, window_bounds = array<i64: 2, 3, 64>}, {pipeline_mode = #tpu.pipeline_mode<synchronous>, transform_indices = @transform_7, window_bounds = array<i64: 2, 1, 64>}, {pipeline_mode = #tpu.pipeline_mode<synchronous>, transform_indices = @transform_8, window_bounds = array<i64: 2, 64, 64>}, {pipeline_mode = #tpu.pipeline_mode<synchronous>, transform_indices = @transform_9, window_bounds = array<i64: 2, 1, 64>}, {pipeline_mode = #tpu.pipeline_mode<synchronous>, transform_indices = @transform_10, window_bounds = array<i64: 2, 64, 1024>}, {pipeline_mode = #tpu.pipeline_mode<synchronous>, transform_indices = @transform_11, window_bounds = array<i64: 2, 1, 512>}, {pipeline_mode = #tpu.pipeline_mode<synchronous>, transform_indices = @transform_12, window_bounds = array<i64: 64, 512>}, {pipeline_mode = #tpu.pipeline_mode<synchronous>, transform_indices = @transform_13, window_bounds = array<i64: 512, 64>}, {pipeline_mode = #tpu.pipeline_mode<synchronous>, transform_indices = @transform_14, window_bounds = array<i64: 2, 1, 64>}, {pipeline_mode = #tpu.pipeline_mode<synchronous>, transform_indices = @transform_15, window_bounds = array<i64: 2, 64, 16>}, {pipeline_mode = #tpu.pipeline_mode<synchronous>, transform_indices = @transform_16, window_bounds = array<i64: 2, 16, 16>}]} {
    %0 = tpu.iota {dimensions = array<i32: 0>} : vector<16x16xi32>
    %1 = tpu.iota {dimensions = array<i32: 1>} : vector<16x16xi32>
    %2 = arith.cmpi eq, %0, %1 : vector<16x16xi32>
    %3 = arith.extui %2 : vector<16x16xi1> to vector<16x16xi32>
    %4 = arith.sitofp %3 : vector<16x16xi32> to vector<16x16xf32>
    %5 = tpu.iota {dimensions = array<i32: 0>} : vector<16x16xi32>
    %6 = tpu.iota {dimensions = array<i32: 1>} : vector<16x16xi32>
    %7 = arith.cmpi eq, %5, %6 : vector<16x16xi32>
    %8 = arith.extui %7 : vector<16x16xi1> to vector<16x16xi32>
    %9 = arith.sitofp %8 : vector<16x16xi32> to vector<16x16xf32>
    %c0 = arith.constant 0 : index
    %c0_0 = arith.constant 0 : index
    %10 = vector.load %arg13[%c0, %c0_0] : memref<64x512xf32, #tpu.memory_space<vmem>>, vector<64x512xf32>
    %c0_1 = arith.constant 0 : index
    %c0_2 = arith.constant 0 : index
    %11 = vector.load %arg14[%c0_1, %c0_2] : memref<512x64xf32, #tpu.memory_space<vmem>>, vector<512x64xf32>
    %c0_3 = arith.constant 0 : index
    %c0_4 = arith.constant 0 : index
    %12 = vector.load %arg2[%c0_3, %c0_4] : memref<96x32xf32, #tpu.memory_space<vmem>>, vector<96x32xf32>
    %c0_5 = arith.constant 0 : index
    %c0_6 = arith.constant 0 : index
    %c0_7 = arith.constant 0 : index
    %13 = vector.load %arg1[%c0_5, %c0_6, %c0_7] : memref<2x16x16xf32, #tpu.memory_space<vmem>>, vector<1x16x16xf32>
    %14 = vector.shape_cast %13 : vector<1x16x16xf32> to vector<16x16xf32>
    %cst = arith.constant dense<0.000000e+00> : vector<16x16xf32>
    %15 = tpu.matmul %4, %14, %cst {dimension_numbers = #tpu.dot_dimension_numbers<[1], [1], [0], [0], [0, 0, 1, 0], [], []>} : vector<16x16xf32>, vector<16x16xf32>, vector<16x16xf32> -> vector<16x16xf32>
    %c1 = arith.constant 1 : index
    %c0_8 = arith.constant 0 : index
    %c0_9 = arith.constant 0 : index
    %16 = vector.load %arg1[%c1, %c0_8, %c0_9] : memref<2x16x16xf32, #tpu.memory_space<vmem>>, vector<1x16x16xf32>
    %17 = vector.shape_cast %16 : vector<1x16x16xf32> to vector<16x16xf32>
    %cst_10 = arith.constant dense<0.000000e+00> : vector<16x16xf32>
    %18 = tpu.matmul %4, %17, %cst_10 {dimension_numbers = #tpu.dot_dimension_numbers<[1], [1], [0], [0], [0, 0, 1, 0], [], []>} : vector<16x16xf32>, vector<16x16xf32>, vector<16x16xf32> -> vector<16x16xf32>
    %19 = tpu.concatenate %15, %18 in 0 : vector<16x16xf32>, vector<16x16xf32> -> vector<32x16xf32>
    %c0_11 = arith.constant 0 : index
    %c0_12 = arith.constant 0 : index
    %c0_13 = arith.constant 0 : index
    %20 = vector.load %arg3[%c0_11, %c0_12, %c0_13] : memref<2x16x64xf32, #tpu.memory_space<vmem>>, vector<1x16x64xf32>
    %21 = vector.shape_cast %20 : vector<1x16x64xf32> to vector<16x64xf32>
    %cst_14 = arith.constant dense<0.000000e+00> : vector<32x64xf32>
    %22 = tpu.matmul %19, %21, %cst_14 {dimension_numbers = #tpu.dot_dimension_numbers<[1], [0], [0], [1], [0, 0, 1, 1], [], []>} : vector<32x16xf32>, vector<16x64xf32>, vector<32x64xf32> -> vector<32x64xf32>
    %c0_15 = arith.constant 0 : index
    %c0_16 = arith.constant 0 : index
    %c0_17 = arith.constant 0 : index
    %23 = vector.load %arg4[%c0_15, %c0_16, %c0_17] : memref<2x1x64xf32, #tpu.memory_space<vmem>>, vector<1x1x64xf32>
    %24 = vector.shape_cast %23 : vector<1x1x64xf32> to vector<1x64xf32>
    %25 = vector.broadcast %24 : vector<1x64xf32> to vector<32x64xf32>
    %26 = arith.addf %22, %25 : vector<32x64xf32>
    %c0_18 = arith.constant 0 : index
    %c0_19 = arith.constant 0 : index
    %c0_20 = arith.constant 0 : index
    %27 = vector.load %arg5[%c0_18, %c0_19, %c0_20] : memref<2x16x64xf32, #tpu.memory_space<vmem>>, vector<1x16x64xf32>
    %28 = vector.shape_cast %27 : vector<1x16x64xf32> to vector<16x64xf32>
    %cst_21 = arith.constant dense<0.000000e+00> : vector<32x64xf32>
    %29 = tpu.matmul %19, %28, %cst_21 {dimension_numbers = #tpu.dot_dimension_numbers<[1], [0], [0], [1], [0, 0, 1, 1], [], []>} : vector<32x16xf32>, vector<16x64xf32>, vector<32x64xf32> -> vector<32x64xf32>
    %c0_22 = arith.constant 0 : index
    %c0_23 = arith.constant 0 : index
    %c0_24 = arith.constant 0 : index
    %30 = vector.load %arg6[%c0_22, %c0_23, %c0_24] : memref<2x1x64xf32, #tpu.memory_space<vmem>>, vector<1x1x64xf32>
    %31 = vector.shape_cast %30 : vector<1x1x64xf32> to vector<1x64xf32>
    %32 = vector.broadcast %31 : vector<1x64xf32> to vector<32x64xf32>
    %33 = arith.addf %29, %32 : vector<32x64xf32>
    %cst_25 = arith.constant dense<0.000000e+00> : vector<96x64xf32>
    %34 = tpu.matmul %12, %26, %cst_25 {dimension_numbers = #tpu.dot_dimension_numbers<[1], [0], [0], [1], [0, 0, 1, 1], [], []>} : vector<96x32xf32>, vector<32x64xf32>, vector<96x64xf32> -> vector<96x64xf32>
    %c0_26 = arith.constant 0 : index
    %c0_27 = arith.constant 0 : index
    %c0_28 = arith.constant 0 : index
    %35 = vector.load %arg7[%c0_26, %c0_27, %c0_28] : memref<2x3x64xf32, #tpu.memory_space<vmem>>, vector<1x3x64xf32>
    %36 = vector.shape_cast %35 : vector<1x3x64xf32> to vector<3x64xf32>
    %37 = vector.extract_strided_slice %34 {offsets = [0, 0], sizes = [32, 64], strides = [1, 1]} : vector<96x64xf32> to vector<32x64xf32>
    %38 = vector.extract_strided_slice %36 {offsets = [0, 0], sizes = [1, 64], strides = [1, 1]} : vector<3x64xf32> to vector<1x64xf32>
    %39 = vector.broadcast %38 : vector<1x64xf32> to vector<32x64xf32>
    %40 = arith.mulf %37, %39 : vector<32x64xf32>
    %41 = vector.extract_strided_slice %34 {offsets = [32, 0], sizes = [32, 64], strides = [1, 1]} : vector<96x64xf32> to vector<32x64xf32>
    %42 = vector.extract_strided_slice %36 {offsets = [1, 0], sizes = [1, 64], strides = [1, 1]} : vector<3x64xf32> to vector<1x64xf32>
    %43 = vector.broadcast %42 : vector<1x64xf32> to vector<32x64xf32>
    %44 = arith.mulf %41, %43 : vector<32x64xf32>
    %45 = arith.addf %40, %44 : vector<32x64xf32>
    %46 = vector.extract_strided_slice %34 {offsets = [64, 0], sizes = [32, 64], strides = [1, 1]} : vector<96x64xf32> to vector<32x64xf32>
    %47 = vector.extract_strided_slice %36 {offsets = [2, 0], sizes = [1, 64], strides = [1, 1]} : vector<3x64xf32> to vector<1x64xf32>
    %48 = vector.broadcast %47 : vector<1x64xf32> to vector<32x64xf32>
    %49 = arith.mulf %46, %48 : vector<32x64xf32>
    %50 = arith.addf %45, %49 : vector<32x64xf32>
    %c0_29 = arith.constant 0 : index
    %c0_30 = arith.constant 0 : index
    %c0_31 = arith.constant 0 : index
    %51 = vector.load %arg8[%c0_29, %c0_30, %c0_31] : memref<2x1x64xf32, #tpu.memory_space<vmem>>, vector<1x1x64xf32>
    %52 = vector.shape_cast %51 : vector<1x1x64xf32> to vector<1x64xf32>
    %53 = vector.broadcast %52 : vector<1x64xf32> to vector<32x64xf32>
    %54 = arith.addf %50, %53 : vector<32x64xf32>
    %cst_32 = arith.constant 5.000000e-01 : f32
    %55 = vector.broadcast %cst_32 : f32 to vector<32x64xf32>
    %56 = arith.mulf %55, %54 : vector<32x64xf32>
    %cst_33 = arith.constant 5.000000e-01 : f32
    %57 = vector.broadcast %cst_33 : f32 to vector<32x64xf32>
    %58 = arith.mulf %57, %54 : vector<32x64xf32>
    %59 = math.tanh %58 : vector<32x64xf32>
    %cst_34 = arith.constant 1.000000e+00 : f32
    %60 = vector.broadcast %cst_34 : f32 to vector<32x64xf32>
    %61 = arith.addf %60, %59 : vector<32x64xf32>
    %62 = arith.mulf %56, %61 : vector<32x64xf32>
    %c0_35 = arith.constant 0 : index
    %c0_36 = arith.constant 0 : index
    %c0_37 = arith.constant 0 : index
    %63 = vector.load %arg9[%c0_35, %c0_36, %c0_37] : memref<2x64x64xf32, #tpu.memory_space<vmem>>, vector<1x64x64xf32>
    %64 = vector.shape_cast %63 : vector<1x64x64xf32> to vector<64x64xf32>
    %cst_38 = arith.constant dense<0.000000e+00> : vector<32x64xf32>
    %65 = tpu.matmul %62, %64, %cst_38 {dimension_numbers = #tpu.dot_dimension_numbers<[1], [0], [0], [1], [0, 0, 1, 1], [], []>} : vector<32x64xf32>, vector<64x64xf32>, vector<32x64xf32> -> vector<32x64xf32>
    %c0_39 = arith.constant 0 : index
    %c0_40 = arith.constant 0 : index
    %c0_41 = arith.constant 0 : index
    %66 = vector.load %arg10[%c0_39, %c0_40, %c0_41] : memref<2x1x64xf32, #tpu.memory_space<vmem>>, vector<1x1x64xf32>
    %67 = vector.shape_cast %66 : vector<1x1x64xf32> to vector<1x64xf32>
    %68 = vector.broadcast %67 : vector<1x64xf32> to vector<32x64xf32>
    %69 = arith.addf %65, %68 : vector<32x64xf32>
    %cst_42 = arith.constant 2.000000e+01 : f32
    %70 = vector.broadcast %cst_42 : f32 to vector<32x64xf32>
    %71 = arith.cmpf ogt, %69, %70 : vector<32x64xf32>
    %cst_43 = arith.constant 2.000000e+01 : f32
    %72 = vector.broadcast %cst_43 : f32 to vector<32x64xf32>
    %73 = arith.minimumf %69, %72 : vector<32x64xf32>
    %74 = math.exp %73 : vector<32x64xf32>
    %cst_44 = arith.constant 1.000000e+00 : f32
    %75 = vector.broadcast %cst_44 : f32 to vector<32x64xf32>
    %76 = arith.addf %75, %74 : vector<32x64xf32>
    %77 = math.log %76 : vector<32x64xf32>
    %78 = arith.select %71, %69, %77 : vector<32x64xi1>, vector<32x64xf32>
    %c0_45 = arith.constant 0 : index
    %c0_46 = arith.constant 0 : index
    %c0_47 = arith.constant 0 : index
    %79 = vector.load %arg11[%c0_45, %c0_46, %c0_47] : memref<2x64x1024xf32, #tpu.memory_space<vmem>>, vector<1x64x1024xf32>
    %80 = vector.shape_cast %79 : vector<1x64x1024xf32> to vector<64x1024xf32>
    %cst_48 = arith.constant dense<0.000000e+00> : vector<32x1024xf32>
    %81 = tpu.matmul %62, %80, %cst_48 {dimension_numbers = #tpu.dot_dimension_numbers<[1], [0], [0], [1], [0, 0, 1, 1], [], []>} : vector<32x64xf32>, vector<64x1024xf32>, vector<32x1024xf32> -> vector<32x1024xf32>
    %82 = vector.extract_strided_slice %81 {offsets = [0, 0], sizes = [32, 512], strides = [1, 1]} : vector<32x1024xf32> to vector<32x512xf32>
    %83 = vector.extract_strided_slice %81 {offsets = [0, 512], sizes = [32, 512], strides = [1, 1]} : vector<32x1024xf32> to vector<32x512xf32>
    %cst_49 = arith.constant dense<0.000000e+00> : vector<32x512xf32>
    %84 = tpu.matmul %78, %10, %cst_49 {dimension_numbers = #tpu.dot_dimension_numbers<[1], [0], [0], [1], [0, 0, 1, 1], [], []>} : vector<32x64xf32>, vector<64x512xf32>, vector<32x512xf32> -> vector<32x512xf32>
    %85 = arith.mulf %78, %62 : vector<32x64xf32>
    %cst_50 = arith.constant dense<0.000000e+00> : vector<32x512xf32>
    %86 = tpu.matmul %85, %10, %cst_50 {dimension_numbers = #tpu.dot_dimension_numbers<[1], [0], [0], [1], [0, 0, 1, 1], [], []>} : vector<32x64xf32>, vector<64x512xf32>, vector<32x512xf32> -> vector<32x512xf32>
    %c0_51 = arith.constant 0 : index
    %c0_52 = arith.constant 0 : index
    %c0_53 = arith.constant 0 : index
    %87 = vector.load %arg12[%c0_51, %c0_52, %c0_53] : memref<2x1x512xf32, #tpu.memory_space<vmem>>, vector<1x1x512xf32>
    %88 = vector.shape_cast %87 : vector<1x1x512xf32> to vector<1x512xf32>
    %89 = vector.broadcast %88 : vector<1x512xf32> to vector<32x512xf32>
    %90 = arith.mulf %84, %89 : vector<32x512xf32>
    %91 = math.exp %90 : vector<32x512xf32>
    %92 = arith.mulf %86, %82 : vector<32x512xf32>
    %93 = vector.extract_strided_slice %91 {offsets = [0, 0], sizes = [16, 512], strides = [1, 1]} : vector<32x512xf32> to vector<16x512xf32>
    %94 = vector.extract_strided_slice %92 {offsets = [0, 0], sizes = [16, 512], strides = [1, 1]} : vector<32x512xf32> to vector<16x512xf32>
    %95 = vector.extract_strided_slice %94 {offsets = [0, 0], sizes = [1, 512], strides = [1, 1]} : vector<16x512xf32> to vector<1x512xf32>
    %c0_54 = arith.constant 0 : index
    %c0_55 = arith.constant 0 : index
    %96 = vector.load %arg18[%c0_54, %c0_55] : memref<32x512xf32, #tpu.memory_space<vmem>>, vector<1x512xf32>
    tpu.vector_store %arg18[%c0_54, %c0_55], %95 {strides = array<i32>} : memref<32x512xf32, #tpu.memory_space<vmem>>, vector<1x512xf32>,
    %97 = vector.extract_strided_slice %93 {offsets = [1, 0], sizes = [1, 512], strides = [1, 1]} : vector<16x512xf32> to vector<1x512xf32>
    %98 = arith.mulf %97, %95 : vector<1x512xf32>
    %99 = vector.extract_strided_slice %94 {offsets = [1, 0], sizes = [1, 512], strides = [1, 1]} : vector<16x512xf32> to vector<1x512xf32>
    %100 = arith.addf %98, %99 : vector<1x512xf32>
    %c1_56 = arith.constant 1 : index
    %c0_57 = arith.constant 0 : index
    %101 = vector.load %arg18[%c1_56, %c0_57] : memref<32x512xf32, #tpu.memory_space<vmem>>, vector<1x512xf32>
    tpu.vector_store %arg18[%c1_56, %c0_57], %100 {strides = array<i32>} : memref<32x512xf32, #tpu.memory_space<vmem>>, vector<1x512xf32>,
    %102 = vector.extract_strided_slice %93 {offsets = [2, 0], sizes = [1, 512], strides = [1, 1]} : vector<16x512xf32> to vector<1x512xf32>
    %103 = arith.mulf %102, %100 : vector<1x512xf32>
    %104 = vector.extract_strided_slice %94 {offsets = [2, 0], sizes = [1, 512], strides = [1, 1]} : vector<16x512xf32> to vector<1x512xf32>
    %105 = arith.addf %103, %104 : vector<1x512xf32>
    %c2 = arith.constant 2 : index
    %c0_58 = arith.constant 0 : index
    %106 = vector.load %arg18[%c2, %c0_58] : memref<32x512xf32, #tpu.memory_space<vmem>>, vector<1x512xf32>
    tpu.vector_store %arg18[%c2, %c0_58], %105 {strides = array<i32>} : memref<32x512xf32, #tpu.memory_space<vmem>>, vector<1x512xf32>,
    %107 = vector.extract_strided_slice %93 {offsets = [3, 0], sizes = [1, 512], strides = [1, 1]} : vector<16x512xf32> to vector<1x512xf32>
    %108 = arith.mulf %107, %105 : vector<1x512xf32>
    %109 = vector.extract_strided_slice %94 {offsets = [3, 0], sizes = [1, 512], strides = [1, 1]} : vector<16x512xf32> to vector<1x512xf32>
    %110 = arith.addf %108, %109 : vector<1x512xf32>
    %c3 = arith.constant 3 : index
    %c0_59 = arith.constant 0 : index
    %111 = vector.load %arg18[%c3, %c0_59] : memref<32x512xf32, #tpu.memory_space<vmem>>, vector<1x512xf32>
    tpu.vector_store %arg18[%c3, %c0_59], %110 {strides = array<i32>} : memref<32x512xf32, #tpu.memory_space<vmem>>, vector<1x512xf32>,
    %112 = vector.extract_strided_slice %93 {offsets = [4, 0], sizes = [1, 512], strides = [1, 1]} : vector<16x512xf32> to vector<1x512xf32>
    %113 = arith.mulf %112, %110 : vector<1x512xf32>
    %114 = vector.extract_strided_slice %94 {offsets = [4, 0], sizes = [1, 512], strides = [1, 1]} : vector<16x512xf32> to vector<1x512xf32>
    %115 = arith.addf %113, %114 : vector<1x512xf32>
    %c4 = arith.constant 4 : index
    %c0_60 = arith.constant 0 : index
    %116 = vector.load %arg18[%c4, %c0_60] : memref<32x512xf32, #tpu.memory_space<vmem>>, vector<1x512xf32>
    tpu.vector_store %arg18[%c4, %c0_60], %115 {strides = array<i32>} : memref<32x512xf32, #tpu.memory_space<vmem>>, vector<1x512xf32>,
    %117 = vector.extract_strided_slice %93 {offsets = [5, 0], sizes = [1, 512], strides = [1, 1]} : vector<16x512xf32> to vector<1x512xf32>
    %118 = arith.mulf %117, %115 : vector<1x512xf32>
    %119 = vector.extract_strided_slice %94 {offsets = [5, 0], sizes = [1, 512], strides = [1, 1]} : vector<16x512xf32> to vector<1x512xf32>
    %120 = arith.addf %118, %119 : vector<1x512xf32>
    %c5 = arith.constant 5 : index
    %c0_61 = arith.constant 0 : index
    %121 = vector.load %arg18[%c5, %c0_61] : memref<32x512xf32, #tpu.memory_space<vmem>>, vector<1x512xf32>
    tpu.vector_store %arg18[%c5, %c0_61], %120 {strides = array<i32>} : memref<32x512xf32, #tpu.memory_space<vmem>>, vector<1x512xf32>,
    %122 = vector.extract_strided_slice %93 {offsets = [6, 0], sizes = [1, 512], strides = [1, 1]} : vector<16x512xf32> to vector<1x512xf32>
    %123 = arith.mulf %122, %120 : vector<1x512xf32>
    %124 = vector.extract_strided_slice %94 {offsets = [6, 0], sizes = [1, 512], strides = [1, 1]} : vector<16x512xf32> to vector<1x512xf32>
    %125 = arith.addf %123, %124 : vector<1x512xf32>
    %c6 = arith.constant 6 : index
    %c0_62 = arith.constant 0 : index
    %126 = vector.load %arg18[%c6, %c0_62] : memref<32x512xf32, #tpu.memory_space<vmem>>, vector<1x512xf32>
    tpu.vector_store %arg18[%c6, %c0_62], %125 {strides = array<i32>} : memref<32x512xf32, #tpu.memory_space<vmem>>, vector<1x512xf32>,
    %127 = vector.extract_strided_slice %93 {offsets = [7, 0], sizes = [1, 512], strides = [1, 1]} : vector<16x512xf32> to vector<1x512xf32>
    %128 = arith.mulf %127, %125 : vector<1x512xf32>
    %129 = vector.extract_strided_slice %94 {offsets = [7, 0], sizes = [1, 512], strides = [1, 1]} : vector<16x512xf32> to vector<1x512xf32>
    %130 = arith.addf %128, %129 : vector<1x512xf32>
    %c7 = arith.constant 7 : index
    %c0_63 = arith.constant 0 : index
    %131 = vector.load %arg18[%c7, %c0_63] : memref<32x512xf32, #tpu.memory_space<vmem>>, vector<1x512xf32>
    tpu.vector_store %arg18[%c7, %c0_63], %130 {strides = array<i32>} : memref<32x512xf32, #tpu.memory_space<vmem>>, vector<1x512xf32>,
    %132 = vector.extract_strided_slice %93 {offsets = [8, 0], sizes = [1, 512], strides = [1, 1]} : vector<16x512xf32> to vector<1x512xf32>
    %133 = arith.mulf %132, %130 : vector<1x512xf32>
    %134 = vector.extract_strided_slice %94 {offsets = [8, 0], sizes = [1, 512], strides = [1, 1]} : vector<16x512xf32> to vector<1x512xf32>
    %135 = arith.addf %133, %134 : vector<1x512xf32>
    %c8 = arith.constant 8 : index
    %c0_64 = arith.constant 0 : index
    %136 = vector.load %arg18[%c8, %c0_64] : memref<32x512xf32, #tpu.memory_space<vmem>>, vector<1x512xf32>
    tpu.vector_store %arg18[%c8, %c0_64], %135 {strides = array<i32>} : memref<32x512xf32, #tpu.memory_space<vmem>>, vector<1x512xf32>,
    %137 = vector.extract_strided_slice %93 {offsets = [9, 0], sizes = [1, 512], strides = [1, 1]} : vector<16x512xf32> to vector<1x512xf32>
    %138 = arith.mulf %137, %135 : vector<1x512xf32>
    %139 = vector.extract_strided_slice %94 {offsets = [9, 0], sizes = [1, 512], strides = [1, 1]} : vector<16x512xf32> to vector<1x512xf32>
    %140 = arith.addf %138, %139 : vector<1x512xf32>
    %c9 = arith.constant 9 : index
    %c0_65 = arith.constant 0 : index
    %141 = vector.load %arg18[%c9, %c0_65] : memref<32x512xf32, #tpu.memory_space<vmem>>, vector<1x512xf32>
    tpu.vector_store %arg18[%c9, %c0_65], %140 {strides = array<i32>} : memref<32x512xf32, #tpu.memory_space<vmem>>, vector<1x512xf32>,
    %142 = vector.extract_strided_slice %93 {offsets = [10, 0], sizes = [1, 512], strides = [1, 1]} : vector<16x512xf32> to vector<1x512xf32>
    %143 = arith.mulf %142, %140 : vector<1x512xf32>
    %144 = vector.extract_strided_slice %94 {offsets = [10, 0], sizes = [1, 512], strides = [1, 1]} : vector<16x512xf32> to vector<1x512xf32>
    %145 = arith.addf %143, %144 : vector<1x512xf32>
    %c10 = arith.constant 10 : index
    %c0_66 = arith.constant 0 : index
    %146 = vector.load %arg18[%c10, %c0_66] : memref<32x512xf32, #tpu.memory_space<vmem>>, vector<1x512xf32>
    tpu.vector_store %arg18[%c10, %c0_66], %145 {strides = array<i32>} : memref<32x512xf32, #tpu.memory_space<vmem>>, vector<1x512xf32>,
    %147 = vector.extract_strided_slice %93 {offsets = [11, 0], sizes = [1, 512], strides = [1, 1]} : vector<16x512xf32> to vector<1x512xf32>
    %148 = arith.mulf %147, %145 : vector<1x512xf32>
    %149 = vector.extract_strided_slice %94 {offsets = [11, 0], sizes = [1, 512], strides = [1, 1]} : vector<16x512xf32> to vector<1x512xf32>
    %150 = arith.addf %148, %149 : vector<1x512xf32>
    %c11 = arith.constant 11 : index
    %c0_67 = arith.constant 0 : index
    %151 = vector.load %arg18[%c11, %c0_67] : memref<32x512xf32, #tpu.memory_space<vmem>>, vector<1x512xf32>
    tpu.vector_store %arg18[%c11, %c0_67], %150 {strides = array<i32>} : memref<32x512xf32, #tpu.memory_space<vmem>>, vector<1x512xf32>,
    %152 = vector.extract_strided_slice %93 {offsets = [12, 0], sizes = [1, 512], strides = [1, 1]} : vector<16x512xf32> to vector<1x512xf32>
    %153 = arith.mulf %152, %150 : vector<1x512xf32>
    %154 = vector.extract_strided_slice %94 {offsets = [12, 0], sizes = [1, 512], strides = [1, 1]} : vector<16x512xf32> to vector<1x512xf32>
    %155 = arith.addf %153, %154 : vector<1x512xf32>
    %c12 = arith.constant 12 : index
    %c0_68 = arith.constant 0 : index
    %156 = vector.load %arg18[%c12, %c0_68] : memref<32x512xf32, #tpu.memory_space<vmem>>, vector<1x512xf32>
    tpu.vector_store %arg18[%c12, %c0_68], %155 {strides = array<i32>} : memref<32x512xf32, #tpu.memory_space<vmem>>, vector<1x512xf32>,
    %157 = vector.extract_strided_slice %93 {offsets = [13, 0], sizes = [1, 512], strides = [1, 1]} : vector<16x512xf32> to vector<1x512xf32>
    %158 = arith.mulf %157, %155 : vector<1x512xf32>
    %159 = vector.extract_strided_slice %94 {offsets = [13, 0], sizes = [1, 512], strides = [1, 1]} : vector<16x512xf32> to vector<1x512xf32>
    %160 = arith.addf %158, %159 : vector<1x512xf32>
    %c13 = arith.constant 13 : index
    %c0_69 = arith.constant 0 : index
    %161 = vector.load %arg18[%c13, %c0_69] : memref<32x512xf32, #tpu.memory_space<vmem>>, vector<1x512xf32>
    tpu.vector_store %arg18[%c13, %c0_69], %160 {strides = array<i32>} : memref<32x512xf32, #tpu.memory_space<vmem>>, vector<1x512xf32>,
    %162 = vector.extract_strided_slice %93 {offsets = [14, 0], sizes = [1, 512], strides = [1, 1]} : vector<16x512xf32> to vector<1x512xf32>
    %163 = arith.mulf %162, %160 : vector<1x512xf32>
    %164 = vector.extract_strided_slice %94 {offsets = [14, 0], sizes = [1, 512], strides = [1, 1]} : vector<16x512xf32> to vector<1x512xf32>
    %165 = arith.addf %163, %164 : vector<1x512xf32>
    %c14 = arith.constant 14 : index
    %c0_70 = arith.constant 0 : index
    %166 = vector.load %arg18[%c14, %c0_70] : memref<32x512xf32, #tpu.memory_space<vmem>>, vector<1x512xf32>
    tpu.vector_store %arg18[%c14, %c0_70], %165 {strides = array<i32>} : memref<32x512xf32, #tpu.memory_space<vmem>>, vector<1x512xf32>,
    %167 = vector.extract_strided_slice %93 {offsets = [15, 0], sizes = [1, 512], strides = [1, 1]} : vector<16x512xf32> to vector<1x512xf32>
    %168 = arith.mulf %167, %165 : vector<1x512xf32>
    %169 = vector.extract_strided_slice %94 {offsets = [15, 0], sizes = [1, 512], strides = [1, 1]} : vector<16x512xf32> to vector<1x512xf32>
    %170 = arith.addf %168, %169 : vector<1x512xf32>
    %c15 = arith.constant 15 : index
    %c0_71 = arith.constant 0 : index
    %171 = vector.load %arg18[%c15, %c0_71] : memref<32x512xf32, #tpu.memory_space<vmem>>, vector<1x512xf32>
    tpu.vector_store %arg18[%c15, %c0_71], %170 {strides = array<i32>} : memref<32x512xf32, #tpu.memory_space<vmem>>, vector<1x512xf32>,
    %172 = vector.extract_strided_slice %91 {offsets = [16, 0], sizes = [16, 512], strides = [1, 1]} : vector<32x512xf32> to vector<16x512xf32>
    %173 = vector.extract_strided_slice %92 {offsets = [16, 0], sizes = [16, 512], strides = [1, 1]} : vector<32x512xf32> to vector<16x512xf32>
    %174 = vector.extract_strided_slice %173 {offsets = [0, 0], sizes = [1, 512], strides = [1, 1]} : vector<16x512xf32> to vector<1x512xf32>
    %c16 = arith.constant 16 : index
    %c0_72 = arith.constant 0 : index
    %175 = vector.load %arg18[%c16, %c0_72] : memref<32x512xf32, #tpu.memory_space<vmem>>, vector<1x512xf32>
    tpu.vector_store %arg18[%c16, %c0_72], %174 {strides = array<i32>} : memref<32x512xf32, #tpu.memory_space<vmem>>, vector<1x512xf32>,
    %176 = vector.extract_strided_slice %172 {offsets = [1, 0], sizes = [1, 512], strides = [1, 1]} : vector<16x512xf32> to vector<1x512xf32>
    %177 = arith.mulf %176, %174 : vector<1x512xf32>
    %178 = vector.extract_strided_slice %173 {offsets = [1, 0], sizes = [1, 512], strides = [1, 1]} : vector<16x512xf32> to vector<1x512xf32>
    %179 = arith.addf %177, %178 : vector<1x512xf32>
    %c17 = arith.constant 17 : index
    %c0_73 = arith.constant 0 : index
    %180 = vector.load %arg18[%c17, %c0_73] : memref<32x512xf32, #tpu.memory_space<vmem>>, vector<1x512xf32>
    tpu.vector_store %arg18[%c17, %c0_73], %179 {strides = array<i32>} : memref<32x512xf32, #tpu.memory_space<vmem>>, vector<1x512xf32>,
    %181 = vector.extract_strided_slice %172 {offsets = [2, 0], sizes = [1, 512], strides = [1, 1]} : vector<16x512xf32> to vector<1x512xf32>
    %182 = arith.mulf %181, %179 : vector<1x512xf32>
    %183 = vector.extract_strided_slice %173 {offsets = [2, 0], sizes = [1, 512], strides = [1, 1]} : vector<16x512xf32> to vector<1x512xf32>
    %184 = arith.addf %182, %183 : vector<1x512xf32>
    %c18 = arith.constant 18 : index
    %c0_74 = arith.constant 0 : index
    %185 = vector.load %arg18[%c18, %c0_74] : memref<32x512xf32, #tpu.memory_space<vmem>>, vector<1x512xf32>
    tpu.vector_store %arg18[%c18, %c0_74], %184 {strides = array<i32>} : memref<32x512xf32, #tpu.memory_space<vmem>>, vector<1x512xf32>,
    %186 = vector.extract_strided_slice %172 {offsets = [3, 0], sizes = [1, 512], strides = [1, 1]} : vector<16x512xf32> to vector<1x512xf32>
    %187 = arith.mulf %186, %184 : vector<1x512xf32>
    %188 = vector.extract_strided_slice %173 {offsets = [3, 0], sizes = [1, 512], strides = [1, 1]} : vector<16x512xf32> to vector<1x512xf32>
    %189 = arith.addf %187, %188 : vector<1x512xf32>
    %c19 = arith.constant 19 : index
    %c0_75 = arith.constant 0 : index
    %190 = vector.load %arg18[%c19, %c0_75] : memref<32x512xf32, #tpu.memory_space<vmem>>, vector<1x512xf32>
    tpu.vector_store %arg18[%c19, %c0_75], %189 {strides = array<i32>} : memref<32x512xf32, #tpu.memory_space<vmem>>, vector<1x512xf32>,
    %191 = vector.extract_strided_slice %172 {offsets = [4, 0], sizes = [1, 512], strides = [1, 1]} : vector<16x512xf32> to vector<1x512xf32>
    %192 = arith.mulf %191, %189 : vector<1x512xf32>
    %193 = vector.extract_strided_slice %173 {offsets = [4, 0], sizes = [1, 512], strides = [1, 1]} : vector<16x512xf32> to vector<1x512xf32>
    %194 = arith.addf %192, %193 : vector<1x512xf32>
    %c20 = arith.constant 20 : index
    %c0_76 = arith.constant 0 : index
    %195 = vector.load %arg18[%c20, %c0_76] : memref<32x512xf32, #tpu.memory_space<vmem>>, vector<1x512xf32>
    tpu.vector_store %arg18[%c20, %c0_76], %194 {strides = array<i32>} : memref<32x512xf32, #tpu.memory_space<vmem>>, vector<1x512xf32>,
    %196 = vector.extract_strided_slice %172 {offsets = [5, 0], sizes = [1, 512], strides = [1, 1]} : vector<16x512xf32> to vector<1x512xf32>
    %197 = arith.mulf %196, %194 : vector<1x512xf32>
    %198 = vector.extract_strided_slice %173 {offsets = [5, 0], sizes = [1, 512], strides = [1, 1]} : vector<16x512xf32> to vector<1x512xf32>
    %199 = arith.addf %197, %198 : vector<1x512xf32>
    %c21 = arith.constant 21 : index
    %c0_77 = arith.constant 0 : index
    %200 = vector.load %arg18[%c21, %c0_77] : memref<32x512xf32, #tpu.memory_space<vmem>>, vector<1x512xf32>
    tpu.vector_store %arg18[%c21, %c0_77], %199 {strides = array<i32>} : memref<32x512xf32, #tpu.memory_space<vmem>>, vector<1x512xf32>,
    %201 = vector.extract_strided_slice %172 {offsets = [6, 0], sizes = [1, 512], strides = [1, 1]} : vector<16x512xf32> to vector<1x512xf32>
    %202 = arith.mulf %201, %199 : vector<1x512xf32>
    %203 = vector.extract_strided_slice %173 {offsets = [6, 0], sizes = [1, 512], strides = [1, 1]} : vector<16x512xf32> to vector<1x512xf32>
    %204 = arith.addf %202, %203 : vector<1x512xf32>
    %c22 = arith.constant 22 : index
    %c0_78 = arith.constant 0 : index
    %205 = vector.load %arg18[%c22, %c0_78] : memref<32x512xf32, #tpu.memory_space<vmem>>, vector<1x512xf32>
    tpu.vector_store %arg18[%c22, %c0_78], %204 {strides = array<i32>} : memref<32x512xf32, #tpu.memory_space<vmem>>, vector<1x512xf32>,
    %206 = vector.extract_strided_slice %172 {offsets = [7, 0], sizes = [1, 512], strides = [1, 1]} : vector<16x512xf32> to vector<1x512xf32>
    %207 = arith.mulf %206, %204 : vector<1x512xf32>
    %208 = vector.extract_strided_slice %173 {offsets = [7, 0], sizes = [1, 512], strides = [1, 1]} : vector<16x512xf32> to vector<1x512xf32>
    %209 = arith.addf %207, %208 : vector<1x512xf32>
    %c23 = arith.constant 23 : index
    %c0_79 = arith.constant 0 : index
    %210 = vector.load %arg18[%c23, %c0_79] : memref<32x512xf32, #tpu.memory_space<vmem>>, vector<1x512xf32>
    tpu.vector_store %arg18[%c23, %c0_79], %209 {strides = array<i32>} : memref<32x512xf32, #tpu.memory_space<vmem>>, vector<1x512xf32>,
    %211 = vector.extract_strided_slice %172 {offsets = [8, 0], sizes = [1, 512], strides = [1, 1]} : vector<16x512xf32> to vector<1x512xf32>
    %212 = arith.mulf %211, %209 : vector<1x512xf32>
    %213 = vector.extract_strided_slice %173 {offsets = [8, 0], sizes = [1, 512], strides = [1, 1]} : vector<16x512xf32> to vector<1x512xf32>
    %214 = arith.addf %212, %213 : vector<1x512xf32>
    %c24 = arith.constant 24 : index
    %c0_80 = arith.constant 0 : index
    %215 = vector.load %arg18[%c24, %c0_80] : memref<32x512xf32, #tpu.memory_space<vmem>>, vector<1x512xf32>
    tpu.vector_store %arg18[%c24, %c0_80], %214 {strides = array<i32>} : memref<32x512xf32, #tpu.memory_space<vmem>>, vector<1x512xf32>,
    %216 = vector.extract_strided_slice %172 {offsets = [9, 0], sizes = [1, 512], strides = [1, 1]} : vector<16x512xf32> to vector<1x512xf32>
    %217 = arith.mulf %216, %214 : vector<1x512xf32>
    %218 = vector.extract_strided_slice %173 {offsets = [9, 0], sizes = [1, 512], strides = [1, 1]} : vector<16x512xf32> to vector<1x512xf32>
    %219 = arith.addf %217, %218 : vector<1x512xf32>
    %c25 = arith.constant 25 : index
    %c0_81 = arith.constant 0 : index
    %220 = vector.load %arg18[%c25, %c0_81] : memref<32x512xf32, #tpu.memory_space<vmem>>, vector<1x512xf32>
    tpu.vector_store %arg18[%c25, %c0_81], %219 {strides = array<i32>} : memref<32x512xf32, #tpu.memory_space<vmem>>, vector<1x512xf32>,
    %221 = vector.extract_strided_slice %172 {offsets = [10, 0], sizes = [1, 512], strides = [1, 1]} : vector<16x512xf32> to vector<1x512xf32>
    %222 = arith.mulf %221, %219 : vector<1x512xf32>
    %223 = vector.extract_strided_slice %173 {offsets = [10, 0], sizes = [1, 512], strides = [1, 1]} : vector<16x512xf32> to vector<1x512xf32>
    %224 = arith.addf %222, %223 : vector<1x512xf32>
    %c26 = arith.constant 26 : index
    %c0_82 = arith.constant 0 : index
    %225 = vector.load %arg18[%c26, %c0_82] : memref<32x512xf32, #tpu.memory_space<vmem>>, vector<1x512xf32>
    tpu.vector_store %arg18[%c26, %c0_82], %224 {strides = array<i32>} : memref<32x512xf32, #tpu.memory_space<vmem>>, vector<1x512xf32>,
    %226 = vector.extract_strided_slice %172 {offsets = [11, 0], sizes = [1, 512], strides = [1, 1]} : vector<16x512xf32> to vector<1x512xf32>
    %227 = arith.mulf %226, %224 : vector<1x512xf32>
    %228 = vector.extract_strided_slice %173 {offsets = [11, 0], sizes = [1, 512], strides = [1, 1]} : vector<16x512xf32> to vector<1x512xf32>
    %229 = arith.addf %227, %228 : vector<1x512xf32>
    %c27 = arith.constant 27 : index
    %c0_83 = arith.constant 0 : index
    %230 = vector.load %arg18[%c27, %c0_83] : memref<32x512xf32, #tpu.memory_space<vmem>>, vector<1x512xf32>
    tpu.vector_store %arg18[%c27, %c0_83], %229 {strides = array<i32>} : memref<32x512xf32, #tpu.memory_space<vmem>>, vector<1x512xf32>,
    %231 = vector.extract_strided_slice %172 {offsets = [12, 0], sizes = [1, 512], strides = [1, 1]} : vector<16x512xf32> to vector<1x512xf32>
    %232 = arith.mulf %231, %229 : vector<1x512xf32>
    %233 = vector.extract_strided_slice %173 {offsets = [12, 0], sizes = [1, 512], strides = [1, 1]} : vector<16x512xf32> to vector<1x512xf32>
    %234 = arith.addf %232, %233 : vector<1x512xf32>
    %c28 = arith.constant 28 : index
    %c0_84 = arith.constant 0 : index
    %235 = vector.load %arg18[%c28, %c0_84] : memref<32x512xf32, #tpu.memory_space<vmem>>, vector<1x512xf32>
    tpu.vector_store %arg18[%c28, %c0_84], %234 {strides = array<i32>} : memref<32x512xf32, #tpu.memory_space<vmem>>, vector<1x512xf32>,
    %236 = vector.extract_strided_slice %172 {offsets = [13, 0], sizes = [1, 512], strides = [1, 1]} : vector<16x512xf32> to vector<1x512xf32>
    %237 = arith.mulf %236, %234 : vector<1x512xf32>
    %238 = vector.extract_strided_slice %173 {offsets = [13, 0], sizes = [1, 512], strides = [1, 1]} : vector<16x512xf32> to vector<1x512xf32>
    %239 = arith.addf %237, %238 : vector<1x512xf32>
    %c29 = arith.constant 29 : index
    %c0_85 = arith.constant 0 : index
    %240 = vector.load %arg18[%c29, %c0_85] : memref<32x512xf32, #tpu.memory_space<vmem>>, vector<1x512xf32>
    tpu.vector_store %arg18[%c29, %c0_85], %239 {strides = array<i32>} : memref<32x512xf32, #tpu.memory_space<vmem>>, vector<1x512xf32>,
    %241 = vector.extract_strided_slice %172 {offsets = [14, 0], sizes = [1, 512], strides = [1, 1]} : vector<16x512xf32> to vector<1x512xf32>
    %242 = arith.mulf %241, %239 : vector<1x512xf32>
    %243 = vector.extract_strided_slice %173 {offsets = [14, 0], sizes = [1, 512], strides = [1, 1]} : vector<16x512xf32> to vector<1x512xf32>
    %244 = arith.addf %242, %243 : vector<1x512xf32>
    %c30 = arith.constant 30 : index
    %c0_86 = arith.constant 0 : index
    %245 = vector.load %arg18[%c30, %c0_86] : memref<32x512xf32, #tpu.memory_space<vmem>>, vector<1x512xf32>
    tpu.vector_store %arg18[%c30, %c0_86], %244 {strides = array<i32>} : memref<32x512xf32, #tpu.memory_space<vmem>>, vector<1x512xf32>,
    %246 = vector.extract_strided_slice %172 {offsets = [15, 0], sizes = [1, 512], strides = [1, 1]} : vector<16x512xf32> to vector<1x512xf32>
    %247 = arith.mulf %246, %244 : vector<1x512xf32>
    %248 = vector.extract_strided_slice %173 {offsets = [15, 0], sizes = [1, 512], strides = [1, 1]} : vector<16x512xf32> to vector<1x512xf32>
    %249 = arith.addf %247, %248 : vector<1x512xf32>
    %c31 = arith.constant 31 : index
    %c0_87 = arith.constant 0 : index
    %250 = vector.load %arg18[%c31, %c0_87] : memref<32x512xf32, #tpu.memory_space<vmem>>, vector<1x512xf32>
    tpu.vector_store %arg18[%c31, %c0_87], %249 {strides = array<i32>} : memref<32x512xf32, #tpu.memory_space<vmem>>, vector<1x512xf32>,
    %c0_88 = arith.constant 0 : index
    %c0_89 = arith.constant 0 : index
    %251 = vector.load %arg18[%c0_88, %c0_89] : memref<32x512xf32, #tpu.memory_space<vmem>>, vector<32x512xf32>
    %252 = arith.mulf %251, %83 : vector<32x512xf32>
    %cst_90 = arith.constant dense<0.000000e+00> : vector<32x64xf32>
    %253 = tpu.matmul %252, %11, %cst_90 {dimension_numbers = #tpu.dot_dimension_numbers<[1], [0], [0], [1], [0, 0, 1, 1], [], []>} : vector<32x512xf32>, vector<512x64xf32>, vector<32x64xf32> -> vector<32x64xf32>
    %c0_91 = arith.constant 0 : index
    %c0_92 = arith.constant 0 : index
    %c0_93 = arith.constant 0 : index
    %254 = vector.load %arg15[%c0_91, %c0_92, %c0_93] : memref<2x1x64xf32, #tpu.memory_space<vmem>>, vector<1x1x64xf32>
    %255 = vector.shape_cast %254 : vector<1x1x64xf32> to vector<1x64xf32>
    %256 = vector.broadcast %255 : vector<1x64xf32> to vector<32x64xf32>
    %257 = arith.mulf %62, %256 : vector<32x64xf32>
    %258 = arith.addf %253, %257 : vector<32x64xf32>
    %cst_94 = arith.constant 5.000000e-01 : f32
    %259 = vector.broadcast %cst_94 : f32 to vector<32x64xf32>
    %260 = arith.mulf %259, %33 : vector<32x64xf32>
    %cst_95 = arith.constant 5.000000e-01 : f32
    %261 = vector.broadcast %cst_95 : f32 to vector<32x64xf32>
    %262 = arith.mulf %261, %33 : vector<32x64xf32>
    %263 = math.tanh %262 : vector<32x64xf32>
    %cst_96 = arith.constant 1.000000e+00 : f32
    %264 = vector.broadcast %cst_96 : f32 to vector<32x64xf32>
    %265 = arith.addf %264, %263 : vector<32x64xf32>
    %266 = arith.mulf %260, %265 : vector<32x64xf32>
    %267 = arith.mulf %258, %266 : vector<32x64xf32>
    %c0_97 = arith.constant 0 : index
    %c0_98 = arith.constant 0 : index
    %c0_99 = arith.constant 0 : index
    %268 = vector.load %arg16[%c0_97, %c0_98, %c0_99] : memref<2x64x16xf32, #tpu.memory_space<vmem>>, vector<1x64x16xf32>
    %269 = vector.shape_cast %268 : vector<1x64x16xf32> to vector<64x16xf32>
    %cst_100 = arith.constant dense<0.000000e+00> : vector<32x16xf32>
    %270 = tpu.matmul %267, %269, %cst_100 {dimension_numbers = #tpu.dot_dimension_numbers<[1], [0], [0], [1], [0, 0, 1, 1], [], []>} : vector<32x64xf32>, vector<64x16xf32>, vector<32x16xf32> -> vector<32x16xf32>
    %c1_101 = arith.constant 1 : index
    %c0_102 = arith.constant 0 : index
    %c0_103 = arith.constant 0 : index
    %271 = vector.load %arg3[%c1_101, %c0_102, %c0_103] : memref<2x16x64xf32, #tpu.memory_space<vmem>>, vector<1x16x64xf32>
    %272 = vector.shape_cast %271 : vector<1x16x64xf32> to vector<16x64xf32>
    %cst_104 = arith.constant dense<0.000000e+00> : vector<32x64xf32>
    %273 = tpu.matmul %270, %272, %cst_104 {dimension_numbers = #tpu.dot_dimension_numbers<[1], [0], [0], [1], [0, 0, 1, 1], [], []>} : vector<32x16xf32>, vector<16x64xf32>, vector<32x64xf32> -> vector<32x64xf32>
    %c1_105 = arith.constant 1 : index
    %c0_106 = arith.constant 0 : index
    %c0_107 = arith.constant 0 : index
    %274 = vector.load %arg4[%c1_105, %c0_106, %c0_107] : memref<2x1x64xf32, #tpu.memory_space<vmem>>, vector<1x1x64xf32>
    %275 = vector.shape_cast %274 : vector<1x1x64xf32> to vector<1x64xf32>
    %276 = vector.broadcast %275 : vector<1x64xf32> to vector<32x64xf32>
    %277 = arith.addf %273, %276 : vector<32x64xf32>
    %c1_108 = arith.constant 1 : index
    %c0_109 = arith.constant 0 : index
    %c0_110 = arith.constant 0 : index
    %278 = vector.load %arg5[%c1_108, %c0_109, %c0_110] : memref<2x16x64xf32, #tpu.memory_space<vmem>>, vector<1x16x64xf32>
    %279 = vector.shape_cast %278 : vector<1x16x64xf32> to vector<16x64xf32>
    %cst_111 = arith.constant dense<0.000000e+00> : vector<32x64xf32>
    %280 = tpu.matmul %270, %279, %cst_111 {dimension_numbers = #tpu.dot_dimension_numbers<[1], [0], [0], [1], [0, 0, 1, 1], [], []>} : vector<32x16xf32>, vector<16x64xf32>, vector<32x64xf32> -> vector<32x64xf32>
    %c1_112 = arith.constant 1 : index
    %c0_113 = arith.constant 0 : index
    %c0_114 = arith.constant 0 : index
    %281 = vector.load %arg6[%c1_112, %c0_113, %c0_114] : memref<2x1x64xf32, #tpu.memory_space<vmem>>, vector<1x1x64xf32>
    %282 = vector.shape_cast %281 : vector<1x1x64xf32> to vector<1x64xf32>
    %283 = vector.broadcast %282 : vector<1x64xf32> to vector<32x64xf32>
    %284 = arith.addf %280, %283 : vector<32x64xf32>
    %cst_115 = arith.constant dense<0.000000e+00> : vector<96x64xf32>
    %285 = tpu.matmul %12, %277, %cst_115 {dimension_numbers = #tpu.dot_dimension_numbers<[1], [0], [0], [1], [0, 0, 1, 1], [], []>} : vector<96x32xf32>, vector<32x64xf32>, vector<96x64xf32> -> vector<96x64xf32>
    %c1_116 = arith.constant 1 : index
    %c0_117 = arith.constant 0 : index
    %c0_118 = arith.constant 0 : index
    %286 = vector.load %arg7[%c1_116, %c0_117, %c0_118] : memref<2x3x64xf32, #tpu.memory_space<vmem>>, vector<1x3x64xf32>
    %287 = vector.shape_cast %286 : vector<1x3x64xf32> to vector<3x64xf32>
    %288 = vector.extract_strided_slice %285 {offsets = [0, 0], sizes = [32, 64], strides = [1, 1]} : vector<96x64xf32> to vector<32x64xf32>
    %289 = vector.extract_strided_slice %287 {offsets = [0, 0], sizes = [1, 64], strides = [1, 1]} : vector<3x64xf32> to vector<1x64xf32>
    %290 = vector.broadcast %289 : vector<1x64xf32> to vector<32x64xf32>
    %291 = arith.mulf %288, %290 : vector<32x64xf32>
    %292 = vector.extract_strided_slice %285 {offsets = [32, 0], sizes = [32, 64], strides = [1, 1]} : vector<96x64xf32> to vector<32x64xf32>
    %293 = vector.extract_strided_slice %287 {offsets = [1, 0], sizes = [1, 64], strides = [1, 1]} : vector<3x64xf32> to vector<1x64xf32>
    %294 = vector.broadcast %293 : vector<1x64xf32> to vector<32x64xf32>
    %295 = arith.mulf %292, %294 : vector<32x64xf32>
    %296 = arith.addf %291, %295 : vector<32x64xf32>
    %297 = vector.extract_strided_slice %285 {offsets = [64, 0], sizes = [32, 64], strides = [1, 1]} : vector<96x64xf32> to vector<32x64xf32>
    %298 = vector.extract_strided_slice %287 {offsets = [2, 0], sizes = [1, 64], strides = [1, 1]} : vector<3x64xf32> to vector<1x64xf32>
    %299 = vector.broadcast %298 : vector<1x64xf32> to vector<32x64xf32>
    %300 = arith.mulf %297, %299 : vector<32x64xf32>
    %301 = arith.addf %296, %300 : vector<32x64xf32>
    %c1_119 = arith.constant 1 : index
    %c0_120 = arith.constant 0 : index
    %c0_121 = arith.constant 0 : index
    %302 = vector.load %arg8[%c1_119, %c0_120, %c0_121] : memref<2x1x64xf32, #tpu.memory_space<vmem>>, vector<1x1x64xf32>
    %303 = vector.shape_cast %302 : vector<1x1x64xf32> to vector<1x64xf32>
    %304 = vector.broadcast %303 : vector<1x64xf32> to vector<32x64xf32>
    %305 = arith.addf %301, %304 : vector<32x64xf32>
    %cst_122 = arith.constant 5.000000e-01 : f32
    %306 = vector.broadcast %cst_122 : f32 to vector<32x64xf32>
    %307 = arith.mulf %306, %305 : vector<32x64xf32>
    %cst_123 = arith.constant 5.000000e-01 : f32
    %308 = vector.broadcast %cst_123 : f32 to vector<32x64xf32>
    %309 = arith.mulf %308, %305 : vector<32x64xf32>
    %310 = math.tanh %309 : vector<32x64xf32>
    %cst_124 = arith.constant 1.000000e+00 : f32
    %311 = vector.broadcast %cst_124 : f32 to vector<32x64xf32>
    %312 = arith.addf %311, %310 : vector<32x64xf32>
    %313 = arith.mulf %307, %312 : vector<32x64xf32>
    %c1_125 = arith.constant 1 : index
    %c0_126 = arith.constant 0 : index
    %c0_127 = arith.constant 0 : index
    %314 = vector.load %arg9[%c1_125, %c0_126, %c0_127] : memref<2x64x64xf32, #tpu.memory_space<vmem>>, vector<1x64x64xf32>
    %315 = vector.shape_cast %314 : vector<1x64x64xf32> to vector<64x64xf32>
    %cst_128 = arith.constant dense<0.000000e+00> : vector<32x64xf32>
    %316 = tpu.matmul %313, %315, %cst_128 {dimension_numbers = #tpu.dot_dimension_numbers<[1], [0], [0], [1], [0, 0, 1, 1], [], []>} : vector<32x64xf32>, vector<64x64xf32>, vector<32x64xf32> -> vector<32x64xf32>
    %c1_129 = arith.constant 1 : index
    %c0_130 = arith.constant 0 : index
    %c0_131 = arith.constant 0 : index
    %317 = vector.load %arg10[%c1_129, %c0_130, %c0_131] : memref<2x1x64xf32, #tpu.memory_space<vmem>>, vector<1x1x64xf32>
    %318 = vector.shape_cast %317 : vector<1x1x64xf32> to vector<1x64xf32>
    %319 = vector.broadcast %318 : vector<1x64xf32> to vector<32x64xf32>
    %320 = arith.addf %316, %319 : vector<32x64xf32>
    %cst_132 = arith.constant 2.000000e+01 : f32
    %321 = vector.broadcast %cst_132 : f32 to vector<32x64xf32>
    %322 = arith.cmpf ogt, %320, %321 : vector<32x64xf32>
    %cst_133 = arith.constant 2.000000e+01 : f32
    %323 = vector.broadcast %cst_133 : f32 to vector<32x64xf32>
    %324 = arith.minimumf %320, %323 : vector<32x64xf32>
    %325 = math.exp %324 : vector<32x64xf32>
    %cst_134 = arith.constant 1.000000e+00 : f32
    %326 = vector.broadcast %cst_134 : f32 to vector<32x64xf32>
    %327 = arith.addf %326, %325 : vector<32x64xf32>
    %328 = math.log %327 : vector<32x64xf32>
    %329 = arith.select %322, %320, %328 : vector<32x64xi1>, vector<32x64xf32>
    %c1_135 = arith.constant 1 : index
    %c0_136 = arith.constant 0 : index
    %c0_137 = arith.constant 0 : index
    %330 = vector.load %arg11[%c1_135, %c0_136, %c0_137] : memref<2x64x1024xf32, #tpu.memory_space<vmem>>, vector<1x64x1024xf32>
    %331 = vector.shape_cast %330 : vector<1x64x1024xf32> to vector<64x1024xf32>
    %cst_138 = arith.constant dense<0.000000e+00> : vector<32x1024xf32>
    %332 = tpu.matmul %313, %331, %cst_138 {dimension_numbers = #tpu.dot_dimension_numbers<[1], [0], [0], [1], [0, 0, 1, 1], [], []>} : vector<32x64xf32>, vector<64x1024xf32>, vector<32x1024xf32> -> vector<32x1024xf32>
    %333 = vector.extract_strided_slice %332 {offsets = [0, 0], sizes = [32, 512], strides = [1, 1]} : vector<32x1024xf32> to vector<32x512xf32>
    %334 = vector.extract_strided_slice %332 {offsets = [0, 512], sizes = [32, 512], strides = [1, 1]} : vector<32x1024xf32> to vector<32x512xf32>
    %cst_139 = arith.constant dense<0.000000e+00> : vector<32x512xf32>
    %335 = tpu.matmul %329, %10, %cst_139 {dimension_numbers = #tpu.dot_dimension_numbers<[1], [0], [0], [1], [0, 0, 1, 1], [], []>} : vector<32x64xf32>, vector<64x512xf32>, vector<32x512xf32> -> vector<32x512xf32>
    %336 = arith.mulf %329, %313 : vector<32x64xf32>
    %cst_140 = arith.constant dense<0.000000e+00> : vector<32x512xf32>
    %337 = tpu.matmul %336, %10, %cst_140 {dimension_numbers = #tpu.dot_dimension_numbers<[1], [0], [0], [1], [0, 0, 1, 1], [], []>} : vector<32x64xf32>, vector<64x512xf32>, vector<32x512xf32> -> vector<32x512xf32>
    %c1_141 = arith.constant 1 : index
    %c0_142 = arith.constant 0 : index
    %c0_143 = arith.constant 0 : index
    %338 = vector.load %arg12[%c1_141, %c0_142, %c0_143] : memref<2x1x512xf32, #tpu.memory_space<vmem>>, vector<1x1x512xf32>
    %339 = vector.shape_cast %338 : vector<1x1x512xf32> to vector<1x512xf32>
    %340 = vector.broadcast %339 : vector<1x512xf32> to vector<32x512xf32>
    %341 = arith.mulf %335, %340 : vector<32x512xf32>
    %342 = math.exp %341 : vector<32x512xf32>
    %343 = arith.mulf %337, %333 : vector<32x512xf32>
    %344 = vector.extract_strided_slice %342 {offsets = [0, 0], sizes = [16, 512], strides = [1, 1]} : vector<32x512xf32> to vector<16x512xf32>
    %345 = vector.extract_strided_slice %343 {offsets = [0, 0], sizes = [16, 512], strides = [1, 1]} : vector<32x512xf32> to vector<16x512xf32>
    %346 = vector.extract_strided_slice %345 {offsets = [0, 0], sizes = [1, 512], strides = [1, 1]} : vector<16x512xf32> to vector<1x512xf32>
    %c0_144 = arith.constant 0 : index
    %c0_145 = arith.constant 0 : index
    %347 = vector.load %arg18[%c0_144, %c0_145] : memref<32x512xf32, #tpu.memory_space<vmem>>, vector<1x512xf32>
    tpu.vector_store %arg18[%c0_144, %c0_145], %346 {strides = array<i32>} : memref<32x512xf32, #tpu.memory_space<vmem>>, vector<1x512xf32>,
    %348 = vector.extract_strided_slice %344 {offsets = [1, 0], sizes = [1, 512], strides = [1, 1]} : vector<16x512xf32> to vector<1x512xf32>
    %349 = arith.mulf %348, %346 : vector<1x512xf32>
    %350 = vector.extract_strided_slice %345 {offsets = [1, 0], sizes = [1, 512], strides = [1, 1]} : vector<16x512xf32> to vector<1x512xf32>
    %351 = arith.addf %349, %350 : vector<1x512xf32>
    %c1_146 = arith.constant 1 : index
    %c0_147 = arith.constant 0 : index
    %352 = vector.load %arg18[%c1_146, %c0_147] : memref<32x512xf32, #tpu.memory_space<vmem>>, vector<1x512xf32>
    tpu.vector_store %arg18[%c1_146, %c0_147], %351 {strides = array<i32>} : memref<32x512xf32, #tpu.memory_space<vmem>>, vector<1x512xf32>,
    %353 = vector.extract_strided_slice %344 {offsets = [2, 0], sizes = [1, 512], strides = [1, 1]} : vector<16x512xf32> to vector<1x512xf32>
    %354 = arith.mulf %353, %351 : vector<1x512xf32>
    %355 = vector.extract_strided_slice %345 {offsets = [2, 0], sizes = [1, 512], strides = [1, 1]} : vector<16x512xf32> to vector<1x512xf32>
    %356 = arith.addf %354, %355 : vector<1x512xf32>
    %c2_148 = arith.constant 2 : index
    %c0_149 = arith.constant 0 : index
    %357 = vector.load %arg18[%c2_148, %c0_149] : memref<32x512xf32, #tpu.memory_space<vmem>>, vector<1x512xf32>
    tpu.vector_store %arg18[%c2_148, %c0_149], %356 {strides = array<i32>} : memref<32x512xf32, #tpu.memory_space<vmem>>, vector<1x512xf32>,
    %358 = vector.extract_strided_slice %344 {offsets = [3, 0], sizes = [1, 512], strides = [1, 1]} : vector<16x512xf32> to vector<1x512xf32>
    %359 = arith.mulf %358, %356 : vector<1x512xf32>
    %360 = vector.extract_strided_slice %345 {offsets = [3, 0], sizes = [1, 512], strides = [1, 1]} : vector<16x512xf32> to vector<1x512xf32>
    %361 = arith.addf %359, %360 : vector<1x512xf32>
    %c3_150 = arith.constant 3 : index
    %c0_151 = arith.constant 0 : index
    %362 = vector.load %arg18[%c3_150, %c0_151] : memref<32x512xf32, #tpu.memory_space<vmem>>, vector<1x512xf32>
    tpu.vector_store %arg18[%c3_150, %c0_151], %361 {strides = array<i32>} : memref<32x512xf32, #tpu.memory_space<vmem>>, vector<1x512xf32>,
    %363 = vector.extract_strided_slice %344 {offsets = [4, 0], sizes = [1, 512], strides = [1, 1]} : vector<16x512xf32> to vector<1x512xf32>
    %364 = arith.mulf %363, %361 : vector<1x512xf32>
    %365 = vector.extract_strided_slice %345 {offsets = [4, 0], sizes = [1, 512], strides = [1, 1]} : vector<16x512xf32> to vector<1x512xf32>
    %366 = arith.addf %364, %365 : vector<1x512xf32>
    %c4_152 = arith.constant 4 : index
    %c0_153 = arith.constant 0 : index
    %367 = vector.load %arg18[%c4_152, %c0_153] : memref<32x512xf32, #tpu.memory_space<vmem>>, vector<1x512xf32>
    tpu.vector_store %arg18[%c4_152, %c0_153], %366 {strides = array<i32>} : memref<32x512xf32, #tpu.memory_space<vmem>>, vector<1x512xf32>,
    %368 = vector.extract_strided_slice %344 {offsets = [5, 0], sizes = [1, 512], strides = [1, 1]} : vector<16x512xf32> to vector<1x512xf32>
    %369 = arith.mulf %368, %366 : vector<1x512xf32>
    %370 = vector.extract_strided_slice %345 {offsets = [5, 0], sizes = [1, 512], strides = [1, 1]} : vector<16x512xf32> to vector<1x512xf32>
    %371 = arith.addf %369, %370 : vector<1x512xf32>
    %c5_154 = arith.constant 5 : index
    %c0_155 = arith.constant 0 : index
    %372 = vector.load %arg18[%c5_154, %c0_155] : memref<32x512xf32, #tpu.memory_space<vmem>>, vector<1x512xf32>
    tpu.vector_store %arg18[%c5_154, %c0_155], %371 {strides = array<i32>} : memref<32x512xf32, #tpu.memory_space<vmem>>, vector<1x512xf32>,
    %373 = vector.extract_strided_slice %344 {offsets = [6, 0], sizes = [1, 512], strides = [1, 1]} : vector<16x512xf32> to vector<1x512xf32>
    %374 = arith.mulf %373, %371 : vector<1x512xf32>
    %375 = vector.extract_strided_slice %345 {offsets = [6, 0], sizes = [1, 512], strides = [1, 1]} : vector<16x512xf32> to vector<1x512xf32>
    %376 = arith.addf %374, %375 : vector<1x512xf32>
    %c6_156 = arith.constant 6 : index
    %c0_157 = arith.constant 0 : index
    %377 = vector.load %arg18[%c6_156, %c0_157] : memref<32x512xf32, #tpu.memory_space<vmem>>, vector<1x512xf32>
    tpu.vector_store %arg18[%c6_156, %c0_157], %376 {strides = array<i32>} : memref<32x512xf32, #tpu.memory_space<vmem>>, vector<1x512xf32>,
    %378 = vector.extract_strided_slice %344 {offsets = [7, 0], sizes = [1, 512], strides = [1, 1]} : vector<16x512xf32> to vector<1x512xf32>
    %379 = arith.mulf %378, %376 : vector<1x512xf32>
    %380 = vector.extract_strided_slice %345 {offsets = [7, 0], sizes = [1, 512], strides = [1, 1]} : vector<16x512xf32> to vector<1x512xf32>
    %381 = arith.addf %379, %380 : vector<1x512xf32>
    %c7_158 = arith.constant 7 : index
    %c0_159 = arith.constant 0 : index
    %382 = vector.load %arg18[%c7_158, %c0_159] : memref<32x512xf32, #tpu.memory_space<vmem>>, vector<1x512xf32>
    tpu.vector_store %arg18[%c7_158, %c0_159], %381 {strides = array<i32>} : memref<32x512xf32, #tpu.memory_space<vmem>>, vector<1x512xf32>,
    %383 = vector.extract_strided_slice %344 {offsets = [8, 0], sizes = [1, 512], strides = [1, 1]} : vector<16x512xf32> to vector<1x512xf32>
    %384 = arith.mulf %383, %381 : vector<1x512xf32>
    %385 = vector.extract_strided_slice %345 {offsets = [8, 0], sizes = [1, 512], strides = [1, 1]} : vector<16x512xf32> to vector<1x512xf32>
    %386 = arith.addf %384, %385 : vector<1x512xf32>
    %c8_160 = arith.constant 8 : index
    %c0_161 = arith.constant 0 : index
    %387 = vector.load %arg18[%c8_160, %c0_161] : memref<32x512xf32, #tpu.memory_space<vmem>>, vector<1x512xf32>
    tpu.vector_store %arg18[%c8_160, %c0_161], %386 {strides = array<i32>} : memref<32x512xf32, #tpu.memory_space<vmem>>, vector<1x512xf32>,
    %388 = vector.extract_strided_slice %344 {offsets = [9, 0], sizes = [1, 512], strides = [1, 1]} : vector<16x512xf32> to vector<1x512xf32>
    %389 = arith.mulf %388, %386 : vector<1x512xf32>
    %390 = vector.extract_strided_slice %345 {offsets = [9, 0], sizes = [1, 512], strides = [1, 1]} : vector<16x512xf32> to vector<1x512xf32>
    %391 = arith.addf %389, %390 : vector<1x512xf32>
    %c9_162 = arith.constant 9 : index
    %c0_163 = arith.constant 0 : index
    %392 = vector.load %arg18[%c9_162, %c0_163] : memref<32x512xf32, #tpu.memory_space<vmem>>, vector<1x512xf32>
    tpu.vector_store %arg18[%c9_162, %c0_163], %391 {strides = array<i32>} : memref<32x512xf32, #tpu.memory_space<vmem>>, vector<1x512xf32>,
    %393 = vector.extract_strided_slice %344 {offsets = [10, 0], sizes = [1, 512], strides = [1, 1]} : vector<16x512xf32> to vector<1x512xf32>
    %394 = arith.mulf %393, %391 : vector<1x512xf32>
    %395 = vector.extract_strided_slice %345 {offsets = [10, 0], sizes = [1, 512], strides = [1, 1]} : vector<16x512xf32> to vector<1x512xf32>
    %396 = arith.addf %394, %395 : vector<1x512xf32>
    %c10_164 = arith.constant 10 : index
    %c0_165 = arith.constant 0 : index
    %397 = vector.load %arg18[%c10_164, %c0_165] : memref<32x512xf32, #tpu.memory_space<vmem>>, vector<1x512xf32>
    tpu.vector_store %arg18[%c10_164, %c0_165], %396 {strides = array<i32>} : memref<32x512xf32, #tpu.memory_space<vmem>>, vector<1x512xf32>,
    %398 = vector.extract_strided_slice %344 {offsets = [11, 0], sizes = [1, 512], strides = [1, 1]} : vector<16x512xf32> to vector<1x512xf32>
    %399 = arith.mulf %398, %396 : vector<1x512xf32>
    %400 = vector.extract_strided_slice %345 {offsets = [11, 0], sizes = [1, 512], strides = [1, 1]} : vector<16x512xf32> to vector<1x512xf32>
    %401 = arith.addf %399, %400 : vector<1x512xf32>
    %c11_166 = arith.constant 11 : index
    %c0_167 = arith.constant 0 : index
    %402 = vector.load %arg18[%c11_166, %c0_167] : memref<32x512xf32, #tpu.memory_space<vmem>>, vector<1x512xf32>
    tpu.vector_store %arg18[%c11_166, %c0_167], %401 {strides = array<i32>} : memref<32x512xf32, #tpu.memory_space<vmem>>, vector<1x512xf32>,
    %403 = vector.extract_strided_slice %344 {offsets = [12, 0], sizes = [1, 512], strides = [1, 1]} : vector<16x512xf32> to vector<1x512xf32>
    %404 = arith.mulf %403, %401 : vector<1x512xf32>
    %405 = vector.extract_strided_slice %345 {offsets = [12, 0], sizes = [1, 512], strides = [1, 1]} : vector<16x512xf32> to vector<1x512xf32>
    %406 = arith.addf %404, %405 : vector<1x512xf32>
    %c12_168 = arith.constant 12 : index
    %c0_169 = arith.constant 0 : index
    %407 = vector.load %arg18[%c12_168, %c0_169] : memref<32x512xf32, #tpu.memory_space<vmem>>, vector<1x512xf32>
    tpu.vector_store %arg18[%c12_168, %c0_169], %406 {strides = array<i32>} : memref<32x512xf32, #tpu.memory_space<vmem>>, vector<1x512xf32>,
    %408 = vector.extract_strided_slice %344 {offsets = [13, 0], sizes = [1, 512], strides = [1, 1]} : vector<16x512xf32> to vector<1x512xf32>
    %409 = arith.mulf %408, %406 : vector<1x512xf32>
    %410 = vector.extract_strided_slice %345 {offsets = [13, 0], sizes = [1, 512], strides = [1, 1]} : vector<16x512xf32> to vector<1x512xf32>
    %411 = arith.addf %409, %410 : vector<1x512xf32>
    %c13_170 = arith.constant 13 : index
    %c0_171 = arith.constant 0 : index
    %412 = vector.load %arg18[%c13_170, %c0_171] : memref<32x512xf32, #tpu.memory_space<vmem>>, vector<1x512xf32>
    tpu.vector_store %arg18[%c13_170, %c0_171], %411 {strides = array<i32>} : memref<32x512xf32, #tpu.memory_space<vmem>>, vector<1x512xf32>,
    %413 = vector.extract_strided_slice %344 {offsets = [14, 0], sizes = [1, 512], strides = [1, 1]} : vector<16x512xf32> to vector<1x512xf32>
    %414 = arith.mulf %413, %411 : vector<1x512xf32>
    %415 = vector.extract_strided_slice %345 {offsets = [14, 0], sizes = [1, 512], strides = [1, 1]} : vector<16x512xf32> to vector<1x512xf32>
    %416 = arith.addf %414, %415 : vector<1x512xf32>
    %c14_172 = arith.constant 14 : index
    %c0_173 = arith.constant 0 : index
    %417 = vector.load %arg18[%c14_172, %c0_173] : memref<32x512xf32, #tpu.memory_space<vmem>>, vector<1x512xf32>
    tpu.vector_store %arg18[%c14_172, %c0_173], %416 {strides = array<i32>} : memref<32x512xf32, #tpu.memory_space<vmem>>, vector<1x512xf32>,
    %418 = vector.extract_strided_slice %344 {offsets = [15, 0], sizes = [1, 512], strides = [1, 1]} : vector<16x512xf32> to vector<1x512xf32>
    %419 = arith.mulf %418, %416 : vector<1x512xf32>
    %420 = vector.extract_strided_slice %345 {offsets = [15, 0], sizes = [1, 512], strides = [1, 1]} : vector<16x512xf32> to vector<1x512xf32>
    %421 = arith.addf %419, %420 : vector<1x512xf32>
    %c15_174 = arith.constant 15 : index
    %c0_175 = arith.constant 0 : index
    %422 = vector.load %arg18[%c15_174, %c0_175] : memref<32x512xf32, #tpu.memory_space<vmem>>, vector<1x512xf32>
    tpu.vector_store %arg18[%c15_174, %c0_175], %421 {strides = array<i32>} : memref<32x512xf32, #tpu.memory_space<vmem>>, vector<1x512xf32>,
    %423 = vector.extract_strided_slice %342 {offsets = [16, 0], sizes = [16, 512], strides = [1, 1]} : vector<32x512xf32> to vector<16x512xf32>
    %424 = vector.extract_strided_slice %343 {offsets = [16, 0], sizes = [16, 512], strides = [1, 1]} : vector<32x512xf32> to vector<16x512xf32>
    %425 = vector.extract_strided_slice %424 {offsets = [0, 0], sizes = [1, 512], strides = [1, 1]} : vector<16x512xf32> to vector<1x512xf32>
    %c16_176 = arith.constant 16 : index
    %c0_177 = arith.constant 0 : index
    %426 = vector.load %arg18[%c16_176, %c0_177] : memref<32x512xf32, #tpu.memory_space<vmem>>, vector<1x512xf32>
    tpu.vector_store %arg18[%c16_176, %c0_177], %425 {strides = array<i32>} : memref<32x512xf32, #tpu.memory_space<vmem>>, vector<1x512xf32>,
    %427 = vector.extract_strided_slice %423 {offsets = [1, 0], sizes = [1, 512], strides = [1, 1]} : vector<16x512xf32> to vector<1x512xf32>
    %428 = arith.mulf %427, %425 : vector<1x512xf32>
    %429 = vector.extract_strided_slice %424 {offsets = [1, 0], sizes = [1, 512], strides = [1, 1]} : vector<16x512xf32> to vector<1x512xf32>
    %430 = arith.addf %428, %429 : vector<1x512xf32>
    %c17_178 = arith.constant 17 : index
    %c0_179 = arith.constant 0 : index
    %431 = vector.load %arg18[%c17_178, %c0_179] : memref<32x512xf32, #tpu.memory_space<vmem>>, vector<1x512xf32>
    tpu.vector_store %arg18[%c17_178, %c0_179], %430 {strides = array<i32>} : memref<32x512xf32, #tpu.memory_space<vmem>>, vector<1x512xf32>,
    %432 = vector.extract_strided_slice %423 {offsets = [2, 0], sizes = [1, 512], strides = [1, 1]} : vector<16x512xf32> to vector<1x512xf32>
    %433 = arith.mulf %432, %430 : vector<1x512xf32>
    %434 = vector.extract_strided_slice %424 {offsets = [2, 0], sizes = [1, 512], strides = [1, 1]} : vector<16x512xf32> to vector<1x512xf32>
    %435 = arith.addf %433, %434 : vector<1x512xf32>
    %c18_180 = arith.constant 18 : index
    %c0_181 = arith.constant 0 : index
    %436 = vector.load %arg18[%c18_180, %c0_181] : memref<32x512xf32, #tpu.memory_space<vmem>>, vector<1x512xf32>
    tpu.vector_store %arg18[%c18_180, %c0_181], %435 {strides = array<i32>} : memref<32x512xf32, #tpu.memory_space<vmem>>, vector<1x512xf32>,
    %437 = vector.extract_strided_slice %423 {offsets = [3, 0], sizes = [1, 512], strides = [1, 1]} : vector<16x512xf32> to vector<1x512xf32>
    %438 = arith.mulf %437, %435 : vector<1x512xf32>
    %439 = vector.extract_strided_slice %424 {offsets = [3, 0], sizes = [1, 512], strides = [1, 1]} : vector<16x512xf32> to vector<1x512xf32>
    %440 = arith.addf %438, %439 : vector<1x512xf32>
    %c19_182 = arith.constant 19 : index
    %c0_183 = arith.constant 0 : index
    %441 = vector.load %arg18[%c19_182, %c0_183] : memref<32x512xf32, #tpu.memory_space<vmem>>, vector<1x512xf32>
    tpu.vector_store %arg18[%c19_182, %c0_183], %440 {strides = array<i32>} : memref<32x512xf32, #tpu.memory_space<vmem>>, vector<1x512xf32>,
    %442 = vector.extract_strided_slice %423 {offsets = [4, 0], sizes = [1, 512], strides = [1, 1]} : vector<16x512xf32> to vector<1x512xf32>
    %443 = arith.mulf %442, %440 : vector<1x512xf32>
    %444 = vector.extract_strided_slice %424 {offsets = [4, 0], sizes = [1, 512], strides = [1, 1]} : vector<16x512xf32> to vector<1x512xf32>
    %445 = arith.addf %443, %444 : vector<1x512xf32>
    %c20_184 = arith.constant 20 : index
    %c0_185 = arith.constant 0 : index
    %446 = vector.load %arg18[%c20_184, %c0_185] : memref<32x512xf32, #tpu.memory_space<vmem>>, vector<1x512xf32>
    tpu.vector_store %arg18[%c20_184, %c0_185], %445 {strides = array<i32>} : memref<32x512xf32, #tpu.memory_space<vmem>>, vector<1x512xf32>,
    %447 = vector.extract_strided_slice %423 {offsets = [5, 0], sizes = [1, 512], strides = [1, 1]} : vector<16x512xf32> to vector<1x512xf32>
    %448 = arith.mulf %447, %445 : vector<1x512xf32>
    %449 = vector.extract_strided_slice %424 {offsets = [5, 0], sizes = [1, 512], strides = [1, 1]} : vector<16x512xf32> to vector<1x512xf32>
    %450 = arith.addf %448, %449 : vector<1x512xf32>
    %c21_186 = arith.constant 21 : index
    %c0_187 = arith.constant 0 : index
    %451 = vector.load %arg18[%c21_186, %c0_187] : memref<32x512xf32, #tpu.memory_space<vmem>>, vector<1x512xf32>
    tpu.vector_store %arg18[%c21_186, %c0_187], %450 {strides = array<i32>} : memref<32x512xf32, #tpu.memory_space<vmem>>, vector<1x512xf32>,
    %452 = vector.extract_strided_slice %423 {offsets = [6, 0], sizes = [1, 512], strides = [1, 1]} : vector<16x512xf32> to vector<1x512xf32>
    %453 = arith.mulf %452, %450 : vector<1x512xf32>
    %454 = vector.extract_strided_slice %424 {offsets = [6, 0], sizes = [1, 512], strides = [1, 1]} : vector<16x512xf32> to vector<1x512xf32>
    %455 = arith.addf %453, %454 : vector<1x512xf32>
    %c22_188 = arith.constant 22 : index
    %c0_189 = arith.constant 0 : index
    %456 = vector.load %arg18[%c22_188, %c0_189] : memref<32x512xf32, #tpu.memory_space<vmem>>, vector<1x512xf32>
    tpu.vector_store %arg18[%c22_188, %c0_189], %455 {strides = array<i32>} : memref<32x512xf32, #tpu.memory_space<vmem>>, vector<1x512xf32>,
    %457 = vector.extract_strided_slice %423 {offsets = [7, 0], sizes = [1, 512], strides = [1, 1]} : vector<16x512xf32> to vector<1x512xf32>
    %458 = arith.mulf %457, %455 : vector<1x512xf32>
    %459 = vector.extract_strided_slice %424 {offsets = [7, 0], sizes = [1, 512], strides = [1, 1]} : vector<16x512xf32> to vector<1x512xf32>
    %460 = arith.addf %458, %459 : vector<1x512xf32>
    %c23_190 = arith.constant 23 : index
    %c0_191 = arith.constant 0 : index
    %461 = vector.load %arg18[%c23_190, %c0_191] : memref<32x512xf32, #tpu.memory_space<vmem>>, vector<1x512xf32>
    tpu.vector_store %arg18[%c23_190, %c0_191], %460 {strides = array<i32>} : memref<32x512xf32, #tpu.memory_space<vmem>>, vector<1x512xf32>,
    %462 = vector.extract_strided_slice %423 {offsets = [8, 0], sizes = [1, 512], strides = [1, 1]} : vector<16x512xf32> to vector<1x512xf32>
    %463 = arith.mulf %462, %460 : vector<1x512xf32>
    %464 = vector.extract_strided_slice %424 {offsets = [8, 0], sizes = [1, 512], strides = [1, 1]} : vector<16x512xf32> to vector<1x512xf32>
    %465 = arith.addf %463, %464 : vector<1x512xf32>
    %c24_192 = arith.constant 24 : index
    %c0_193 = arith.constant 0 : index
    %466 = vector.load %arg18[%c24_192, %c0_193] : memref<32x512xf32, #tpu.memory_space<vmem>>, vector<1x512xf32>
    tpu.vector_store %arg18[%c24_192, %c0_193], %465 {strides = array<i32>} : memref<32x512xf32, #tpu.memory_space<vmem>>, vector<1x512xf32>,
    %467 = vector.extract_strided_slice %423 {offsets = [9, 0], sizes = [1, 512], strides = [1, 1]} : vector<16x512xf32> to vector<1x512xf32>
    %468 = arith.mulf %467, %465 : vector<1x512xf32>
    %469 = vector.extract_strided_slice %424 {offsets = [9, 0], sizes = [1, 512], strides = [1, 1]} : vector<16x512xf32> to vector<1x512xf32>
    %470 = arith.addf %468, %469 : vector<1x512xf32>
    %c25_194 = arith.constant 25 : index
    %c0_195 = arith.constant 0 : index
    %471 = vector.load %arg18[%c25_194, %c0_195] : memref<32x512xf32, #tpu.memory_space<vmem>>, vector<1x512xf32>
    tpu.vector_store %arg18[%c25_194, %c0_195], %470 {strides = array<i32>} : memref<32x512xf32, #tpu.memory_space<vmem>>, vector<1x512xf32>,
    %472 = vector.extract_strided_slice %423 {offsets = [10, 0], sizes = [1, 512], strides = [1, 1]} : vector<16x512xf32> to vector<1x512xf32>
    %473 = arith.mulf %472, %470 : vector<1x512xf32>
    %474 = vector.extract_strided_slice %424 {offsets = [10, 0], sizes = [1, 512], strides = [1, 1]} : vector<16x512xf32> to vector<1x512xf32>
    %475 = arith.addf %473, %474 : vector<1x512xf32>
    %c26_196 = arith.constant 26 : index
    %c0_197 = arith.constant 0 : index
    %476 = vector.load %arg18[%c26_196, %c0_197] : memref<32x512xf32, #tpu.memory_space<vmem>>, vector<1x512xf32>
    tpu.vector_store %arg18[%c26_196, %c0_197], %475 {strides = array<i32>} : memref<32x512xf32, #tpu.memory_space<vmem>>, vector<1x512xf32>,
    %477 = vector.extract_strided_slice %423 {offsets = [11, 0], sizes = [1, 512], strides = [1, 1]} : vector<16x512xf32> to vector<1x512xf32>
    %478 = arith.mulf %477, %475 : vector<1x512xf32>
    %479 = vector.extract_strided_slice %424 {offsets = [11, 0], sizes = [1, 512], strides = [1, 1]} : vector<16x512xf32> to vector<1x512xf32>
    %480 = arith.addf %478, %479 : vector<1x512xf32>
    %c27_198 = arith.constant 27 : index
    %c0_199 = arith.constant 0 : index
    %481 = vector.load %arg18[%c27_198, %c0_199] : memref<32x512xf32, #tpu.memory_space<vmem>>, vector<1x512xf32>
    tpu.vector_store %arg18[%c27_198, %c0_199], %480 {strides = array<i32>} : memref<32x512xf32, #tpu.memory_space<vmem>>, vector<1x512xf32>,
    %482 = vector.extract_strided_slice %423 {offsets = [12, 0], sizes = [1, 512], strides = [1, 1]} : vector<16x512xf32> to vector<1x512xf32>
    %483 = arith.mulf %482, %480 : vector<1x512xf32>
    %484 = vector.extract_strided_slice %424 {offsets = [12, 0], sizes = [1, 512], strides = [1, 1]} : vector<16x512xf32> to vector<1x512xf32>
    %485 = arith.addf %483, %484 : vector<1x512xf32>
    %c28_200 = arith.constant 28 : index
    %c0_201 = arith.constant 0 : index
    %486 = vector.load %arg18[%c28_200, %c0_201] : memref<32x512xf32, #tpu.memory_space<vmem>>, vector<1x512xf32>
    tpu.vector_store %arg18[%c28_200, %c0_201], %485 {strides = array<i32>} : memref<32x512xf32, #tpu.memory_space<vmem>>, vector<1x512xf32>,
    %487 = vector.extract_strided_slice %423 {offsets = [13, 0], sizes = [1, 512], strides = [1, 1]} : vector<16x512xf32> to vector<1x512xf32>
    %488 = arith.mulf %487, %485 : vector<1x512xf32>
    %489 = vector.extract_strided_slice %424 {offsets = [13, 0], sizes = [1, 512], strides = [1, 1]} : vector<16x512xf32> to vector<1x512xf32>
    %490 = arith.addf %488, %489 : vector<1x512xf32>
    %c29_202 = arith.constant 29 : index
    %c0_203 = arith.constant 0 : index
    %491 = vector.load %arg18[%c29_202, %c0_203] : memref<32x512xf32, #tpu.memory_space<vmem>>, vector<1x512xf32>
    tpu.vector_store %arg18[%c29_202, %c0_203], %490 {strides = array<i32>} : memref<32x512xf32, #tpu.memory_space<vmem>>, vector<1x512xf32>,
    %492 = vector.extract_strided_slice %423 {offsets = [14, 0], sizes = [1, 512], strides = [1, 1]} : vector<16x512xf32> to vector<1x512xf32>
    %493 = arith.mulf %492, %490 : vector<1x512xf32>
    %494 = vector.extract_strided_slice %424 {offsets = [14, 0], sizes = [1, 512], strides = [1, 1]} : vector<16x512xf32> to vector<1x512xf32>
    %495 = arith.addf %493, %494 : vector<1x512xf32>
    %c30_204 = arith.constant 30 : index
    %c0_205 = arith.constant 0 : index
    %496 = vector.load %arg18[%c30_204, %c0_205] : memref<32x512xf32, #tpu.memory_space<vmem>>, vector<1x512xf32>
    tpu.vector_store %arg18[%c30_204, %c0_205], %495 {strides = array<i32>} : memref<32x512xf32, #tpu.memory_space<vmem>>, vector<1x512xf32>,
    %497 = vector.extract_strided_slice %423 {offsets = [15, 0], sizes = [1, 512], strides = [1, 1]} : vector<16x512xf32> to vector<1x512xf32>
    %498 = arith.mulf %497, %495 : vector<1x512xf32>
    %499 = vector.extract_strided_slice %424 {offsets = [15, 0], sizes = [1, 512], strides = [1, 1]} : vector<16x512xf32> to vector<1x512xf32>
    %500 = arith.addf %498, %499 : vector<1x512xf32>
    %c31_206 = arith.constant 31 : index
    %c0_207 = arith.constant 0 : index
    %501 = vector.load %arg18[%c31_206, %c0_207] : memref<32x512xf32, #tpu.memory_space<vmem>>, vector<1x512xf32>
    tpu.vector_store %arg18[%c31_206, %c0_207], %500 {strides = array<i32>} : memref<32x512xf32, #tpu.memory_space<vmem>>, vector<1x512xf32>,
    %c0_208 = arith.constant 0 : index
    %c0_209 = arith.constant 0 : index
    %502 = vector.load %arg18[%c0_208, %c0_209] : memref<32x512xf32, #tpu.memory_space<vmem>>, vector<32x512xf32>
    %503 = arith.mulf %502, %334 : vector<32x512xf32>
    %cst_210 = arith.constant dense<0.000000e+00> : vector<32x64xf32>
    %504 = tpu.matmul %503, %11, %cst_210 {dimension_numbers = #tpu.dot_dimension_numbers<[1], [0], [0], [1], [0, 0, 1, 1], [], []>} : vector<32x512xf32>, vector<512x64xf32>, vector<32x64xf32> -> vector<32x64xf32>
    %c1_211 = arith.constant 1 : index
    %c0_212 = arith.constant 0 : index
    %c0_213 = arith.constant 0 : index
    %505 = vector.load %arg15[%c1_211, %c0_212, %c0_213] : memref<2x1x64xf32, #tpu.memory_space<vmem>>, vector<1x1x64xf32>
    %506 = vector.shape_cast %505 : vector<1x1x64xf32> to vector<1x64xf32>
    %507 = vector.broadcast %506 : vector<1x64xf32> to vector<32x64xf32>
    %508 = arith.mulf %313, %507 : vector<32x64xf32>
    %509 = arith.addf %504, %508 : vector<32x64xf32>
    %cst_214 = arith.constant 5.000000e-01 : f32
    %510 = vector.broadcast %cst_214 : f32 to vector<32x64xf32>
    %511 = arith.mulf %510, %284 : vector<32x64xf32>
    %cst_215 = arith.constant 5.000000e-01 : f32
    %512 = vector.broadcast %cst_215 : f32 to vector<32x64xf32>
    %513 = arith.mulf %512, %284 : vector<32x64xf32>
    %514 = math.tanh %513 : vector<32x64xf32>
    %cst_216 = arith.constant 1.000000e+00 : f32
    %515 = vector.broadcast %cst_216 : f32 to vector<32x64xf32>
    %516 = arith.addf %515, %514 : vector<32x64xf32>
    %517 = arith.mulf %511, %516 : vector<32x64xf32>
    %518 = arith.mulf %509, %517 : vector<32x64xf32>
    %c1_217 = arith.constant 1 : index
    %c0_218 = arith.constant 0 : index
    %c0_219 = arith.constant 0 : index
    %519 = vector.load %arg16[%c1_217, %c0_218, %c0_219] : memref<2x64x16xf32, #tpu.memory_space<vmem>>, vector<1x64x16xf32>
    %520 = vector.shape_cast %519 : vector<1x64x16xf32> to vector<64x16xf32>
    %cst_220 = arith.constant dense<0.000000e+00> : vector<32x16xf32>
    %521 = tpu.matmul %518, %520, %cst_220 {dimension_numbers = #tpu.dot_dimension_numbers<[1], [0], [0], [1], [0, 0, 1, 1], [], []>} : vector<32x64xf32>, vector<64x16xf32>, vector<32x16xf32> -> vector<32x16xf32>
    %522 = vector.extract_strided_slice %521 {offsets = [0, 0], sizes = [16, 16], strides = [1, 1]} : vector<32x16xf32> to vector<16x16xf32>
    %cst_221 = arith.constant dense<0.000000e+00> : vector<16x16xf32>
    %523 = tpu.matmul %9, %522, %cst_221 {dimension_numbers = #tpu.dot_dimension_numbers<[1], [1], [0], [0], [0, 0, 1, 0], [], []>} : vector<16x16xf32>, vector<16x16xf32>, vector<16x16xf32> -> vector<16x16xf32>
    %c0_222 = arith.constant 0 : index
    %c0_223 = arith.constant 0 : index
    %c0_224 = arith.constant 0 : index
    %524 = vector.load %arg17[%c0_222, %c0_223, %c0_224] : memref<2x16x16xf32, #tpu.memory_space<vmem>>, vector<1x16x16xf32>
    %525 = vector.shape_cast %524 : vector<1x16x16xf32> to vector<16x16xf32>
    %526 = vector.shape_cast %523 : vector<16x16xf32> to vector<1x16x16xf32>
    tpu.vector_store %arg17[%c0_222, %c0_223, %c0_224], %526 {strides = array<i32>} : memref<2x16x16xf32, #tpu.memory_space<vmem>>, vector<1x16x16xf32>,
    %527 = vector.extract_strided_slice %521 {offsets = [16, 0], sizes = [16, 16], strides = [1, 1]} : vector<32x16xf32> to vector<16x16xf32>
    %cst_225 = arith.constant dense<0.000000e+00> : vector<16x16xf32>
    %528 = tpu.matmul %9, %527, %cst_225 {dimension_numbers = #tpu.dot_dimension_numbers<[1], [1], [0], [0], [0, 0, 1, 0], [], []>} : vector<16x16xf32>, vector<16x16xf32>, vector<16x16xf32> -> vector<16x16xf32>
    %c1_226 = arith.constant 1 : index
    %c0_227 = arith.constant 0 : index
    %c0_228 = arith.constant 0 : index
    %529 = vector.load %arg17[%c1_226, %c0_227, %c0_228] : memref<2x16x16xf32, #tpu.memory_space<vmem>>, vector<1x16x16xf32>
    %530 = vector.shape_cast %529 : vector<1x16x16xf32> to vector<16x16xf32>
    %531 = vector.shape_cast %528 : vector<16x16xf32> to vector<1x16x16xf32>
    tpu.vector_store %arg17[%c1_226, %c0_227, %c0_228], %531 {strides = array<i32>} : memref<2x16x16xf32, #tpu.memory_space<vmem>>, vector<1x16x16xf32>,
    return
  }
  func.func @transform_0(%arg0: i32) -> (i32, i32, i32) {
    %c0_i32 = arith.constant 0 : i32
    %c0_i32_0 = arith.constant 0 : i32
    %c0_i32_1 = arith.constant 0 : i32
    %c0_i32_2 = arith.constant 0 : i32
    return %c0_i32, %c0_i32_0, %c0_i32_1 : i32, i32, i32
  }
  func.func @transform_1(%arg0: i32) -> (i32, i32) {
    %c0_i32 = arith.constant 0 : i32
    %c0_i32_0 = arith.constant 0 : i32
    %c0_i32_1 = arith.constant 0 : i32
    return %c0_i32, %c0_i32_0 : i32, i32
  }
  func.func @transform_2(%arg0: i32) -> (i32, i32, i32) {
    %c0_i32 = arith.constant 0 : i32
    %c0_i32_0 = arith.constant 0 : i32
    %c0_i32_1 = arith.constant 0 : i32
    %c0_i32_2 = arith.constant 0 : i32
    return %c0_i32, %c0_i32_0, %c0_i32_1 : i32, i32, i32
  }
  func.func @transform_3(%arg0: i32) -> (i32, i32, i32) {
    %c0_i32 = arith.constant 0 : i32
    %c0_i32_0 = arith.constant 0 : i32
    %c0_i32_1 = arith.constant 0 : i32
    %c0_i32_2 = arith.constant 0 : i32
    return %c0_i32, %c0_i32_0, %c0_i32_1 : i32, i32, i32
  }
  func.func @transform_4(%arg0: i32) -> (i32, i32, i32) {
    %c0_i32 = arith.constant 0 : i32
    %c0_i32_0 = arith.constant 0 : i32
    %c0_i32_1 = arith.constant 0 : i32
    %c0_i32_2 = arith.constant 0 : i32
    return %c0_i32, %c0_i32_0, %c0_i32_1 : i32, i32, i32
  }
  func.func @transform_5(%arg0: i32) -> (i32, i32, i32) {
    %c0_i32 = arith.constant 0 : i32
    %c0_i32_0 = arith.constant 0 : i32
    %c0_i32_1 = arith.constant 0 : i32
    %c0_i32_2 = arith.constant 0 : i32
    return %c0_i32, %c0_i32_0, %c0_i32_1 : i32, i32, i32
  }
  func.func @transform_6(%arg0: i32) -> (i32, i32, i32) {
    %c0_i32 = arith.constant 0 : i32
    %c0_i32_0 = arith.constant 0 : i32
    %c0_i32_1 = arith.constant 0 : i32
    %c0_i32_2 = arith.constant 0 : i32
    return %c0_i32, %c0_i32_0, %c0_i32_1 : i32, i32, i32
  }
  func.func @transform_7(%arg0: i32) -> (i32, i32, i32) {
    %c0_i32 = arith.constant 0 : i32
    %c0_i32_0 = arith.constant 0 : i32
    %c0_i32_1 = arith.constant 0 : i32
    %c0_i32_2 = arith.constant 0 : i32
    return %c0_i32, %c0_i32_0, %c0_i32_1 : i32, i32, i32
  }
  func.func @transform_8(%arg0: i32) -> (i32, i32, i32) {
    %c0_i32 = arith.constant 0 : i32
    %c0_i32_0 = arith.constant 0 : i32
    %c0_i32_1 = arith.constant 0 : i32
    %c0_i32_2 = arith.constant 0 : i32
    return %c0_i32, %c0_i32_0, %c0_i32_1 : i32, i32, i32
  }
  func.func @transform_9(%arg0: i32) -> (i32, i32, i32) {
    %c0_i32 = arith.constant 0 : i32
    %c0_i32_0 = arith.constant 0 : i32
    %c0_i32_1 = arith.constant 0 : i32
    %c0_i32_2 = arith.constant 0 : i32
    return %c0_i32, %c0_i32_0, %c0_i32_1 : i32, i32, i32
  }
  func.func @transform_10(%arg0: i32) -> (i32, i32, i32) {
    %c0_i32 = arith.constant 0 : i32
    %c0_i32_0 = arith.constant 0 : i32
    %c0_i32_1 = arith.constant 0 : i32
    %c0_i32_2 = arith.constant 0 : i32
    return %c0_i32, %c0_i32_0, %c0_i32_1 : i32, i32, i32
  }
  func.func @transform_11(%arg0: i32) -> (i32, i32, i32) {
    %c0_i32 = arith.constant 0 : i32
    %c0_i32_0 = arith.constant 0 : i32
    %c0_i32_1 = arith.constant 0 : i32
    %c0_i32_2 = arith.constant 0 : i32
    return %c0_i32, %c0_i32_0, %c0_i32_1 : i32, i32, i32
  }
  func.func @transform_12(%arg0: i32) -> (i32, i32) {
    %c0_i32 = arith.constant 0 : i32
    %c0_i32_0 = arith.constant 0 : i32
    %c0_i32_1 = arith.constant 0 : i32
    return %c0_i32, %c0_i32_0 : i32, i32
  }
  func.func @transform_13(%arg0: i32) -> (i32, i32) {
    %c0_i32 = arith.constant 0 : i32
    %c0_i32_0 = arith.constant 0 : i32
    %c0_i32_1 = arith.constant 0 : i32
    return %c0_i32, %c0_i32_0 : i32, i32
  }
  func.func @transform_14(%arg0: i32) -> (i32, i32, i32) {
    %c0_i32 = arith.constant 0 : i32
    %c0_i32_0 = arith.constant 0 : i32
    %c0_i32_1 = arith.constant 0 : i32
    %c0_i32_2 = arith.constant 0 : i32
    return %c0_i32, %c0_i32_0, %c0_i32_1 : i32, i32, i32
  }
  func.func @transform_15(%arg0: i32) -> (i32, i32, i32) {
    %c0_i32 = arith.constant 0 : i32
    %c0_i32_0 = arith.constant 0 : i32
    %c0_i32_1 = arith.constant 0 : i32
    %c0_i32_2 = arith.constant 0 : i32
    return %c0_i32, %c0_i32_0, %c0_i32_1 : i32, i32, i32
  }
  func.func @transform_16(%arg0: i32) -> (i32, i32, i32) {
    %c0_i32 = arith.constant 0 : i32
    %c0_i32_0 = arith.constant 0 : i32
    %c0_i32_1 = arith.constant 0 : i32
    %c0_i32_2 = arith.constant 0 : i32
    return %c0_i32, %c0_i32_0, %c0_i32_1 : i32, i32, i32
  }
}

</mosaic_0001>

<llo_original>
// kernel: channel_mamba_layer_pallas.1
$region0: #{channel_mamba_layer_pallas.1}
  #allocation0 [shape = 'u32[]', space=smem, size = 0x4, offset = 0x4, fixed_abs, tag = 'smem constant byte address 0x4 - core index']
  #allocation1 [shape = 'u32[144,128]{1,0:T(1,128)}', space=vmem, size = 0x12000, scoped, tag = 'internal scratch']
  #allocation2 [shape = 'f32[32,512]{1,0:T(8,128)}', space=vmem, size = 0x10000, scoped, tag = 'scratch operand']
  %s0 = inlined_call_operand.vmem [shape: f32[2,16,16], index: 0, kind: input, shape index: {}]
  %s1 = inlined_call_operand.vmem [shape: f32[96,32], index: 1, kind: input, shape index: {}]
  %s2 = inlined_call_operand.vmem [shape: f32[2,16,64], index: 2, kind: input, shape index: {}]
  %s3 = inlined_call_operand.vmem [shape: f32[2,1,64], index: 3, kind: input, shape index: {}]
  %s4 = inlined_call_operand.vmem [shape: f32[2,16,64], index: 4, kind: input, shape index: {}]
  %s5 = inlined_call_operand.vmem [shape: f32[2,1,64], index: 5, kind: input, shape index: {}]
  %s6 = inlined_call_operand.vmem [shape: f32[2,3,64], index: 6, kind: input, shape index: {}]
  %s7 = inlined_call_operand.vmem [shape: f32[2,1,64], index: 7, kind: input, shape index: {}]
  %s8 = inlined_call_operand.vmem [shape: f32[2,64,64], index: 8, kind: input, shape index: {}]
  %s9 = inlined_call_operand.vmem [shape: f32[2,1,64], index: 9, kind: input, shape index: {}]
  %s10 = inlined_call_operand.hbm [shape: f32[2,64,1024], index: 10, kind: input, shape index: {}]
  %s11 = inlined_call_operand.vmem [shape: f32[2,1,512], index: 11, kind: input, shape index: {}]
  %s12 = inlined_call_operand.vmem [shape: f32[64,512], index: 12, kind: input, shape index: {}]
  %s13 = inlined_call_operand.vmem [shape: f32[512,64], index: 13, kind: input, shape index: {}]
  %s14 = inlined_call_operand.vmem [shape: f32[2,1,64], index: 14, kind: input, shape index: {}]
  %s15 = inlined_call_operand.vmem [shape: f32[2,64,16], index: 15, kind: input, shape index: {}]
  %s16 = inlined_call_operand.hbm [shape: f32[2,16,16], index: 16, kind: output, shape index: {}]
  %s17 = sld [smem:[#allocation0]]
  $region78: #{channel_mamba_layer_pallas.1} parent=0
    _
  %s19 = ssub.s32 1, %s17
  %s20 = scalar_select 0, %s19, %s17
  $region1: #{channel_mamba_layer_pallas.1} parent=0
    #allocation3 [shape = 'u8[524288]{0}', space=vmem, size = 0x80000, scoped, tag = 'input window, operand 10, single buffered']
    #allocation4 [shape = 's32[1]{0}', space=sflag, size = 0x4, scoped, tag = 'scoped memory for channel_mamba_layer_pallas.1']
    #allocation5 [shape = 's32[1]{0}', space=sflag, size = 0x4, scoped, tag = 'scoped memory for channel_mamba_layer_pallas.1']
    #allocation6 [shape = 'u8[16384]{0}', space=vmem, size = 0x4000, scoped, tag = 'output window, operand 0, single buffered']
    %21 = vsyncpa [#allocation4], 0
    %22 = vsyncpa [#allocation5], 0
    // Predicated region
    $region2: #{channel_mamba_layer_pallas.1} parent=1 // pred_check
      _
    $region3: #{channel_mamba_layer_pallas.1} parent=1 // pred_check_branch
      %24 = sbr.rel (0) target = $region5
    $region4: #{channel_mamba_layer_pallas.1} parent=1 // pred_region
      _
    $region5: #{channel_mamba_layer_pallas.1} parent=1 // pred_fallthru
      _
    // Predicated region
    $region6: #{channel_mamba_layer_pallas.1} parent=1 // pred_check
      _
    $region7: #{channel_mamba_layer_pallas.1} parent=1 // pred_check_branch
      %26 = sbr.rel (0) target = $region9
    $region8: #{channel_mamba_layer_pallas.1} parent=1 // pred_region
      _
    $region9: #{channel_mamba_layer_pallas.1} parent=1 // pred_fallthru
      _
    // Predicated region
    $region10: #{channel_mamba_layer_pallas.1} parent=1 // pred_check
      _
    $region11: #{channel_mamba_layer_pallas.1} parent=1 // pred_check_branch
      %28 = sbr.rel (0) target = $region13
    $region12: #{channel_mamba_layer_pallas.1} parent=1 // pred_region
      _
    $region13: #{channel_mamba_layer_pallas.1} parent=1 // pred_fallthru
      _
    // Predicated region
    $region14: #{channel_mamba_layer_pallas.1} parent=1 // pred_check
      _
    $region15: #{channel_mamba_layer_pallas.1} parent=1 // pred_check_branch
      %30 = sbr.rel (0) target = $region17
    $region16: #{channel_mamba_layer_pallas.1} parent=1 // pred_region
      _
    $region17: #{channel_mamba_layer_pallas.1} parent=1 // pred_fallthru
      _
    // Predicated region
    $region18: #{channel_mamba_layer_pallas.1} parent=1 // pred_check
      _
    $region19: #{channel_mamba_layer_pallas.1} parent=1 // pred_check_branch
      %32 = sbr.rel (0) target = $region21
    $region20: #{channel_mamba_layer_pallas.1} parent=1 // pred_region
      _
    $region21: #{channel_mamba_layer_pallas.1} parent=1 // pred_fallthru
      _
    // Predicated region
    $region22: #{channel_mamba_layer_pallas.1} parent=1 // pred_check
      _
    $region23: #{channel_mamba_layer_pallas.1} parent=1 // pred_check_branch
      %34 = sbr.rel (0) target = $region25
    $region24: #{channel_mamba_layer_pallas.1} parent=1 // pred_region
      _
    $region25: #{channel_mamba_layer_pallas.1} parent=1 // pred_fallthru
      _
    // Predicated region
    $region26: #{channel_mamba_layer_pallas.1} parent=1 // pred_check
      _
    $region27: #{channel_mamba_layer_pallas.1} parent=1 // pred_check_branch
      %36 = sbr.rel (0) target = $region29
    $region28: #{channel_mamba_layer_pallas.1} parent=1 // pred_region
      _
    $region29: #{channel_mamba_layer_pallas.1} parent=1 // pred_fallthru
      _
    // Predicated region
    $region30: #{channel_mamba_layer_pallas.1} parent=1 // pred_check
      _
    $region31: #{channel_mamba_layer_pallas.1} parent=1 // pred_check_branch
      %38 = sbr.rel (0) target = $region33
    $region32: #{channel_mamba_layer_pallas.1} parent=1 // pred_region
      _
    $region33: #{channel_mamba_layer_pallas.1} parent=1 // pred_fallthru
      _
    // Predicated region
    $region34: #{channel_mamba_layer_pallas.1} parent=1 // pred_check
      _
    $region35: #{channel_mamba_layer_pallas.1} parent=1 // pred_check_branch
      %40 = sbr.rel (0) target = $region37
    $region36: #{channel_mamba_layer_pallas.1} parent=1 // pred_region
      _
    $region37: #{channel_mamba_layer_pallas.1} parent=1 // pred_fallthru
      _
    // Predicated region
    $region38: #{channel_mamba_layer_pallas.1} parent=1 // pred_check
      _
    $region39: #{channel_mamba_layer_pallas.1} parent=1 // pred_check_branch
      %42 = sbr.rel (0) target = $region41
    $region40: #{channel_mamba_layer_pallas.1} parent=1 // pred_region
      _
    $region41: #{channel_mamba_layer_pallas.1} parent=1 // pred_fallthru
      _
    // Predicated region
    $region42: #{channel_mamba_layer_pallas.1} parent=1 // pred_check
      _
    $region43: #{channel_mamba_layer_pallas.1} parent=1 // pred_check_branch
      %44 = sbr.rel (0) target = $region45
    $region44: #{channel_mamba_layer_pallas.1} parent=1 // pred_region
      %s46 = ssub.s32 16384, 16384
      %47 = vsyncadd [#allocation4], %s46
      %s48 = sshll.u32 [#allocation3], 4
      %s49 = int_to_ptr.vmem [resolvable:$true] %s48
      %54 = dma.hbm_to_vmem [thread:$0]  %s10, 16384, %s49, [#allocation4], 1024, 1024, 64
    $region45: #{channel_mamba_layer_pallas.1} parent=1 // pred_fallthru
      _
    // Predicated region
    $region46: #{channel_mamba_layer_pallas.1} parent=1 // pred_check
      _
    $region47: #{channel_mamba_layer_pallas.1} parent=1 // pred_check_branch
      %56 = sbr.rel (0) target = $region49
    $region48: #{channel_mamba_layer_pallas.1} parent=1 // pred_region
      _
    $region49: #{channel_mamba_layer_pallas.1} parent=1 // pred_fallthru
      _
    // Predicated region
    $region50: #{channel_mamba_layer_pallas.1} parent=1 // pred_check
      _
    $region51: #{channel_mamba_layer_pallas.1} parent=1 // pred_check_branch
      %58 = sbr.rel (0) target = $region53
    $region52: #{channel_mamba_layer_pallas.1} parent=1 // pred_region
      _
    $region53: #{channel_mamba_layer_pallas.1} parent=1 // pred_fallthru
      _
    // Predicated region
    $region54: #{channel_mamba_layer_pallas.1} parent=1 // pred_check
      _
    $region55: #{channel_mamba_layer_pallas.1} parent=1 // pred_check_branch
      %60 = sbr.rel (0) target = $region57
    $region56: #{channel_mamba_layer_pallas.1} parent=1 // pred_region
      _
    $region57: #{channel_mamba_layer_pallas.1} parent=1 // pred_fallthru
      _
    // Predicated region
    $region58: #{channel_mamba_layer_pallas.1} parent=1 // pred_check
      _
    $region59: #{channel_mamba_layer_pallas.1} parent=1 // pred_check_branch
      %62 = sbr.rel (0) target = $region61
    $region60: #{channel_mamba_layer_pallas.1} parent=1 // pred_region
      _
    $region61: #{channel_mamba_layer_pallas.1} parent=1 // pred_fallthru
      _
    // Predicated region
    $region62: #{channel_mamba_layer_pallas.1} parent=1 // pred_check
      _
    $region63: #{channel_mamba_layer_pallas.1} parent=1 // pred_check_branch
      %64 = sbr.rel (0) target = $region65
    $region64: #{channel_mamba_layer_pallas.1} parent=1 // pred_region
      _
    $region65: #{channel_mamba_layer_pallas.1} parent=1 // pred_fallthru
      _
    // Predicated region
    $region66: #{channel_mamba_layer_pallas.1} parent=1 // pred_check
      _
    $region67: #{channel_mamba_layer_pallas.1} parent=1 // pred_check_branch
      %66 = sbr.rel (0) target = $region69
    $region68: #{channel_mamba_layer_pallas.1} parent=1 // pred_region
      %67 = dma.done [#allocation4], 16384
    $region69: #{channel_mamba_layer_pallas.1} parent=1 // pred_fallthru
      _
    %v68 = vlaneseq
    %v69 = vshrl.u32 %v68, 7
    %v70 = vadd.s32 %v69, 8
    %v71 = vlaneseq
    %v72 = vand.u32 %v71, 127
    %vm73 = vcmp.eq.s32.totalorder %v69, %v72
    %vm74 = vcmp.eq.s32.totalorder %v70, %v72
    %v75 = vsel %vm73, 1, 0
    %v76 = vsel %vm74, 1, 0
    %v77 = vcvt.s32.f32 %v75
    %v78 = vcvt.s32.f32 %v76
    %v79 = vld [vmem:[%s12] sm:$0xff]
    %v80 = vld [vmem:[%s12 + $0x8] sm:$0xff]
    %v81 = vld [vmem:[%s12 + $0x10] sm:$0xff]
    %v82 = vld [vmem:[%s12 + $0x18] sm:$0xff]
    %v83 = vld [vmem:[%s12 + $0x20] sm:$0xff]
    %v84 = vld [vmem:[%s12 + $0x28] sm:$0xff]
    %v85 = vld [vmem:[%s12 + $0x30] sm:$0xff]
    %v86 = vld [vmem:[%s12 + $0x38] sm:$0xff]
    %v87 = vld [vmem:[%s12 + $0x40] sm:$0xff]
    %v88 = vld [vmem:[%s12 + $0x48] sm:$0xff]
    %v89 = vld [vmem:[%s12 + $0x50] sm:$0xff]
    %v90 = vld [vmem:[%s12 + $0x58] sm:$0xff]
    %v91 = vld [vmem:[%s12 + $0x60] sm:$0xff]
    %v92 = vld [vmem:[%s12 + $0x68] sm:$0xff]
    %v93 = vld [vmem:[%s12 + $0x70] sm:$0xff]
    %v94 = vld [vmem:[%s12 + $0x78] sm:$0xff]
    %v95 = vld [vmem:[%s12 + $0x80] sm:$0xff]
    %v96 = vld [vmem:[%s12 + $0x88] sm:$0xff]
    %v97 = vld [vmem:[%s12 + $0x90] sm:$0xff]
    %v98 = vld [vmem:[%s12 + $0x98] sm:$0xff]
    %v99 = vld [vmem:[%s12 + $0xa0] sm:$0xff]
    %v100 = vld [vmem:[%s12 + $0xa8] sm:$0xff]
    %v101 = vld [vmem:[%s12 + $0xb0] sm:$0xff]
    %v102 = vld [vmem:[%s12 + $0xb8] sm:$0xff]
    %v103 = vld [vmem:[%s12 + $0xc0] sm:$0xff]
    %v104 = vld [vmem:[%s12 + $0xc8] sm:$0xff]
    %v105 = vld [vmem:[%s12 + $0xd0] sm:$0xff]
    %v106 = vld [vmem:[%s12 + $0xd8] sm:$0xff]
    %v107 = vld [vmem:[%s12 + $0xe0] sm:$0xff]
    %v108 = vld [vmem:[%s12 + $0xe8] sm:$0xff]
    %v109 = vld [vmem:[%s12 + $0xf0] sm:$0xff]
    %v110 = vld [vmem:[%s12 + $0xf8] sm:$0xff]
    %v111 = vld [vmem:[%s13] sm:$0xff]
    %v112 = vld [vmem:[%s13 + $0x8] sm:$0xff]
    %v113 = vld [vmem:[%s13 + $0x10] sm:$0xff]
    %v114 = vld [vmem:[%s13 + $0x18] sm:$0xff]
    %v115 = vld [vmem:[%s13 + $0x20] sm:$0xff]
    %v116 = vld [vmem:[%s13 + $0x28] sm:$0xff]
    %v117 = vld [vmem:[%s13 + $0x30] sm:$0xff]
    %v118 = vld [vmem:[%s13 + $0x38] sm:$0xff]
    %v119 = vld [vmem:[%s13 + $0x40] sm:$0xff]
    %v120 = vld [vmem:[%s13 + $0x48] sm:$0xff]
    %v121 = vld [vmem:[%s13 + $0x50] sm:$0xff]
    %v122 = vld [vmem:[%s13 + $0x58] sm:$0xff]
    %v123 = vld [vmem:[%s13 + $0x60] sm:$0xff]
    %v124 = vld [vmem:[%s13 + $0x68] sm:$0xff]
    %v125 = vld [vmem:[%s13 + $0x70] sm:$0xff]
    %v126 = vld [vmem:[%s13 + $0x78] sm:$0xff]
    %v127 = vld [vmem:[%s13 + $0x80] sm:$0xff]
    %v128 = vld [vmem:[%s13 + $0x88] sm:$0xff]
    %v129 = vld [vmem:[%s13 + $0x90] sm:$0xff]
    %v130 = vld [vmem:[%s13 + $0x98] sm:$0xff]
    %v131 = vld [vmem:[%s13 + $0xa0] sm:$0xff]
    %v132 = vld [vmem:[%s13 + $0xa8] sm:$0xff]
    %v133 = vld [vmem:[%s13 + $0xb0] sm:$0xff]
    %v134 = vld [vmem:[%s13 + $0xb8] sm:$0xff]
    %v135 = vld [vmem:[%s13 + $0xc0] sm:$0xff]
    %v136 = vld [vmem:[%s13 + $0xc8] sm:$0xff]
    %v137 = vld [vmem:[%s13 + $0xd0] sm:$0xff]
    %v138 = vld [vmem:[%s13 + $0xd8] sm:$0xff]
    %v139 = vld [vmem:[%s13 + $0xe0] sm:$0xff]
    %v140 = vld [vmem:[%s13 + $0xe8] sm:$0xff]
    %v141 = vld [vmem:[%s13 + $0xf0] sm:$0xff]
    %v142 = vld [vmem:[%s13 + $0xf8] sm:$0xff]
    %v143 = vld [vmem:[%s13 + $0x100] sm:$0xff]
    %v144 = vld [vmem:[%s13 + $0x108] sm:$0xff]
    %v145 = vld [vmem:[%s13 + $0x110] sm:$0xff]
    %v146 = vld [vmem:[%s13 + $0x118] sm:$0xff]
    %v147 = vld [vmem:[%s13 + $0x120] sm:$0xff]
    %v148 = vld [vmem:[%s13 + $0x128] sm:$0xff]
    %v149 = vld [vmem:[%s13 + $0x130] sm:$0xff]
    %v150 = vld [vmem:[%s13 + $0x138] sm:$0xff]
    %v151 = vld [vmem:[%s13 + $0x140] sm:$0xff]
    %v152 = vld [vmem:[%s13 + $0x148] sm:$0xff]
    %v153 = vld [vmem:[%s13 + $0x150] sm:$0xff]
    %v154 = vld [vmem:[%s13 + $0x158] sm:$0xff]
    %v155 = vld [vmem:[%s13 + $0x160] sm:$0xff]
    %v156 = vld [vmem:[%s13 + $0x168] sm:$0xff]
    %v157 = vld [vmem:[%s13 + $0x170] sm:$0xff]
    %v158 = vld [vmem:[%s13 + $0x178] sm:$0xff]
    %v159 = vld [vmem:[%s13 + $0x180] sm:$0xff]
    %v160 = vld [vmem:[%s13 + $0x188] sm:$0xff]
    %v161 = vld [vmem:[%s13 + $0x190] sm:$0xff]
    %v162 = vld [vmem:[%s13 + $0x198] sm:$0xff]
    %v163 = vld [vmem:[%s13 + $0x1a0] sm:$0xff]
    %v164 = vld [vmem:[%s13 + $0x1a8] sm:$0xff]
    %v165 = vld [vmem:[%s13 + $0x1b0] sm:$0xff]
    %v166 = vld [vmem:[%s13 + $0x1b8] sm:$0xff]
    %v167 = vld [vmem:[%s13 + $0x1c0] sm:$0xff]
    %v168 = vld [vmem:[%s13 + $0x1c8] sm:$0xff]
    %v169 = vld [vmem:[%s13 + $0x1d0] sm:$0xff]
    %v170 = vld [vmem:[%s13 + $0x1d8] sm:$0xff]
    %v171 = vld [vmem:[%s13 + $0x1e0] sm:$0xff]
    %v172 = vld [vmem:[%s13 + $0x1e8] sm:$0xff]
    %v173 = vld [vmem:[%s13 + $0x1f0] sm:$0xff]
    %v174 = vld [vmem:[%s13 + $0x1f8] sm:$0xff]
    %v175 = vld [vmem:[%s1] sm:$0xff]
    %v176 = vld [vmem:[%s1 + $0x8] sm:$0xff]
    %v177 = vld [vmem:[%s1 + $0x10] sm:$0xff]
    %v178 = vld [vmem:[%s1 + $0x18] sm:$0xff]
    %v179 = vld [vmem:[%s1 + $0x20] sm:$0xff]
    %v180 = vld [vmem:[%s1 + $0x28] sm:$0xff]
    %v181 = vld [vmem:[%s1 + $0x30] sm:$0xff]
    %v182 = vld [vmem:[%s1 + $0x38] sm:$0xff]
    %v183 = vld [vmem:[%s1 + $0x40] sm:$0xff]
    %v184 = vld [vmem:[%s1 + $0x48] sm:$0xff]
    %v185 = vld [vmem:[%s1 + $0x50] sm:$0xff]
    %v186 = vld [vmem:[%s1 + $0x58] sm:$0xff]
    %v187 = vld [vmem:[%s0] sm:$0xff]
    %v188 = vld [vmem:[%s0 + $0x8] sm:$0xff]
    %vm189 = vcmask 130048
    %v191 = vsel %vm189, %v77, 0
    %v194 = vsel %vm189, %v78, 0
    %v197 = vsel %vm189, %v187, 0
    %v200 = vsel %vm189, %v188, 0
    %202 = vmatprep.subr.mxu0 0.0
    %203 = vmatpush1.xpose.msra.mxu0 %v197
    %204 = vmatprep.subr.mxu0 0.0
    %205 = vmatpush1.xpose.msra.mxu0 %v200
    %206 = vmatprep.subr.mxu0 0.0
    %207 = vmatpush1.xpose.msra.mxu0 0.0
    %208 = vmatprep.subr.mxu0 0.0
    %209 = vmatpush1.xpose.msra.mxu0 0.0
    %210 = vmatprep.subr.mxu0 0.0
    %211 = vmatpush1.xpose.msra.mxu0 0.0
    %212 = vmatprep.subr.mxu0 0.0
    %213 = vmatpush1.xpose.msra.mxu0 0.0
    %214 = vmatprep.subr.mxu0 0.0
    %215 = vmatpush1.xpose.msra.mxu0 0.0
    %216 = vmatprep.subr.mxu0 0.0
    %217 = vmatpush1.xpose.msra.mxu0 0.0
    %218 = vmatprep.subr.mxu0 0.0
    %219 = vmatpush1.xpose.msra.mxu0 0.0
    %220 = vmatprep.subr.mxu0 0.0
    %221 = vmatpush1.xpose.msra.mxu0 0.0
    %222 = vmatprep.subr.mxu0 0.0
    %223 = vmatpush1.xpose.msra.mxu0 0.0
    %224 = vmatprep.subr.mxu0 0.0
    %225 = vmatpush1.xpose.msra.mxu0 0.0
    %226 = vmatprep.subr.mxu0 0.0
    %227 = vmatpush1.xpose.msra.mxu0 0.0
    %228 = vmatprep.subr.mxu0 0.0
    %229 = vmatpush1.xpose.msra.mxu0 0.0
    %230 = vmatprep.subr.mxu0 0.0
    %231 = vmatpush1.xpose.msra.mxu0 0.0
    %232 = vmatprep.subr.mxu0 0.0
    %233 = vmatpush1.xpose.msra.mxu0 0.0
    %234 = vmatprep.subr.mxu0 0.0
    %235 = vmatpush1.xpose.msra.mxu0 0.0
    %236 = vmatprep.subr.mxu0 0.0
    %237 = vmatpush1.xpose.msra.mxu0 0.0
    %238 = vmatprep.subr.mxu0 0.0
    %239 = vmatpush1.xpose.msra.mxu0 0.0
    %240 = vmatprep.subr.mxu0 0.0
    %241 = vmatpush1.xpose.msra.mxu0 0.0
    %242 = vmatprep.subr.mxu0 0.0
    %243 = vmatpush1.xpose.msra.mxu0 0.0
    %244 = vmatprep.subr.mxu0 0.0
    %245 = vmatpush1.xpose.msra.mxu0 0.0
    %246 = vmatprep.subr.mxu0 0.0
    %247 = vmatpush1.xpose.msra.mxu0 0.0
    %248 = vmatprep.subr.mxu0 0.0
    %249 = vmatpush1.xpose.msra.mxu0 0.0
    %250 = vmatprep.subr.mxu0 0.0
    %251 = vmatpush1.xpose.msra.mxu0 0.0
    %252 = vmatprep.subr.mxu0 0.0
    %253 = vmatpush1.xpose.msra.mxu0 0.0
    %254 = vmatprep.subr.mxu0 0.0
    %255 = vmatpush1.xpose.msra.mxu0 0.0
    %256 = vmatprep.subr.mxu0 0.0
    %257 = vmatpush1.xpose.msra.mxu0 0.0
    %258 = vmatprep.subr.mxu0 0.0
    %259 = vmatpush1.xpose.msra.mxu0 0.0
    %260 = vmatprep.subr.mxu0 0.0
    %261 = vmatpush1.xpose.msra.mxu0 0.0
    %262 = vmatprep.subr.mxu0 0.0
    %263 = vmatpush1.xpose.msra.mxu0 0.0
    %264 = vmatprep.subr.mxu0 0.0
    %265 = vmatpush1.xpose.msra.mxu0 0.0
    %266 = vmatprep.mubr.f32.mxu0 0.0
    %267 = vmatmul.mubr.f32.gmra.mrb[0].mxu0 %v191
    %v268 = vpop.f32.mrb[0].mxu0
    %v269 = vadd.f32 0.0, %v268
    %v270 = vpop.f32.mrb[0].mxu0
    %271 = vmatprep.mubr.f32.mxu0 0.0
    %272 = vmatmul.mubr.f32.gmra.mrb[0].mxu0 %v194
    %v273 = vpop.f32.mrb[0].mxu0
    %v274 = vadd.f32 0.0, %v273
    %v275 = vpop.f32.mrb[0].mxu0
    %276 = vdwg.mxu0
    %s277 = scalar_lea.vmem %s0, 16
    %v278 = vld [vmem:[%s277] sm:$0xff]
    %v279 = vld [vmem:[%s277 + $0x8] sm:$0xff]
    %v281 = vsel %vm189, %v278, 0
    %v284 = vsel %vm189, %v279, 0
    %286 = vmatprep.subr.mxu0 0.0
    %287 = vmatpush1.xpose.msra.mxu0 %v281
    %288 = vmatprep.subr.mxu0 0.0
    %289 = vmatpush1.xpose.msra.mxu0 %v284
    %290 = vmatprep.subr.mxu0 0.0
    %291 = vmatpush1.xpose.msra.mxu0 0.0
    %292 = vmatprep.subr.mxu0 0.0
    %293 = vmatpush1.xpose.msra.mxu0 0.0
    %294 = vmatprep.subr.mxu0 0.0
    %295 = vmatpush1.xpose.msra.mxu0 0.0
    %296 = vmatprep.subr.mxu0 0.0
    %297 = vmatpush1.xpose.msra.mxu0 0.0
    %298 = vmatprep.subr.mxu0 0.0
    %299 = vmatpush1.xpose.msra.mxu0 0.0
    %300 = vmatprep.subr.mxu0 0.0
    %301 = vmatpush1.xpose.msra.mxu0 0.0
    %302 = vmatprep.subr.mxu0 0.0
    %303 = vmatpush1.xpose.msra.mxu0 0.0
    %304 = vmatprep.subr.mxu0 0.0
    %305 = vmatpush1.xpose.msra.mxu0 0.0
    %306 = vmatprep.subr.mxu0 0.0
    %307 = vmatpush1.xpose.msra.mxu0 0.0
    %308 = vmatprep.subr.mxu0 0.0
    %309 = vmatpush1.xpose.msra.mxu0 0.0
    %310 = vmatprep.subr.mxu0 0.0
    %311 = vmatpush1.xpose.msra.mxu0 0.0
    %312 = vmatprep.subr.mxu0 0.0
    %313 = vmatpush1.xpose.msra.mxu0 0.0
    %314 = vmatprep.subr.mxu0 0.0
    %315 = vmatpush1.xpose.msra.mxu0 0.0
    %316 = vmatprep.subr.mxu0 0.0
    %317 = vmatpush1.xpose.msra.mxu0 0.0
    %318 = vmatprep.subr.mxu0 0.0
    %319 = vmatpush1.xpose.msra.mxu0 0.0
    %320 = vmatprep.subr.mxu0 0.0
    %321 = vmatpush1.xpose.msra.mxu0 0.0
    %322 = vmatprep.subr.mxu0 0.0
    %323 = vmatpush1.xpose.msra.mxu0 0.0
    %324 = vmatprep.subr.mxu0 0.0
    %325 = vmatpush1.xpose.msra.mxu0 0.0
    %326 = vmatprep.subr.mxu0 0.0
    %327 = vmatpush1.xpose.msra.mxu0 0.0
    %328 = vmatprep.subr.mxu0 0.0
    %329 = vmatpush1.xpose.msra.mxu0 0.0
    %330 = vmatprep.subr.mxu0 0.0
    %331 = vmatpush1.xpose.msra.mxu0 0.0
    %332 = vmatprep.subr.mxu0 0.0
    %333 = vmatpush1.xpose.msra.mxu0 0.0
    %334 = vmatprep.subr.mxu0 0.0
    %335 = vmatpush1.xpose.msra.mxu0 0.0
    %336 = vmatprep.subr.mxu0 0.0
    %337 = vmatpush1.xpose.msra.mxu0 0.0
    %338 = vmatprep.subr.mxu0 0.0
    %339 = vmatpush1.xpose.msra.mxu0 0.0
    %340 = vmatprep.subr.mxu0 0.0
    %341 = vmatpush1.xpose.msra.mxu0 0.0
    %342 = vmatprep.subr.mxu0 0.0
    %343 = vmatpush1.xpose.msra.mxu0 0.0
    %344 = vmatprep.subr.mxu0 0.0
    %345 = vmatpush1.xpose.msra.mxu0 0.0
    %346 = vmatprep.subr.mxu0 0.0
    %347 = vmatpush1.xpose.msra.mxu0 0.0
    %348 = vmatprep.subr.mxu0 0.0
    %349 = vmatpush1.xpose.msra.mxu0 0.0
    %350 = vmatprep.mubr.f32.mxu0 0.0
    %351 = vmatmul.mubr.f32.gmra.mrb[0].mxu0 %v191
    %v352 = vpop.f32.mrb[0].mxu0
    %v353 = vadd.f32 0.0, %v352
    %v354 = vpop.f32.mrb[0].mxu0
    %355 = vmatprep.mubr.f32.mxu0 0.0
    %356 = vmatmul.mubr.f32.gmra.mrb[0].mxu0 %v194
    %v357 = vpop.f32.mrb[0].mxu0
    %v358 = vadd.f32 0.0, %v357
    %v359 = vpop.f32.mrb[0].mxu0
    %360 = vdwg.mxu0
    %v361 = vld [vmem:[%s2] sm:$0xff]
    %v362 = vld [vmem:[%s2 + $0x8] sm:$0xff]
    %v363 = vld [vmem:[%s3] sm:$0x1]
    %v365 = vlaneseq
    %v366 = vshrl.u32 %v365, 7
    %v367 = vsub.s32 0, %v366
    %v368 = vrot.slane %v363, %v367
    %v371 = vsel %vm189, %v269, 0
    %v374 = vsel %vm189, %v274, 0
    %v377 = vsel %vm189, %v353, 0
    %v380 = vsel %vm189, %v358, 0
    %382 = vmatprep.subr.mxu0 0.0
    %383 = vmatpush1.msra.mxu0 %v361
    %384 = vmatprep.subr.mxu0 0.0
    %385 = vmatpush1.msra.mxu0 %v362
    %386 = vmatprep.subr.mxu0 0.0
    %387 = vmatpush1.msra.mxu0 0.0
    %388 = vmatprep.subr.mxu0 0.0
    %389 = vmatpush1.msra.mxu0 0.0
    %390 = vmatprep.subr.mxu0 0.0
    %391 = vmatpush1.msra.mxu0 0.0
    %392 = vmatprep.subr.mxu0 0.0
    %393 = vmatpush1.msra.mxu0 0.0
    %394 = vmatprep.subr.mxu0 0.0
    %395 = vmatpush1.msra.mxu0 0.0
    %396 = vmatprep.subr.mxu0 0.0
    %397 = vmatpush1.msra.mxu0 0.0
    %398 = vmatprep.subr.mxu0 0.0
    %399 = vmatpush1.msra.mxu0 0.0
    %400 = vmatprep.subr.mxu0 0.0
    %401 = vmatpush1.msra.mxu0 0.0
    %402 = vmatprep.subr.mxu0 0.0
    %403 = vmatpush1.msra.mxu0 0.0
    %404 = vmatprep.subr.mxu0 0.0
    %405 = vmatpush1.msra.mxu0 0.0
    %406 = vmatprep.subr.mxu0 0.0
    %407 = vmatpush1.msra.mxu0 0.0
    %408 = vmatprep.subr.mxu0 0.0
    %409 = vmatpush1.msra.mxu0 0.0
    %410 = vmatprep.subr.mxu0 0.0
    %411 = vmatpush1.msra.mxu0 0.0
    %412 = vmatprep.subr.mxu0 0.0
    %413 = vmatpush1.msra.mxu0 0.0
    %414 = vmatprep.subr.mxu0 0.0
    %415 = vmatpush1.msra.mxu0 0.0
    %416 = vmatprep.subr.mxu0 0.0
    %417 = vmatpush1.msra.mxu0 0.0
    %418 = vmatprep.subr.mxu0 0.0
    %419 = vmatpush1.msra.mxu0 0.0
    %420 = vmatprep.subr.mxu0 0.0
    %421 = vmatpush1.msra.mxu0 0.0
    %422 = vmatprep.subr.mxu0 0.0
    %423 = vmatpush1.msra.mxu0 0.0
    %424 = vmatprep.subr.mxu0 0.0
    %425 = vmatpush1.msra.mxu0 0.0
    %426 = vmatprep.subr.mxu0 0.0
    %427 = vmatpush1.msra.mxu0 0.0
    %428 = vmatprep.subr.mxu0 0.0
    %429 = vmatpush1.msra.mxu0 0.0
    %430 = vmatprep.subr.mxu0 0.0
    %431 = vmatpush1.msra.mxu0 0.0
    %432 = vmatprep.subr.mxu0 0.0
    %433 = vmatpush1.msra.mxu0 0.0
    %434 = vmatprep.subr.mxu0 0.0
    %435 = vmatpush1.msra.mxu0 0.0
    %436 = vmatprep.subr.mxu0 0.0
    %437 = vmatpush1.msra.mxu0 0.0
    %438 = vmatprep.subr.mxu0 0.0
    %439 = vmatpush1.msra.mxu0 0.0
    %440 = vmatprep.subr.mxu0 0.0
    %441 = vmatpush1.msra.mxu0 0.0
    %442 = vmatprep.subr.mxu0 0.0
    %443 = vmatpush1.msra.mxu0 0.0
    %444 = vmatprep.subr.mxu0 0.0
    %445 = vmatpush1.msra.mxu0 0.0
    %446 = vmatprep.mubr.f32.mxu0 0.0
    %447 = vmatmul.mubr.f32.gmra.mrb[0].mxu0 %v371
    %v448 = vpop.f32.mrb[0].mxu0
    %v449 = vadd.f32 %v368, %v448
    %v450 = vpop.f32.mrb[0].mxu0
    %451 = vmatprep.mubr.f32.mxu0 0.0
    %452 = vmatmul.mubr.f32.gmra.mrb[0].mxu0 %v374
    %v453 = vpop.f32.mrb[0].mxu0
    %v454 = vadd.f32 %v368, %v453
    %v455 = vpop.f32.mrb[0].mxu0
    %456 = vmatprep.mubr.f32.mxu0 0.0
    %457 = vmatmul.mubr.f32.gmra.mrb[0].mxu0 %v377
    %v458 = vpop.f32.mrb[0].mxu0
    %v459 = vadd.f32 %v368, %v458
    %v460 = vpop.f32.mrb[0].mxu0
    %461 = vmatprep.mubr.f32.mxu0 0.0
    %462 = vmatmul.mubr.f32.gmra.mrb[0].mxu0 %v380
    %v463 = vpop.f32.mrb[0].mxu0
    %v464 = vadd.f32 %v368, %v463
    %v465 = vpop.f32.mrb[0].mxu0
    %466 = vdwg.mxu0
    %v467 = vld [vmem:[%s4] sm:$0xff]
    %v468 = vld [vmem:[%s4 + $0x8] sm:$0xff]
    %v469 = vld [vmem:[%s5] sm:$0x1]
    %v471 = vlaneseq
    %v472 = vshrl.u32 %v471, 7
    %v473 = vsub.s32 0, %v472
    %v474 = vrot.slane %v469, %v473
    %476 = vmatprep.subr.mxu0 0.0
    %477 = vmatpush1.msra.mxu0 %v467
    %478 = vmatprep.subr.mxu0 0.0
    %479 = vmatpush1.msra.mxu0 %v468
    %480 = vmatprep.subr.mxu0 0.0
    %481 = vmatpush1.msra.mxu0 0.0
    %482 = vmatprep.subr.mxu0 0.0
    %483 = vmatpush1.msra.mxu0 0.0
    %484 = vmatprep.subr.mxu0 0.0
    %485 = vmatpush1.msra.mxu0 0.0
    %486 = vmatprep.subr.mxu0 0.0
    %487 = vmatpush1.msra.mxu0 0.0
    %488 = vmatprep.subr.mxu0 0.0
    %489 = vmatpush1.msra.mxu0 0.0
    %490 = vmatprep.subr.mxu0 0.0
    %491 = vmatpush1.msra.mxu0 0.0
    %492 = vmatprep.subr.mxu0 0.0
    %493 = vmatpush1.msra.mxu0 0.0
    %494 = vmatprep.subr.mxu0 0.0
    %495 = vmatpush1.msra.mxu0 0.0
    %496 = vmatprep.subr.mxu0 0.0
    %497 = vmatpush1.msra.mxu0 0.0
    %498 = vmatprep.subr.mxu0 0.0
    %499 = vmatpush1.msra.mxu0 0.0
    %500 = vmatprep.subr.mxu0 0.0
    %501 = vmatpush1.msra.mxu0 0.0
    %502 = vmatprep.subr.mxu0 0.0
    %503 = vmatpush1.msra.mxu0 0.0
    %504 = vmatprep.subr.mxu0 0.0
    %505 = vmatpush1.msra.mxu0 0.0
    %506 = vmatprep.subr.mxu0 0.0
    %507 = vmatpush1.msra.mxu0 0.0
    %508 = vmatprep.subr.mxu0 0.0
    %509 = vmatpush1.msra.mxu0 0.0
    %510 = vmatprep.subr.mxu0 0.0
    %511 = vmatpush1.msra.mxu0 0.0
    %512 = vmatprep.subr.mxu0 0.0
    %513 = vmatpush1.msra.mxu0 0.0
    %514 = vmatprep.subr.mxu0 0.0
    %515 = vmatpush1.msra.mxu0 0.0
    %516 = vmatprep.subr.mxu0 0.0
    %517 = vmatpush1.msra.mxu0 0.0
    %518 = vmatprep.subr.mxu0 0.0
    %519 = vmatpush1.msra.mxu0 0.0
    %520 = vmatprep.subr.mxu0 0.0
    %521 = vmatpush1.msra.mxu0 0.0
    %522 = vmatprep.subr.mxu0 0.0
    %523 = vmatpush1.msra.mxu0 0.0
    %524 = vmatprep.subr.mxu0 0.0
    %525 = vmatpush1.msra.mxu0 0.0
    %526 = vmatprep.subr.mxu0 0.0
    %527 = vmatpush1.msra.mxu0 0.0
    %528 = vmatprep.subr.mxu0 0.0
    %529 = vmatpush1.msra.mxu0 0.0
    %530 = vmatprep.subr.mxu0 0.0
    %531 = vmatpush1.msra.mxu0 0.0
    %532 = vmatprep.subr.mxu0 0.0
    %533 = vmatpush1.msra.mxu0 0.0
    %534 = vmatprep.subr.mxu0 0.0
    %535 = vmatpush1.msra.mxu0 0.0
    %536 = vmatprep.subr.mxu0 0.0
    %537 = vmatpush1.msra.mxu0 0.0
    %538 = vmatprep.subr.mxu0 0.0
    %539 = vmatpush1.msra.mxu0 0.0
    %540 = vmatprep.mubr.f32.mxu0 0.0
    %541 = vmatmul.mubr.f32.gmra.mrb[0].mxu0 %v371
    %v542 = vpop.f32.mrb[0].mxu0
    %v543 = vadd.f32 %v474, %v542
    %v544 = vpop.f32.mrb[0].mxu0
    %545 = vmatprep.mubr.f32.mxu0 0.0
    %546 = vmatmul.mubr.f32.gmra.mrb[0].mxu0 %v374
    %v547 = vpop.f32.mrb[0].mxu0
    %v548 = vadd.f32 %v474, %v547
    %v549 = vpop.f32.mrb[0].mxu0
    %550 = vmatprep.mubr.f32.mxu0 0.0
    %551 = vmatmul.mubr.f32.gmra.mrb[0].mxu0 %v377
    %v552 = vpop.f32.mrb[0].mxu0
    %v553 = vadd.f32 %v474, %v552
    %v554 = vpop.f32.mrb[0].mxu0
    %555 = vmatprep.mubr.f32.mxu0 0.0
    %556 = vmatmul.mubr.f32.gmra.mrb[0].mxu0 %v380
    %v557 = vpop.f32.mrb[0].mxu0
    %v558 = vadd.f32 %v474, %v557
    %v559 = vpop.f32.mrb[0].mxu0
    %560 = vdwg.mxu0
    %vm561 = vcmask 261120
    %v563 = vsel %vm561, %v175, 0
    %v566 = vsel %vm561, %v176, 0
    %v569 = vsel %vm561, %v177, 0
    %v572 = vsel %vm561, %v178, 0
    %v575 = vsel %vm561, %v179, 0
    %v578 = vsel %vm561, %v180, 0
    %v581 = vsel %vm561, %v181, 0
    %v584 = vsel %vm561, %v182, 0
    %v587 = vsel %vm561, %v183, 0
    %v590 = vsel %vm561, %v184, 0
    %v593 = vsel %vm561, %v185, 0
    %v596 = vsel %vm561, %v186, 0
    %598 = vmatprep.subr.mxu0 0.0
    %599 = vmatpush1.msra.mxu0 %v449
    %600 = vmatprep.subr.mxu0 0.0
    %601 = vmatpush1.msra.mxu0 %v454
    %602 = vmatprep.subr.mxu0 0.0
    %603 = vmatpush1.msra.mxu0 %v459
    %604 = vmatprep.subr.mxu0 0.0
    %605 = vmatpush1.msra.mxu0 %v464
    %606 = vmatprep.subr.mxu0 0.0
    %607 = vmatpush1.msra.mxu0 0.0
    %608 = vmatprep.subr.mxu0 0.0
    %609 = vmatpush1.msra.mxu0 0.0
    %610 = vmatprep.subr.mxu0 0.0
    %611 = vmatpush1.msra.mxu0 0.0
    %612 = vmatprep.subr.mxu0 0.0
    %613 = vmatpush1.msra.mxu0 0.0
    %614 = vmatprep.subr.mxu0 0.0
    %615 = vmatpush1.msra.mxu0 0.0
    %616 = vmatprep.subr.mxu0 0.0
    %617 = vmatpush1.msra.mxu0 0.0
    %618 = vmatprep.subr.mxu0 0.0
    %619 = vmatpush1.msra.mxu0 0.0
    %620 = vmatprep.subr.mxu0 0.0
    %621 = vmatpush1.msra.mxu0 0.0
    %622 = vmatprep.subr.mxu0 0.0
    %623 = vmatpush1.msra.mxu0 0.0
    %624 = vmatprep.subr.mxu0 0.0
    %625 = vmatpush1.msra.mxu0 0.0
    %626 = vmatprep.subr.mxu0 0.0
    %627 = vmatpush1.msra.mxu0 0.0
    %628 = vmatprep.subr.mxu0 0.0
    %629 = vmatpush1.msra.mxu0 0.0
    %630 = vmatprep.subr.mxu0 0.0
    %631 = vmatpush1.msra.mxu0 0.0
    %632 = vmatprep.subr.mxu0 0.0
    %633 = vmatpush1.msra.mxu0 0.0
    %634 = vmatprep.subr.mxu0 0.0
    %635 = vmatpush1.msra.mxu0 0.0
    %636 = vmatprep.subr.mxu0 0.0
    %637 = vmatpush1.msra.mxu0 0.0
    %638 = vmatprep.subr.mxu0 0.0
    %639 = vmatpush1.msra.mxu0 0.0
    %640 = vmatprep.subr.mxu0 0.0
    %641 = vmatpush1.msra.mxu0 0.0
    %642 = vmatprep.subr.mxu0 0.0
    %643 = vmatpush1.msra.mxu0 0.0
    %644 = vmatprep.subr.mxu0 0.0
    %645 = vmatpush1.msra.mxu0 0.0
    %646 = vmatprep.subr.mxu0 0.0
    %647 = vmatpush1.msra.mxu0 0.0
    %648 = vmatprep.subr.mxu0 0.0
    %649 = vmatpush1.msra.mxu0 0.0
    %650 = vmatprep.subr.mxu0 0.0
    %651 = vmatpush1.msra.mxu0 0.0
    %652 = vmatprep.subr.mxu0 0.0
    %653 = vmatpush1.msra.mxu0 0.0
    %654 = vmatprep.subr.mxu0 0.0
    %655 = vmatpush1.msra.mxu0 0.0
    %656 = vmatprep.subr.mxu0 0.0
    %657 = vmatpush1.msra.mxu0 0.0
    %658 = vmatprep.subr.mxu0 0.0
    %659 = vmatpush1.msra.mxu0 0.0
    %660 = vmatprep.subr.mxu0 0.0
    %661 = vmatpush1.msra.mxu0 0.0
    %662 = vmatprep.mubr.f32.mxu0 0.0
    %663 = vmatmul.mubr.f32.gmra.mrb[0].mxu0 %v563
    %v664 = vpop.f32.mrb[0].mxu0
    %v665 = vadd.f32 0.0, %v664
    %v666 = vpop.f32.mrb[0].mxu0
    %667 = vmatprep.mubr.f32.mxu0 0.0
    %668 = vmatmul.mubr.f32.gmra.mrb[0].mxu0 %v566
    %v669 = vpop.f32.mrb[0].mxu0
    %v670 = vadd.f32 0.0, %v669
    %v671 = vpop.f32.mrb[0].mxu0
    %672 = vmatprep.mubr.f32.mxu0 0.0
    %673 = vmatmul.mubr.f32.gmra.mrb[0].mxu0 %v569
    %v674 = vpop.f32.mrb[0].mxu0
    %v675 = vadd.f32 0.0, %v674
    %v676 = vpop.f32.mrb[0].mxu0
    %677 = vmatprep.mubr.f32.mxu0 0.0
    %678 = vmatmul.mubr.f32.gmra.mrb[0].mxu0 %v572
    %v679 = vpop.f32.mrb[0].mxu0
    %v680 = vadd.f32 0.0, %v679
    %v681 = vpop.f32.mrb[0].mxu0
    %682 = vmatprep.mubr.f32.mxu0 0.0
    %683 = vmatmul.mubr.f32.gmra.mrb[0].mxu0 %v575
    %v684 = vpop.f32.mrb[0].mxu0
    %v685 = vadd.f32 0.0, %v684
    %v686 = vpop.f32.mrb[0].mxu0
    %687 = vmatprep.mubr.f32.mxu0 0.0
    %688 = vmatmul.mubr.f32.gmra.mrb[0].mxu0 %v578
    %v689 = vpop.f32.mrb[0].mxu0
    %v690 = vadd.f32 0.0, %v689
    %v691 = vpop.f32.mrb[0].mxu0
    %692 = vmatprep.mubr.f32.mxu0 0.0
    %693 = vmatmul.mubr.f32.gmra.mrb[0].mxu0 %v581
    %v694 = vpop.f32.mrb[0].mxu0
    %v695 = vadd.f32 0.0, %v694
    %v696 = vpop.f32.mrb[0].mxu0
    %697 = vmatprep.mubr.f32.mxu0 0.0
    %698 = vmatmul.mubr.f32.gmra.mrb[0].mxu0 %v584
    %v699 = vpop.f32.mrb[0].mxu0
    %v700 = vadd.f32 0.0, %v699
    %v701 = vpop.f32.mrb[0].mxu0
    %702 = vmatprep.mubr.f32.mxu0 0.0
    %703 = vmatmul.mubr.f32.gmra.mrb[0].mxu0 %v587
    %v704 = vpop.f32.mrb[0].mxu0
    %v705 = vadd.f32 0.0, %v704
    %v706 = vpop.f32.mrb[0].mxu0
    %707 = vmatprep.mubr.f32.mxu0 0.0
    %708 = vmatmul.mubr.f32.gmra.mrb[0].mxu0 %v590
    %v709 = vpop.f32.mrb[0].mxu0
    %v710 = vadd.f32 0.0, %v709
    %v711 = vpop.f32.mrb[0].mxu0
    %712 = vmatprep.mubr.f32.mxu0 0.0
    %713 = vmatmul.mubr.f32.gmra.mrb[0].mxu0 %v593
    %v714 = vpop.f32.mrb[0].mxu0
    %v715 = vadd.f32 0.0, %v714
    %v716 = vpop.f32.mrb[0].mxu0
    %717 = vmatprep.mubr.f32.mxu0 0.0
    %718 = vmatmul.mubr.f32.gmra.mrb[0].mxu0 %v596
    %v719 = vpop.f32.mrb[0].mxu0
    %v720 = vadd.f32 0.0, %v719
    %v721 = vpop.f32.mrb[0].mxu0
    %722 = vdwg.mxu0
    %v723 = vld [vmem:[%s6] sm:$0x7]
    %v724 = vlaneseq
    %v725 = vshrl.u32 %v724, 7
    %v726 = vsub.s32 0, %v725
    %v727 = vrot.slane %v723, %v726
    %v728 = vmul.f32 %v665, %v727
    %v729 = vmul.f32 %v670, %v727
    %v730 = vmul.f32 %v675, %v727
    %v731 = vmul.f32 %v680, %v727
    %v732 = vlaneseq
    %v733 = vshrl.u32 %v732, 7
    %v734 = vsub.s32 1, %v733
    %v735 = vrot.slane %v723, %v734
    %v736 = vmul.f32 %v685, %v735
    %v737 = vmul.f32 %v690, %v735
    %v738 = vmul.f32 %v695, %v735
    %v739 = vmul.f32 %v700, %v735
    %v740 = vadd.f32 %v728, %v736
    %v741 = vadd.f32 %v729, %v737
    %v742 = vadd.f32 %v730, %v738
    %v743 = vadd.f32 %v731, %v739
    %v744 = vlaneseq
    %v745 = vshrl.u32 %v744, 7
    %v746 = vsub.s32 2, %v745
    %v747 = vrot.slane %v723, %v746
    %v748 = vmul.f32 %v705, %v747
    %v749 = vmul.f32 %v710, %v747
    %v750 = vmul.f32 %v715, %v747
    %v751 = vmul.f32 %v720, %v747
    %v752 = vadd.f32 %v740, %v748
    %v753 = vadd.f32 %v741, %v749
    %v754 = vadd.f32 %v742, %v750
    %v755 = vadd.f32 %v743, %v751
    %v756 = vld [vmem:[%s7] sm:$0x1]
    %v758 = vlaneseq
    %v759 = vshrl.u32 %v758, 7
    %v760 = vsub.s32 0, %v759
    %v761 = vrot.slane %v756, %v760
    %v763 = vadd.f32 %v752, %v761
    %v764 = vadd.f32 %v753, %v761
    %v765 = vadd.f32 %v754, %v761
    %v766 = vadd.f32 %v755, %v761
    %v767 = vmul.f32 %v763, 0.5
    %v768 = vmul.f32 %v764, 0.5
    %v769 = vmul.f32 %v765, 0.5
    %v770 = vmul.f32 %v766, 0.5
    %v771 = vtanh.pop %v767
    %v772 = vtanh.pop %v768
    %v773 = vtanh.pop %v769
    %v774 = vtanh.pop %v770
    %v775 = vadd.f32 %v771, 1.0
    %v776 = vadd.f32 %v772, 1.0
    %v777 = vadd.f32 %v773, 1.0
    %v778 = vadd.f32 %v774, 1.0
    %v779 = vmul.f32 %v767, %v775
    %v780 = vmul.f32 %v768, %v776
    %v781 = vmul.f32 %v769, %v777
    %v782 = vmul.f32 %v770, %v778
    %v783 = vld [vmem:[%s8] sm:$0xff]
    %v784 = vld [vmem:[%s8 + $0x8] sm:$0xff]
    %v785 = vld [vmem:[%s8 + $0x10] sm:$0xff]
    %v786 = vld [vmem:[%s8 + $0x18] sm:$0xff]
    %v787 = vld [vmem:[%s8 + $0x20] sm:$0xff]
    %v788 = vld [vmem:[%s8 + $0x28] sm:$0xff]
    %v789 = vld [vmem:[%s8 + $0x30] sm:$0xff]
    %v790 = vld [vmem:[%s8 + $0x38] sm:$0xff]
    %v791 = vld [vmem:[%s9] sm:$0x1]
    %v793 = vlaneseq
    %v794 = vshrl.u32 %v793, 7
    %v795 = vsub.s32 0, %v794
    %v796 = vrot.slane %v791, %v795
    %vm798 = vcmask 523264
    %v800 = vsel %vm798, %v779, 0
    %v803 = vsel %vm798, %v780, 0
    %v806 = vsel %vm798, %v781, 0
    %v809 = vsel %vm798, %v782, 0
    %811 = vmatprep.subr.mxu0 0.0
    %812 = vmatpush1.msra.mxu0 %v783
    %813 = vmatprep.subr.mxu0 0.0
    %814 = vmatpush1.msra.mxu0 %v784
    %815 = vmatprep.subr.mxu0 0.0
    %816 = vmatpush1.msra.mxu0 %v785
    %817 = vmatprep.subr.mxu0 0.0
    %818 = vmatpush1.msra.mxu0 %v786
    %819 = vmatprep.subr.mxu0 0.0
    %820 = vmatpush1.msra.mxu0 %v787
    %821 = vmatprep.subr.mxu0 0.0
    %822 = vmatpush1.msra.mxu0 %v788
    %823 = vmatprep.subr.mxu0 0.0
    %824 = vmatpush1.msra.mxu0 %v789
    %825 = vmatprep.subr.mxu0 0.0
    %826 = vmatpush1.msra.mxu0 %v790
    %827 = vmatprep.subr.mxu0 0.0
    %828 = vmatpush1.msra.mxu0 0.0
    %829 = vmatprep.subr.mxu0 0.0
    %830 = vmatpush1.msra.mxu0 0.0
    %831 = vmatprep.subr.mxu0 0.0
    %832 = vmatpush1.msra.mxu0 0.0
    %833 = vmatprep.subr.mxu0 0.0
    %834 = vmatpush1.msra.mxu0 0.0
    %835 = vmatprep.subr.mxu0 0.0
    %836 = vmatpush1.msra.mxu0 0.0
    %837 = vmatprep.subr.mxu0 0.0
    %838 = vmatpush1.msra.mxu0 0.0
    %839 = vmatprep.subr.mxu0 0.0
    %840 = vmatpush1.msra.mxu0 0.0
    %841 = vmatprep.subr.mxu0 0.0
    %842 = vmatpush1.msra.mxu0 0.0
    %843 = vmatprep.subr.mxu0 0.0
    %844 = vmatpush1.msra.mxu0 0.0
    %845 = vmatprep.subr.mxu0 0.0
    %846 = vmatpush1.msra.mxu0 0.0
    %847 = vmatprep.subr.mxu0 0.0
    %848 = vmatpush1.msra.mxu0 0.0
    %849 = vmatprep.subr.mxu0 0.0
    %850 = vmatpush1.msra.mxu0 0.0
    %851 = vmatprep.subr.mxu0 0.0
    %852 = vmatpush1.msra.mxu0 0.0
    %853 = vmatprep.subr.mxu0 0.0
    %854 = vmatpush1.msra.mxu0 0.0
    %855 = vmatprep.subr.mxu0 0.0
    %856 = vmatpush1.msra.mxu0 0.0
    %857 = vmatprep.subr.mxu0 0.0
    %858 = vmatpush1.msra.mxu0 0.0
    %859 = vmatprep.subr.mxu0 0.0
    %860 = vmatpush1.msra.mxu0 0.0
    %861 = vmatprep.subr.mxu0 0.0
    %862 = vmatpush1.msra.mxu0 0.0
    %863 = vmatprep.subr.mxu0 0.0
    %864 = vmatpush1.msra.mxu0 0.0
    %865 = vmatprep.subr.mxu0 0.0
    %866 = vmatpush1.msra.mxu0 0.0
    %867 = vmatprep.subr.mxu0 0.0
    %868 = vmatpush1.msra.mxu0 0.0
    %869 = vmatprep.subr.mxu0 0.0
    %870 = vmatpush1.msra.mxu0 0.0
    %871 = vmatprep.subr.mxu0 0.0
    %872 = vmatpush1.msra.mxu0 0.0
    %873 = vmatprep.subr.mxu0 0.0
    %874 = vmatpush1.msra.mxu0 0.0
    %875 = vmatprep.mubr.f32.mxu0 0.0
    %876 = vmatmul.mubr.f32.gmra.mrb[0].mxu0 %v800
    %v877 = vpop.f32.mrb[0].mxu0
    %v878 = vadd.f32 %v796, %v877
    %v879 = vpop.f32.mrb[0].mxu0
    %880 = vmatprep.mubr.f32.mxu0 0.0
    %881 = vmatmul.mubr.f32.gmra.mrb[0].mxu0 %v803
    %v882 = vpop.f32.mrb[0].mxu0
    %v883 = vadd.f32 %v796, %v882
    %v884 = vpop.f32.mrb[0].mxu0
    %885 = vmatprep.mubr.f32.mxu0 0.0
    %886 = vmatmul.mubr.f32.gmra.mrb[0].mxu0 %v806
    %v887 = vpop.f32.mrb[0].mxu0
    %v888 = vadd.f32 %v796, %v887
    %v889 = vpop.f32.mrb[0].mxu0
    %890 = vmatprep.mubr.f32.mxu0 0.0
    %891 = vmatmul.mubr.f32.gmra.mrb[0].mxu0 %v809
    %v892 = vpop.f32.mrb[0].mxu0
    %v893 = vadd.f32 %v796, %v892
    %v894 = vpop.f32.mrb[0].mxu0
    %895 = vdwg.mxu0
    %vm896 = vcmp.gt.f32.partialorder %v878, 20.0
    %vm897 = vcmp.gt.f32.partialorder %v883, 20.0
    %vm898 = vcmp.gt.f32.partialorder %v888, 20.0
    %vm899 = vcmp.gt.f32.partialorder %v893, 20.0
    %v900 = vmin.f32 %v878, 20.0
    %v901 = vmin.f32 %v883, 20.0
    %v902 = vmin.f32 %v888, 20.0
    %v903 = vmin.f32 %v893, 20.0
    %v904 = vmul.f32 %v900, 1.442695
    %v905 = vpow.pop %v904
    %v906 = vmul.f32 %v901, 1.442695
    %v907 = vpow.pop %v906
    %v908 = vmul.f32 %v902, 1.442695
    %v909 = vpow.pop %v908
    %v910 = vmul.f32 %v903, 1.442695
    %v911 = vpow.pop %v910
    %v912 = vadd.f32 %v905, 1.0
    %v913 = vadd.f32 %v907, 1.0
    %v914 = vadd.f32 %v909, 1.0
    %v915 = vadd.f32 %v911, 1.0
    %v916 = vlog2.pop %v912
    %v917 = vmul.f32 %v916, 0.6931472
    %v918 = vlog2.pop %v913
    %v919 = vmul.f32 %v918, 0.6931472
    %v920 = vlog2.pop %v914
    %v921 = vmul.f32 %v920, 0.6931472
    %v922 = vlog2.pop %v915
    %v923 = vmul.f32 %v922, 0.6931472
    %v924 = vsel %vm896, %v878, %v917
    %v925 = vsel %vm897, %v883, %v919
    %v926 = vsel %vm898, %v888, %v921
    %v927 = vsel %vm899, %v893, %v923
    %v928 = vld [vmem:[#allocation3] sm:$0xff]
    %v929 = vld [vmem:[#allocation3 + $0x8] sm:$0xff]
    %v930 = vld [vmem:[#allocation3 + $0x10] sm:$0xff]
    %v931 = vld [vmem:[#allocation3 + $0x18] sm:$0xff]
    %v932 = vld [vmem:[#allocation3 + $0x20] sm:$0xff]
    %v933 = vld [vmem:[#allocation3 + $0x28] sm:$0xff]
    %v934 = vld [vmem:[#allocation3 + $0x30] sm:$0xff]
    %v935 = vld [vmem:[#allocation3 + $0x38] sm:$0xff]
    %v936 = vld [vmem:[#allocation3 + $0x40] sm:$0xff]
    %v937 = vld [vmem:[#allocation3 + $0x48] sm:$0xff]
    %v938 = vld [vmem:[#allocation3 + $0x50] sm:$0xff]
    %v939 = vld [vmem:[#allocation3 + $0x58] sm:$0xff]
    %v940 = vld [vmem:[#allocation3 + $0x60] sm:$0xff]
    %v941 = vld [vmem:[#allocation3 + $0x68] sm:$0xff]
    %v942 = vld [vmem:[#allocation3 + $0x70] sm:$0xff]
    %v943 = vld [vmem:[#allocation3 + $0x78] sm:$0xff]
    %v944 = vld [vmem:[#allocation3 + $0x80] sm:$0xff]
    %v945 = vld [vmem:[#allocation3 + $0x88] sm:$0xff]
    %v946 = vld [vmem:[#allocation3 + $0x90] sm:$0xff]
    %v947 = vld [vmem:[#allocation3 + $0x98] sm:$0xff]
    %v948 = vld [vmem:[#allocation3 + $0xa0] sm:$0xff]
    %v949 = vld [vmem:[#allocation3 + $0xa8] sm:$0xff]
    %v950 = vld [vmem:[#allocation3 + $0xb0] sm:$0xff]
    %v951 = vld [vmem:[#allocation3 + $0xb8] sm:$0xff]
    %v952 = vld [vmem:[#allocation3 + $0xc0] sm:$0xff]
    %v953 = vld [vmem:[#allocation3 + $0xc8] sm:$0xff]
    %v954 = vld [vmem:[#allocation3 + $0xd0] sm:$0xff]
    %v955 = vld [vmem:[#allocation3 + $0xd8] sm:$0xff]
    %v956 = vld [vmem:[#allocation3 + $0xe0] sm:$0xff]
    %v957 = vld [vmem:[#allocation3 + $0xe8] sm:$0xff]
    %v958 = vld [vmem:[#allocation3 + $0xf0] sm:$0xff]
    %v959 = vld [vmem:[#allocation3 + $0xf8] sm:$0xff]
    %v960 = vld [vmem:[#allocation3 + $0x100] sm:$0xff]
    %v961 = vld [vmem:[#allocation3 + $0x108] sm:$0xff]
    %v962 = vld [vmem:[#allocation3 + $0x110] sm:$0xff]
    %v963 = vld [vmem:[#allocation3 + $0x118] sm:$0xff]
    %v964 = vld [vmem:[#allocation3 + $0x120] sm:$0xff]
    %v965 = vld [vmem:[#allocation3 + $0x128] sm:$0xff]
    %v966 = vld [vmem:[#allocation3 + $0x130] sm:$0xff]
    %v967 = vld [vmem:[#allocation3 + $0x138] sm:$0xff]
    %v968 = vld [vmem:[#allocation3 + $0x140] sm:$0xff]
    %v969 = vld [vmem:[#allocation3 + $0x148] sm:$0xff]
    %v970 = vld [vmem:[#allocation3 + $0x150] sm:$0xff]
    %v971 = vld [vmem:[#allocation3 + $0x158] sm:$0xff]
    %v972 = vld [vmem:[#allocation3 + $0x160] sm:$0xff]
    %v973 = vld [vmem:[#allocation3 + $0x168] sm:$0xff]
    %v974 = vld [vmem:[#allocation3 + $0x170] sm:$0xff]
    %v975 = vld [vmem:[#allocation3 + $0x178] sm:$0xff]
    %v976 = vld [vmem:[#allocation3 + $0x180] sm:$0xff]
    %v977 = vld [vmem:[#allocation3 + $0x188] sm:$0xff]
    %v978 = vld [vmem:[#allocation3 + $0x190] sm:$0xff]
    %v979 = vld [vmem:[#allocation3 + $0x198] sm:$0xff]
    %v980 = vld [vmem:[#allocation3 + $0x1a0] sm:$0xff]
    %v981 = vld [vmem:[#allocation3 + $0x1a8] sm:$0xff]
    %v982 = vld [vmem:[#allocation3 + $0x1b0] sm:$0xff]
    %v983 = vld [vmem:[#allocation3 + $0x1b8] sm:$0xff]
    %v984 = vld [vmem:[#allocation3 + $0x1c0] sm:$0xff]
    %v985 = vld [vmem:[#allocation3 + $0x1c8] sm:$0xff]
    %v986 = vld [vmem:[#allocation3 + $0x1d0] sm:$0xff]
    %v987 = vld [vmem:[#allocation3 + $0x1d8] sm:$0xff]
    %v988 = vld [vmem:[#allocation3 + $0x1e0] sm:$0xff]
    %v989 = vld [vmem:[#allocation3 + $0x1e8] sm:$0xff]
    %v990 = vld [vmem:[#allocation3 + $0x1f0] sm:$0xff]
    %v991 = vld [vmem:[#allocation3 + $0x1f8] sm:$0xff]
    %992 = vmatprep.subr.mxu0 %v929
    %993 = vmatpush1.msra.mxu0 %v928
    %994 = vmatprep.subr.mxu0 %v937
    %995 = vmatpush1.msra.mxu0 %v936
    %996 = vmatprep.subr.mxu0 %v945
    %997 = vmatpush1.msra.mxu0 %v944
    %998 = vmatprep.subr.mxu0 %v953
    %999 = vmatpush1.msra.mxu0 %v952
    %1000 = vmatprep.subr.mxu0 %v961
    %1001 = vmatpush1.msra.mxu0 %v960
    %1002 = vmatprep.subr.mxu0 %v969
    %1003 = vmatpush1.msra.mxu0 %v968
    %1004 = vmatprep.subr.mxu0 %v977
    %1005 = vmatpush1.msra.mxu0 %v976
    %1006 = vmatprep.subr.mxu0 %v985
    %1007 = vmatpush1.msra.mxu0 %v984
    %1008 = vmatprep.subr.mxu0 0.0
    %1009 = vmatpush1.msra.mxu0 0.0
    %1010 = vmatprep.subr.mxu0 0.0
    %1011 = vmatpush1.msra.mxu0 0.0
    %1012 = vmatprep.subr.mxu0 0.0
    %1013 = vmatpush1.msra.mxu0 0.0
    %1014 = vmatprep.subr.mxu0 0.0
    %1015 = vmatpush1.msra.mxu0 0.0
    %1016 = vmatprep.subr.mxu0 0.0
    %1017 = vmatpush1.msra.mxu0 0.0
    %1018 = vmatprep.subr.mxu0 0.0
    %1019 = vmatpush1.msra.mxu0 0.0
    %1020 = vmatprep.subr.mxu0 0.0
    %1021 = vmatpush1.msra.mxu0 0.0
    %1022 = vmatprep.subr.mxu0 0.0
    %1023 = vmatpush1.msra.mxu0 0.0
    %1024 = vmatprep.subr.mxu0 0.0
    %1025 = vmatpush1.msra.mxu0 0.0
    %1026 = vmatprep.subr.mxu0 0.0
    %1027 = vmatpush1.msra.mxu0 0.0
    %1028 = vmatprep.subr.mxu0 0.0
    %1029 = vmatpush1.msra.mxu0 0.0
    %1030 = vmatprep.subr.mxu0 0.0
    %1031 = vmatpush1.msra.mxu0 0.0
    %1032 = vmatprep.subr.mxu0 0.0
    %1033 = vmatpush1.msra.mxu0 0.0
    %1034 = vmatprep.subr.mxu0 0.0
    %1035 = vmatpush1.msra.mxu0 0.0
    %1036 = vmatprep.subr.mxu0 0.0
    %1037 = vmatpush1.msra.mxu0 0.0
    %1038 = vmatprep.subr.mxu0 0.0
    %1039 = vmatpush1.msra.mxu0 0.0
    %1040 = vmatprep.subr.mxu0 0.0
    %1041 = vmatpush1.msra.mxu0 0.0
    %1042 = vmatprep.subr.mxu0 0.0
    %1043 = vmatpush1.msra.mxu0 0.0
    %1044 = vmatprep.subr.mxu0 0.0
    %1045 = vmatpush1.msra.mxu0 0.0
    %1046 = vmatprep.subr.mxu0 0.0
    %1047 = vmatpush1.msra.mxu0 0.0
    %1048 = vmatprep.subr.mxu0 0.0
    %1049 = vmatpush1.msra.mxu0 0.0
    %1050 = vmatprep.subr.mxu0 0.0
    %1051 = vmatpush1.msra.mxu0 0.0
    %1052 = vmatprep.subr.mxu0 0.0
    %1053 = vmatpush1.msra.mxu0 0.0
    %1054 = vmatprep.subr.mxu0 0.0
    %1055 = vmatpush1.msra.mxu0 0.0
    %1056 = vmatprep.mubr.f32.mxu0 0.0
    %1057 = vmatmul.mubr.f32.gmra.mrb[0].mxu0 %v800
    %v1058 = vpop.f32.mrb[0].mxu0
    %v1059 = vadd.f32 0.0, %v1058
    %v1060 = vpop.f32.mrb[0].mxu0
    %v1061 = vadd.f32 0.0, %v1060
    %1062 = vmatprep.mubr.f32.mxu0 0.0
    %1063 = vmatmul.mubr.f32.gmra.mrb[0].mxu0 %v803
    %v1064 = vpop.f32.mrb[0].mxu0
    %v1065 = vadd.f32 0.0, %v1064
    %v1066 = vpop.f32.mrb[0].mxu0
    %v1067 = vadd.f32 0.0, %v1066
    %1068 = vmatprep.mubr.f32.mxu0 0.0
    %1069 = vmatmul.mubr.f32.gmra.mrb[0].mxu0 %v806
    %v1070 = vpop.f32.mrb[0].mxu0
    %v1071 = vadd.f32 0.0, %v1070
    %v1072 = vpop.f32.mrb[0].mxu0
    %v1073 = vadd.f32 0.0, %v1072
    %1074 = vmatprep.mubr.f32.mxu0 0.0
    %1075 = vmatmul.mubr.f32.gmra.mrb[0].mxu0 %v809
    %v1076 = vpop.f32.mrb[0].mxu0
    %v1077 = vadd.f32 0.0, %v1076
    %v1078 = vpop.f32.mrb[0].mxu0
    %v1079 = vadd.f32 0.0, %v1078
    %1080 = vdwg.mxu0
    %1081 = vmatprep.subr.mxu0 %v931
    %1082 = vmatpush1.msra.mxu0 %v930
    %1083 = vmatprep.subr.mxu0 %v939
    %1084 = vmatpush1.msra.mxu0 %v938
    %1085 = vmatprep.subr.mxu0 %v947
    %1086 = vmatpush1.msra.mxu0 %v946
    %1087 = vmatprep.subr.mxu0 %v955
    %1088 = vmatpush1.msra.mxu0 %v954
    %1089 = vmatprep.subr.mxu0 %v963
    %1090 = vmatpush1.msra.mxu0 %v962
    %1091 = vmatprep.subr.mxu0 %v971
    %1092 = vmatpush1.msra.mxu0 %v970
    %1093 = vmatprep.subr.mxu0 %v979
    %1094 = vmatpush1.msra.mxu0 %v978
    %1095 = vmatprep.subr.mxu0 %v987
    %1096 = vmatpush1.msra.mxu0 %v986
    %1097 = vmatprep.subr.mxu0 0.0
    %1098 = vmatpush1.msra.mxu0 0.0
    %1099 = vmatprep.subr.mxu0 0.0
    %1100 = vmatpush1.msra.mxu0 0.0
    %1101 = vmatprep.subr.mxu0 0.0
    %1102 = vmatpush1.msra.mxu0 0.0
    %1103 = vmatprep.subr.mxu0 0.0
    %1104 = vmatpush1.msra.mxu0 0.0
    %1105 = vmatprep.subr.mxu0 0.0
    %1106 = vmatpush1.msra.mxu0 0.0
    %1107 = vmatprep.subr.mxu0 0.0
    %1108 = vmatpush1.msra.mxu0 0.0
    %1109 = vmatprep.subr.mxu0 0.0
    %1110 = vmatpush1.msra.mxu0 0.0
    %1111 = vmatprep.subr.mxu0 0.0
    %1112 = vmatpush1.msra.mxu0 0.0
    %1113 = vmatprep.subr.mxu0 0.0
    %1114 = vmatpush1.msra.mxu0 0.0
    %1115 = vmatprep.subr.mxu0 0.0
    %1116 = vmatpush1.msra.mxu0 0.0
    %1117 = vmatprep.subr.mxu0 0.0
    %1118 = vmatpush1.msra.mxu0 0.0
    %1119 = vmatprep.subr.mxu0 0.0
    %1120 = vmatpush1.msra.mxu0 0.0
    %1121 = vmatprep.subr.mxu0 0.0
    %1122 = vmatpush1.msra.mxu0 0.0
    %1123 = vmatprep.subr.mxu0 0.0
    %1124 = vmatpush1.msra.mxu0 0.0
    %1125 = vmatprep.subr.mxu0 0.0
    %1126 = vmatpush1.msra.mxu0 0.0
    %1127 = vmatprep.subr.mxu0 0.0
    %1128 = vmatpush1.msra.mxu0 0.0
    %1129 = vmatprep.subr.mxu0 0.0
    %1130 = vmatpush1.msra.mxu0 0.0
    %1131 = vmatprep.subr.mxu0 0.0
    %1132 = vmatpush1.msra.mxu0 0.0
    %1133 = vmatprep.subr.mxu0 0.0
    %1134 = vmatpush1.msra.mxu0 0.0
    %1135 = vmatprep.subr.mxu0 0.0
    %1136 = vmatpush1.msra.mxu0 0.0
    %1137 = vmatprep.subr.mxu0 0.0
    %1138 = vmatpush1.msra.mxu0 0.0
    %1139 = vmatprep.subr.mxu0 0.0
    %1140 = vmatpush1.msra.mxu0 0.0
    %1141 = vmatprep.subr.mxu0 0.0
    %1142 = vmatpush1.msra.mxu0 0.0
    %1143 = vmatprep.subr.mxu0 0.0
    %1144 = vmatpush1.msra.mxu0 0.0
    %1145 = vmatprep.mubr.f32.mxu0 0.0
    %1146 = vmatmul.mubr.f32.gmra.mrb[0].mxu0 %v800
    %v1147 = vpop.f32.mrb[0].mxu0
    %v1148 = vadd.f32 0.0, %v1147
    %v1149 = vpop.f32.mrb[0].mxu0
    %v1150 = vadd.f32 0.0, %v1149
    %1151 = vmatprep.mubr.f32.mxu0 0.0
    %1152 = vmatmul.mubr.f32.gmra.mrb[0].mxu0 %v803
    %v1153 = vpop.f32.mrb[0].mxu0
    %v1154 = vadd.f32 0.0, %v1153
    %v1155 = vpop.f32.mrb[0].mxu0
    %v1156 = vadd.f32 0.0, %v1155
    %1157 = vmatprep.mubr.f32.mxu0 0.0
    %1158 = vmatmul.mubr.f32.gmra.mrb[0].mxu0 %v806
    %v1159 = vpop.f32.mrb[0].mxu0
    %v1160 = vadd.f32 0.0, %v1159
    %v1161 = vpop.f32.mrb[0].mxu0
    %v1162 = vadd.f32 0.0, %v1161
    %1163 = vmatprep.mubr.f32.mxu0 0.0
    %1164 = vmatmul.mubr.f32.gmra.mrb[0].mxu0 %v809
    %v1165 = vpop.f32.mrb[0].mxu0
    %v1166 = vadd.f32 0.0, %v1165
    %v1167 = vpop.f32.mrb[0].mxu0
    %v1168 = vadd.f32 0.0, %v1167
    %1169 = vdwg.mxu0
    %1170 = vmatprep.subr.mxu0 %v933
    %1171 = vmatpush1.msra.mxu0 %v932
    %1172 = vmatprep.subr.mxu0 %v941
    %1173 = vmatpush1.msra.mxu0 %v940
    %1174 = vmatprep.subr.mxu0 %v949
    %1175 = vmatpush1.msra.mxu0 %v948
    %1176 = vmatprep.subr.mxu0 %v957
    %1177 = vmatpush1.msra.mxu0 %v956
    %1178 = vmatprep.subr.mxu0 %v965
    %1179 = vmatpush1.msra.mxu0 %v964
    %1180 = vmatprep.subr.mxu0 %v973
    %1181 = vmatpush1.msra.mxu0 %v972
    %1182 = vmatprep.subr.mxu0 %v981
    %1183 = vmatpush1.msra.mxu0 %v980
    %1184 = vmatprep.subr.mxu0 %v989
    %1185 = vmatpush1.msra.mxu0 %v988
    %1186 = vmatprep.subr.mxu0 0.0
    %1187 = vmatpush1.msra.mxu0 0.0
    %1188 = vmatprep.subr.mxu0 0.0
    %1189 = vmatpush1.msra.mxu0 0.0
    %1190 = vmatprep.subr.mxu0 0.0
    %1191 = vmatpush1.msra.mxu0 0.0
    %1192 = vmatprep.subr.mxu0 0.0
    %1193 = vmatpush1.msra.mxu0 0.0
    %1194 = vmatprep.subr.mxu0 0.0
    %1195 = vmatpush1.msra.mxu0 0.0
    %1196 = vmatprep.subr.mxu0 0.0
    %1197 = vmatpush1.msra.mxu0 0.0
    %1198 = vmatprep.subr.mxu0 0.0
    %1199 = vmatpush1.msra.mxu0 0.0
    %1200 = vmatprep.subr.mxu0 0.0
    %1201 = vmatpush1.msra.mxu0 0.0
    %1202 = vmatprep.subr.mxu0 0.0
    %1203 = vmatpush1.msra.mxu0 0.0
    %1204 = vmatprep.subr.mxu0 0.0
    %1205 = vmatpush1.msra.mxu0 0.0
    %1206 = vmatprep.subr.mxu0 0.0
    %1207 = vmatpush1.msra.mxu0 0.0
    %1208 = vmatprep.subr.mxu0 0.0
    %1209 = vmatpush1.msra.mxu0 0.0
    %1210 = vmatprep.subr.mxu0 0.0
    %1211 = vmatpush1.msra.mxu0 0.0
    %1212 = vmatprep.subr.mxu0 0.0
    %1213 = vmatpush1.msra.mxu0 0.0
    %1214 = vmatprep.subr.mxu0 0.0
    %1215 = vmatpush1.msra.mxu0 0.0
    %1216 = vmatprep.subr.mxu0 0.0
    %1217 = vmatpush1.msra.mxu0 0.0
    %1218 = vmatprep.subr.mxu0 0.0
    %1219 = vmatpush1.msra.mxu0 0.0
    %1220 = vmatprep.subr.mxu0 0.0
    %1221 = vmatpush1.msra.mxu0 0.0
    %1222 = vmatprep.subr.mxu0 0.0
    %1223 = vmatpush1.msra.mxu0 0.0
    %1224 = vmatprep.subr.mxu0 0.0
    %1225 = vmatpush1.msra.mxu0 0.0
    %1226 = vmatprep.subr.mxu0 0.0
    %1227 = vmatpush1.msra.mxu0 0.0
    %1228 = vmatprep.subr.mxu0 0.0
    %1229 = vmatpush1.msra.mxu0 0.0
    %1230 = vmatprep.subr.mxu0 0.0
    %1231 = vmatpush1.msra.mxu0 0.0
    %1232 = vmatprep.subr.mxu0 0.0
    %1233 = vmatpush1.msra.mxu0 0.0
    %1234 = vmatprep.mubr.f32.mxu0 0.0
    %1235 = vmatmul.mubr.f32.gmra.mrb[0].mxu0 %v800
    %v1236 = vpop.f32.mrb[0].mxu0
    %v1237 = vadd.f32 0.0, %v1236
    %v1238 = vpop.f32.mrb[0].mxu0
    %v1239 = vadd.f32 0.0, %v1238
    %1240 = vmatprep.mubr.f32.mxu0 0.0
    %1241 = vmatmul.mubr.f32.gmra.mrb[0].mxu0 %v803
    %v1242 = vpop.f32.mrb[0].mxu0
    %v1243 = vadd.f32 0.0, %v1242
    %v1244 = vpop.f32.mrb[0].mxu0
    %v1245 = vadd.f32 0.0, %v1244
    %1246 = vmatprep.mubr.f32.mxu0 0.0
    %1247 = vmatmul.mubr.f32.gmra.mrb[0].mxu0 %v806
    %v1248 = vpop.f32.mrb[0].mxu0
    %v1249 = vadd.f32 0.0, %v1248
    %v1250 = vpop.f32.mrb[0].mxu0
    %v1251 = vadd.f32 0.0, %v1250
    %1252 = vmatprep.mubr.f32.mxu0 0.0
    %1253 = vmatmul.mubr.f32.gmra.mrb[0].mxu0 %v809
    %v1254 = vpop.f32.mrb[0].mxu0
    %v1255 = vadd.f32 0.0, %v1254
    %v1256 = vpop.f32.mrb[0].mxu0
    %v1257 = vadd.f32 0.0, %v1256
    %1258 = vdwg.mxu0
    %1259 = vmatprep.subr.mxu0 %v935
    %1260 = vmatpush1.msra.mxu0 %v934
    %1261 = vmatprep.subr.mxu0 %v943
    %1262 = vmatpush1.msra.mxu0 %v942
    %1263 = vmatprep.subr.mxu0 %v951
    %1264 = vmatpush1.msra.mxu0 %v950
    %1265 = vmatprep.subr.mxu0 %v959
    %1266 = vmatpush1.msra.mxu0 %v958
    %1267 = vmatprep.subr.mxu0 %v967
    %1268 = vmatpush1.msra.mxu0 %v966
    %1269 = vmatprep.subr.mxu0 %v975
    %1270 = vmatpush1.msra.mxu0 %v974
    %1271 = vmatprep.subr.mxu0 %v983
    %1272 = vmatpush1.msra.mxu0 %v982
    %1273 = vmatprep.subr.mxu0 %v991
    %1274 = vmatpush1.msra.mxu0 %v990
    %1275 = vmatprep.subr.mxu0 0.0
    %1276 = vmatpush1.msra.mxu0 0.0
    %1277 = vmatprep.subr.mxu0 0.0
    %1278 = vmatpush1.msra.mxu0 0.0
    %1279 = vmatprep.subr.mxu0 0.0
    %1280 = vmatpush1.msra.mxu0 0.0
    %1281 = vmatprep.subr.mxu0 0.0
    %1282 = vmatpush1.msra.mxu0 0.0
    %1283 = vmatprep.subr.mxu0 0.0
    %1284 = vmatpush1.msra.mxu0 0.0
    %1285 = vmatprep.subr.mxu0 0.0
    %1286 = vmatpush1.msra.mxu0 0.0
    %1287 = vmatprep.subr.mxu0 0.0
    %1288 = vmatpush1.msra.mxu0 0.0
    %1289 = vmatprep.subr.mxu0 0.0
    %1290 = vmatpush1.msra.mxu0 0.0
    %1291 = vmatprep.subr.mxu0 0.0
    %1292 = vmatpush1.msra.mxu0 0.0
    %1293 = vmatprep.subr.mxu0 0.0
    %1294 = vmatpush1.msra.mxu0 0.0
    %1295 = vmatprep.subr.mxu0 0.0
    %1296 = vmatpush1.msra.mxu0 0.0
    %1297 = vmatprep.subr.mxu0 0.0
    %1298 = vmatpush1.msra.mxu0 0.0
    %1299 = vmatprep.subr.mxu0 0.0
    %1300 = vmatpush1.msra.mxu0 0.0
    %1301 = vmatprep.subr.mxu0 0.0
    %1302 = vmatpush1.msra.mxu0 0.0
    %1303 = vmatprep.subr.mxu0 0.0
    %1304 = vmatpush1.msra.mxu0 0.0
    %1305 = vmatprep.subr.mxu0 0.0
    %1306 = vmatpush1.msra.mxu0 0.0
    %1307 = vmatprep.subr.mxu0 0.0
    %1308 = vmatpush1.msra.mxu0 0.0
    %1309 = vmatprep.subr.mxu0 0.0
    %1310 = vmatpush1.msra.mxu0 0.0
    %1311 = vmatprep.subr.mxu0 0.0
    %1312 = vmatpush1.msra.mxu0 0.0
    %1313 = vmatprep.subr.mxu0 0.0
    %1314 = vmatpush1.msra.mxu0 0.0
    %1315 = vmatprep.subr.mxu0 0.0
    %1316 = vmatpush1.msra.mxu0 0.0
    %1317 = vmatprep.subr.mxu0 0.0
    %1318 = vmatpush1.msra.mxu0 0.0
    %1319 = vmatprep.subr.mxu0 0.0
    %1320 = vmatpush1.msra.mxu0 0.0
    %1321 = vmatprep.subr.mxu0 0.0
    %1322 = vmatpush1.msra.mxu0 0.0
    %1323 = vmatprep.mubr.f32.mxu0 0.0
    %1324 = vmatmul.mubr.f32.gmra.mrb[0].mxu0 %v800
    %v1325 = vpop.f32.mrb[0].mxu0
    %v1326 = vadd.f32 0.0, %v1325
    %v1327 = vpop.f32.mrb[0].mxu0
    %v1328 = vadd.f32 0.0, %v1327
    %1329 = vmatprep.mubr.f32.mxu0 0.0
    %1330 = vmatmul.mubr.f32.gmra.mrb[0].mxu0 %v803
    %v1331 = vpop.f32.mrb[0].mxu0
    %v1332 = vadd.f32 0.0, %v1331
    %v1333 = vpop.f32.mrb[0].mxu0
    %v1334 = vadd.f32 0.0, %v1333
    %1335 = vmatprep.mubr.f32.mxu0 0.0
    %1336 = vmatmul.mubr.f32.gmra.mrb[0].mxu0 %v806
    %v1337 = vpop.f32.mrb[0].mxu0
    %v1338 = vadd.f32 0.0, %v1337
    %v1339 = vpop.f32.mrb[0].mxu0
    %v1340 = vadd.f32 0.0, %v1339
    %1341 = vmatprep.mubr.f32.mxu0 0.0
    %1342 = vmatmul.mubr.f32.gmra.mrb[0].mxu0 %v809
    %v1343 = vpop.f32.mrb[0].mxu0
    %v1344 = vadd.f32 0.0, %v1343
    %v1345 = vpop.f32.mrb[0].mxu0
    %v1346 = vadd.f32 0.0, %v1345
    %1347 = vdwg.mxu0
    %v1349 = vsel %vm798, %v924, 0
    %v1352 = vsel %vm798, %v925, 0
    %v1355 = vsel %vm798, %v926, 0
    %v1358 = vsel %vm798, %v927, 0
    %1360 = vmatprep.subr.mxu0 %v80
    %1361 = vmatpush1.msra.mxu0 %v79
    %1362 = vmatprep.subr.mxu0 %v84
    %1363 = vmatpush1.msra.mxu0 %v83
    %1364 = vmatprep.subr.mxu0 %v88
    %1365 = vmatpush1.msra.mxu0 %v87
    %1366 = vmatprep.subr.mxu0 %v92
    %1367 = vmatpush1.msra.mxu0 %v91
    %1368 = vmatprep.subr.mxu0 %v96
    %1369 = vmatpush1.msra.mxu0 %v95
    %1370 = vmatprep.subr.mxu0 %v100
    %1371 = vmatpush1.msra.mxu0 %v99
    %1372 = vmatprep.subr.mxu0 %v104
    %1373 = vmatpush1.msra.mxu0 %v103
    %1374 = vmatprep.subr.mxu0 %v108
    %1375 = vmatpush1.msra.mxu0 %v107
    %1376 = vmatprep.subr.mxu0 0.0
    %1377 = vmatpush1.msra.mxu0 0.0
    %1378 = vmatprep.subr.mxu0 0.0
    %1379 = vmatpush1.msra.mxu0 0.0
    %1380 = vmatprep.subr.mxu0 0.0
    %1381 = vmatpush1.msra.mxu0 0.0
    %1382 = vmatprep.subr.mxu0 0.0
    %1383 = vmatpush1.msra.mxu0 0.0
    %1384 = vmatprep.subr.mxu0 0.0
    %1385 = vmatpush1.msra.mxu0 0.0
    %1386 = vmatprep.subr.mxu0 0.0
    %1387 = vmatpush1.msra.mxu0 0.0
    %1388 = vmatprep.subr.mxu0 0.0
    %1389 = vmatpush1.msra.mxu0 0.0
    %1390 = vmatprep.subr.mxu0 0.0
    %1391 = vmatpush1.msra.mxu0 0.0
    %1392 = vmatprep.subr.mxu0 0.0
    %1393 = vmatpush1.msra.mxu0 0.0
    %1394 = vmatprep.subr.mxu0 0.0
    %1395 = vmatpush1.msra.mxu0 0.0
    %1396 = vmatprep.subr.mxu0 0.0
    %1397 = vmatpush1.msra.mxu0 0.0
    %1398 = vmatprep.subr.mxu0 0.0
    %1399 = vmatpush1.msra.mxu0 0.0
    %1400 = vmatprep.subr.mxu0 0.0
    %1401 = vmatpush1.msra.mxu0 0.0
    %1402 = vmatprep.subr.mxu0 0.0
    %1403 = vmatpush1.msra.mxu0 0.0
    %1404 = vmatprep.subr.mxu0 0.0
    %1405 = vmatpush1.msra.mxu0 0.0
    %1406 = vmatprep.subr.mxu0 0.0
    %1407 = vmatpush1.msra.mxu0 0.0
    %1408 = vmatprep.subr.mxu0 0.0
    %1409 = vmatpush1.msra.mxu0 0.0
    %1410 = vmatprep.subr.mxu0 0.0
    %1411 = vmatpush1.msra.mxu0 0.0
    %1412 = vmatprep.subr.mxu0 0.0
    %1413 = vmatpush1.msra.mxu0 0.0
    %1414 = vmatprep.subr.mxu0 0.0
    %1415 = vmatpush1.msra.mxu0 0.0
    %1416 = vmatprep.subr.mxu0 0.0
    %1417 = vmatpush1.msra.mxu0 0.0
    %1418 = vmatprep.subr.mxu0 0.0
    %1419 = vmatpush1.msra.mxu0 0.0
    %1420 = vmatprep.subr.mxu0 0.0
    %1421 = vmatpush1.msra.mxu0 0.0
    %1422 = vmatprep.subr.mxu0 0.0
    %1423 = vmatpush1.msra.mxu0 0.0
    %1424 = vmatprep.mubr.f32.mxu0 0.0
    %1425 = vmatmul.mubr.f32.gmra.mrb[0].mxu0 %v1349
    %v1426 = vpop.f32.mrb[0].mxu0
    %v1427 = vadd.f32 0.0, %v1426
    %v1428 = vpop.f32.mrb[0].mxu0
    %v1429 = vadd.f32 0.0, %v1428
    %1430 = vmatprep.mubr.f32.mxu0 0.0
    %1431 = vmatmul.mubr.f32.gmra.mrb[0].mxu0 %v1352
    %v1432 = vpop.f32.mrb[0].mxu0
    %v1433 = vadd.f32 0.0, %v1432
    %v1434 = vpop.f32.mrb[0].mxu0
    %v1435 = vadd.f32 0.0, %v1434
    %1436 = vmatprep.mubr.f32.mxu0 0.0
    %1437 = vmatmul.mubr.f32.gmra.mrb[0].mxu0 %v1355
    %v1438 = vpop.f32.mrb[0].mxu0
    %v1439 = vadd.f32 0.0, %v1438
    %v1440 = vpop.f32.mrb[0].mxu0
    %v1441 = vadd.f32 0.0, %v1440
    %1442 = vmatprep.mubr.f32.mxu0 0.0
    %1443 = vmatmul.mubr.f32.gmra.mrb[0].mxu0 %v1358
    %v1444 = vpop.f32.mrb[0].mxu0
    %v1445 = vadd.f32 0.0, %v1444
    %v1446 = vpop.f32.mrb[0].mxu0
    %v1447 = vadd.f32 0.0, %v1446
    %1448 = vdwg.mxu0
    %1449 = vmatprep.subr.mxu0 %v82
    %1450 = vmatpush1.msra.mxu0 %v81
    %1451 = vmatprep.subr.mxu0 %v86
    %1452 = vmatpush1.msra.mxu0 %v85
    %1453 = vmatprep.subr.mxu0 %v90
    %1454 = vmatpush1.msra.mxu0 %v89
    %1455 = vmatprep.subr.mxu0 %v94
    %1456 = vmatpush1.msra.mxu0 %v93
    %1457 = vmatprep.subr.mxu0 %v98
    %1458 = vmatpush1.msra.mxu0 %v97
    %1459 = vmatprep.subr.mxu0 %v102
    %1460 = vmatpush1.msra.mxu0 %v101
    %1461 = vmatprep.subr.mxu0 %v106
    %1462 = vmatpush1.msra.mxu0 %v105
    %1463 = vmatprep.subr.mxu0 %v110
    %1464 = vmatpush1.msra.mxu0 %v109
    %1465 = vmatprep.subr.mxu0 0.0
    %1466 = vmatpush1.msra.mxu0 0.0
    %1467 = vmatprep.subr.mxu0 0.0
    %1468 = vmatpush1.msra.mxu0 0.0
    %1469 = vmatprep.subr.mxu0 0.0
    %1470 = vmatpush1.msra.mxu0 0.0
    %1471 = vmatprep.subr.mxu0 0.0
    %1472 = vmatpush1.msra.mxu0 0.0
    %1473 = vmatprep.subr.mxu0 0.0
    %1474 = vmatpush1.msra.mxu0 0.0
    %1475 = vmatprep.subr.mxu0 0.0
    %1476 = vmatpush1.msra.mxu0 0.0
    %1477 = vmatprep.subr.mxu0 0.0
    %1478 = vmatpush1.msra.mxu0 0.0
    %1479 = vmatprep.subr.mxu0 0.0
    %1480 = vmatpush1.msra.mxu0 0.0
    %1481 = vmatprep.subr.mxu0 0.0
    %1482 = vmatpush1.msra.mxu0 0.0
    %1483 = vmatprep.subr.mxu0 0.0
    %1484 = vmatpush1.msra.mxu0 0.0
    %1485 = vmatprep.subr.mxu0 0.0
    %1486 = vmatpush1.msra.mxu0 0.0
    %1487 = vmatprep.subr.mxu0 0.0
    %1488 = vmatpush1.msra.mxu0 0.0
    %1489 = vmatprep.subr.mxu0 0.0
    %1490 = vmatpush1.msra.mxu0 0.0
    %1491 = vmatprep.subr.mxu0 0.0
    %1492 = vmatpush1.msra.mxu0 0.0
    %1493 = vmatprep.subr.mxu0 0.0
    %1494 = vmatpush1.msra.mxu0 0.0
    %1495 = vmatprep.subr.mxu0 0.0
    %1496 = vmatpush1.msra.mxu0 0.0
    %1497 = vmatprep.subr.mxu0 0.0
    %1498 = vmatpush1.msra.mxu0 0.0
    %1499 = vmatprep.subr.mxu0 0.0
    %1500 = vmatpush1.msra.mxu0 0.0
    %1501 = vmatprep.subr.mxu0 0.0
    %1502 = vmatpush1.msra.mxu0 0.0
    %1503 = vmatprep.subr.mxu0 0.0
    %1504 = vmatpush1.msra.mxu0 0.0
    %1505 = vmatprep.subr.mxu0 0.0
    %1506 = vmatpush1.msra.mxu0 0.0
    %1507 = vmatprep.subr.mxu0 0.0
    %1508 = vmatpush1.msra.mxu0 0.0
    %1509 = vmatprep.subr.mxu0 0.0
    %1510 = vmatpush1.msra.mxu0 0.0
    %1511 = vmatprep.subr.mxu0 0.0
    %1512 = vmatpush1.msra.mxu0 0.0
    %1513 = vmatprep.mubr.f32.mxu0 0.0
    %1514 = vmatmul.mubr.f32.gmra.mrb[0].mxu0 %v1349
    %v1515 = vpop.f32.mrb[0].mxu0
    %v1516 = vadd.f32 0.0, %v1515
    %v1517 = vpop.f32.mrb[0].mxu0
    %v1518 = vadd.f32 0.0, %v1517
    %1519 = vmatprep.mubr.f32.mxu0 0.0
    %1520 = vmatmul.mubr.f32.gmra.mrb[0].mxu0 %v1352
    %v1521 = vpop.f32.mrb[0].mxu0
    %v1522 = vadd.f32 0.0, %v1521
    %v1523 = vpop.f32.mrb[0].mxu0
    %v1524 = vadd.f32 0.0, %v1523
    %1525 = vmatprep.mubr.f32.mxu0 0.0
    %1526 = vmatmul.mubr.f32.gmra.mrb[0].mxu0 %v1355
    %v1527 = vpop.f32.mrb[0].mxu0
    %v1528 = vadd.f32 0.0, %v1527
    %v1529 = vpop.f32.mrb[0].mxu0
    %v1530 = vadd.f32 0.0, %v1529
    %1531 = vmatprep.mubr.f32.mxu0 0.0
    %1532 = vmatmul.mubr.f32.gmra.mrb[0].mxu0 %v1358
    %v1533 = vpop.f32.mrb[0].mxu0
    %v1534 = vadd.f32 0.0, %v1533
    %v1535 = vpop.f32.mrb[0].mxu0
    %v1536 = vadd.f32 0.0, %v1535
    %1537 = vdwg.mxu0
    %v1538 = vmul.f32 %v924, %v779
    %v1539 = vmul.f32 %v925, %v780
    %v1540 = vmul.f32 %v926, %v781
    %v1541 = vmul.f32 %v927, %v782
    %v1543 = vsel %vm798, %v1538, 0
    %v1546 = vsel %vm798, %v1539, 0
    %v1549 = vsel %vm798, %v1540, 0
    %v1552 = vsel %vm798, %v1541, 0
    %1554 = vmatprep.subr.mxu0 %v80
    %1555 = vmatpush1.msra.mxu0 %v79
    %1556 = vmatprep.subr.mxu0 %v84
    %1557 = vmatpush1.msra.mxu0 %v83
    %1558 = vmatprep.subr.mxu0 %v88
    %1559 = vmatpush1.msra.mxu0 %v87
    %1560 = vmatprep.subr.mxu0 %v92
    %1561 = vmatpush1.msra.mxu0 %v91
    %1562 = vmatprep.subr.mxu0 %v96
    %1563 = vmatpush1.msra.mxu0 %v95
    %1564 = vmatprep.subr.mxu0 %v100
    %1565 = vmatpush1.msra.mxu0 %v99
    %1566 = vmatprep.subr.mxu0 %v104
    %1567 = vmatpush1.msra.mxu0 %v103
    %1568 = vmatprep.subr.mxu0 %v108
    %1569 = vmatpush1.msra.mxu0 %v107
    %1570 = vmatprep.subr.mxu0 0.0
    %1571 = vmatpush1.msra.mxu0 0.0
    %1572 = vmatprep.subr.mxu0 0.0
    %1573 = vmatpush1.msra.mxu0 0.0
    %1574 = vmatprep.subr.mxu0 0.0
    %1575 = vmatpush1.msra.mxu0 0.0
    %1576 = vmatprep.subr.mxu0 0.0
    %1577 = vmatpush1.msra.mxu0 0.0
    %1578 = vmatprep.subr.mxu0 0.0
    %1579 = vmatpush1.msra.mxu0 0.0
    %1580 = vmatprep.subr.mxu0 0.0
    %1581 = vmatpush1.msra.mxu0 0.0
    %1582 = vmatprep.subr.mxu0 0.0
    %1583 = vmatpush1.msra.mxu0 0.0
    %1584 = vmatprep.subr.mxu0 0.0
    %1585 = vmatpush1.msra.mxu0 0.0
    %1586 = vmatprep.subr.mxu0 0.0
    %1587 = vmatpush1.msra.mxu0 0.0
    %1588 = vmatprep.subr.mxu0 0.0
    %1589 = vmatpush1.msra.mxu0 0.0
    %1590 = vmatprep.subr.mxu0 0.0
    %1591 = vmatpush1.msra.mxu0 0.0
    %1592 = vmatprep.subr.mxu0 0.0
    %1593 = vmatpush1.msra.mxu0 0.0
    %1594 = vmatprep.subr.mxu0 0.0
    %1595 = vmatpush1.msra.mxu0 0.0
    %1596 = vmatprep.subr.mxu0 0.0
    %1597 = vmatpush1.msra.mxu0 0.0
    %1598 = vmatprep.subr.mxu0 0.0
    %1599 = vmatpush1.msra.mxu0 0.0
    %1600 = vmatprep.subr.mxu0 0.0
    %1601 = vmatpush1.msra.mxu0 0.0
    %1602 = vmatprep.subr.mxu0 0.0
    %1603 = vmatpush1.msra.mxu0 0.0
    %1604 = vmatprep.subr.mxu0 0.0
    %1605 = vmatpush1.msra.mxu0 0.0
    %1606 = vmatprep.subr.mxu0 0.0
    %1607 = vmatpush1.msra.mxu0 0.0
    %1608 = vmatprep.subr.mxu0 0.0
    %1609 = vmatpush1.msra.mxu0 0.0
    %1610 = vmatprep.subr.mxu0 0.0
    %1611 = vmatpush1.msra.mxu0 0.0
    %1612 = vmatprep.subr.mxu0 0.0
    %1613 = vmatpush1.msra.mxu0 0.0
    %1614 = vmatprep.subr.mxu0 0.0
    %1615 = vmatpush1.msra.mxu0 0.0
    %1616 = vmatprep.subr.mxu0 0.0
    %1617 = vmatpush1.msra.mxu0 0.0
    %1618 = vmatprep.mubr.f32.mxu0 0.0
    %1619 = vmatmul.mubr.f32.gmra.mrb[0].mxu0 %v1543
    %v1620 = vpop.f32.mrb[0].mxu0
    %v1621 = vadd.f32 0.0, %v1620
    %v1622 = vpop.f32.mrb[0].mxu0
    %v1623 = vadd.f32 0.0, %v1622
    %1624 = vmatprep.mubr.f32.mxu0 0.0
    %1625 = vmatmul.mubr.f32.gmra.mrb[0].mxu0 %v1546
    %v1626 = vpop.f32.mrb[0].mxu0
    %v1627 = vadd.f32 0.0, %v1626
    %v1628 = vpop.f32.mrb[0].mxu0
    %v1629 = vadd.f32 0.0, %v1628
    %1630 = vmatprep.mubr.f32.mxu0 0.0
    %1631 = vmatmul.mubr.f32.gmra.mrb[0].mxu0 %v1549
    %v1632 = vpop.f32.mrb[0].mxu0
    %v1633 = vadd.f32 0.0, %v1632
    %v1634 = vpop.f32.mrb[0].mxu0
    %v1635 = vadd.f32 0.0, %v1634
    %1636 = vmatprep.mubr.f32.mxu0 0.0
    %1637 = vmatmul.mubr.f32.gmra.mrb[0].mxu0 %v1552
    %v1638 = vpop.f32.mrb[0].mxu0
    %v1639 = vadd.f32 0.0, %v1638
    %v1640 = vpop.f32.mrb[0].mxu0
    %v1641 = vadd.f32 0.0, %v1640
    %1642 = vdwg.mxu0
    %1643 = vmatprep.subr.mxu0 %v82
    %1644 = vmatpush1.msra.mxu0 %v81
    %1645 = vmatprep.subr.mxu0 %v86
    %1646 = vmatpush1.msra.mxu0 %v85
    %1647 = vmatprep.subr.mxu0 %v90
    %1648 = vmatpush1.msra.mxu0 %v89
    %1649 = vmatprep.subr.mxu0 %v94
    %1650 = vmatpush1.msra.mxu0 %v93
    %1651 = vmatprep.subr.mxu0 %v98
    %1652 = vmatpush1.msra.mxu0 %v97
    %1653 = vmatprep.subr.mxu0 %v102
    %1654 = vmatpush1.msra.mxu0 %v101
    %1655 = vmatprep.subr.mxu0 %v106
    %1656 = vmatpush1.msra.mxu0 %v105
    %1657 = vmatprep.subr.mxu0 %v110
    %1658 = vmatpush1.msra.mxu0 %v109
    %1659 = vmatprep.subr.mxu0 0.0
    %1660 = vmatpush1.msra.mxu0 0.0
    %1661 = vmatprep.subr.mxu0 0.0
    %1662 = vmatpush1.msra.mxu0 0.0
    %1663 = vmatprep.subr.mxu0 0.0
    %1664 = vmatpush1.msra.mxu0 0.0
    %1665 = vmatprep.subr.mxu0 0.0
    %1666 = vmatpush1.msra.mxu0 0.0
    %1667 = vmatprep.subr.mxu0 0.0
    %1668 = vmatpush1.msra.mxu0 0.0
    %1669 = vmatprep.subr.mxu0 0.0
    %1670 = vmatpush1.msra.mxu0 0.0
    %1671 = vmatprep.subr.mxu0 0.0
    %1672 = vmatpush1.msra.mxu0 0.0
    %1673 = vmatprep.subr.mxu0 0.0
    %1674 = vmatpush1.msra.mxu0 0.0
    %1675 = vmatprep.subr.mxu0 0.0
    %1676 = vmatpush1.msra.mxu0 0.0
    %1677 = vmatprep.subr.mxu0 0.0
    %1678 = vmatpush1.msra.mxu0 0.0
    %1679 = vmatprep.subr.mxu0 0.0
    %1680 = vmatpush1.msra.mxu0 0.0
    %1681 = vmatprep.subr.mxu0 0.0
    %1682 = vmatpush1.msra.mxu0 0.0
    %1683 = vmatprep.subr.mxu0 0.0
    %1684 = vmatpush1.msra.mxu0 0.0
    %1685 = vmatprep.subr.mxu0 0.0
    %1686 = vmatpush1.msra.mxu0 0.0
    %1687 = vmatprep.subr.mxu0 0.0
    %1688 = vmatpush1.msra.mxu0 0.0
    %1689 = vmatprep.subr.mxu0 0.0
    %1690 = vmatpush1.msra.mxu0 0.0
    %1691 = vmatprep.subr.mxu0 0.0
    %1692 = vmatpush1.msra.mxu0 0.0
    %1693 = vmatprep.subr.mxu0 0.0
    %1694 = vmatpush1.msra.mxu0 0.0
    %1695 = vmatprep.subr.mxu0 0.0
    %1696 = vmatpush1.msra.mxu0 0.0
    %1697 = vmatprep.subr.mxu0 0.0
    %1698 = vmatpush1.msra.mxu0 0.0
    %1699 = vmatprep.subr.mxu0 0.0
    %1700 = vmatpush1.msra.mxu0 0.0
    %1701 = vmatprep.subr.mxu0 0.0
    %1702 = vmatpush1.msra.mxu0 0.0
    %1703 = vmatprep.subr.mxu0 0.0
    %1704 = vmatpush1.msra.mxu0 0.0
    %1705 = vmatprep.subr.mxu0 0.0
    %1706 = vmatpush1.msra.mxu0 0.0
    %1707 = vmatprep.mubr.f32.mxu0 0.0
    %1708 = vmatmul.mubr.f32.gmra.mrb[0].mxu0 %v1543
    %v1709 = vpop.f32.mrb[0].mxu0
    %v1710 = vadd.f32 0.0, %v1709
    %v1711 = vpop.f32.mrb[0].mxu0
    %v1712 = vadd.f32 0.0, %v1711
    %1713 = vmatprep.mubr.f32.mxu0 0.0
    %1714 = vmatmul.mubr.f32.gmra.mrb[0].mxu0 %v1546
    %v1715 = vpop.f32.mrb[0].mxu0
    %v1716 = vadd.f32 0.0, %v1715
    %v1717 = vpop.f32.mrb[0].mxu0
    %v1718 = vadd.f32 0.0, %v1717
    %1719 = vmatprep.mubr.f32.mxu0 0.0
    %1720 = vmatmul.mubr.f32.gmra.mrb[0].mxu0 %v1549
    %v1721 = vpop.f32.mrb[0].mxu0
    %v1722 = vadd.f32 0.0, %v1721
    %v1723 = vpop.f32.mrb[0].mxu0
    %v1724 = vadd.f32 0.0, %v1723
    %1725 = vmatprep.mubr.f32.mxu0 0.0
    %1726 = vmatmul.mubr.f32.gmra.mrb[0].mxu0 %v1552
    %v1727 = vpop.f32.mrb[0].mxu0
    %v1728 = vadd.f32 0.0, %v1727
    %v1729 = vpop.f32.mrb[0].mxu0
    %v1730 = vadd.f32 0.0, %v1729
    %1731 = vdwg.mxu0
    %v1732 = vld [vmem:[%s11] sm:$0xf]
    %v1734 = vlaneseq
    %v1735 = vshrl.u32 %v1734, 7
    %v1736 = vsub.s32 0, %v1735
    %v1737 = vrot.slane %v1732, %v1736
    %v1738 = vlaneseq
    %v1739 = vshrl.u32 %v1738, 7
    %v1740 = vsub.s32 1, %v1739
    %v1741 = vrot.slane %v1732, %v1740
    %v1742 = vlaneseq
    %v1743 = vshrl.u32 %v1742, 7
    %v1744 = vsub.s32 2, %v1743
    %v1745 = vrot.slane %v1732, %v1744
    %v1746 = vlaneseq
    %v1747 = vshrl.u32 %v1746, 7
    %v1748 = vsub.s32 3, %v1747
    %v1749 = vrot.slane %v1732, %v1748
    %v1754 = vmul.f32 %v1427, %v1737
    %v1755 = vmul.f32 %v1429, %v1741
    %v1756 = vmul.f32 %v1516, %v1745
    %v1757 = vmul.f32 %v1518, %v1749
    %v1758 = vmul.f32 %v1433, %v1737
    %v1759 = vmul.f32 %v1435, %v1741
    %v1760 = vmul.f32 %v1522, %v1745
    %v1761 = vmul.f32 %v1524, %v1749
    %v1762 = vmul.f32 %v1439, %v1737
    %v1763 = vmul.f32 %v1441, %v1741
    %v1764 = vmul.f32 %v1528, %v1745
    %v1765 = vmul.f32 %v1530, %v1749
    %v1766 = vmul.f32 %v1445, %v1737
    %v1767 = vmul.f32 %v1447, %v1741
    %v1768 = vmul.f32 %v1534, %v1745
    %v1769 = vmul.f32 %v1536, %v1749
    %v1770 = vmul.f32 %v1754, 1.442695
    %v1771 = vpow.pop %v1770
    %v1772 = vmul.f32 %v1755, 1.442695
    %v1773 = vpow.pop %v1772
    %v1774 = vmul.f32 %v1756, 1.442695
    %v1775 = vpow.pop %v1774
    %v1776 = vmul.f32 %v1757, 1.442695
    %v1777 = vpow.pop %v1776
    %v1778 = vmul.f32 %v1758, 1.442695
    %v1779 = vpow.pop %v1778
    %v1780 = vmul.f32 %v1759, 1.442695
    %v1781 = vpow.pop %v1780
    %v1782 = vmul.f32 %v1760, 1.442695
    %v1783 = vpow.pop %v1782
    %v1784 = vmul.f32 %v1761, 1.442695
    %v1785 = vpow.pop %v1784
    %v1786 = vmul.f32 %v1762, 1.442695
    %v1787 = vpow.pop %v1786
    %v1788 = vmul.f32 %v1763, 1.442695
    %v1789 = vpow.pop %v1788
    %v1790 = vmul.f32 %v1764, 1.442695
    %v1791 = vpow.pop %v1790
    %v1792 = vmul.f32 %v1765, 1.442695
    %v1793 = vpow.pop %v1792
    %v1794 = vmul.f32 %v1766, 1.442695
    %v1795 = vpow.pop %v1794
    %v1796 = vmul.f32 %v1767, 1.442695
    %v1797 = vpow.pop %v1796
    %v1798 = vmul.f32 %v1768, 1.442695
    %v1799 = vpow.pop %v1798
    %v1800 = vmul.f32 %v1769, 1.442695
    %v1801 = vpow.pop %v1800
    %v1802 = vmul.f32 %v1621, %v1059
    %v1803 = vmul.f32 %v1623, %v1061
    %v1804 = vmul.f32 %v1710, %v1148
    %v1805 = vmul.f32 %v1712, %v1150
    %v1806 = vmul.f32 %v1627, %v1065
    %v1807 = vmul.f32 %v1629, %v1067
    %v1808 = vmul.f32 %v1716, %v1154
    %v1809 = vmul.f32 %v1718, %v1156
    %v1810 = vmul.f32 %v1633, %v1071
    %v1811 = vmul.f32 %v1635, %v1073
    %v1812 = vmul.f32 %v1722, %v1160
    %v1813 = vmul.f32 %v1724, %v1162
    %v1814 = vmul.f32 %v1639, %v1077
    %v1815 = vmul.f32 %v1641, %v1079
    %v1816 = vmul.f32 %v1728, %v1166
    %v1817 = vmul.f32 %v1730, %v1168
    %v1822 = vcombine.low %v1802, %v1803
    %v1823 = vcombine.low %v1804, %v1805
    %v1825 = vunpack.c.l.s4 1966171168
    %v1826 = vunpack.c.0.s8 %v1825
    %v1827 = vlaneseq
    %v1828 = vshrl.u32 %v1827, 7
    %v1829 = vsub.s32 %v1826, %v1828
    %v1830 = vrot.slane %v1822, %v1829
    %v1832 = vunpack.c.l.s4 1966171168
    %v1833 = vunpack.c.0.s8 %v1832
    %v1834 = vlaneseq
    %v1835 = vshrl.u32 %v1834, 7
    %v1836 = vsub.s32 %v1833, %v1835
    %v1837 = vrot.slane %v1823, %v1836
    %v1838 = vcombine.low %v1830, %v1837
    %v1840 = vunpack.c.l.s4 1966171168
    %v1841 = vunpack.c.0.s8 %v1840
    %v1842 = vlaneseq
    %v1843 = vshrl.u32 %v1842, 7
    %v1844 = vsub.s32 %v1841, %v1843
    %v1845 = vrot.slane %v1838, %v1844
    %v1847 = vlaneseq
    %vm1848 = vcmp.ge.s32.totalorder %v1847, 0
    %vm1849 = vcmp.lt.s32.totalorder %v1847, 512
    %vm1850 = vmand %vm1848, %vm1849
    %1851 = vst.msk [vmem:[#allocation2] ss:$8 sm:$0xf] %vm1850, %v1845
    %1852 = vst.msk [vmem:[#allocation2] ss:$8 sm:$0x0] %vm1850, %v1845
    %v1853 = vrot.slane %v1802, 7
    %v1854 = vrot.slane %v1803, 7
    %v1855 = vrot.slane %v1804, 7
    %v1856 = vrot.slane %v1805, 7
    %v1861 = vmul.f32 %v1771, %v1853
    %v1862 = vmul.f32 %v1773, %v1854
    %v1863 = vmul.f32 %v1775, %v1855
    %v1864 = vmul.f32 %v1777, %v1856
    %v1865 = vadd.f32 %v1861, %v1802
    %v1866 = vadd.f32 %v1862, %v1803
    %v1867 = vadd.f32 %v1863, %v1804
    %v1868 = vadd.f32 %v1864, %v1805
    %v1873 = vcombine.low %v1865, %v1866
    %v1874 = vcombine.low %v1867, %v1868
    %v1876 = vunpack.c.l.s4 1966171168
    %v1877 = vunpack.c.0.s8 %v1876
    %v1878 = vlaneseq
    %v1879 = vshrl.u32 %v1878, 7
    %v1880 = vsub.s32 %v1877, %v1879
    %v1881 = vrot.slane %v1873, %v1880
    %v1883 = vunpack.c.l.s4 1966171168
    %v1884 = vunpack.c.0.s8 %v1883
    %v1885 = vlaneseq
    %v1886 = vshrl.u32 %v1885, 7
    %v1887 = vsub.s32 %v1884, %v1886
    %v1888 = vrot.slane %v1874, %v1887
    %v1889 = vcombine.high %v1881, %v1888
    %v1891 = vunpack.c.l.s4 1966171168
    %v1892 = vunpack.c.0.s8 %v1891
    %v1893 = vlaneseq
    %v1894 = vshrl.u32 %v1893, 7
    %v1895 = vsub.s32 %v1892, %v1894
    %v1896 = vrot.slane %v1889, %v1895
    %s1898 = scalar_lea.vmem [#allocation2], 1
    %1899 = vst.msk [vmem:[%s1898] ss:$8 sm:$0xf] %vm1850, %v1896
    %1900 = vst.msk [vmem:[%s1898] ss:$8 sm:$0x0] %vm1850, %v1896
    %v1901 = vrot.slane %v1865, 7
    %v1902 = vrot.slane %v1866, 7
    %v1903 = vrot.slane %v1867, 7
    %v1904 = vrot.slane %v1868, 7
    %v1909 = vmul.f32 %v1771, %v1901
    %v1910 = vmul.f32 %v1773, %v1902
    %v1911 = vmul.f32 %v1775, %v1903
    %v1912 = vmul.f32 %v1777, %v1904
    %v1913 = vadd.f32 %v1909, %v1802
    %v1914 = vadd.f32 %v1910, %v1803
    %v1915 = vadd.f32 %v1911, %v1804
    %v1916 = vadd.f32 %v1912, %v1805
    %v1921 = vcombine.low %v1913, %v1914
    %v1922 = vcombine.low %v1915, %v1916
    %v1924 = vunpack.c.l.s4 1966171168
    %v1925 = vunpack.c.0.s8 %v1924
    %v1926 = vlaneseq
    %v1927 = vshrl.u32 %v1926, 7
    %v1928 = vsub.s32 %v1925, %v1927
    %v1929 = vrot.slane %v1921, %v1928
    %v1931 = vunpack.c.l.s4 1966171168
    %v1932 = vunpack.c.0.s8 %v1931
    %v1933 = vlaneseq
    %v1934 = vshrl.u32 %v1933, 7
    %v1935 = vsub.s32 %v1932, %v1934
    %v1936 = vrot.slane %v1922, %v1935
    %v1937 = vcombine.low %v1929, %v1936
    %v1939 = vunpack.c.l.s4 1966171168
    %v1940 = vunpack.c.0.s8 %v1939
    %v1941 = vlaneseq
    %v1942 = vshrl.u32 %v1941, 7
    %v1943 = vsub.s32 %v1940, %v1942
    %v1944 = vrot.slane %v1937, %v1943
    %v1945 = vcombine.high %v1944, %v1944
    %s1947 = scalar_lea.vmem [#allocation2], 2
    %1948 = vst.msk [vmem:[%s1947] ss:$8 sm:$0xf] %vm1850, %v1945
    %1949 = vst.msk [vmem:[%s1947] ss:$8 sm:$0x0] %vm1850, %v1945
    %v1950 = vrot.slane %v1913, 7
    %v1951 = vrot.slane %v1914, 7
    %v1952 = vrot.slane %v1915, 7
    %v1953 = vrot.slane %v1916, 7
    %v1958 = vmul.f32 %v1771, %v1950
    %v1959 = vmul.f32 %v1773, %v1951
    %v1960 = vmul.f32 %v1775, %v1952
    %v1961 = vmul.f32 %v1777, %v1953
    %v1962 = vadd.f32 %v1958, %v1802
    %v1963 = vadd.f32 %v1959, %v1803
    %v1964 = vadd.f32 %v1960, %v1804
    %v1965 = vadd.f32 %v1961, %v1805
    %v1970 = vcombine.low %v1962, %v1963
    %v1971 = vcombine.low %v1964, %v1965
    %v1973 = vunpack.c.l.s4 1966171168
    %v1974 = vunpack.c.0.s8 %v1973
    %v1975 = vlaneseq
    %v1976 = vshrl.u32 %v1975, 7
    %v1977 = vsub.s32 %v1974, %v1976
    %v1978 = vrot.slane %v1970, %v1977
    %v1980 = vunpack.c.l.s4 1966171168
    %v1981 = vunpack.c.0.s8 %v1980
    %v1982 = vlaneseq
    %v1983 = vshrl.u32 %v1982, 7
    %v1984 = vsub.s32 %v1981, %v1983
    %v1985 = vrot.slane %v1971, %v1984
    %v1986 = vcombine.high %v1978, %v1985
    %v1988 = vunpack.c.l.s4 1966171168
    %v1989 = vunpack.c.0.s8 %v1988
    %v1990 = vlaneseq
    %v1991 = vshrl.u32 %v1990, 7
    %v1992 = vsub.s32 %v1989, %v1991
    %v1993 = vrot.slane %v1986, %v1992
    %v1994 = vcombine.high %v1993, %v1993
    %s1996 = scalar_lea.vmem [#allocation2], 3
    %1997 = vst.msk [vmem:[%s1996] ss:$8 sm:$0xf] %vm1850, %v1994
    %1998 = vst.msk [vmem:[%s1996] ss:$8 sm:$0x0] %vm1850, %v1994
    %v1999 = vrot.slane %v1962, 7
    %v2000 = vrot.slane %v1963, 7
    %v2001 = vrot.slane %v1964, 7
    %v2002 = vrot.slane %v1965, 7
    %v2007 = vmul.f32 %v1771, %v1999
    %v2008 = vmul.f32 %v1773, %v2000
    %v2009 = vmul.f32 %v1775, %v2001
    %v2010 = vmul.f32 %v1777, %v2002
    %v2011 = vadd.f32 %v2007, %v1802
    %v2012 = vadd.f32 %v2008, %v1803
    %v2013 = vadd.f32 %v2009, %v1804
    %v2014 = vadd.f32 %v2010, %v1805
    %v2019 = vcombine.high %v2011, %v2012
    %v2020 = vcombine.high %v2013, %v2014
    %v2022 = vunpack.c.l.s4 1966171168
    %v2023 = vunpack.c.0.s8 %v2022
    %v2024 = vlaneseq
    %v2025 = vshrl.u32 %v2024, 7
    %v2026 = vsub.s32 %v2023, %v2025
    %v2027 = vrot.slane %v2019, %v2026
    %v2029 = vunpack.c.l.s4 1966171168
    %v2030 = vunpack.c.0.s8 %v2029
    %v2031 = vlaneseq
    %v2032 = vshrl.u32 %v2031, 7
    %v2033 = vsub.s32 %v2030, %v2032
    %v2034 = vrot.slane %v2020, %v2033
    %v2035 = vcombine.low %v2027, %v2034
    %v2037 = vunpack.c.l.s4 1966171168
    %v2038 = vunpack.c.0.s8 %v2037
    %v2039 = vlaneseq
    %v2040 = vshrl.u32 %v2039, 7
    %v2041 = vsub.s32 %v2038, %v2040
    %v2042 = vrot.slane %v2035, %v2041
    %s2044 = scalar_lea.vmem [#allocation2], 4
    %2045 = vst.msk [vmem:[%s2044] ss:$8 sm:$0xf] %vm1850, %v2042
    %2046 = vst.msk [vmem:[%s2044] ss:$8 sm:$0x0] %vm1850, %v2042
    %v2047 = vrot.slane %v2011, 7
    %v2048 = vrot.slane %v2012, 7
    %v2049 = vrot.slane %v2013, 7
    %v2050 = vrot.slane %v2014, 7
    %v2055 = vmul.f32 %v1771, %v2047
    %v2056 = vmul.f32 %v1773, %v2048
    %v2057 = vmul.f32 %v1775, %v2049
    %v2058 = vmul.f32 %v1777, %v2050
    %v2059 = vadd.f32 %v2055, %v1802
    %v2060 = vadd.f32 %v2056, %v1803
    %v2061 = vadd.f32 %v2057, %v1804
    %v2062 = vadd.f32 %v2058, %v1805
    %v2067 = vcombine.high %v2059, %v2060
    %v2068 = vcombine.high %v2061, %v2062
    %v2070 = vunpack.c.l.s4 1966171168
    %v2071 = vunpack.c.0.s8 %v2070
    %v2072 = vlaneseq
    %v2073 = vshrl.u32 %v2072, 7
    %v2074 = vsub.s32 %v2071, %v2073
    %v2075 = vrot.slane %v2067, %v2074
    %v2077 = vunpack.c.l.s4 1966171168
    %v2078 = vunpack.c.0.s8 %v2077
    %v2079 = vlaneseq
    %v2080 = vshrl.u32 %v2079, 7
    %v2081 = vsub.s32 %v2078, %v2080
    %v2082 = vrot.slane %v2068, %v2081
    %v2083 = vcombine.high %v2075, %v2082
    %v2085 = vunpack.c.l.s4 1966171168
    %v2086 = vunpack.c.0.s8 %v2085
    %v2087 = vlaneseq
    %v2088 = vshrl.u32 %v2087, 7
    %v2089 = vsub.s32 %v2086, %v2088
    %v2090 = vrot.slane %v2083, %v2089
    %s2092 = scalar_lea.vmem [#allocation2], 5
    %2093 = vst.msk [vmem:[%s2092] ss:$8 sm:$0xf] %vm1850, %v2090
    %2094 = vst.msk [vmem:[%s2092] ss:$8 sm:$0x0] %vm1850, %v2090
    %v2095 = vrot.slane %v2059, 7
    %v2096 = vrot.slane %v2060, 7
    %v2097 = vrot.slane %v2061, 7
    %v2098 = vrot.slane %v2062, 7
    %v2103 = vmul.f32 %v1771, %v2095
    %v2104 = vmul.f32 %v1773, %v2096
    %v2105 = vmul.f32 %v1775, %v2097
    %v2106 = vmul.f32 %v1777, %v2098
    %v2107 = vadd.f32 %v2103, %v1802
    %v2108 = vadd.f32 %v2104, %v1803
    %v2109 = vadd.f32 %v2105, %v1804
    %v2110 = vadd.f32 %v2106, %v1805
    %v2115 = vcombine.high %v2107, %v2108
    %v2116 = vcombine.high %v2109, %v2110
    %v2118 = vunpack.c.l.s4 1966171168
    %v2119 = vunpack.c.0.s8 %v2118
    %v2120 = vlaneseq
    %v2121 = vshrl.u32 %v2120, 7
    %v2122 = vsub.s32 %v2119, %v2121
    %v2123 = vrot.slane %v2115, %v2122
    %v2125 = vunpack.c.l.s4 1966171168
    %v2126 = vunpack.c.0.s8 %v2125
    %v2127 = vlaneseq
    %v2128 = vshrl.u32 %v2127, 7
    %v2129 = vsub.s32 %v2126, %v2128
    %v2130 = vrot.slane %v2116, %v2129
    %v2131 = vcombine.low %v2123, %v2130
    %v2133 = vunpack.c.l.s4 1966171168
    %v2134 = vunpack.c.0.s8 %v2133
    %v2135 = vlaneseq
    %v2136 = vshrl.u32 %v2135, 7
    %v2137 = vsub.s32 %v2134, %v2136
    %v2138 = vrot.slane %v2131, %v2137
    %v2139 = vcombine.high %v2138, %v2138
    %s2141 = scalar_lea.vmem [#allocation2], 6
    %2142 = vst.msk [vmem:[%s2141] ss:$8 sm:$0xf] %vm1850, %v2139
    %2143 = vst.msk [vmem:[%s2141] ss:$8 sm:$0x0] %vm1850, %v2139
    %v2144 = vrot.slane %v2107, 7
    %v2145 = vrot.slane %v2108, 7
    %v2146 = vrot.slane %v2109, 7
    %v2147 = vrot.slane %v2110, 7
    %v2152 = vmul.f32 %v1771, %v2144
    %v2153 = vmul.f32 %v1773, %v2145
    %v2154 = vmul.f32 %v1775, %v2146
    %v2155 = vmul.f32 %v1777, %v2147
    %v2156 = vadd.f32 %v2152, %v1802
    %v2157 = vadd.f32 %v2153, %v1803
    %v2158 = vadd.f32 %v2154, %v1804
    %v2159 = vadd.f32 %v2155, %v1805
    %v2164 = vcombine.high %v2156, %v2157
    %v2165 = vcombine.high %v2158, %v2159
    %v2167 = vunpack.c.l.s4 1966171168
    %v2168 = vunpack.c.0.s8 %v2167
    %v2169 = vlaneseq
    %v2170 = vshrl.u32 %v2169, 7
    %v2171 = vsub.s32 %v2168, %v2170
    %v2172 = vrot.slane %v2164, %v2171
    %v2174 = vunpack.c.l.s4 1966171168
    %v2175 = vunpack.c.0.s8 %v2174
    %v2176 = vlaneseq
    %v2177 = vshrl.u32 %v2176, 7
    %v2178 = vsub.s32 %v2175, %v2177
    %v2179 = vrot.slane %v2165, %v2178
    %v2180 = vcombine.high %v2172, %v2179
    %v2182 = vunpack.c.l.s4 1966171168
    %v2183 = vunpack.c.0.s8 %v2182
    %v2184 = vlaneseq
    %v2185 = vshrl.u32 %v2184, 7
    %v2186 = vsub.s32 %v2183, %v2185
    %v2187 = vrot.slane %v2180, %v2186
    %v2188 = vcombine.high %v2187, %v2187
    %s2190 = scalar_lea.vmem [#allocation2], 7
    %2191 = vst.msk [vmem:[%s2190] ss:$8 sm:$0xf] %vm1850, %v2188
    %2192 = vst.msk [vmem:[%s2190] ss:$8 sm:$0x0] %vm1850, %v2188
    %v2193 = vrot.slane %v2156, 7
    %v2194 = vrot.slane %v2157, 7
    %v2195 = vrot.slane %v2158, 7
    %v2196 = vrot.slane %v2159, 7
    %v2201 = vmul.f32 %v1779, %v2193
    %v2202 = vmul.f32 %v1781, %v2194
    %v2203 = vmul.f32 %v1783, %v2195
    %v2204 = vmul.f32 %v1785, %v2196
    %v2205 = vadd.f32 %v2201, %v1806
    %v2206 = vadd.f32 %v2202, %v1807
    %v2207 = vadd.f32 %v2203, %v1808
    %v2208 = vadd.f32 %v2204, %v1809
    %v2213 = vcombine.low %v2205, %v2206
    %v2214 = vcombine.low %v2207, %v2208
    %v2216 = vunpack.c.l.s4 1966171168
    %v2217 = vunpack.c.0.s8 %v2216
    %v2218 = vlaneseq
    %v2219 = vshrl.u32 %v2218, 7
    %v2220 = vsub.s32 %v2217, %v2219
    %v2221 = vrot.slane %v2213, %v2220
    %v2223 = vunpack.c.l.s4 1966171168
    %v2224 = vunpack.c.0.s8 %v2223
    %v2225 = vlaneseq
    %v2226 = vshrl.u32 %v2225, 7
    %v2227 = vsub.s32 %v2224, %v2226
    %v2228 = vrot.slane %v2214, %v2227
    %v2229 = vcombine.low %v2221, %v2228
    %v2231 = vunpack.c.l.s4 1966171168
    %v2232 = vunpack.c.0.s8 %v2231
    %v2233 = vlaneseq
    %v2234 = vshrl.u32 %v2233, 7
    %v2235 = vsub.s32 %v2232, %v2234
    %v2236 = vrot.slane %v2229, %v2235
    %s2238 = scalar_lea.vmem [#allocation2], 32
    %2239 = vst.msk [vmem:[%s2238] ss:$8 sm:$0xf] %vm1850, %v2236
    %2240 = vst.msk [vmem:[%s2238] ss:$8 sm:$0x0] %vm1850, %v2236
    %v2241 = vrot.slane %v2205, 7
    %v2242 = vrot.slane %v2206, 7
    %v2243 = vrot.slane %v2207, 7
    %v2244 = vrot.slane %v2208, 7
    %v2249 = vmul.f32 %v1779, %v2241
    %v2250 = vmul.f32 %v1781, %v2242
    %v2251 = vmul.f32 %v1783, %v2243
    %v2252 = vmul.f32 %v1785, %v2244
    %v2253 = vadd.f32 %v2249, %v1806
    %v2254 = vadd.f32 %v2250, %v1807
    %v2255 = vadd.f32 %v2251, %v1808
    %v2256 = vadd.f32 %v2252, %v1809
    %v2261 = vcombine.low %v2253, %v2254
    %v2262 = vcombine.low %v2255, %v2256
    %v2264 = vunpack.c.l.s4 1966171168
    %v2265 = vunpack.c.0.s8 %v2264
    %v2266 = vlaneseq
    %v2267 = vshrl.u32 %v2266, 7
    %v2268 = vsub.s32 %v2265, %v2267
    %v2269 = vrot.slane %v2261, %v2268
    %v2271 = vunpack.c.l.s4 1966171168
    %v2272 = vunpack.c.0.s8 %v2271
    %v2273 = vlaneseq
    %v2274 = vshrl.u32 %v2273, 7
    %v2275 = vsub.s32 %v2272, %v2274
    %v2276 = vrot.slane %v2262, %v2275
    %v2277 = vcombine.high %v2269, %v2276
    %v2279 = vunpack.c.l.s4 1966171168
    %v2280 = vunpack.c.0.s8 %v2279
    %v2281 = vlaneseq
    %v2282 = vshrl.u32 %v2281, 7
    %v2283 = vsub.s32 %v2280, %v2282
    %v2284 = vrot.slane %v2277, %v2283
    %s2286 = scalar_lea.vmem [#allocation2], 33
    %2287 = vst.msk [vmem:[%s2286] ss:$8 sm:$0xf] %vm1850, %v2284
    %2288 = vst.msk [vmem:[%s2286] ss:$8 sm:$0x0] %vm1850, %v2284
    %v2289 = vrot.slane %v2253, 7
    %v2290 = vrot.slane %v2254, 7
    %v2291 = vrot.slane %v2255, 7
    %v2292 = vrot.slane %v2256, 7
    %v2297 = vmul.f32 %v1779, %v2289
    %v2298 = vmul.f32 %v1781, %v2290
    %v2299 = vmul.f32 %v1783, %v2291
    %v2300 = vmul.f32 %v1785, %v2292
    %v2301 = vadd.f32 %v2297, %v1806
    %v2302 = vadd.f32 %v2298, %v1807
    %v2303 = vadd.f32 %v2299, %v1808
    %v2304 = vadd.f32 %v2300, %v1809
    %v2309 = vcombine.low %v2301, %v2302
    %v2310 = vcombine.low %v2303, %v2304
    %v2312 = vunpack.c.l.s4 1966171168
    %v2313 = vunpack.c.0.s8 %v2312
    %v2314 = vlaneseq
    %v2315 = vshrl.u32 %v2314, 7
    %v2316 = vsub.s32 %v2313, %v2315
    %v2317 = vrot.slane %v2309, %v2316
    %v2319 = vunpack.c.l.s4 1966171168
    %v2320 = vunpack.c.0.s8 %v2319
    %v2321 = vlaneseq
    %v2322 = vshrl.u32 %v2321, 7
    %v2323 = vsub.s32 %v2320, %v2322
    %v2324 = vrot.slane %v2310, %v2323
    %v2325 = vcombine.low %v2317, %v2324
    %v2327 = vunpack.c.l.s4 1966171168
    %v2328 = vunpack.c.0.s8 %v2327
    %v2329 = vlaneseq
    %v2330 = vshrl.u32 %v2329, 7
    %v2331 = vsub.s32 %v2328, %v2330
    %v2332 = vrot.slane %v2325, %v2331
    %v2333 = vcombine.high %v2332, %v2332
    %s2335 = scalar_lea.vmem [#allocation2], 34
    %2336 = vst.msk [vmem:[%s2335] ss:$8 sm:$0xf] %vm1850, %v2333
    %2337 = vst.msk [vmem:[%s2335] ss:$8 sm:$0x0] %vm1850, %v2333
    %v2338 = vrot.slane %v2301, 7
    %v2339 = vrot.slane %v2302, 7
    %v2340 = vrot.slane %v2303, 7
    %v2341 = vrot.slane %v2304, 7
    %v2346 = vmul.f32 %v1779, %v2338
    %v2347 = vmul.f32 %v1781, %v2339
    %v2348 = vmul.f32 %v1783, %v2340
    %v2349 = vmul.f32 %v1785, %v2341
    %v2350 = vadd.f32 %v2346, %v1806
    %v2351 = vadd.f32 %v2347, %v1807
    %v2352 = vadd.f32 %v2348, %v1808
    %v2353 = vadd.f32 %v2349, %v1809
    %v2358 = vcombine.low %v2350, %v2351
    %v2359 = vcombine.low %v2352, %v2353
    %v2361 = vunpack.c.l.s4 1966171168
    %v2362 = vunpack.c.0.s8 %v2361
    %v2363 = vlaneseq
    %v2364 = vshrl.u32 %v2363, 7
    %v2365 = vsub.s32 %v2362, %v2364
    %v2366 = vrot.slane %v2358, %v2365
    %v2368 = vunpack.c.l.s4 1966171168
    %v2369 = vunpack.c.0.s8 %v2368
    %v2370 = vlaneseq
    %v2371 = vshrl.u32 %v2370, 7
    %v2372 = vsub.s32 %v2369, %v2371
    %v2373 = vrot.slane %v2359, %v2372
    %v2374 = vcombine.high %v2366, %v2373
    %v2376 = vunpack.c.l.s4 1966171168
    %v2377 = vunpack.c.0.s8 %v2376
    %v2378 = vlaneseq
    %v2379 = vshrl.u32 %v2378, 7
    %v2380 = vsub.s32 %v2377, %v2379
    %v2381 = vrot.slane %v2374, %v2380
    %v2382 = vcombine.high %v2381, %v2381
    %s2384 = scalar_lea.vmem [#allocation2], 35
    %2385 = vst.msk [vmem:[%s2384] ss:$8 sm:$0xf] %vm1850, %v2382
    %2386 = vst.msk [vmem:[%s2384] ss:$8 sm:$0x0] %vm1850, %v2382
    %v2387 = vrot.slane %v2350, 7
    %v2388 = vrot.slane %v2351, 7
    %v2389 = vrot.slane %v2352, 7
    %v2390 = vrot.slane %v2353, 7
    %v2395 = vmul.f32 %v1779, %v2387
    %v2396 = vmul.f32 %v1781, %v2388
    %v2397 = vmul.f32 %v1783, %v2389
    %v2398 = vmul.f32 %v1785, %v2390
    %v2399 = vadd.f32 %v2395, %v1806
    %v2400 = vadd.f32 %v2396, %v1807
    %v2401 = vadd.f32 %v2397, %v1808
    %v2402 = vadd.f32 %v2398, %v1809
    %v2407 = vcombine.high %v2399, %v2400
    %v2408 = vcombine.high %v2401, %v2402
    %v2410 = vunpack.c.l.s4 1966171168
    %v2411 = vunpack.c.0.s8 %v2410
    %v2412 = vlaneseq
    %v2413 = vshrl.u32 %v2412, 7
    %v2414 = vsub.s32 %v2411, %v2413
    %v2415 = vrot.slane %v2407, %v2414
    %v2417 = vunpack.c.l.s4 1966171168
    %v2418 = vunpack.c.0.s8 %v2417
    %v2419 = vlaneseq
    %v2420 = vshrl.u32 %v2419, 7
    %v2421 = vsub.s32 %v2418, %v2420
    %v2422 = vrot.slane %v2408, %v2421
    %v2423 = vcombine.low %v2415, %v2422
    %v2425 = vunpack.c.l.s4 1966171168
    %v2426 = vunpack.c.0.s8 %v2425
    %v2427 = vlaneseq
    %v2428 = vshrl.u32 %v2427, 7
    %v2429 = vsub.s32 %v2426, %v2428
    %v2430 = vrot.slane %v2423, %v2429
    %s2432 = scalar_lea.vmem [#allocation2], 36
    %2433 = vst.msk [vmem:[%s2432] ss:$8 sm:$0xf] %vm1850, %v2430
    %2434 = vst.msk [vmem:[%s2432] ss:$8 sm:$0x0] %vm1850, %v2430
    %v2435 = vrot.slane %v2399, 7
    %v2436 = vrot.slane %v2400, 7
    %v2437 = vrot.slane %v2401, 7
    %v2438 = vrot.slane %v2402, 7
    %v2443 = vmul.f32 %v1779, %v2435
    %v2444 = vmul.f32 %v1781, %v2436
    %v2445 = vmul.f32 %v1783, %v2437
    %v2446 = vmul.f32 %v1785, %v2438
    %v2447 = vadd.f32 %v2443, %v1806
    %v2448 = vadd.f32 %v2444, %v1807
    %v2449 = vadd.f32 %v2445, %v1808
    %v2450 = vadd.f32 %v2446, %v1809
    %v2455 = vcombine.high %v2447, %v2448
    %v2456 = vcombine.high %v2449, %v2450
    %v2458 = vunpack.c.l.s4 1966171168
    %v2459 = vunpack.c.0.s8 %v2458
    %v2460 = vlaneseq
    %v2461 = vshrl.u32 %v2460, 7
    %v2462 = vsub.s32 %v2459, %v2461
    %v2463 = vrot.slane %v2455, %v2462
    %v2465 = vunpack.c.l.s4 1966171168
    %v2466 = vunpack.c.0.s8 %v2465
    %v2467 = vlaneseq
    %v2468 = vshrl.u32 %v2467, 7
    %v2469 = vsub.s32 %v2466, %v2468
    %v2470 = vrot.slane %v2456, %v2469
    %v2471 = vcombine.high %v2463, %v2470
    %v2473 = vunpack.c.l.s4 1966171168
    %v2474 = vunpack.c.0.s8 %v2473
    %v2475 = vlaneseq
    %v2476 = vshrl.u32 %v2475, 7
    %v2477 = vsub.s32 %v2474, %v2476
    %v2478 = vrot.slane %v2471, %v2477
    %s2480 = scalar_lea.vmem [#allocation2], 37
    %2481 = vst.msk [vmem:[%s2480] ss:$8 sm:$0xf] %vm1850, %v2478
    %2482 = vst.msk [vmem:[%s2480] ss:$8 sm:$0x0] %vm1850, %v2478
    %v2483 = vrot.slane %v2447, 7
    %v2484 = vrot.slane %v2448, 7
    %v2485 = vrot.slane %v2449, 7
    %v2486 = vrot.slane %v2450, 7
    %v2491 = vmul.f32 %v1779, %v2483
    %v2492 = vmul.f32 %v1781, %v2484
    %v2493 = vmul.f32 %v1783, %v2485
    %v2494 = vmul.f32 %v1785, %v2486
    %v2495 = vadd.f32 %v2491, %v1806
    %v2496 = vadd.f32 %v2492, %v1807
    %v2497 = vadd.f32 %v2493, %v1808
    %v2498 = vadd.f32 %v2494, %v1809
    %v2503 = vcombine.high %v2495, %v2496
    %v2504 = vcombine.high %v2497, %v2498
    %v2506 = vunpack.c.l.s4 1966171168
    %v2507 = vunpack.c.0.s8 %v2506
    %v2508 = vlaneseq
    %v2509 = vshrl.u32 %v2508, 7
    %v2510 = vsub.s32 %v2507, %v2509
    %v2511 = vrot.slane %v2503, %v2510
    %v2513 = vunpack.c.l.s4 1966171168
    %v2514 = vunpack.c.0.s8 %v2513
    %v2515 = vlaneseq
    %v2516 = vshrl.u32 %v2515, 7
    %v2517 = vsub.s32 %v2514, %v2516
    %v2518 = vrot.slane %v2504, %v2517
    %v2519 = vcombine.low %v2511, %v2518
    %v2521 = vunpack.c.l.s4 1966171168
    %v2522 = vunpack.c.0.s8 %v2521
    %v2523 = vlaneseq
    %v2524 = vshrl.u32 %v2523, 7
    %v2525 = vsub.s32 %v2522, %v2524
    %v2526 = vrot.slane %v2519, %v2525
    %v2527 = vcombine.high %v2526, %v2526
    %s2529 = scalar_lea.vmem [#allocation2], 38
    %2530 = vst.msk [vmem:[%s2529] ss:$8 sm:$0xf] %vm1850, %v2527
    %2531 = vst.msk [vmem:[%s2529] ss:$8 sm:$0x0] %vm1850, %v2527
    %v2532 = vrot.slane %v2495, 7
    %v2533 = vrot.slane %v2496, 7
    %v2534 = vrot.slane %v2497, 7
    %v2535 = vrot.slane %v2498, 7
    %v2540 = vmul.f32 %v1779, %v2532
    %v2541 = vmul.f32 %v1781, %v2533
    %v2542 = vmul.f32 %v1783, %v2534
    %v2543 = vmul.f32 %v1785, %v2535
    %v2544 = vadd.f32 %v2540, %v1806
    %v2545 = vadd.f32 %v2541, %v1807
    %v2546 = vadd.f32 %v2542, %v1808
    %v2547 = vadd.f32 %v2543, %v1809
    %v2552 = vcombine.high %v2544, %v2545
    %v2553 = vcombine.high %v2546, %v2547
    %v2555 = vunpack.c.l.s4 1966171168
    %v2556 = vunpack.c.0.s8 %v2555
    %v2557 = vlaneseq
    %v2558 = vshrl.u32 %v2557, 7
    %v2559 = vsub.s32 %v2556, %v2558
    %v2560 = vrot.slane %v2552, %v2559
    %v2562 = vunpack.c.l.s4 1966171168
    %v2563 = vunpack.c.0.s8 %v2562
    %v2564 = vlaneseq
    %v2565 = vshrl.u32 %v2564, 7
    %v2566 = vsub.s32 %v2563, %v2565
    %v2567 = vrot.slane %v2553, %v2566
    %v2568 = vcombine.high %v2560, %v2567
    %v2570 = vunpack.c.l.s4 1966171168
    %v2571 = vunpack.c.0.s8 %v2570
    %v2572 = vlaneseq
    %v2573 = vshrl.u32 %v2572, 7
    %v2574 = vsub.s32 %v2571, %v2573
    %v2575 = vrot.slane %v2568, %v2574
    %v2576 = vcombine.high %v2575, %v2575
    %s2578 = scalar_lea.vmem [#allocation2], 39
    %2579 = vst.msk [vmem:[%s2578] ss:$8 sm:$0xf] %vm1850, %v2576
    %2580 = vst.msk [vmem:[%s2578] ss:$8 sm:$0x0] %vm1850, %v2576
    %v2585 = vcombine.low %v1810, %v1811
    %v2586 = vcombine.low %v1812, %v1813
    %v2588 = vunpack.c.l.s4 1966171168
    %v2589 = vunpack.c.0.s8 %v2588
    %v2590 = vlaneseq
    %v2591 = vshrl.u32 %v2590, 7
    %v2592 = vsub.s32 %v2589, %v2591
    %v2593 = vrot.slane %v2585, %v2592
    %v2595 = vunpack.c.l.s4 1966171168
    %v2596 = vunpack.c.0.s8 %v2595
    %v2597 = vlaneseq
    %v2598 = vshrl.u32 %v2597, 7
    %v2599 = vsub.s32 %v2596, %v2598
    %v2600 = vrot.slane %v2586, %v2599
    %v2601 = vcombine.low %v2593, %v2600
    %v2603 = vunpack.c.l.s4 1966171168
    %v2604 = vunpack.c.0.s8 %v2603
    %v2605 = vlaneseq
    %v2606 = vshrl.u32 %v2605, 7
    %v2607 = vsub.s32 %v2604, %v2606
    %v2608 = vrot.slane %v2601, %v2607
    %s2610 = scalar_lea.vmem [#allocation2], 64
    %2611 = vst.msk [vmem:[%s2610] ss:$8 sm:$0xf] %vm1850, %v2608
    %2612 = vst.msk [vmem:[%s2610] ss:$8 sm:$0x0] %vm1850, %v2608
    %v2613 = vrot.slane %v1810, 7
    %v2614 = vrot.slane %v1811, 7
    %v2615 = vrot.slane %v1812, 7
    %v2616 = vrot.slane %v1813, 7
    %v2621 = vmul.f32 %v1787, %v2613
    %v2622 = vmul.f32 %v1789, %v2614
    %v2623 = vmul.f32 %v1791, %v2615
    %v2624 = vmul.f32 %v1793, %v2616
    %v2625 = vadd.f32 %v2621, %v1810
    %v2626 = vadd.f32 %v2622, %v1811
    %v2627 = vadd.f32 %v2623, %v1812
    %v2628 = vadd.f32 %v2624, %v1813
    %v2633 = vcombine.low %v2625, %v2626
    %v2634 = vcombine.low %v2627, %v2628
    %v2636 = vunpack.c.l.s4 1966171168
    %v2637 = vunpack.c.0.s8 %v2636
    %v2638 = vlaneseq
    %v2639 = vshrl.u32 %v2638, 7
    %v2640 = vsub.s32 %v2637, %v2639
    %v2641 = vrot.slane %v2633, %v2640
    %v2643 = vunpack.c.l.s4 1966171168
    %v2644 = vunpack.c.0.s8 %v2643
    %v2645 = vlaneseq
    %v2646 = vshrl.u32 %v2645, 7
    %v2647 = vsub.s32 %v2644, %v2646
    %v2648 = vrot.slane %v2634, %v2647
    %v2649 = vcombine.high %v2641, %v2648
    %v2651 = vunpack.c.l.s4 1966171168
    %v2652 = vunpack.c.0.s8 %v2651
    %v2653 = vlaneseq
    %v2654 = vshrl.u32 %v2653, 7
    %v2655 = vsub.s32 %v2652, %v2654
    %v2656 = vrot.slane %v2649, %v2655
    %s2658 = scalar_lea.vmem [#allocation2], 65
    %2659 = vst.msk [vmem:[%s2658] ss:$8 sm:$0xf] %vm1850, %v2656
    %2660 = vst.msk [vmem:[%s2658] ss:$8 sm:$0x0] %vm1850, %v2656
    %v2661 = vrot.slane %v2625, 7
    %v2662 = vrot.slane %v2626, 7
    %v2663 = vrot.slane %v2627, 7
    %v2664 = vrot.slane %v2628, 7
    %v2669 = vmul.f32 %v1787, %v2661
    %v2670 = vmul.f32 %v1789, %v2662
    %v2671 = vmul.f32 %v1791, %v2663
    %v2672 = vmul.f32 %v1793, %v2664
    %v2673 = vadd.f32 %v2669, %v1810
    %v2674 = vadd.f32 %v2670, %v1811
    %v2675 = vadd.f32 %v2671, %v1812
    %v2676 = vadd.f32 %v2672, %v1813
    %v2681 = vcombine.low %v2673, %v2674
    %v2682 = vcombine.low %v2675, %v2676
    %v2684 = vunpack.c.l.s4 1966171168
    %v2685 = vunpack.c.0.s8 %v2684
    %v2686 = vlaneseq
    %v2687 = vshrl.u32 %v2686, 7
    %v2688 = vsub.s32 %v2685, %v2687
    %v2689 = vrot.slane %v2681, %v2688
    %v2691 = vunpack.c.l.s4 1966171168
    %v2692 = vunpack.c.0.s8 %v2691
    %v2693 = vlaneseq
    %v2694 = vshrl.u32 %v2693, 7
    %v2695 = vsub.s32 %v2692, %v2694
    %v2696 = vrot.slane %v2682, %v2695
    %v2697 = vcombine.low %v2689, %v2696
    %v2699 = vunpack.c.l.s4 1966171168
    %v2700 = vunpack.c.0.s8 %v2699
    %v2701 = vlaneseq
    %v2702 = vshrl.u32 %v2701, 7
    %v2703 = vsub.s32 %v2700, %v2702
    %v2704 = vrot.slane %v2697, %v2703
    %v2705 = vcombine.high %v2704, %v2704
    %s2707 = scalar_lea.vmem [#allocation2], 66
    %2708 = vst.msk [vmem:[%s2707] ss:$8 sm:$0xf] %vm1850, %v2705
    %2709 = vst.msk [vmem:[%s2707] ss:$8 sm:$0x0] %vm1850, %v2705
    %v2710 = vrot.slane %v2673, 7
    %v2711 = vrot.slane %v2674, 7
    %v2712 = vrot.slane %v2675, 7
    %v2713 = vrot.slane %v2676, 7
    %v2718 = vmul.f32 %v1787, %v2710
    %v2719 = vmul.f32 %v1789, %v2711
    %v2720 = vmul.f32 %v1791, %v2712
    %v2721 = vmul.f32 %v1793, %v2713
    %v2722 = vadd.f32 %v2718, %v1810
    %v2723 = vadd.f32 %v2719, %v1811
    %v2724 = vadd.f32 %v2720, %v1812
    %v2725 = vadd.f32 %v2721, %v1813
    %v2730 = vcombine.low %v2722, %v2723
    %v2731 = vcombine.low %v2724, %v2725
    %v2733 = vunpack.c.l.s4 1966171168
    %v2734 = vunpack.c.0.s8 %v2733
    %v2735 = vlaneseq
    %v2736 = vshrl.u32 %v2735, 7
    %v2737 = vsub.s32 %v2734, %v2736
    %v2738 = vrot.slane %v2730, %v2737
    %v2740 = vunpack.c.l.s4 1966171168
    %v2741 = vunpack.c.0.s8 %v2740
    %v2742 = vlaneseq
    %v2743 = vshrl.u32 %v2742, 7
    %v2744 = vsub.s32 %v2741, %v2743
    %v2745 = vrot.slane %v2731, %v2744
    %v2746 = vcombine.high %v2738, %v2745
    %v2748 = vunpack.c.l.s4 1966171168
    %v2749 = vunpack.c.0.s8 %v2748
    %v2750 = vlaneseq
    %v2751 = vshrl.u32 %v2750, 7
    %v2752 = vsub.s32 %v2749, %v2751
    %v2753 = vrot.slane %v2746, %v2752
    %v2754 = vcombine.high %v2753, %v2753
    %s2756 = scalar_lea.vmem [#allocation2], 67
    %2757 = vst.msk [vmem:[%s2756] ss:$8 sm:$0xf] %vm1850, %v2754
    %2758 = vst.msk [vmem:[%s2756] ss:$8 sm:$0x0] %vm1850, %v2754
    %v2759 = vrot.slane %v2722, 7
    %v2760 = vrot.slane %v2723, 7
    %v2761 = vrot.slane %v2724, 7
    %v2762 = vrot.slane %v2725, 7
    %v2767 = vmul.f32 %v1787, %v2759
    %v2768 = vmul.f32 %v1789, %v2760
    %v2769 = vmul.f32 %v1791, %v2761
    %v2770 = vmul.f32 %v1793, %v2762
    %v2771 = vadd.f32 %v2767, %v1810
    %v2772 = vadd.f32 %v2768, %v1811
    %v2773 = vadd.f32 %v2769, %v1812
    %v2774 = vadd.f32 %v2770, %v1813
    %v2779 = vcombine.high %v2771, %v2772
    %v2780 = vcombine.high %v2773, %v2774
    %v2782 = vunpack.c.l.s4 1966171168
    %v2783 = vunpack.c.0.s8 %v2782
    %v2784 = vlaneseq
    %v2785 = vshrl.u32 %v2784, 7
    %v2786 = vsub.s32 %v2783, %v2785
    %v2787 = vrot.slane %v2779, %v2786
    %v2789 = vunpack.c.l.s4 1966171168
    %v2790 = vunpack.c.0.s8 %v2789
    %v2791 = vlaneseq
    %v2792 = vshrl.u32 %v2791, 7
    %v2793 = vsub.s32 %v2790, %v2792
    %v2794 = vrot.slane %v2780, %v2793
    %v2795 = vcombine.low %v2787, %v2794
    %v2797 = vunpack.c.l.s4 1966171168
    %v2798 = vunpack.c.0.s8 %v2797
    %v2799 = vlaneseq
    %v2800 = vshrl.u32 %v2799, 7
    %v2801 = vsub.s32 %v2798, %v2800
    %v2802 = vrot.slane %v2795, %v2801
    %s2804 = scalar_lea.vmem [#allocation2], 68
    %2805 = vst.msk [vmem:[%s2804] ss:$8 sm:$0xf] %vm1850, %v2802
    %2806 = vst.msk [vmem:[%s2804] ss:$8 sm:$0x0] %vm1850, %v2802
    %v2807 = vrot.slane %v2771, 7
    %v2808 = vrot.slane %v2772, 7
    %v2809 = vrot.slane %v2773, 7
    %v2810 = vrot.slane %v2774, 7
    %v2815 = vmul.f32 %v1787, %v2807
    %v2816 = vmul.f32 %v1789, %v2808
    %v2817 = vmul.f32 %v1791, %v2809
    %v2818 = vmul.f32 %v1793, %v2810
    %v2819 = vadd.f32 %v2815, %v1810
    %v2820 = vadd.f32 %v2816, %v1811
    %v2821 = vadd.f32 %v2817, %v1812
    %v2822 = vadd.f32 %v2818, %v1813
    %v2827 = vcombine.high %v2819, %v2820
    %v2828 = vcombine.high %v2821, %v2822
    %v2830 = vunpack.c.l.s4 1966171168
    %v2831 = vunpack.c.0.s8 %v2830
    %v2832 = vlaneseq
    %v2833 = vshrl.u32 %v2832, 7
    %v2834 = vsub.s32 %v2831, %v2833
    %v2835 = vrot.slane %v2827, %v2834
    %v2837 = vunpack.c.l.s4 1966171168
    %v2838 = vunpack.c.0.s8 %v2837
    %v2839 = vlaneseq
    %v2840 = vshrl.u32 %v2839, 7
    %v2841 = vsub.s32 %v2838, %v2840
    %v2842 = vrot.slane %v2828, %v2841
    %v2843 = vcombine.high %v2835, %v2842
    %v2845 = vunpack.c.l.s4 1966171168
    %v2846 = vunpack.c.0.s8 %v2845
    %v2847 = vlaneseq
    %v2848 = vshrl.u32 %v2847, 7
    %v2849 = vsub.s32 %v2846, %v2848
    %v2850 = vrot.slane %v2843, %v2849
    %s2852 = scalar_lea.vmem [#allocation2], 69
    %2853 = vst.msk [vmem:[%s2852] ss:$8 sm:$0xf] %vm1850, %v2850
    %2854 = vst.msk [vmem:[%s2852] ss:$8 sm:$0x0] %vm1850, %v2850
    %v2855 = vrot.slane %v2819, 7
    %v2856 = vrot.slane %v2820, 7
    %v2857 = vrot.slane %v2821, 7
    %v2858 = vrot.slane %v2822, 7
    %v2863 = vmul.f32 %v1787, %v2855
    %v2864 = vmul.f32 %v1789, %v2856
    %v2865 = vmul.f32 %v1791, %v2857
    %v2866 = vmul.f32 %v1793, %v2858
    %v2867 = vadd.f32 %v2863, %v1810
    %v2868 = vadd.f32 %v2864, %v1811
    %v2869 = vadd.f32 %v2865, %v1812
    %v2870 = vadd.f32 %v2866, %v1813
    %v2875 = vcombine.high %v2867, %v2868
    %v2876 = vcombine.high %v2869, %v2870
    %v2878 = vunpack.c.l.s4 1966171168
    %v2879 = vunpack.c.0.s8 %v2878
    %v2880 = vlaneseq
    %v2881 = vshrl.u32 %v2880, 7
    %v2882 = vsub.s32 %v2879, %v2881
    %v2883 = vrot.slane %v2875, %v2882
    %v2885 = vunpack.c.l.s4 1966171168
    %v2886 = vunpack.c.0.s8 %v2885
    %v2887 = vlaneseq
    %v2888 = vshrl.u32 %v2887, 7
    %v2889 = vsub.s32 %v2886, %v2888
    %v2890 = vrot.slane %v2876, %v2889
    %v2891 = vcombine.low %v2883, %v2890
    %v2893 = vunpack.c.l.s4 1966171168
    %v2894 = vunpack.c.0.s8 %v2893
    %v2895 = vlaneseq
    %v2896 = vshrl.u32 %v2895, 7
    %v2897 = vsub.s32 %v2894, %v2896
    %v2898 = vrot.slane %v2891, %v2897
    %v2899 = vcombine.high %v2898, %v2898
    %s2901 = scalar_lea.vmem [#allocation2], 70
    %2902 = vst.msk [vmem:[%s2901] ss:$8 sm:$0xf] %vm1850, %v2899
    %2903 = vst.msk [vmem:[%s2901] ss:$8 sm:$0x0] %vm1850, %v2899
    %v2904 = vrot.slane %v2867, 7
    %v2905 = vrot.slane %v2868, 7
    %v2906 = vrot.slane %v2869, 7
    %v2907 = vrot.slane %v2870, 7
    %v2912 = vmul.f32 %v1787, %v2904
    %v2913 = vmul.f32 %v1789, %v2905
    %v2914 = vmul.f32 %v1791, %v2906
    %v2915 = vmul.f32 %v1793, %v2907
    %v2916 = vadd.f32 %v2912, %v1810
    %v2917 = vadd.f32 %v2913, %v1811
    %v2918 = vadd.f32 %v2914, %v1812
    %v2919 = vadd.f32 %v2915, %v1813
    %v2924 = vcombine.high %v2916, %v2917
    %v2925 = vcombine.high %v2918, %v2919
    %v2927 = vunpack.c.l.s4 1966171168
    %v2928 = vunpack.c.0.s8 %v2927
    %v2929 = vlaneseq
    %v2930 = vshrl.u32 %v2929, 7
    %v2931 = vsub.s32 %v2928, %v2930
    %v2932 = vrot.slane %v2924, %v2931
    %v2934 = vunpack.c.l.s4 1966171168
    %v2935 = vunpack.c.0.s8 %v2934
    %v2936 = vlaneseq
    %v2937 = vshrl.u32 %v2936, 7
    %v2938 = vsub.s32 %v2935, %v2937
    %v2939 = vrot.slane %v2925, %v2938
    %v2940 = vcombine.high %v2932, %v2939
    %v2942 = vunpack.c.l.s4 1966171168
    %v2943 = vunpack.c.0.s8 %v2942
    %v2944 = vlaneseq
    %v2945 = vshrl.u32 %v2944, 7
    %v2946 = vsub.s32 %v2943, %v2945
    %v2947 = vrot.slane %v2940, %v2946
    %v2948 = vcombine.high %v2947, %v2947
    %s2950 = scalar_lea.vmem [#allocation2], 71
    %2951 = vst.msk [vmem:[%s2950] ss:$8 sm:$0xf] %vm1850, %v2948
    %2952 = vst.msk [vmem:[%s2950] ss:$8 sm:$0x0] %vm1850, %v2948
    %v2953 = vrot.slane %v2916, 7
    %v2954 = vrot.slane %v2917, 7
    %v2955 = vrot.slane %v2918, 7
    %v2956 = vrot.slane %v2919, 7
    %v2961 = vmul.f32 %v1795, %v2953
    %v2962 = vmul.f32 %v1797, %v2954
    %v2963 = vmul.f32 %v1799, %v2955
    %v2964 = vmul.f32 %v1801, %v2956
    %v2965 = vadd.f32 %v2961, %v1814
    %v2966 = vadd.f32 %v2962, %v1815
    %v2967 = vadd.f32 %v2963, %v1816
    %v2968 = vadd.f32 %v2964, %v1817
    %v2973 = vcombine.low %v2965, %v2966
    %v2974 = vcombine.low %v2967, %v2968
    %v2976 = vunpack.c.l.s4 1966171168
    %v2977 = vunpack.c.0.s8 %v2976
    %v2978 = vlaneseq
    %v2979 = vshrl.u32 %v2978, 7
    %v2980 = vsub.s32 %v2977, %v2979
    %v2981 = vrot.slane %v2973, %v2980
    %v2983 = vunpack.c.l.s4 1966171168
    %v2984 = vunpack.c.0.s8 %v2983
    %v2985 = vlaneseq
    %v2986 = vshrl.u32 %v2985, 7
    %v2987 = vsub.s32 %v2984, %v2986
    %v2988 = vrot.slane %v2974, %v2987
    %v2989 = vcombine.low %v2981, %v2988
    %v2991 = vunpack.c.l.s4 1966171168
    %v2992 = vunpack.c.0.s8 %v2991
    %v2993 = vlaneseq
    %v2994 = vshrl.u32 %v2993, 7
    %v2995 = vsub.s32 %v2992, %v2994
    %v2996 = vrot.slane %v2989, %v2995
    %s2998 = scalar_lea.vmem [#allocation2], 96
    %2999 = vst.msk [vmem:[%s2998] ss:$8 sm:$0xf] %vm1850, %v2996
    %3000 = vst.msk [vmem:[%s2998] ss:$8 sm:$0x0] %vm1850, %v2996
    %v3001 = vrot.slane %v2965, 7
    %v3002 = vrot.slane %v2966, 7
    %v3003 = vrot.slane %v2967, 7
    %v3004 = vrot.slane %v2968, 7
    %v3009 = vmul.f32 %v1795, %v3001
    %v3010 = vmul.f32 %v1797, %v3002
    %v3011 = vmul.f32 %v1799, %v3003
    %v3012 = vmul.f32 %v1801, %v3004
    %v3013 = vadd.f32 %v3009, %v1814
    %v3014 = vadd.f32 %v3010, %v1815
    %v3015 = vadd.f32 %v3011, %v1816
    %v3016 = vadd.f32 %v3012, %v1817
    %v3021 = vcombine.low %v3013, %v3014
    %v3022 = vcombine.low %v3015, %v3016
    %v3024 = vunpack.c.l.s4 1966171168
    %v3025 = vunpack.c.0.s8 %v3024
    %v3026 = vlaneseq
    %v3027 = vshrl.u32 %v3026, 7
    %v3028 = vsub.s32 %v3025, %v3027
    %v3029 = vrot.slane %v3021, %v3028
    %v3031 = vunpack.c.l.s4 1966171168
    %v3032 = vunpack.c.0.s8 %v3031
    %v3033 = vlaneseq
    %v3034 = vshrl.u32 %v3033, 7
    %v3035 = vsub.s32 %v3032, %v3034
    %v3036 = vrot.slane %v3022, %v3035
    %v3037 = vcombine.high %v3029, %v3036
    %v3039 = vunpack.c.l.s4 1966171168
    %v3040 = vunpack.c.0.s8 %v3039
    %v3041 = vlaneseq
    %v3042 = vshrl.u32 %v3041, 7
    %v3043 = vsub.s32 %v3040, %v3042
    %v3044 = vrot.slane %v3037, %v3043
    %s3046 = scalar_lea.vmem [#allocation2], 97
    %3047 = vst.msk [vmem:[%s3046] ss:$8 sm:$0xf] %vm1850, %v3044
    %3048 = vst.msk [vmem:[%s3046] ss:$8 sm:$0x0] %vm1850, %v3044
    %v3049 = vrot.slane %v3013, 7
    %v3050 = vrot.slane %v3014, 7
    %v3051 = vrot.slane %v3015, 7
    %v3052 = vrot.slane %v3016, 7
    %v3057 = vmul.f32 %v1795, %v3049
    %v3058 = vmul.f32 %v1797, %v3050
    %v3059 = vmul.f32 %v1799, %v3051
    %v3060 = vmul.f32 %v1801, %v3052
    %v3061 = vadd.f32 %v3057, %v1814
    %v3062 = vadd.f32 %v3058, %v1815
    %v3063 = vadd.f32 %v3059, %v1816
    %v3064 = vadd.f32 %v3060, %v1817
    %v3069 = vcombine.low %v3061, %v3062
    %v3070 = vcombine.low %v3063, %v3064
    %v3072 = vunpack.c.l.s4 1966171168
    %v3073 = vunpack.c.0.s8 %v3072
    %v3074 = vlaneseq
    %v3075 = vshrl.u32 %v3074, 7
    %v3076 = vsub.s32 %v3073, %v3075
    %v3077 = vrot.slane %v3069, %v3076
    %v3079 = vunpack.c.l.s4 1966171168
    %v3080 = vunpack.c.0.s8 %v3079
    %v3081 = vlaneseq
    %v3082 = vshrl.u32 %v3081, 7
    %v3083 = vsub.s32 %v3080, %v3082
    %v3084 = vrot.slane %v3070, %v3083
    %v3085 = vcombine.low %v3077, %v3084
    %v3087 = vunpack.c.l.s4 1966171168
    %v3088 = vunpack.c.0.s8 %v3087
    %v3089 = vlaneseq
    %v3090 = vshrl.u32 %v3089, 7
    %v3091 = vsub.s32 %v3088, %v3090
    %v3092 = vrot.slane %v3085, %v3091
    %v3093 = vcombine.high %v3092, %v3092
    %s3095 = scalar_lea.vmem [#allocation2], 98
    %3096 = vst.msk [vmem:[%s3095] ss:$8 sm:$0xf] %vm1850, %v3093
    %3097 = vst.msk [vmem:[%s3095] ss:$8 sm:$0x0] %vm1850, %v3093
    %v3098 = vrot.slane %v3061, 7
    %v3099 = vrot.slane %v3062, 7
    %v3100 = vrot.slane %v3063, 7
    %v3101 = vrot.slane %v3064, 7
    %v3106 = vmul.f32 %v1795, %v3098
    %v3107 = vmul.f32 %v1797, %v3099
    %v3108 = vmul.f32 %v1799, %v3100
    %v3109 = vmul.f32 %v1801, %v3101
    %v3110 = vadd.f32 %v3106, %v1814
    %v3111 = vadd.f32 %v3107, %v1815
    %v3112 = vadd.f32 %v3108, %v1816
    %v3113 = vadd.f32 %v3109, %v1817
    %v3118 = vcombine.low %v3110, %v3111
    %v3119 = vcombine.low %v3112, %v3113
    %v3121 = vunpack.c.l.s4 1966171168
    %v3122 = vunpack.c.0.s8 %v3121
    %v3123 = vlaneseq
    %v3124 = vshrl.u32 %v3123, 7
    %v3125 = vsub.s32 %v3122, %v3124
    %v3126 = vrot.slane %v3118, %v3125
    %v3128 = vunpack.c.l.s4 1966171168
    %v3129 = vunpack.c.0.s8 %v3128
    %v3130 = vlaneseq
    %v3131 = vshrl.u32 %v3130, 7
    %v3132 = vsub.s32 %v3129, %v3131
    %v3133 = vrot.slane %v3119, %v3132
    %v3134 = vcombine.high %v3126, %v3133
    %v3136 = vunpack.c.l.s4 1966171168
    %v3137 = vunpack.c.0.s8 %v3136
    %v3138 = vlaneseq
    %v3139 = vshrl.u32 %v3138, 7
    %v3140 = vsub.s32 %v3137, %v3139
    %v3141 = vrot.slane %v3134, %v3140
    %v3142 = vcombine.high %v3141, %v3141
    %s3144 = scalar_lea.vmem [#allocation2], 99
    %3145 = vst.msk [vmem:[%s3144] ss:$8 sm:$0xf] %vm1850, %v3142
    %3146 = vst.msk [vmem:[%s3144] ss:$8 sm:$0x0] %vm1850, %v3142
    %v3147 = vrot.slane %v3110, 7
    %v3148 = vrot.slane %v3111, 7
    %v3149 = vrot.slane %v3112, 7
    %v3150 = vrot.slane %v3113, 7
    %v3155 = vmul.f32 %v1795, %v3147
    %v3156 = vmul.f32 %v1797, %v3148
    %v3157 = vmul.f32 %v1799, %v3149
    %v3158 = vmul.f32 %v1801, %v3150
    %v3159 = vadd.f32 %v3155, %v1814
    %v3160 = vadd.f32 %v3156, %v1815
    %v3161 = vadd.f32 %v3157, %v1816
    %v3162 = vadd.f32 %v3158, %v1817
    %v3167 = vcombine.high %v3159, %v3160
    %v3168 = vcombine.high %v3161, %v3162
    %v3170 = vunpack.c.l.s4 1966171168
    %v3171 = vunpack.c.0.s8 %v3170
    %v3172 = vlaneseq
    %v3173 = vshrl.u32 %v3172, 7
    %v3174 = vsub.s32 %v3171, %v3173
    %v3175 = vrot.slane %v3167, %v3174
    %v3177 = vunpack.c.l.s4 1966171168
    %v3178 = vunpack.c.0.s8 %v3177
    %v3179 = vlaneseq
    %v3180 = vshrl.u32 %v3179, 7
    %v3181 = vsub.s32 %v3178, %v3180
    %v3182 = vrot.slane %v3168, %v3181
    %v3183 = vcombine.low %v3175, %v3182
    %v3185 = vunpack.c.l.s4 1966171168
    %v3186 = vunpack.c.0.s8 %v3185
    %v3187 = vlaneseq
    %v3188 = vshrl.u32 %v3187, 7
    %v3189 = vsub.s32 %v3186, %v3188
    %v3190 = vrot.slane %v3183, %v3189
    %s3192 = scalar_lea.vmem [#allocation2], 100
    %3193 = vst.msk [vmem:[%s3192] ss:$8 sm:$0xf] %vm1850, %v3190
    %3194 = vst.msk [vmem:[%s3192] ss:$8 sm:$0x0] %vm1850, %v3190
    %v3195 = vrot.slane %v3159, 7
    %v3196 = vrot.slane %v3160, 7
    %v3197 = vrot.slane %v3161, 7
    %v3198 = vrot.slane %v3162, 7
    %v3203 = vmul.f32 %v1795, %v3195
    %v3204 = vmul.f32 %v1797, %v3196
    %v3205 = vmul.f32 %v1799, %v3197
    %v3206 = vmul.f32 %v1801, %v3198
    %v3207 = vadd.f32 %v3203, %v1814
    %v3208 = vadd.f32 %v3204, %v1815
    %v3209 = vadd.f32 %v3205, %v1816
    %v3210 = vadd.f32 %v3206, %v1817
    %v3215 = vcombine.high %v3207, %v3208
    %v3216 = vcombine.high %v3209, %v3210
    %v3218 = vunpack.c.l.s4 1966171168
    %v3219 = vunpack.c.0.s8 %v3218
    %v3220 = vlaneseq
    %v3221 = vshrl.u32 %v3220, 7
    %v3222 = vsub.s32 %v3219, %v3221
    %v3223 = vrot.slane %v3215, %v3222
    %v3225 = vunpack.c.l.s4 1966171168
    %v3226 = vunpack.c.0.s8 %v3225
    %v3227 = vlaneseq
    %v3228 = vshrl.u32 %v3227, 7
    %v3229 = vsub.s32 %v3226, %v3228
    %v3230 = vrot.slane %v3216, %v3229
    %v3231 = vcombine.high %v3223, %v3230
    %v3233 = vunpack.c.l.s4 1966171168
    %v3234 = vunpack.c.0.s8 %v3233
    %v3235 = vlaneseq
    %v3236 = vshrl.u32 %v3235, 7
    %v3237 = vsub.s32 %v3234, %v3236
    %v3238 = vrot.slane %v3231, %v3237
    %s3240 = scalar_lea.vmem [#allocation2], 101
    %3241 = vst.msk [vmem:[%s3240] ss:$8 sm:$0xf] %vm1850, %v3238
    %3242 = vst.msk [vmem:[%s3240] ss:$8 sm:$0x0] %vm1850, %v3238
    %v3243 = vrot.slane %v3207, 7
    %v3244 = vrot.slane %v3208, 7
    %v3245 = vrot.slane %v3209, 7
    %v3246 = vrot.slane %v3210, 7
    %v3251 = vmul.f32 %v1795, %v3243
    %v3252 = vmul.f32 %v1797, %v3244
    %v3253 = vmul.f32 %v1799, %v3245
    %v3254 = vmul.f32 %v1801, %v3246
    %v3255 = vadd.f32 %v3251, %v1814
    %v3256 = vadd.f32 %v3252, %v1815
    %v3257 = vadd.f32 %v3253, %v1816
    %v3258 = vadd.f32 %v3254, %v1817
    %v3263 = vcombine.high %v3255, %v3256
    %v3264 = vcombine.high %v3257, %v3258
    %v3266 = vunpack.c.l.s4 1966171168
    %v3267 = vunpack.c.0.s8 %v3266
    %v3268 = vlaneseq
    %v3269 = vshrl.u32 %v3268, 7
    %v3270 = vsub.s32 %v3267, %v3269
    %v3271 = vrot.slane %v3263, %v3270
    %v3273 = vunpack.c.l.s4 1966171168
    %v3274 = vunpack.c.0.s8 %v3273
    %v3275 = vlaneseq
    %v3276 = vshrl.u32 %v3275, 7
    %v3277 = vsub.s32 %v3274, %v3276
    %v3278 = vrot.slane %v3264, %v3277
    %v3279 = vcombine.low %v3271, %v3278
    %v3281 = vunpack.c.l.s4 1966171168
    %v3282 = vunpack.c.0.s8 %v3281
    %v3283 = vlaneseq
    %v3284 = vshrl.u32 %v3283, 7
    %v3285 = vsub.s32 %v3282, %v3284
    %v3286 = vrot.slane %v3279, %v3285
    %v3287 = vcombine.high %v3286, %v3286
    %s3289 = scalar_lea.vmem [#allocation2], 102
    %3290 = vst.msk [vmem:[%s3289] ss:$8 sm:$0xf] %vm1850, %v3287
    %3291 = vst.msk [vmem:[%s3289] ss:$8 sm:$0x0] %vm1850, %v3287
    %v3292 = vrot.slane %v3255, 7
    %v3293 = vrot.slane %v3256, 7
    %v3294 = vrot.slane %v3257, 7
    %v3295 = vrot.slane %v3258, 7
    %v3300 = vmul.f32 %v1795, %v3292
    %v3301 = vmul.f32 %v1797, %v3293
    %v3302 = vmul.f32 %v1799, %v3294
    %v3303 = vmul.f32 %v1801, %v3295
    %v3304 = vadd.f32 %v3300, %v1814
    %v3305 = vadd.f32 %v3301, %v1815
    %v3306 = vadd.f32 %v3302, %v1816
    %v3307 = vadd.f32 %v3303, %v1817
    %v3312 = vcombine.high %v3304, %v3305
    %v3313 = vcombine.high %v3306, %v3307
    %v3315 = vunpack.c.l.s4 1966171168
    %v3316 = vunpack.c.0.s8 %v3315
    %v3317 = vlaneseq
    %v3318 = vshrl.u32 %v3317, 7
    %v3319 = vsub.s32 %v3316, %v3318
    %v3320 = vrot.slane %v3312, %v3319
    %v3322 = vunpack.c.l.s4 1966171168
    %v3323 = vunpack.c.0.s8 %v3322
    %v3324 = vlaneseq
    %v3325 = vshrl.u32 %v3324, 7
    %v3326 = vsub.s32 %v3323, %v3325
    %v3327 = vrot.slane %v3313, %v3326
    %v3328 = vcombine.high %v3320, %v3327
    %v3330 = vunpack.c.l.s4 1966171168
    %v3331 = vunpack.c.0.s8 %v3330
    %v3332 = vlaneseq
    %v3333 = vshrl.u32 %v3332, 7
    %v3334 = vsub.s32 %v3331, %v3333
    %v3335 = vrot.slane %v3328, %v3334
    %v3336 = vcombine.high %v3335, %v3335
    %s3338 = scalar_lea.vmem [#allocation2], 103
    %3339 = vst.msk [vmem:[%s3338] ss:$8 sm:$0xf] %vm1850, %v3336
    %3340 = vst.msk [vmem:[%s3338] ss:$8 sm:$0x0] %vm1850, %v3336
    %v3341 = vld [vmem:[#allocation2] sm:$0xff]
    %v3342 = vld [vmem:[#allocation2 + $0x8] sm:$0xff]
    %v3343 = vld [vmem:[#allocation2 + $0x10] sm:$0xff]
    %v3344 = vld [vmem:[#allocation2 + $0x18] sm:$0xff]
    %v3345 = vld [vmem:[#allocation2 + $0x20] sm:$0xff]
    %v3346 = vld [vmem:[#allocation2 + $0x28] sm:$0xff]
    %v3347 = vld [vmem:[#allocation2 + $0x30] sm:$0xff]
    %v3348 = vld [vmem:[#allocation2 + $0x38] sm:$0xff]
    %v3349 = vld [vmem:[#allocation2 + $0x40] sm:$0xff]
    %v3350 = vld [vmem:[#allocation2 + $0x48] sm:$0xff]
    %v3351 = vld [vmem:[#allocation2 + $0x50] sm:$0xff]
    %v3352 = vld [vmem:[#allocation2 + $0x58] sm:$0xff]
    %v3353 = vld [vmem:[#allocation2 + $0x60] sm:$0xff]
    %v3354 = vld [vmem:[#allocation2 + $0x68] sm:$0xff]
    %v3355 = vld [vmem:[#allocation2 + $0x70] sm:$0xff]
    %v3356 = vld [vmem:[#allocation2 + $0x78] sm:$0xff]
    %v3357 = vmul.f32 %v3341, %v1237
    %v3358 = vmul.f32 %v3342, %v1239
    %v3359 = vmul.f32 %v3343, %v1326
    %v3360 = vmul.f32 %v3344, %v1328
    %v3361 = vmul.f32 %v3345, %v1243
    %v3362 = vmul.f32 %v3346, %v1245
    %v3363 = vmul.f32 %v3347, %v1332
    %v3364 = vmul.f32 %v3348, %v1334
    %v3365 = vmul.f32 %v3349, %v1249
    %v3366 = vmul.f32 %v3350, %v1251
    %v3367 = vmul.f32 %v3351, %v1338
    %v3368 = vmul.f32 %v3352, %v1340
    %v3369 = vmul.f32 %v3353, %v1255
    %v3370 = vmul.f32 %v3354, %v1257
    %v3371 = vmul.f32 %v3355, %v1344
    %v3372 = vmul.f32 %v3356, %v1346
    %v3373 = vld [vmem:[%s14] sm:$0x1]
    %v3375 = vlaneseq
    %v3376 = vshrl.u32 %v3375, 7
    %v3377 = vsub.s32 0, %v3376
    %v3378 = vrot.slane %v3373, %v3377
    %v3380 = vmul.f32 %v779, %v3378
    %v3381 = vmul.f32 %v780, %v3378
    %v3382 = vmul.f32 %v781, %v3378
    %v3383 = vmul.f32 %v782, %v3378
    %3384 = vmatprep.subr.mxu0 0.0
    %3385 = vmatpush1.msra.mxu0 %v111
    %3386 = vmatprep.subr.mxu0 0.0
    %3387 = vmatpush1.msra.mxu0 %v112
    %3388 = vmatprep.subr.mxu0 0.0
    %3389 = vmatpush1.msra.mxu0 %v113
    %3390 = vmatprep.subr.mxu0 0.0
    %3391 = vmatpush1.msra.mxu0 %v114
    %3392 = vmatprep.subr.mxu0 0.0
    %3393 = vmatpush1.msra.mxu0 %v115
    %3394 = vmatprep.subr.mxu0 0.0
    %3395 = vmatpush1.msra.mxu0 %v116
    %3396 = vmatprep.subr.mxu0 0.0
    %3397 = vmatpush1.msra.mxu0 %v117
    %3398 = vmatprep.subr.mxu0 0.0
    %3399 = vmatpush1.msra.mxu0 %v118
    %3400 = vmatprep.subr.mxu0 0.0
    %3401 = vmatpush1.msra.mxu0 %v119
    %3402 = vmatprep.subr.mxu0 0.0
    %3403 = vmatpush1.msra.mxu0 %v120
    %3404 = vmatprep.subr.mxu0 0.0
    %3405 = vmatpush1.msra.mxu0 %v121
    %3406 = vmatprep.subr.mxu0 0.0
    %3407 = vmatpush1.msra.mxu0 %v122
    %3408 = vmatprep.subr.mxu0 0.0
    %3409 = vmatpush1.msra.mxu0 %v123
    %3410 = vmatprep.subr.mxu0 0.0
    %3411 = vmatpush1.msra.mxu0 %v124
    %3412 = vmatprep.subr.mxu0 0.0
    %3413 = vmatpush1.msra.mxu0 %v125
    %3414 = vmatprep.subr.mxu0 0.0
    %3415 = vmatpush1.msra.mxu0 %v126
    %3416 = vmatprep.subr.mxu0 0.0
    %3417 = vmatpush1.msra.mxu0 %v127
    %3418 = vmatprep.subr.mxu0 0.0
    %3419 = vmatpush1.msra.mxu0 %v128
    %3420 = vmatprep.subr.mxu0 0.0
    %3421 = vmatpush1.msra.mxu0 %v129
    %3422 = vmatprep.subr.mxu0 0.0
    %3423 = vmatpush1.msra.mxu0 %v130
    %3424 = vmatprep.subr.mxu0 0.0
    %3425 = vmatpush1.msra.mxu0 %v131
    %3426 = vmatprep.subr.mxu0 0.0
    %3427 = vmatpush1.msra.mxu0 %v132
    %3428 = vmatprep.subr.mxu0 0.0
    %3429 = vmatpush1.msra.mxu0 %v133
    %3430 = vmatprep.subr.mxu0 0.0
    %3431 = vmatpush1.msra.mxu0 %v134
    %3432 = vmatprep.subr.mxu0 0.0
    %3433 = vmatpush1.msra.mxu0 %v135
    %3434 = vmatprep.subr.mxu0 0.0
    %3435 = vmatpush1.msra.mxu0 %v136
    %3436 = vmatprep.subr.mxu0 0.0
    %3437 = vmatpush1.msra.mxu0 %v137
    %3438 = vmatprep.subr.mxu0 0.0
    %3439 = vmatpush1.msra.mxu0 %v138
    %3440 = vmatprep.subr.mxu0 0.0
    %3441 = vmatpush1.msra.mxu0 %v139
    %3442 = vmatprep.subr.mxu0 0.0
    %3443 = vmatpush1.msra.mxu0 %v140
    %3444 = vmatprep.subr.mxu0 0.0
    %3445 = vmatpush1.msra.mxu0 %v141
    %3446 = vmatprep.subr.mxu0 0.0
    %3447 = vmatpush1.msra.mxu0 %v142
    %3448 = vmatprep.mubr.f32.mxu0 %v3358
    %3449 = vmatmul.mubr.f32.gmra.mrb[0].mxu0 %v3357
    %v3450 = vpop.f32.mrb[0].mxu0
    %v3451 = vadd.f32 %v3380, %v3450
    %v3452 = vpop.f32.mrb[0].mxu0
    %3453 = vmatprep.mubr.f32.mxu0 %v3362
    %3454 = vmatmul.mubr.f32.gmra.mrb[0].mxu0 %v3361
    %v3455 = vpop.f32.mrb[0].mxu0
    %v3456 = vadd.f32 %v3381, %v3455
    %v3457 = vpop.f32.mrb[0].mxu0
    %3458 = vmatprep.mubr.f32.mxu0 %v3366
    %3459 = vmatmul.mubr.f32.gmra.mrb[0].mxu0 %v3365
    %v3460 = vpop.f32.mrb[0].mxu0
    %v3461 = vadd.f32 %v3382, %v3460
    %v3462 = vpop.f32.mrb[0].mxu0
    %3463 = vmatprep.mubr.f32.mxu0 %v3370
    %3464 = vmatmul.mubr.f32.gmra.mrb[0].mxu0 %v3369
    %v3465 = vpop.f32.mrb[0].mxu0
    %v3466 = vadd.f32 %v3383, %v3465
    %v3467 = vpop.f32.mrb[0].mxu0
    %3468 = vdwg.mxu0
    %3469 = vmatprep.subr.mxu0 0.0
    %3470 = vmatpush1.msra.mxu0 %v143
    %3471 = vmatprep.subr.mxu0 0.0
    %3472 = vmatpush1.msra.mxu0 %v144
    %3473 = vmatprep.subr.mxu0 0.0
    %3474 = vmatpush1.msra.mxu0 %v145
    %3475 = vmatprep.subr.mxu0 0.0
    %3476 = vmatpush1.msra.mxu0 %v146
    %3477 = vmatprep.subr.mxu0 0.0
    %3478 = vmatpush1.msra.mxu0 %v147
    %3479 = vmatprep.subr.mxu0 0.0
    %3480 = vmatpush1.msra.mxu0 %v148
    %3481 = vmatprep.subr.mxu0 0.0
    %3482 = vmatpush1.msra.mxu0 %v149
    %3483 = vmatprep.subr.mxu0 0.0
    %3484 = vmatpush1.msra.mxu0 %v150
    %3485 = vmatprep.subr.mxu0 0.0
    %3486 = vmatpush1.msra.mxu0 %v151
    %3487 = vmatprep.subr.mxu0 0.0
    %3488 = vmatpush1.msra.mxu0 %v152
    %3489 = vmatprep.subr.mxu0 0.0
    %3490 = vmatpush1.msra.mxu0 %v153
    %3491 = vmatprep.subr.mxu0 0.0
    %3492 = vmatpush1.msra.mxu0 %v154
    %3493 = vmatprep.subr.mxu0 0.0
    %3494 = vmatpush1.msra.mxu0 %v155
    %3495 = vmatprep.subr.mxu0 0.0
    %3496 = vmatpush1.msra.mxu0 %v156
    %3497 = vmatprep.subr.mxu0 0.0
    %3498 = vmatpush1.msra.mxu0 %v157
    %3499 = vmatprep.subr.mxu0 0.0
    %3500 = vmatpush1.msra.mxu0 %v158
    %3501 = vmatprep.subr.mxu0 0.0
    %3502 = vmatpush1.msra.mxu0 %v159
    %3503 = vmatprep.subr.mxu0 0.0
    %3504 = vmatpush1.msra.mxu0 %v160
    %3505 = vmatprep.subr.mxu0 0.0
    %3506 = vmatpush1.msra.mxu0 %v161
    %3507 = vmatprep.subr.mxu0 0.0
    %3508 = vmatpush1.msra.mxu0 %v162
    %3509 = vmatprep.subr.mxu0 0.0
    %3510 = vmatpush1.msra.mxu0 %v163
    %3511 = vmatprep.subr.mxu0 0.0
    %3512 = vmatpush1.msra.mxu0 %v164
    %3513 = vmatprep.subr.mxu0 0.0
    %3514 = vmatpush1.msra.mxu0 %v165
    %3515 = vmatprep.subr.mxu0 0.0
    %3516 = vmatpush1.msra.mxu0 %v166
    %3517 = vmatprep.subr.mxu0 0.0
    %3518 = vmatpush1.msra.mxu0 %v167
    %3519 = vmatprep.subr.mxu0 0.0
    %3520 = vmatpush1.msra.mxu0 %v168
    %3521 = vmatprep.subr.mxu0 0.0
    %3522 = vmatpush1.msra.mxu0 %v169
    %3523 = vmatprep.subr.mxu0 0.0
    %3524 = vmatpush1.msra.mxu0 %v170
    %3525 = vmatprep.subr.mxu0 0.0
    %3526 = vmatpush1.msra.mxu0 %v171
    %3527 = vmatprep.subr.mxu0 0.0
    %3528 = vmatpush1.msra.mxu0 %v172
    %3529 = vmatprep.subr.mxu0 0.0
    %3530 = vmatpush1.msra.mxu0 %v173
    %3531 = vmatprep.subr.mxu0 0.0
    %3532 = vmatpush1.msra.mxu0 %v174
    %3533 = vmatprep.mubr.f32.mxu0 %v3360
    %3534 = vmatmul.mubr.f32.gmra.mrb[0].mxu0 %v3359
    %v3535 = vpop.f32.mrb[0].mxu0
    %v3536 = vadd.f32 %v3451, %v3535
    %v3537 = vpop.f32.mrb[0].mxu0
    %3538 = vmatprep.mubr.f32.mxu0 %v3364
    %3539 = vmatmul.mubr.f32.gmra.mrb[0].mxu0 %v3363
    %v3540 = vpop.f32.mrb[0].mxu0
    %v3541 = vadd.f32 %v3456, %v3540
    %v3542 = vpop.f32.mrb[0].mxu0
    %3543 = vmatprep.mubr.f32.mxu0 %v3368
    %3544 = vmatmul.mubr.f32.gmra.mrb[0].mxu0 %v3367
    %v3545 = vpop.f32.mrb[0].mxu0
    %v3546 = vadd.f32 %v3461, %v3545
    %v3547 = vpop.f32.mrb[0].mxu0
    %3548 = vmatprep.mubr.f32.mxu0 %v3372
    %3549 = vmatmul.mubr.f32.gmra.mrb[0].mxu0 %v3371
    %v3550 = vpop.f32.mrb[0].mxu0
    %v3551 = vadd.f32 %v3466, %v3550
    %v3552 = vpop.f32.mrb[0].mxu0
    %3553 = vdwg.mxu0
    %v3554 = vmul.f32 %v543, 0.5
    %v3555 = vmul.f32 %v548, 0.5
    %v3556 = vmul.f32 %v553, 0.5
    %v3557 = vmul.f32 %v558, 0.5
    %v3558 = vtanh.pop %v3554
    %v3559 = vtanh.pop %v3555
    %v3560 = vtanh.pop %v3556
    %v3561 = vtanh.pop %v3557
    %v3562 = vadd.f32 %v3558, 1.0
    %v3563 = vadd.f32 %v3559, 1.0
    %v3564 = vadd.f32 %v3560, 1.0
    %v3565 = vadd.f32 %v3561, 1.0
    %v3566 = vmul.f32 %v3554, %v3562
    %v3567 = vmul.f32 %v3555, %v3563
    %v3568 = vmul.f32 %v3556, %v3564
    %v3569 = vmul.f32 %v3557, %v3565
    %v3570 = vmul.f32 %v3536, %v3566
    %v3571 = vmul.f32 %v3541, %v3567
    %v3572 = vmul.f32 %v3546, %v3568
    %v3573 = vmul.f32 %v3551, %v3569
    %v3574 = vld [vmem:[%s15] sm:$0xff]
    %v3575 = vld [vmem:[%s15 + $0x8] sm:$0xff]
    %v3576 = vld [vmem:[%s15 + $0x10] sm:$0xff]
    %v3577 = vld [vmem:[%s15 + $0x18] sm:$0xff]
    %v3578 = vld [vmem:[%s15 + $0x20] sm:$0xff]
    %v3579 = vld [vmem:[%s15 + $0x28] sm:$0xff]
    %v3580 = vld [vmem:[%s15 + $0x30] sm:$0xff]
    %v3581 = vld [vmem:[%s15 + $0x38] sm:$0xff]
    %v3583 = vsel %vm798, %v3570, 0
    %v3586 = vsel %vm798, %v3571, 0
    %v3589 = vsel %vm798, %v3572, 0
    %v3592 = vsel %vm798, %v3573, 0
    %3594 = vmatprep.subr.mxu0 0.0
    %3595 = vmatpush1.msra.mxu0 %v3574
    %3596 = vmatprep.subr.mxu0 0.0
    %3597 = vmatpush1.msra.mxu0 %v3575
    %3598 = vmatprep.subr.mxu0 0.0
    %3599 = vmatpush1.msra.mxu0 %v3576
    %3600 = vmatprep.subr.mxu0 0.0
    %3601 = vmatpush1.msra.mxu0 %v3577
    %3602 = vmatprep.subr.mxu0 0.0
    %3603 = vmatpush1.msra.mxu0 %v3578
    %3604 = vmatprep.subr.mxu0 0.0
    %3605 = vmatpush1.msra.mxu0 %v3579
    %3606 = vmatprep.subr.mxu0 0.0
    %3607 = vmatpush1.msra.mxu0 %v3580
    %3608 = vmatprep.subr.mxu0 0.0
    %3609 = vmatpush1.msra.mxu0 %v3581
    %3610 = vmatprep.subr.mxu0 0.0
    %3611 = vmatpush1.msra.mxu0 0.0
    %3612 = vmatprep.subr.mxu0 0.0
    %3613 = vmatpush1.msra.mxu0 0.0
    %3614 = vmatprep.subr.mxu0 0.0
    %3615 = vmatpush1.msra.mxu0 0.0
    %3616 = vmatprep.subr.mxu0 0.0
    %3617 = vmatpush1.msra.mxu0 0.0
    %3618 = vmatprep.subr.mxu0 0.0
    %3619 = vmatpush1.msra.mxu0 0.0
    %3620 = vmatprep.subr.mxu0 0.0
    %3621 = vmatpush1.msra.mxu0 0.0
    %3622 = vmatprep.subr.mxu0 0.0
    %3623 = vmatpush1.msra.mxu0 0.0
    %3624 = vmatprep.subr.mxu0 0.0
    %3625 = vmatpush1.msra.mxu0 0.0
    %3626 = vmatprep.subr.mxu0 0.0
    %3627 = vmatpush1.msra.mxu0 0.0
    %3628 = vmatprep.subr.mxu0 0.0
    %3629 = vmatpush1.msra.mxu0 0.0
    %3630 = vmatprep.subr.mxu0 0.0
    %3631 = vmatpush1.msra.mxu0 0.0
    %3632 = vmatprep.subr.mxu0 0.0
    %3633 = vmatpush1.msra.mxu0 0.0
    %3634 = vmatprep.subr.mxu0 0.0
    %3635 = vmatpush1.msra.mxu0 0.0
    %3636 = vmatprep.subr.mxu0 0.0
    %3637 = vmatpush1.msra.mxu0 0.0
    %3638 = vmatprep.subr.mxu0 0.0
    %3639 = vmatpush1.msra.mxu0 0.0
    %3640 = vmatprep.subr.mxu0 0.0
    %3641 = vmatpush1.msra.mxu0 0.0
    %3642 = vmatprep.subr.mxu0 0.0
    %3643 = vmatpush1.msra.mxu0 0.0
    %3644 = vmatprep.subr.mxu0 0.0
    %3645 = vmatpush1.msra.mxu0 0.0
    %3646 = vmatprep.subr.mxu0 0.0
    %3647 = vmatpush1.msra.mxu0 0.0
    %3648 = vmatprep.subr.mxu0 0.0
    %3649 = vmatpush1.msra.mxu0 0.0
    %3650 = vmatprep.subr.mxu0 0.0
    %3651 = vmatpush1.msra.mxu0 0.0
    %3652 = vmatprep.subr.mxu0 0.0
    %3653 = vmatpush1.msra.mxu0 0.0
    %3654 = vmatprep.subr.mxu0 0.0
    %3655 = vmatpush1.msra.mxu0 0.0
    %3656 = vmatprep.subr.mxu0 0.0
    %3657 = vmatpush1.msra.mxu0 0.0
    %3658 = vmatprep.mubr.f32.mxu0 0.0
    %3659 = vmatmul.mubr.f32.gmra.mrb[0].mxu0 %v3583
    %v3660 = vpop.f32.mrb[0].mxu0
    %v3661 = vadd.f32 0.0, %v3660
    %v3662 = vpop.f32.mrb[0].mxu0
    %3663 = vmatprep.mubr.f32.mxu0 0.0
    %3664 = vmatmul.mubr.f32.gmra.mrb[0].mxu0 %v3586
    %v3665 = vpop.f32.mrb[0].mxu0
    %v3666 = vadd.f32 0.0, %v3665
    %v3667 = vpop.f32.mrb[0].mxu0
    %3668 = vmatprep.mubr.f32.mxu0 0.0
    %3669 = vmatmul.mubr.f32.gmra.mrb[0].mxu0 %v3589
    %v3670 = vpop.f32.mrb[0].mxu0
    %v3671 = vadd.f32 0.0, %v3670
    %v3672 = vpop.f32.mrb[0].mxu0
    %3673 = vmatprep.mubr.f32.mxu0 0.0
    %3674 = vmatmul.mubr.f32.gmra.mrb[0].mxu0 %v3592
    %v3675 = vpop.f32.mrb[0].mxu0
    %v3676 = vadd.f32 0.0, %v3675
    %v3677 = vpop.f32.mrb[0].mxu0
    %3678 = vdwg.mxu0
    %s3679 = scalar_lea.vmem %s2, 16
    %v3680 = vld [vmem:[%s3679] sm:$0xff]
    %v3681 = vld [vmem:[%s3679 + $0x8] sm:$0xff]
    %s3682 = scalar_lea.vmem %s3, 1
    %v3683 = vld [vmem:[%s3682] sm:$0x1]
    %v3685 = vlaneseq
    %v3686 = vshrl.u32 %v3685, 7
    %v3687 = vsub.s32 0, %v3686
    %v3688 = vrot.slane %v3683, %v3687
    %v3691 = vsel %vm189, %v3661, 0
    %v3694 = vsel %vm189, %v3666, 0
    %v3697 = vsel %vm189, %v3671, 0
    %v3700 = vsel %vm189, %v3676, 0
    %3702 = vmatprep.subr.mxu0 0.0
    %3703 = vmatpush1.msra.mxu0 %v3680
    %3704 = vmatprep.subr.mxu0 0.0
    %3705 = vmatpush1.msra.mxu0 %v3681
    %3706 = vmatprep.subr.mxu0 0.0
    %3707 = vmatpush1.msra.mxu0 0.0
    %3708 = vmatprep.subr.mxu0 0.0
    %3709 = vmatpush1.msra.mxu0 0.0
    %3710 = vmatprep.subr.mxu0 0.0
    %3711 = vmatpush1.msra.mxu0 0.0
    %3712 = vmatprep.subr.mxu0 0.0
    %3713 = vmatpush1.msra.mxu0 0.0
    %3714 = vmatprep.subr.mxu0 0.0
    %3715 = vmatpush1.msra.mxu0 0.0
    %3716 = vmatprep.subr.mxu0 0.0
    %3717 = vmatpush1.msra.mxu0 0.0
    %3718 = vmatprep.subr.mxu0 0.0
    %3719 = vmatpush1.msra.mxu0 0.0
    %3720 = vmatprep.subr.mxu0 0.0
    %3721 = vmatpush1.msra.mxu0 0.0
    %3722 = vmatprep.subr.mxu0 0.0
    %3723 = vmatpush1.msra.mxu0 0.0
    %3724 = vmatprep.subr.mxu0 0.0
    %3725 = vmatpush1.msra.mxu0 0.0
    %3726 = vmatprep.subr.mxu0 0.0
    %3727 = vmatpush1.msra.mxu0 0.0
    %3728 = vmatprep.subr.mxu0 0.0
    %3729 = vmatpush1.msra.mxu0 0.0
    %3730 = vmatprep.subr.mxu0 0.0
    %3731 = vmatpush1.msra.mxu0 0.0
    %3732 = vmatprep.subr.mxu0 0.0
    %3733 = vmatpush1.msra.mxu0 0.0
    %3734 = vmatprep.subr.mxu0 0.0
    %3735 = vmatpush1.msra.mxu0 0.0
    %3736 = vmatprep.subr.mxu0 0.0
    %3737 = vmatpush1.msra.mxu0 0.0
    %3738 = vmatprep.subr.mxu0 0.0
    %3739 = vmatpush1.msra.mxu0 0.0
    %3740 = vmatprep.subr.mxu0 0.0
    %3741 = vmatpush1.msra.mxu0 0.0
    %3742 = vmatprep.subr.mxu0 0.0
    %3743 = vmatpush1.msra.mxu0 0.0
    %3744 = vmatprep.subr.mxu0 0.0
    %3745 = vmatpush1.msra.mxu0 0.0
    %3746 = vmatprep.subr.mxu0 0.0
    %3747 = vmatpush1.msra.mxu0 0.0
    %3748 = vmatprep.subr.mxu0 0.0
    %3749 = vmatpush1.msra.mxu0 0.0
    %3750 = vmatprep.subr.mxu0 0.0
    %3751 = vmatpush1.msra.mxu0 0.0
    %3752 = vmatprep.subr.mxu0 0.0
    %3753 = vmatpush1.msra.mxu0 0.0
    %3754 = vmatprep.subr.mxu0 0.0
    %3755 = vmatpush1.msra.mxu0 0.0
    %3756 = vmatprep.subr.mxu0 0.0
    %3757 = vmatpush1.msra.mxu0 0.0
    %3758 = vmatprep.subr.mxu0 0.0
    %3759 = vmatpush1.msra.mxu0 0.0
    %3760 = vmatprep.subr.mxu0 0.0
    %3761 = vmatpush1.msra.mxu0 0.0
    %3762 = vmatprep.subr.mxu0 0.0
    %3763 = vmatpush1.msra.mxu0 0.0
    %3764 = vmatprep.subr.mxu0 0.0
    %3765 = vmatpush1.msra.mxu0 0.0
    %3766 = vmatprep.mubr.f32.mxu0 0.0
    %3767 = vmatmul.mubr.f32.gmra.mrb[0].mxu0 %v3691
    %v3768 = vpop.f32.mrb[0].mxu0
    %v3769 = vadd.f32 %v3688, %v3768
    %v3770 = vpop.f32.mrb[0].mxu0
    %3771 = vmatprep.mubr.f32.mxu0 0.0
    %3772 = vmatmul.mubr.f32.gmra.mrb[0].mxu0 %v3694
    %v3773 = vpop.f32.mrb[0].mxu0
    %v3774 = vadd.f32 %v3688, %v3773
    %v3775 = vpop.f32.mrb[0].mxu0
    %3776 = vmatprep.mubr.f32.mxu0 0.0
    %3777 = vmatmul.mubr.f32.gmra.mrb[0].mxu0 %v3697
    %v3778 = vpop.f32.mrb[0].mxu0
    %v3779 = vadd.f32 %v3688, %v3778
    %v3780 = vpop.f32.mrb[0].mxu0
    %3781 = vmatprep.mubr.f32.mxu0 0.0
    %3782 = vmatmul.mubr.f32.gmra.mrb[0].mxu0 %v3700
    %v3783 = vpop.f32.mrb[0].mxu0
    %v3784 = vadd.f32 %v3688, %v3783
    %v3785 = vpop.f32.mrb[0].mxu0
    %3786 = vdwg.mxu0
    %s3787 = scalar_lea.vmem %s4, 16
    %v3788 = vld [vmem:[%s3787] sm:$0xff]
    %v3789 = vld [vmem:[%s3787 + $0x8] sm:$0xff]
    %s3790 = scalar_lea.vmem %s5, 1
    %v3791 = vld [vmem:[%s3790] sm:$0x1]
    %v3793 = vlaneseq
    %v3794 = vshrl.u32 %v3793, 7
    %v3795 = vsub.s32 0, %v3794
    %v3796 = vrot.slane %v3791, %v3795
    %3798 = vmatprep.subr.mxu0 0.0
    %3799 = vmatpush1.msra.mxu0 %v3788
    %3800 = vmatprep.subr.mxu0 0.0
    %3801 = vmatpush1.msra.mxu0 %v3789
    %3802 = vmatprep.subr.mxu0 0.0
    %3803 = vmatpush1.msra.mxu0 0.0
    %3804 = vmatprep.subr.mxu0 0.0
    %3805 = vmatpush1.msra.mxu0 0.0
    %3806 = vmatprep.subr.mxu0 0.0
    %3807 = vmatpush1.msra.mxu0 0.0
    %3808 = vmatprep.subr.mxu0 0.0
    %3809 = vmatpush1.msra.mxu0 0.0
    %3810 = vmatprep.subr.mxu0 0.0
    %3811 = vmatpush1.msra.mxu0 0.0
    %3812 = vmatprep.subr.mxu0 0.0
    %3813 = vmatpush1.msra.mxu0 0.0
    %3814 = vmatprep.subr.mxu0 0.0
    %3815 = vmatpush1.msra.mxu0 0.0
    %3816 = vmatprep.subr.mxu0 0.0
    %3817 = vmatpush1.msra.mxu0 0.0
    %3818 = vmatprep.subr.mxu0 0.0
    %3819 = vmatpush1.msra.mxu0 0.0
    %3820 = vmatprep.subr.mxu0 0.0
    %3821 = vmatpush1.msra.mxu0 0.0
    %3822 = vmatprep.subr.mxu0 0.0
    %3823 = vmatpush1.msra.mxu0 0.0
    %3824 = vmatprep.subr.mxu0 0.0
    %3825 = vmatpush1.msra.mxu0 0.0
    %3826 = vmatprep.subr.mxu0 0.0
    %3827 = vmatpush1.msra.mxu0 0.0
    %3828 = vmatprep.subr.mxu0 0.0
    %3829 = vmatpush1.msra.mxu0 0.0
    %3830 = vmatprep.subr.mxu0 0.0
    %3831 = vmatpush1.msra.mxu0 0.0
    %3832 = vmatprep.subr.mxu0 0.0
    %3833 = vmatpush1.msra.mxu0 0.0
    %3834 = vmatprep.subr.mxu0 0.0
    %3835 = vmatpush1.msra.mxu0 0.0
    %3836 = vmatprep.subr.mxu0 0.0
    %3837 = vmatpush1.msra.mxu0 0.0
    %3838 = vmatprep.subr.mxu0 0.0
    %3839 = vmatpush1.msra.mxu0 0.0
    %3840 = vmatprep.subr.mxu0 0.0
    %3841 = vmatpush1.msra.mxu0 0.0
    %3842 = vmatprep.subr.mxu0 0.0
    %3843 = vmatpush1.msra.mxu0 0.0
    %3844 = vmatprep.subr.mxu0 0.0
    %3845 = vmatpush1.msra.mxu0 0.0
    %3846 = vmatprep.subr.mxu0 0.0
    %3847 = vmatpush1.msra.mxu0 0.0
    %3848 = vmatprep.subr.mxu0 0.0
    %3849 = vmatpush1.msra.mxu0 0.0
    %3850 = vmatprep.subr.mxu0 0.0
    %3851 = vmatpush1.msra.mxu0 0.0
    %3852 = vmatprep.subr.mxu0 0.0
    %3853 = vmatpush1.msra.mxu0 0.0
    %3854 = vmatprep.subr.mxu0 0.0
    %3855 = vmatpush1.msra.mxu0 0.0
    %3856 = vmatprep.subr.mxu0 0.0
    %3857 = vmatpush1.msra.mxu0 0.0
    %3858 = vmatprep.subr.mxu0 0.0
    %3859 = vmatpush1.msra.mxu0 0.0
    %3860 = vmatprep.subr.mxu0 0.0
    %3861 = vmatpush1.msra.mxu0 0.0
    %3862 = vmatprep.mubr.f32.mxu0 0.0
    %3863 = vmatmul.mubr.f32.gmra.mrb[0].mxu0 %v3691
    %v3864 = vpop.f32.mrb[0].mxu0
    %v3865 = vadd.f32 %v3796, %v3864
    %v3866 = vpop.f32.mrb[0].mxu0
    %3867 = vmatprep.mubr.f32.mxu0 0.0
    %3868 = vmatmul.mubr.f32.gmra.mrb[0].mxu0 %v3694
    %v3869 = vpop.f32.mrb[0].mxu0
    %v3870 = vadd.f32 %v3796, %v3869
    %v3871 = vpop.f32.mrb[0].mxu0
    %3872 = vmatprep.mubr.f32.mxu0 0.0
    %3873 = vmatmul.mubr.f32.gmra.mrb[0].mxu0 %v3697
    %v3874 = vpop.f32.mrb[0].mxu0
    %v3875 = vadd.f32 %v3796, %v3874
    %v3876 = vpop.f32.mrb[0].mxu0
    %3877 = vmatprep.mubr.f32.mxu0 0.0
    %3878 = vmatmul.mubr.f32.gmra.mrb[0].mxu0 %v3700
    %v3879 = vpop.f32.mrb[0].mxu0
    %v3880 = vadd.f32 %v3796, %v3879
    %v3881 = vpop.f32.mrb[0].mxu0
    %3882 = vdwg.mxu0
    %3883 = vmatprep.subr.mxu0 0.0
    %3884 = vmatpush1.msra.mxu0 %v3769
    %3885 = vmatprep.subr.mxu0 0.0
    %3886 = vmatpush1.msra.mxu0 %v3774
    %3887 = vmatprep.subr.mxu0 0.0
    %3888 = vmatpush1.msra.mxu0 %v3779
    %3889 = vmatprep.subr.mxu0 0.0
    %3890 = vmatpush1.msra.mxu0 %v3784
    %3891 = vmatprep.subr.mxu0 0.0
    %3892 = vmatpush1.msra.mxu0 0.0
    %3893 = vmatprep.subr.mxu0 0.0
    %3894 = vmatpush1.msra.mxu0 0.0
    %3895 = vmatprep.subr.mxu0 0.0
    %3896 = vmatpush1.msra.mxu0 0.0
    %3897 = vmatprep.subr.mxu0 0.0
    %3898 = vmatpush1.msra.mxu0 0.0
    %3899 = vmatprep.subr.mxu0 0.0
    %3900 = vmatpush1.msra.mxu0 0.0
    %3901 = vmatprep.subr.mxu0 0.0
    %3902 = vmatpush1.msra.mxu0 0.0
    %3903 = vmatprep.subr.mxu0 0.0
    %3904 = vmatpush1.msra.mxu0 0.0
    %3905 = vmatprep.subr.mxu0 0.0
    %3906 = vmatpush1.msra.mxu0 0.0
    %3907 = vmatprep.subr.mxu0 0.0
    %3908 = vmatpush1.msra.mxu0 0.0
    %3909 = vmatprep.subr.mxu0 0.0
    %3910 = vmatpush1.msra.mxu0 0.0
    %3911 = vmatprep.subr.mxu0 0.0
    %3912 = vmatpush1.msra.mxu0 0.0
    %3913 = vmatprep.subr.mxu0 0.0
    %3914 = vmatpush1.msra.mxu0 0.0
    %3915 = vmatprep.subr.mxu0 0.0
    %3916 = vmatpush1.msra.mxu0 0.0
    %3917 = vmatprep.subr.mxu0 0.0
    %3918 = vmatpush1.msra.mxu0 0.0
    %3919 = vmatprep.subr.mxu0 0.0
    %3920 = vmatpush1.msra.mxu0 0.0
    %3921 = vmatprep.subr.mxu0 0.0
    %3922 = vmatpush1.msra.mxu0 0.0
    %3923 = vmatprep.subr.mxu0 0.0
    %3924 = vmatpush1.msra.mxu0 0.0
    %3925 = vmatprep.subr.mxu0 0.0
    %3926 = vmatpush1.msra.mxu0 0.0
    %3927 = vmatprep.subr.mxu0 0.0
    %3928 = vmatpush1.msra.mxu0 0.0
    %3929 = vmatprep.subr.mxu0 0.0
    %3930 = vmatpush1.msra.mxu0 0.0
    %3931 = vmatprep.subr.mxu0 0.0
    %3932 = vmatpush1.msra.mxu0 0.0
    %3933 = vmatprep.subr.mxu0 0.0
    %3934 = vmatpush1.msra.mxu0 0.0
    %3935 = vmatprep.subr.mxu0 0.0
    %3936 = vmatpush1.msra.mxu0 0.0
    %3937 = vmatprep.subr.mxu0 0.0
    %3938 = vmatpush1.msra.mxu0 0.0
    %3939 = vmatprep.subr.mxu0 0.0
    %3940 = vmatpush1.msra.mxu0 0.0
    %3941 = vmatprep.subr.mxu0 0.0
    %3942 = vmatpush1.msra.mxu0 0.0
    %3943 = vmatprep.subr.mxu0 0.0
    %3944 = vmatpush1.msra.mxu0 0.0
    %3945 = vmatprep.subr.mxu0 0.0
    %3946 = vmatpush1.msra.mxu0 0.0
    %3947 = vmatprep.mubr.f32.mxu0 0.0
    %3948 = vmatmul.mubr.f32.gmra.mrb[0].mxu0 %v563
    %v3949 = vpop.f32.mrb[0].mxu0
    %v3950 = vadd.f32 0.0, %v3949
    %v3951 = vpop.f32.mrb[0].mxu0
    %3952 = vmatprep.mubr.f32.mxu0 0.0
    %3953 = vmatmul.mubr.f32.gmra.mrb[0].mxu0 %v566
    %v3954 = vpop.f32.mrb[0].mxu0
    %v3955 = vadd.f32 0.0, %v3954
    %v3956 = vpop.f32.mrb[0].mxu0
    %3957 = vmatprep.mubr.f32.mxu0 0.0
    %3958 = vmatmul.mubr.f32.gmra.mrb[0].mxu0 %v569
    %v3959 = vpop.f32.mrb[0].mxu0
    %v3960 = vadd.f32 0.0, %v3959
    %v3961 = vpop.f32.mrb[0].mxu0
    %3962 = vmatprep.mubr.f32.mxu0 0.0
    %3963 = vmatmul.mubr.f32.gmra.mrb[0].mxu0 %v572
    %v3964 = vpop.f32.mrb[0].mxu0
    %v3965 = vadd.f32 0.0, %v3964
    %v3966 = vpop.f32.mrb[0].mxu0
    %3967 = vmatprep.mubr.f32.mxu0 0.0
    %3968 = vmatmul.mubr.f32.gmra.mrb[0].mxu0 %v575
    %v3969 = vpop.f32.mrb[0].mxu0
    %v3970 = vadd.f32 0.0, %v3969
    %v3971 = vpop.f32.mrb[0].mxu0
    %3972 = vmatprep.mubr.f32.mxu0 0.0
    %3973 = vmatmul.mubr.f32.gmra.mrb[0].mxu0 %v578
    %v3974 = vpop.f32.mrb[0].mxu0
    %v3975 = vadd.f32 0.0, %v3974
    %v3976 = vpop.f32.mrb[0].mxu0
    %3977 = vmatprep.mubr.f32.mxu0 0.0
    %3978 = vmatmul.mubr.f32.gmra.mrb[0].mxu0 %v581
    %v3979 = vpop.f32.mrb[0].mxu0
    %v3980 = vadd.f32 0.0, %v3979
    %v3981 = vpop.f32.mrb[0].mxu0
    %3982 = vmatprep.mubr.f32.mxu0 0.0
    %3983 = vmatmul.mubr.f32.gmra.mrb[0].mxu0 %v584
    %v3984 = vpop.f32.mrb[0].mxu0
    %v3985 = vadd.f32 0.0, %v3984
    %v3986 = vpop.f32.mrb[0].mxu0
    %3987 = vmatprep.mubr.f32.mxu0 0.0
    %3988 = vmatmul.mubr.f32.gmra.mrb[0].mxu0 %v587
    %v3989 = vpop.f32.mrb[0].mxu0
    %v3990 = vadd.f32 0.0, %v3989
    %v3991 = vpop.f32.mrb[0].mxu0
    %3992 = vmatprep.mubr.f32.mxu0 0.0
    %3993 = vmatmul.mubr.f32.gmra.mrb[0].mxu0 %v590
    %v3994 = vpop.f32.mrb[0].mxu0
    %v3995 = vadd.f32 0.0, %v3994
    %v3996 = vpop.f32.mrb[0].mxu0
    %3997 = vmatprep.mubr.f32.mxu0 0.0
    %3998 = vmatmul.mubr.f32.gmra.mrb[0].mxu0 %v593
    %v3999 = vpop.f32.mrb[0].mxu0
    %v4000 = vadd.f32 0.0, %v3999
    %v4001 = vpop.f32.mrb[0].mxu0
    %4002 = vmatprep.mubr.f32.mxu0 0.0
    %4003 = vmatmul.mubr.f32.gmra.mrb[0].mxu0 %v596
    %v4004 = vpop.f32.mrb[0].mxu0
    %v4005 = vadd.f32 0.0, %v4004
    %v4006 = vpop.f32.mrb[0].mxu0
    %4007 = vdwg.mxu0
    %s4008 = scalar_lea.vmem %s6, 4
    %v4009 = vld [vmem:[%s4008] sm:$0x7]
    %v4010 = vlaneseq
    %v4011 = vshrl.u32 %v4010, 7
    %v4012 = vsub.s32 0, %v4011
    %v4013 = vrot.slane %v4009, %v4012
    %v4014 = vmul.f32 %v3950, %v4013
    %v4015 = vmul.f32 %v3955, %v4013
    %v4016 = vmul.f32 %v3960, %v4013
    %v4017 = vmul.f32 %v3965, %v4013
    %v4018 = vlaneseq
    %v4019 = vshrl.u32 %v4018, 7
    %v4020 = vsub.s32 1, %v4019
    %v4021 = vrot.slane %v4009, %v4020
    %v4022 = vmul.f32 %v3970, %v4021
    %v4023 = vmul.f32 %v3975, %v4021
    %v4024 = vmul.f32 %v3980, %v4021
    %v4025 = vmul.f32 %v3985, %v4021
    %v4026 = vadd.f32 %v4014, %v4022
    %v4027 = vadd.f32 %v4015, %v4023
    %v4028 = vadd.f32 %v4016, %v4024
    %v4029 = vadd.f32 %v4017, %v4025
    %v4030 = vlaneseq
    %v4031 = vshrl.u32 %v4030, 7
    %v4032 = vsub.s32 2, %v4031
    %v4033 = vrot.slane %v4009, %v4032
    %v4034 = vmul.f32 %v3990, %v4033
    %v4035 = vmul.f32 %v3995, %v4033
    %v4036 = vmul.f32 %v4000, %v4033
    %v4037 = vmul.f32 %v4005, %v4033
    %v4038 = vadd.f32 %v4026, %v4034
    %v4039 = vadd.f32 %v4027, %v4035
    %v4040 = vadd.f32 %v4028, %v4036
    %v4041 = vadd.f32 %v4029, %v4037
    %s4042 = scalar_lea.vmem %s7, 1
    %v4043 = vld [vmem:[%s4042] sm:$0x1]
    %v4045 = vlaneseq
    %v4046 = vshrl.u32 %v4045, 7
    %v4047 = vsub.s32 0, %v4046
    %v4048 = vrot.slane %v4043, %v4047
    %v4050 = vadd.f32 %v4038, %v4048
    %v4051 = vadd.f32 %v4039, %v4048
    %v4052 = vadd.f32 %v4040, %v4048
    %v4053 = vadd.f32 %v4041, %v4048
    %v4054 = vmul.f32 %v4050, 0.5
    %v4055 = vmul.f32 %v4051, 0.5
    %v4056 = vmul.f32 %v4052, 0.5
    %v4057 = vmul.f32 %v4053, 0.5
    %v4058 = vtanh.pop %v4054
    %v4059 = vtanh.pop %v4055
    %v4060 = vtanh.pop %v4056
    %v4061 = vtanh.pop %v4057
    %v4062 = vadd.f32 %v4058, 1.0
    %v4063 = vadd.f32 %v4059, 1.0
    %v4064 = vadd.f32 %v4060, 1.0
    %v4065 = vadd.f32 %v4061, 1.0
    %v4066 = vmul.f32 %v4054, %v4062
    %v4067 = vmul.f32 %v4055, %v4063
    %v4068 = vmul.f32 %v4056, %v4064
    %v4069 = vmul.f32 %v4057, %v4065
    %s4070 = scalar_lea.vmem %s8, 64
    %v4071 = vld [vmem:[%s4070] sm:$0xff]
    %v4072 = vld [vmem:[%s4070 + $0x8] sm:$0xff]
    %v4073 = vld [vmem:[%s4070 + $0x10] sm:$0xff]
    %v4074 = vld [vmem:[%s4070 + $0x18] sm:$0xff]
    %v4075 = vld [vmem:[%s4070 + $0x20] sm:$0xff]
    %v4076 = vld [vmem:[%s4070 + $0x28] sm:$0xff]
    %v4077 = vld [vmem:[%s4070 + $0x30] sm:$0xff]
    %v4078 = vld [vmem:[%s4070 + $0x38] sm:$0xff]
    %s4079 = scalar_lea.vmem %s9, 1
    %v4080 = vld [vmem:[%s4079] sm:$0x1]
    %v4082 = vlaneseq
    %v4083 = vshrl.u32 %v4082, 7
    %v4084 = vsub.s32 0, %v4083
    %v4085 = vrot.slane %v4080, %v4084
    %v4088 = vsel %vm798, %v4066, 0
    %v4091 = vsel %vm798, %v4067, 0
    %v4094 = vsel %vm798, %v4068, 0
    %v4097 = vsel %vm798, %v4069, 0
    %4099 = vmatprep.subr.mxu0 0.0
    %4100 = vmatpush1.msra.mxu0 %v4071
    %4101 = vmatprep.subr.mxu0 0.0
    %4102 = vmatpush1.msra.mxu0 %v4072
    %4103 = vmatprep.subr.mxu0 0.0
    %4104 = vmatpush1.msra.mxu0 %v4073
    %4105 = vmatprep.subr.mxu0 0.0
    %4106 = vmatpush1.msra.mxu0 %v4074
    %4107 = vmatprep.subr.mxu0 0.0
    %4108 = vmatpush1.msra.mxu0 %v4075
    %4109 = vmatprep.subr.mxu0 0.0
    %4110 = vmatpush1.msra.mxu0 %v4076
    %4111 = vmatprep.subr.mxu0 0.0
    %4112 = vmatpush1.msra.mxu0 %v4077
    %4113 = vmatprep.subr.mxu0 0.0
    %4114 = vmatpush1.msra.mxu0 %v4078
    %4115 = vmatprep.subr.mxu0 0.0
    %4116 = vmatpush1.msra.mxu0 0.0
    %4117 = vmatprep.subr.mxu0 0.0
    %4118 = vmatpush1.msra.mxu0 0.0
    %4119 = vmatprep.subr.mxu0 0.0
    %4120 = vmatpush1.msra.mxu0 0.0
    %4121 = vmatprep.subr.mxu0 0.0
    %4122 = vmatpush1.msra.mxu0 0.0
    %4123 = vmatprep.subr.mxu0 0.0
    %4124 = vmatpush1.msra.mxu0 0.0
    %4125 = vmatprep.subr.mxu0 0.0
    %4126 = vmatpush1.msra.mxu0 0.0
    %4127 = vmatprep.subr.mxu0 0.0
    %4128 = vmatpush1.msra.mxu0 0.0
    %4129 = vmatprep.subr.mxu0 0.0
    %4130 = vmatpush1.msra.mxu0 0.0
    %4131 = vmatprep.subr.mxu0 0.0
    %4132 = vmatpush1.msra.mxu0 0.0
    %4133 = vmatprep.subr.mxu0 0.0
    %4134 = vmatpush1.msra.mxu0 0.0
    %4135 = vmatprep.subr.mxu0 0.0
    %4136 = vmatpush1.msra.mxu0 0.0
    %4137 = vmatprep.subr.mxu0 0.0
    %4138 = vmatpush1.msra.mxu0 0.0
    %4139 = vmatprep.subr.mxu0 0.0
    %4140 = vmatpush1.msra.mxu0 0.0
    %4141 = vmatprep.subr.mxu0 0.0
    %4142 = vmatpush1.msra.mxu0 0.0
    %4143 = vmatprep.subr.mxu0 0.0
    %4144 = vmatpush1.msra.mxu0 0.0
    %4145 = vmatprep.subr.mxu0 0.0
    %4146 = vmatpush1.msra.mxu0 0.0
    %4147 = vmatprep.subr.mxu0 0.0
    %4148 = vmatpush1.msra.mxu0 0.0
    %4149 = vmatprep.subr.mxu0 0.0
    %4150 = vmatpush1.msra.mxu0 0.0
    %4151 = vmatprep.subr.mxu0 0.0
    %4152 = vmatpush1.msra.mxu0 0.0
    %4153 = vmatprep.subr.mxu0 0.0
    %4154 = vmatpush1.msra.mxu0 0.0
    %4155 = vmatprep.subr.mxu0 0.0
    %4156 = vmatpush1.msra.mxu0 0.0
    %4157 = vmatprep.subr.mxu0 0.0
    %4158 = vmatpush1.msra.mxu0 0.0
    %4159 = vmatprep.subr.mxu0 0.0
    %4160 = vmatpush1.msra.mxu0 0.0
    %4161 = vmatprep.subr.mxu0 0.0
    %4162 = vmatpush1.msra.mxu0 0.0
    %4163 = vmatprep.mubr.f32.mxu0 0.0
    %4164 = vmatmul.mubr.f32.gmra.mrb[0].mxu0 %v4088
    %v4165 = vpop.f32.mrb[0].mxu0
    %v4166 = vadd.f32 %v4085, %v4165
    %v4167 = vpop.f32.mrb[0].mxu0
    %4168 = vmatprep.mubr.f32.mxu0 0.0
    %4169 = vmatmul.mubr.f32.gmra.mrb[0].mxu0 %v4091
    %v4170 = vpop.f32.mrb[0].mxu0
    %v4171 = vadd.f32 %v4085, %v4170
    %v4172 = vpop.f32.mrb[0].mxu0
    %4173 = vmatprep.mubr.f32.mxu0 0.0
    %4174 = vmatmul.mubr.f32.gmra.mrb[0].mxu0 %v4094
    %v4175 = vpop.f32.mrb[0].mxu0
    %v4176 = vadd.f32 %v4085, %v4175
    %v4177 = vpop.f32.mrb[0].mxu0
    %4178 = vmatprep.mubr.f32.mxu0 0.0
    %4179 = vmatmul.mubr.f32.gmra.mrb[0].mxu0 %v4097
    %v4180 = vpop.f32.mrb[0].mxu0
    %v4181 = vadd.f32 %v4085, %v4180
    %v4182 = vpop.f32.mrb[0].mxu0
    %4183 = vdwg.mxu0
    %vm4184 = vcmp.gt.f32.partialorder %v4166, 20.0
    %vm4185 = vcmp.gt.f32.partialorder %v4171, 20.0
    %vm4186 = vcmp.gt.f32.partialorder %v4176, 20.0
    %vm4187 = vcmp.gt.f32.partialorder %v4181, 20.0
    %v4188 = vmin.f32 %v4166, 20.0
    %v4189 = vmin.f32 %v4171, 20.0
    %v4190 = vmin.f32 %v4176, 20.0
    %v4191 = vmin.f32 %v4181, 20.0
    %v4192 = vmul.f32 %v4188, 1.442695
    %v4193 = vpow.pop %v4192
    %v4194 = vmul.f32 %v4189, 1.442695
    %v4195 = vpow.pop %v4194
    %v4196 = vmul.f32 %v4190, 1.442695
    %v4197 = vpow.pop %v4196
    %v4198 = vmul.f32 %v4191, 1.442695
    %v4199 = vpow.pop %v4198
    %v4200 = vadd.f32 %v4193, 1.0
    %v4201 = vadd.f32 %v4195, 1.0
    %v4202 = vadd.f32 %v4197, 1.0
    %v4203 = vadd.f32 %v4199, 1.0
    %v4204 = vlog2.pop %v4200
    %v4205 = vmul.f32 %v4204, 0.6931472
    %v4206 = vlog2.pop %v4201
    %v4207 = vmul.f32 %v4206, 0.6931472
    %v4208 = vlog2.pop %v4202
    %v4209 = vmul.f32 %v4208, 0.6931472
    %v4210 = vlog2.pop %v4203
    %v4211 = vmul.f32 %v4210, 0.6931472
    %v4212 = vsel %vm4184, %v4166, %v4205
    %v4213 = vsel %vm4185, %v4171, %v4207
    %v4214 = vsel %vm4186, %v4176, %v4209
    %v4215 = vsel %vm4187, %v4181, %v4211
    %s4216 = scalar_lea.vmem [#allocation3], 512
    %v4217 = vld [vmem:[%s4216] sm:$0xff]
    %v4218 = vld [vmem:[%s4216 + $0x8] sm:$0xff]
    %v4219 = vld [vmem:[%s4216 + $0x10] sm:$0xff]
    %v4220 = vld [vmem:[%s4216 + $0x18] sm:$0xff]
    %v4221 = vld [vmem:[%s4216 + $0x20] sm:$0xff]
    %v4222 = vld [vmem:[%s4216 + $0x28] sm:$0xff]
    %v4223 = vld [vmem:[%s4216 + $0x30] sm:$0xff]
    %v4224 = vld [vmem:[%s4216 + $0x38] sm:$0xff]
    %v4225 = vld [vmem:[%s4216 + $0x40] sm:$0xff]
    %v4226 = vld [vmem:[%s4216 + $0x48] sm:$0xff]
    %v4227 = vld [vmem:[%s4216 + $0x50] sm:$0xff]
    %v4228 = vld [vmem:[%s4216 + $0x58] sm:$0xff]
    %v4229 = vld [vmem:[%s4216 + $0x60] sm:$0xff]
    %v4230 = vld [vmem:[%s4216 + $0x68] sm:$0xff]
    %v4231 = vld [vmem:[%s4216 + $0x70] sm:$0xff]
    %v4232 = vld [vmem:[%s4216 + $0x78] sm:$0xff]
    %v4233 = vld [vmem:[%s4216 + $0x80] sm:$0xff]
    %v4234 = vld [vmem:[%s4216 + $0x88] sm:$0xff]
    %v4235 = vld [vmem:[%s4216 + $0x90] sm:$0xff]
    %v4236 = vld [vmem:[%s4216 + $0x98] sm:$0xff]
    %v4237 = vld [vmem:[%s4216 + $0xa0] sm:$0xff]
    %v4238 = vld [vmem:[%s4216 + $0xa8] sm:$0xff]
    %v4239 = vld [vmem:[%s4216 + $0xb0] sm:$0xff]
    %v4240 = vld [vmem:[%s4216 + $0xb8] sm:$0xff]
    %v4241 = vld [vmem:[%s4216 + $0xc0] sm:$0xff]
    %v4242 = vld [vmem:[%s4216 + $0xc8] sm:$0xff]
    %v4243 = vld [vmem:[%s4216 + $0xd0] sm:$0xff]
    %v4244 = vld [vmem:[%s4216 + $0xd8] sm:$0xff]
    %v4245 = vld [vmem:[%s4216 + $0xe0] sm:$0xff]
    %v4246 = vld [vmem:[%s4216 + $0xe8] sm:$0xff]
    %v4247 = vld [vmem:[%s4216 + $0xf0] sm:$0xff]
    %v4248 = vld [vmem:[%s4216 + $0xf8] sm:$0xff]
    %v4249 = vld [vmem:[%s4216 + $0x100] sm:$0xff]
    %v4250 = vld [vmem:[%s4216 + $0x108] sm:$0xff]
    %v4251 = vld [vmem:[%s4216 + $0x110] sm:$0xff]
    %v4252 = vld [vmem:[%s4216 + $0x118] sm:$0xff]
    %v4253 = vld [vmem:[%s4216 + $0x120] sm:$0xff]
    %v4254 = vld [vmem:[%s4216 + $0x128] sm:$0xff]
    %v4255 = vld [vmem:[%s4216 + $0x130] sm:$0xff]
    %v4256 = vld [vmem:[%s4216 + $0x138] sm:$0xff]
    %v4257 = vld [vmem:[%s4216 + $0x140] sm:$0xff]
    %v4258 = vld [vmem:[%s4216 + $0x148] sm:$0xff]
    %v4259 = vld [vmem:[%s4216 + $0x150] sm:$0xff]
    %v4260 = vld [vmem:[%s4216 + $0x158] sm:$0xff]
    %v4261 = vld [vmem:[%s4216 + $0x160] sm:$0xff]
    %v4262 = vld [vmem:[%s4216 + $0x168] sm:$0xff]
    %v4263 = vld [vmem:[%s4216 + $0x170] sm:$0xff]
    %v4264 = vld [vmem:[%s4216 + $0x178] sm:$0xff]
    %v4265 = vld [vmem:[%s4216 + $0x180] sm:$0xff]
    %v4266 = vld [vmem:[%s4216 + $0x188] sm:$0xff]
    %v4267 = vld [vmem:[%s4216 + $0x190] sm:$0xff]
    %v4268 = vld [vmem:[%s4216 + $0x198] sm:$0xff]
    %v4269 = vld [vmem:[%s4216 + $0x1a0] sm:$0xff]
    %v4270 = vld [vmem:[%s4216 + $0x1a8] sm:$0xff]
    %v4271 = vld [vmem:[%s4216 + $0x1b0] sm:$0xff]
    %v4272 = vld [vmem:[%s4216 + $0x1b8] sm:$0xff]
    %v4273 = vld [vmem:[%s4216 + $0x1c0] sm:$0xff]
    %v4274 = vld [vmem:[%s4216 + $0x1c8] sm:$0xff]
    %v4275 = vld [vmem:[%s4216 + $0x1d0] sm:$0xff]
    %v4276 = vld [vmem:[%s4216 + $0x1d8] sm:$0xff]
    %v4277 = vld [vmem:[%s4216 + $0x1e0] sm:$0xff]
    %v4278 = vld [vmem:[%s4216 + $0x1e8] sm:$0xff]
    %v4279 = vld [vmem:[%s4216 + $0x1f0] sm:$0xff]
    %v4280 = vld [vmem:[%s4216 + $0x1f8] sm:$0xff]
    %4281 = vmatprep.subr.mxu0 %v4218
    %4282 = vmatpush1.msra.mxu0 %v4217
    %4283 = vmatprep.subr.mxu0 %v4226
    %4284 = vmatpush1.msra.mxu0 %v4225
    %4285 = vmatprep.subr.mxu0 %v4234
    %4286 = vmatpush1.msra.mxu0 %v4233
    %4287 = vmatprep.subr.mxu0 %v4242
    %4288 = vmatpush1.msra.mxu0 %v4241
    %4289 = vmatprep.subr.mxu0 %v4250
    %4290 = vmatpush1.msra.mxu0 %v4249
    %4291 = vmatprep.subr.mxu0 %v4258
    %4292 = vmatpush1.msra.mxu0 %v4257
    %4293 = vmatprep.subr.mxu0 %v4266
    %4294 = vmatpush1.msra.mxu0 %v4265
    %4295 = vmatprep.subr.mxu0 %v4274
    %4296 = vmatpush1.msra.mxu0 %v4273
    %4297 = vmatprep.subr.mxu0 0.0
    %4298 = vmatpush1.msra.mxu0 0.0
    %4299 = vmatprep.subr.mxu0 0.0
    %4300 = vmatpush1.msra.mxu0 0.0
    %4301 = vmatprep.subr.mxu0 0.0
    %4302 = vmatpush1.msra.mxu0 0.0
    %4303 = vmatprep.subr.mxu0 0.0
    %4304 = vmatpush1.msra.mxu0 0.0
    %4305 = vmatprep.subr.mxu0 0.0
    %4306 = vmatpush1.msra.mxu0 0.0
    %4307 = vmatprep.subr.mxu0 0.0
    %4308 = vmatpush1.msra.mxu0 0.0
    %4309 = vmatprep.subr.mxu0 0.0
    %4310 = vmatpush1.msra.mxu0 0.0
    %4311 = vmatprep.subr.mxu0 0.0
    %4312 = vmatpush1.msra.mxu0 0.0
    %4313 = vmatprep.subr.mxu0 0.0
    %4314 = vmatpush1.msra.mxu0 0.0
    %4315 = vmatprep.subr.mxu0 0.0
    %4316 = vmatpush1.msra.mxu0 0.0
    %4317 = vmatprep.subr.mxu0 0.0
    %4318 = vmatpush1.msra.mxu0 0.0
    %4319 = vmatprep.subr.mxu0 0.0
    %4320 = vmatpush1.msra.mxu0 0.0
    %4321 = vmatprep.subr.mxu0 0.0
    %4322 = vmatpush1.msra.mxu0 0.0
    %4323 = vmatprep.subr.mxu0 0.0
    %4324 = vmatpush1.msra.mxu0 0.0
    %4325 = vmatprep.subr.mxu0 0.0
    %4326 = vmatpush1.msra.mxu0 0.0
    %4327 = vmatprep.subr.mxu0 0.0
    %4328 = vmatpush1.msra.mxu0 0.0
    %4329 = vmatprep.subr.mxu0 0.0
    %4330 = vmatpush1.msra.mxu0 0.0
    %4331 = vmatprep.subr.mxu0 0.0
    %4332 = vmatpush1.msra.mxu0 0.0
    %4333 = vmatprep.subr.mxu0 0.0
    %4334 = vmatpush1.msra.mxu0 0.0
    %4335 = vmatprep.subr.mxu0 0.0
    %4336 = vmatpush1.msra.mxu0 0.0
    %4337 = vmatprep.subr.mxu0 0.0
    %4338 = vmatpush1.msra.mxu0 0.0
    %4339 = vmatprep.subr.mxu0 0.0
    %4340 = vmatpush1.msra.mxu0 0.0
    %4341 = vmatprep.subr.mxu0 0.0
    %4342 = vmatpush1.msra.mxu0 0.0
    %4343 = vmatprep.subr.mxu0 0.0
    %4344 = vmatpush1.msra.mxu0 0.0
    %4345 = vmatprep.mubr.f32.mxu0 0.0
    %4346 = vmatmul.mubr.f32.gmra.mrb[0].mxu0 %v4088
    %v4347 = vpop.f32.mrb[0].mxu0
    %v4348 = vadd.f32 0.0, %v4347
    %v4349 = vpop.f32.mrb[0].mxu0
    %v4350 = vadd.f32 0.0, %v4349
    %4351 = vmatprep.mubr.f32.mxu0 0.0
    %4352 = vmatmul.mubr.f32.gmra.mrb[0].mxu0 %v4091
    %v4353 = vpop.f32.mrb[0].mxu0
    %v4354 = vadd.f32 0.0, %v4353
    %v4355 = vpop.f32.mrb[0].mxu0
    %v4356 = vadd.f32 0.0, %v4355
    %4357 = vmatprep.mubr.f32.mxu0 0.0
    %4358 = vmatmul.mubr.f32.gmra.mrb[0].mxu0 %v4094
    %v4359 = vpop.f32.mrb[0].mxu0
    %v4360 = vadd.f32 0.0, %v4359
    %v4361 = vpop.f32.mrb[0].mxu0
    %v4362 = vadd.f32 0.0, %v4361
    %4363 = vmatprep.mubr.f32.mxu0 0.0
    %4364 = vmatmul.mubr.f32.gmra.mrb[0].mxu0 %v4097
    %v4365 = vpop.f32.mrb[0].mxu0
    %v4366 = vadd.f32 0.0, %v4365
    %v4367 = vpop.f32.mrb[0].mxu0
    %v4368 = vadd.f32 0.0, %v4367
    %4369 = vdwg.mxu0
    %4370 = vmatprep.subr.mxu0 %v4220
    %4371 = vmatpush1.msra.mxu0 %v4219
    %4372 = vmatprep.subr.mxu0 %v4228
    %4373 = vmatpush1.msra.mxu0 %v4227
    %4374 = vmatprep.subr.mxu0 %v4236
    %4375 = vmatpush1.msra.mxu0 %v4235
    %4376 = vmatprep.subr.mxu0 %v4244
    %4377 = vmatpush1.msra.mxu0 %v4243
    %4378 = vmatprep.subr.mxu0 %v4252
    %4379 = vmatpush1.msra.mxu0 %v4251
    %4380 = vmatprep.subr.mxu0 %v4260
    %4381 = vmatpush1.msra.mxu0 %v4259
    %4382 = vmatprep.subr.mxu0 %v4268
    %4383 = vmatpush1.msra.mxu0 %v4267
    %4384 = vmatprep.subr.mxu0 %v4276
    %4385 = vmatpush1.msra.mxu0 %v4275
    %4386 = vmatprep.subr.mxu0 0.0
    %4387 = vmatpush1.msra.mxu0 0.0
    %4388 = vmatprep.subr.mxu0 0.0
    %4389 = vmatpush1.msra.mxu0 0.0
    %4390 = vmatprep.subr.mxu0 0.0
    %4391 = vmatpush1.msra.mxu0 0.0
    %4392 = vmatprep.subr.mxu0 0.0
    %4393 = vmatpush1.msra.mxu0 0.0
    %4394 = vmatprep.subr.mxu0 0.0
    %4395 = vmatpush1.msra.mxu0 0.0
    %4396 = vmatprep.subr.mxu0 0.0
    %4397 = vmatpush1.msra.mxu0 0.0
    %4398 = vmatprep.subr.mxu0 0.0
    %4399 = vmatpush1.msra.mxu0 0.0
    %4400 = vmatprep.subr.mxu0 0.0
    %4401 = vmatpush1.msra.mxu0 0.0
    %4402 = vmatprep.subr.mxu0 0.0
    %4403 = vmatpush1.msra.mxu0 0.0
    %4404 = vmatprep.subr.mxu0 0.0
    %4405 = vmatpush1.msra.mxu0 0.0
    %4406 = vmatprep.subr.mxu0 0.0
    %4407 = vmatpush1.msra.mxu0 0.0
    %4408 = vmatprep.subr.mxu0 0.0
    %4409 = vmatpush1.msra.mxu0 0.0
    %4410 = vmatprep.subr.mxu0 0.0
    %4411 = vmatpush1.msra.mxu0 0.0
    %4412 = vmatprep.subr.mxu0 0.0
    %4413 = vmatpush1.msra.mxu0 0.0
    %4414 = vmatprep.subr.mxu0 0.0
    %4415 = vmatpush1.msra.mxu0 0.0
    %4416 = vmatprep.subr.mxu0 0.0
    %4417 = vmatpush1.msra.mxu0 0.0
    %4418 = vmatprep.subr.mxu0 0.0
    %4419 = vmatpush1.msra.mxu0 0.0
    %4420 = vmatprep.subr.mxu0 0.0
    %4421 = vmatpush1.msra.mxu0 0.0
    %4422 = vmatprep.subr.mxu0 0.0
    %4423 = vmatpush1.msra.mxu0 0.0
    %4424 = vmatprep.subr.mxu0 0.0
    %4425 = vmatpush1.msra.mxu0 0.0
    %4426 = vmatprep.subr.mxu0 0.0
    %4427 = vmatpush1.msra.mxu0 0.0
    %4428 = vmatprep.subr.mxu0 0.0
    %4429 = vmatpush1.msra.mxu0 0.0
    %4430 = vmatprep.subr.mxu0 0.0
    %4431 = vmatpush1.msra.mxu0 0.0
    %4432 = vmatprep.subr.mxu0 0.0
    %4433 = vmatpush1.msra.mxu0 0.0
    %4434 = vmatprep.mubr.f32.mxu0 0.0
    %4435 = vmatmul.mubr.f32.gmra.mrb[0].mxu0 %v4088
    %v4436 = vpop.f32.mrb[0].mxu0
    %v4437 = vadd.f32 0.0, %v4436
    %v4438 = vpop.f32.mrb[0].mxu0
    %v4439 = vadd.f32 0.0, %v4438
    %4440 = vmatprep.mubr.f32.mxu0 0.0
    %4441 = vmatmul.mubr.f32.gmra.mrb[0].mxu0 %v4091
    %v4442 = vpop.f32.mrb[0].mxu0
    %v4443 = vadd.f32 0.0, %v4442
    %v4444 = vpop.f32.mrb[0].mxu0
    %v4445 = vadd.f32 0.0, %v4444
    %4446 = vmatprep.mubr.f32.mxu0 0.0
    %4447 = vmatmul.mubr.f32.gmra.mrb[0].mxu0 %v4094
    %v4448 = vpop.f32.mrb[0].mxu0
    %v4449 = vadd.f32 0.0, %v4448
    %v4450 = vpop.f32.mrb[0].mxu0
    %v4451 = vadd.f32 0.0, %v4450
    %4452 = vmatprep.mubr.f32.mxu0 0.0
    %4453 = vmatmul.mubr.f32.gmra.mrb[0].mxu0 %v4097
    %v4454 = vpop.f32.mrb[0].mxu0
    %v4455 = vadd.f32 0.0, %v4454
    %v4456 = vpop.f32.mrb[0].mxu0
    %v4457 = vadd.f32 0.0, %v4456
    %4458 = vdwg.mxu0
    %4459 = vmatprep.subr.mxu0 %v4222
    %4460 = vmatpush1.msra.mxu0 %v4221
    %4461 = vmatprep.subr.mxu0 %v4230
    %4462 = vmatpush1.msra.mxu0 %v4229
    %4463 = vmatprep.subr.mxu0 %v4238
    %4464 = vmatpush1.msra.mxu0 %v4237
    %4465 = vmatprep.subr.mxu0 %v4246
    %4466 = vmatpush1.msra.mxu0 %v4245
    %4467 = vmatprep.subr.mxu0 %v4254
    %4468 = vmatpush1.msra.mxu0 %v4253
    %4469 = vmatprep.subr.mxu0 %v4262
    %4470 = vmatpush1.msra.mxu0 %v4261
    %4471 = vmatprep.subr.mxu0 %v4270
    %4472 = vmatpush1.msra.mxu0 %v4269
    %4473 = vmatprep.subr.mxu0 %v4278
    %4474 = vmatpush1.msra.mxu0 %v4277
    %4475 = vmatprep.subr.mxu0 0.0
    %4476 = vmatpush1.msra.mxu0 0.0
    %4477 = vmatprep.subr.mxu0 0.0
    %4478 = vmatpush1.msra.mxu0 0.0
    %4479 = vmatprep.subr.mxu0 0.0
    %4480 = vmatpush1.msra.mxu0 0.0
    %4481 = vmatprep.subr.mxu0 0.0
    %4482 = vmatpush1.msra.mxu0 0.0
    %4483 = vmatprep.subr.mxu0 0.0
    %4484 = vmatpush1.msra.mxu0 0.0
    %4485 = vmatprep.subr.mxu0 0.0
    %4486 = vmatpush1.msra.mxu0 0.0
    %4487 = vmatprep.subr.mxu0 0.0
    %4488 = vmatpush1.msra.mxu0 0.0
    %4489 = vmatprep.subr.mxu0 0.0
    %4490 = vmatpush1.msra.mxu0 0.0
    %4491 = vmatprep.subr.mxu0 0.0
    %4492 = vmatpush1.msra.mxu0 0.0
    %4493 = vmatprep.subr.mxu0 0.0
    %4494 = vmatpush1.msra.mxu0 0.0
    %4495 = vmatprep.subr.mxu0 0.0
    %4496 = vmatpush1.msra.mxu0 0.0
    %4497 = vmatprep.subr.mxu0 0.0
    %4498 = vmatpush1.msra.mxu0 0.0
    %4499 = vmatprep.subr.mxu0 0.0
    %4500 = vmatpush1.msra.mxu0 0.0
    %4501 = vmatprep.subr.mxu0 0.0
    %4502 = vmatpush1.msra.mxu0 0.0
    %4503 = vmatprep.subr.mxu0 0.0
    %4504 = vmatpush1.msra.mxu0 0.0
    %4505 = vmatprep.subr.mxu0 0.0
    %4506 = vmatpush1.msra.mxu0 0.0
    %4507 = vmatprep.subr.mxu0 0.0
    %4508 = vmatpush1.msra.mxu0 0.0
    %4509 = vmatprep.subr.mxu0 0.0
    %4510 = vmatpush1.msra.mxu0 0.0
    %4511 = vmatprep.subr.mxu0 0.0
    %4512 = vmatpush1.msra.mxu0 0.0
    %4513 = vmatprep.subr.mxu0 0.0
    %4514 = vmatpush1.msra.mxu0 0.0
    %4515 = vmatprep.subr.mxu0 0.0
    %4516 = vmatpush1.msra.mxu0 0.0
    %4517 = vmatprep.subr.mxu0 0.0
    %4518 = vmatpush1.msra.mxu0 0.0
    %4519 = vmatprep.subr.mxu0 0.0
    %4520 = vmatpush1.msra.mxu0 0.0
    %4521 = vmatprep.subr.mxu0 0.0
    %4522 = vmatpush1.msra.mxu0 0.0
    %4523 = vmatprep.mubr.f32.mxu0 0.0
    %4524 = vmatmul.mubr.f32.gmra.mrb[0].mxu0 %v4088
    %v4525 = vpop.f32.mrb[0].mxu0
    %v4526 = vadd.f32 0.0, %v4525
    %v4527 = vpop.f32.mrb[0].mxu0
    %v4528 = vadd.f32 0.0, %v4527
    %4529 = vmatprep.mubr.f32.mxu0 0.0
    %4530 = vmatmul.mubr.f32.gmra.mrb[0].mxu0 %v4091
    %v4531 = vpop.f32.mrb[0].mxu0
    %v4532 = vadd.f32 0.0, %v4531
    %v4533 = vpop.f32.mrb[0].mxu0
    %v4534 = vadd.f32 0.0, %v4533
    %4535 = vmatprep.mubr.f32.mxu0 0.0
    %4536 = vmatmul.mubr.f32.gmra.mrb[0].mxu0 %v4094
    %v4537 = vpop.f32.mrb[0].mxu0
    %v4538 = vadd.f32 0.0, %v4537
    %v4539 = vpop.f32.mrb[0].mxu0
    %v4540 = vadd.f32 0.0, %v4539
    %4541 = vmatprep.mubr.f32.mxu0 0.0
    %4542 = vmatmul.mubr.f32.gmra.mrb[0].mxu0 %v4097
    %v4543 = vpop.f32.mrb[0].mxu0
    %v4544 = vadd.f32 0.0, %v4543
    %v4545 = vpop.f32.mrb[0].mxu0
    %v4546 = vadd.f32 0.0, %v4545
    %4547 = vdwg.mxu0
    %4548 = vmatprep.subr.mxu0 %v4224
    %4549 = vmatpush1.msra.mxu0 %v4223
    %4550 = vmatprep.subr.mxu0 %v4232
    %4551 = vmatpush1.msra.mxu0 %v4231
    %4552 = vmatprep.subr.mxu0 %v4240
    %4553 = vmatpush1.msra.mxu0 %v4239
    %4554 = vmatprep.subr.mxu0 %v4248
    %4555 = vmatpush1.msra.mxu0 %v4247
    %4556 = vmatprep.subr.mxu0 %v4256
    %4557 = vmatpush1.msra.mxu0 %v4255
    %4558 = vmatprep.subr.mxu0 %v4264
    %4559 = vmatpush1.msra.mxu0 %v4263
    %4560 = vmatprep.subr.mxu0 %v4272
    %4561 = vmatpush1.msra.mxu0 %v4271
    %4562 = vmatprep.subr.mxu0 %v4280
    %4563 = vmatpush1.msra.mxu0 %v4279
    %4564 = vmatprep.subr.mxu0 0.0
    %4565 = vmatpush1.msra.mxu0 0.0
    %4566 = vmatprep.subr.mxu0 0.0
    %4567 = vmatpush1.msra.mxu0 0.0
    %4568 = vmatprep.subr.mxu0 0.0
    %4569 = vmatpush1.msra.mxu0 0.0
    %4570 = vmatprep.subr.mxu0 0.0
    %4571 = vmatpush1.msra.mxu0 0.0
    %4572 = vmatprep.subr.mxu0 0.0
    %4573 = vmatpush1.msra.mxu0 0.0
    %4574 = vmatprep.subr.mxu0 0.0
    %4575 = vmatpush1.msra.mxu0 0.0
    %4576 = vmatprep.subr.mxu0 0.0
    %4577 = vmatpush1.msra.mxu0 0.0
    %4578 = vmatprep.subr.mxu0 0.0
    %4579 = vmatpush1.msra.mxu0 0.0
    %4580 = vmatprep.subr.mxu0 0.0
    %4581 = vmatpush1.msra.mxu0 0.0
    %4582 = vmatprep.subr.mxu0 0.0
    %4583 = vmatpush1.msra.mxu0 0.0
    %4584 = vmatprep.subr.mxu0 0.0
    %4585 = vmatpush1.msra.mxu0 0.0
    %4586 = vmatprep.subr.mxu0 0.0
    %4587 = vmatpush1.msra.mxu0 0.0
    %4588 = vmatprep.subr.mxu0 0.0
    %4589 = vmatpush1.msra.mxu0 0.0
    %4590 = vmatprep.subr.mxu0 0.0
    %4591 = vmatpush1.msra.mxu0 0.0
    %4592 = vmatprep.subr.mxu0 0.0
    %4593 = vmatpush1.msra.mxu0 0.0
    %4594 = vmatprep.subr.mxu0 0.0
    %4595 = vmatpush1.msra.mxu0 0.0
    %4596 = vmatprep.subr.mxu0 0.0
    %4597 = vmatpush1.msra.mxu0 0.0
    %4598 = vmatprep.subr.mxu0 0.0
    %4599 = vmatpush1.msra.mxu0 0.0
    %4600 = vmatprep.subr.mxu0 0.0
    %4601 = vmatpush1.msra.mxu0 0.0
    %4602 = vmatprep.subr.mxu0 0.0
    %4603 = vmatpush1.msra.mxu0 0.0
    %4604 = vmatprep.subr.mxu0 0.0
    %4605 = vmatpush1.msra.mxu0 0.0
    %4606 = vmatprep.subr.mxu0 0.0
    %4607 = vmatpush1.msra.mxu0 0.0
    %4608 = vmatprep.subr.mxu0 0.0
    %4609 = vmatpush1.msra.mxu0 0.0
    %4610 = vmatprep.subr.mxu0 0.0
    %4611 = vmatpush1.msra.mxu0 0.0
    %4612 = vmatprep.mubr.f32.mxu0 0.0
    %4613 = vmatmul.mubr.f32.gmra.mrb[0].mxu0 %v4088
    %v4614 = vpop.f32.mrb[0].mxu0
    %v4615 = vadd.f32 0.0, %v4614
    %v4616 = vpop.f32.mrb[0].mxu0
    %v4617 = vadd.f32 0.0, %v4616
    %4618 = vmatprep.mubr.f32.mxu0 0.0
    %4619 = vmatmul.mubr.f32.gmra.mrb[0].mxu0 %v4091
    %v4620 = vpop.f32.mrb[0].mxu0
    %v4621 = vadd.f32 0.0, %v4620
    %v4622 = vpop.f32.mrb[0].mxu0
    %v4623 = vadd.f32 0.0, %v4622
    %4624 = vmatprep.mubr.f32.mxu0 0.0
    %4625 = vmatmul.mubr.f32.gmra.mrb[0].mxu0 %v4094
    %v4626 = vpop.f32.mrb[0].mxu0
    %v4627 = vadd.f32 0.0, %v4626
    %v4628 = vpop.f32.mrb[0].mxu0
    %v4629 = vadd.f32 0.0, %v4628
    %4630 = vmatprep.mubr.f32.mxu0 0.0
    %4631 = vmatmul.mubr.f32.gmra.mrb[0].mxu0 %v4097
    %v4632 = vpop.f32.mrb[0].mxu0
    %v4633 = vadd.f32 0.0, %v4632
    %v4634 = vpop.f32.mrb[0].mxu0
    %v4635 = vadd.f32 0.0, %v4634
    %4636 = vdwg.mxu0
    %v4638 = vsel %vm798, %v4212, 0
    %v4641 = vsel %vm798, %v4213, 0
    %v4644 = vsel %vm798, %v4214, 0
    %v4647 = vsel %vm798, %v4215, 0
    %4649 = vmatprep.subr.mxu0 %v80
    %4650 = vmatpush1.msra.mxu0 %v79
    %4651 = vmatprep.subr.mxu0 %v84
    %4652 = vmatpush1.msra.mxu0 %v83
    %4653 = vmatprep.subr.mxu0 %v88
    %4654 = vmatpush1.msra.mxu0 %v87
    %4655 = vmatprep.subr.mxu0 %v92
    %4656 = vmatpush1.msra.mxu0 %v91
    %4657 = vmatprep.subr.mxu0 %v96
    %4658 = vmatpush1.msra.mxu0 %v95
    %4659 = vmatprep.subr.mxu0 %v100
    %4660 = vmatpush1.msra.mxu0 %v99
    %4661 = vmatprep.subr.mxu0 %v104
    %4662 = vmatpush1.msra.mxu0 %v103
    %4663 = vmatprep.subr.mxu0 %v108
    %4664 = vmatpush1.msra.mxu0 %v107
    %4665 = vmatprep.subr.mxu0 0.0
    %4666 = vmatpush1.msra.mxu0 0.0
    %4667 = vmatprep.subr.mxu0 0.0
    %4668 = vmatpush1.msra.mxu0 0.0
    %4669 = vmatprep.subr.mxu0 0.0
    %4670 = vmatpush1.msra.mxu0 0.0
    %4671 = vmatprep.subr.mxu0 0.0
    %4672 = vmatpush1.msra.mxu0 0.0
    %4673 = vmatprep.subr.mxu0 0.0
    %4674 = vmatpush1.msra.mxu0 0.0
    %4675 = vmatprep.subr.mxu0 0.0
    %4676 = vmatpush1.msra.mxu0 0.0
    %4677 = vmatprep.subr.mxu0 0.0
    %4678 = vmatpush1.msra.mxu0 0.0
    %4679 = vmatprep.subr.mxu0 0.0
    %4680 = vmatpush1.msra.mxu0 0.0
    %4681 = vmatprep.subr.mxu0 0.0
    %4682 = vmatpush1.msra.mxu0 0.0
    %4683 = vmatprep.subr.mxu0 0.0
    %4684 = vmatpush1.msra.mxu0 0.0
    %4685 = vmatprep.subr.mxu0 0.0
    %4686 = vmatpush1.msra.mxu0 0.0
    %4687 = vmatprep.subr.mxu0 0.0
    %4688 = vmatpush1.msra.mxu0 0.0
    %4689 = vmatprep.subr.mxu0 0.0
    %4690 = vmatpush1.msra.mxu0 0.0
    %4691 = vmatprep.subr.mxu0 0.0
    %4692 = vmatpush1.msra.mxu0 0.0
    %4693 = vmatprep.subr.mxu0 0.0
    %4694 = vmatpush1.msra.mxu0 0.0
    %4695 = vmatprep.subr.mxu0 0.0
    %4696 = vmatpush1.msra.mxu0 0.0
    %4697 = vmatprep.subr.mxu0 0.0
    %4698 = vmatpush1.msra.mxu0 0.0
    %4699 = vmatprep.subr.mxu0 0.0
    %4700 = vmatpush1.msra.mxu0 0.0
    %4701 = vmatprep.subr.mxu0 0.0
    %4702 = vmatpush1.msra.mxu0 0.0
    %4703 = vmatprep.subr.mxu0 0.0
    %4704 = vmatpush1.msra.mxu0 0.0
    %4705 = vmatprep.subr.mxu0 0.0
    %4706 = vmatpush1.msra.mxu0 0.0
    %4707 = vmatprep.subr.mxu0 0.0
    %4708 = vmatpush1.msra.mxu0 0.0
    %4709 = vmatprep.subr.mxu0 0.0
    %4710 = vmatpush1.msra.mxu0 0.0
    %4711 = vmatprep.subr.mxu0 0.0
    %4712 = vmatpush1.msra.mxu0 0.0
    %4713 = vmatprep.mubr.f32.mxu0 0.0
    %4714 = vmatmul.mubr.f32.gmra.mrb[0].mxu0 %v4638
    %v4715 = vpop.f32.mrb[0].mxu0
    %v4716 = vadd.f32 0.0, %v4715
    %v4717 = vpop.f32.mrb[0].mxu0
    %v4718 = vadd.f32 0.0, %v4717
    %4719 = vmatprep.mubr.f32.mxu0 0.0
    %4720 = vmatmul.mubr.f32.gmra.mrb[0].mxu0 %v4641
    %v4721 = vpop.f32.mrb[0].mxu0
    %v4722 = vadd.f32 0.0, %v4721
    %v4723 = vpop.f32.mrb[0].mxu0
    %v4724 = vadd.f32 0.0, %v4723
    %4725 = vmatprep.mubr.f32.mxu0 0.0
    %4726 = vmatmul.mubr.f32.gmra.mrb[0].mxu0 %v4644
    %v4727 = vpop.f32.mrb[0].mxu0
    %v4728 = vadd.f32 0.0, %v4727
    %v4729 = vpop.f32.mrb[0].mxu0
    %v4730 = vadd.f32 0.0, %v4729
    %4731 = vmatprep.mubr.f32.mxu0 0.0
    %4732 = vmatmul.mubr.f32.gmra.mrb[0].mxu0 %v4647
    %v4733 = vpop.f32.mrb[0].mxu0
    %v4734 = vadd.f32 0.0, %v4733
    %v4735 = vpop.f32.mrb[0].mxu0
    %v4736 = vadd.f32 0.0, %v4735
    %4737 = vdwg.mxu0
    %4738 = vmatprep.subr.mxu0 %v82
    %4739 = vmatpush1.msra.mxu0 %v81
    %4740 = vmatprep.subr.mxu0 %v86
    %4741 = vmatpush1.msra.mxu0 %v85
    %4742 = vmatprep.subr.mxu0 %v90
    %4743 = vmatpush1.msra.mxu0 %v89
    %4744 = vmatprep.subr.mxu0 %v94
    %4745 = vmatpush1.msra.mxu0 %v93
    %4746 = vmatprep.subr.mxu0 %v98
    %4747 = vmatpush1.msra.mxu0 %v97
    %4748 = vmatprep.subr.mxu0 %v102
    %4749 = vmatpush1.msra.mxu0 %v101
    %4750 = vmatprep.subr.mxu0 %v106
    %4751 = vmatpush1.msra.mxu0 %v105
    %4752 = vmatprep.subr.mxu0 %v110
    %4753 = vmatpush1.msra.mxu0 %v109
    %4754 = vmatprep.subr.mxu0 0.0
    %4755 = vmatpush1.msra.mxu0 0.0
    %4756 = vmatprep.subr.mxu0 0.0
    %4757 = vmatpush1.msra.mxu0 0.0
    %4758 = vmatprep.subr.mxu0 0.0
    %4759 = vmatpush1.msra.mxu0 0.0
    %4760 = vmatprep.subr.mxu0 0.0
    %4761 = vmatpush1.msra.mxu0 0.0
    %4762 = vmatprep.subr.mxu0 0.0
    %4763 = vmatpush1.msra.mxu0 0.0
    %4764 = vmatprep.subr.mxu0 0.0
    %4765 = vmatpush1.msra.mxu0 0.0
    %4766 = vmatprep.subr.mxu0 0.0
    %4767 = vmatpush1.msra.mxu0 0.0
    %4768 = vmatprep.subr.mxu0 0.0
    %4769 = vmatpush1.msra.mxu0 0.0
    %4770 = vmatprep.subr.mxu0 0.0
    %4771 = vmatpush1.msra.mxu0 0.0
    %4772 = vmatprep.subr.mxu0 0.0
    %4773 = vmatpush1.msra.mxu0 0.0
    %4774 = vmatprep.subr.mxu0 0.0
    %4775 = vmatpush1.msra.mxu0 0.0
    %4776 = vmatprep.subr.mxu0 0.0
    %4777 = vmatpush1.msra.mxu0 0.0
    %4778 = vmatprep.subr.mxu0 0.0
    %4779 = vmatpush1.msra.mxu0 0.0
    %4780 = vmatprep.subr.mxu0 0.0
    %4781 = vmatpush1.msra.mxu0 0.0
    %4782 = vmatprep.subr.mxu0 0.0
    %4783 = vmatpush1.msra.mxu0 0.0
    %4784 = vmatprep.subr.mxu0 0.0
    %4785 = vmatpush1.msra.mxu0 0.0
    %4786 = vmatprep.subr.mxu0 0.0
    %4787 = vmatpush1.msra.mxu0 0.0
    %4788 = vmatprep.subr.mxu0 0.0
    %4789 = vmatpush1.msra.mxu0 0.0
    %4790 = vmatprep.subr.mxu0 0.0
    %4791 = vmatpush1.msra.mxu0 0.0
    %4792 = vmatprep.subr.mxu0 0.0
    %4793 = vmatpush1.msra.mxu0 0.0
    %4794 = vmatprep.subr.mxu0 0.0
    %4795 = vmatpush1.msra.mxu0 0.0
    %4796 = vmatprep.subr.mxu0 0.0
    %4797 = vmatpush1.msra.mxu0 0.0
    %4798 = vmatprep.subr.mxu0 0.0
    %4799 = vmatpush1.msra.mxu0 0.0
    %4800 = vmatprep.subr.mxu0 0.0
    %4801 = vmatpush1.msra.mxu0 0.0
    %4802 = vmatprep.mubr.f32.mxu0 0.0
    %4803 = vmatmul.mubr.f32.gmra.mrb[0].mxu0 %v4638
    %v4804 = vpop.f32.mrb[0].mxu0
    %v4805 = vadd.f32 0.0, %v4804
    %v4806 = vpop.f32.mrb[0].mxu0
    %v4807 = vadd.f32 0.0, %v4806
    %4808 = vmatprep.mubr.f32.mxu0 0.0
    %4809 = vmatmul.mubr.f32.gmra.mrb[0].mxu0 %v4641
    %v4810 = vpop.f32.mrb[0].mxu0
    %v4811 = vadd.f32 0.0, %v4810
    %v4812 = vpop.f32.mrb[0].mxu0
    %v4813 = vadd.f32 0.0, %v4812
    %4814 = vmatprep.mubr.f32.mxu0 0.0
    %4815 = vmatmul.mubr.f32.gmra.mrb[0].mxu0 %v4644
    %v4816 = vpop.f32.mrb[0].mxu0
    %v4817 = vadd.f32 0.0, %v4816
    %v4818 = vpop.f32.mrb[0].mxu0
    %v4819 = vadd.f32 0.0, %v4818
    %4820 = vmatprep.mubr.f32.mxu0 0.0
    %4821 = vmatmul.mubr.f32.gmra.mrb[0].mxu0 %v4647
    %v4822 = vpop.f32.mrb[0].mxu0
    %v4823 = vadd.f32 0.0, %v4822
    %v4824 = vpop.f32.mrb[0].mxu0
    %v4825 = vadd.f32 0.0, %v4824
    %4826 = vdwg.mxu0
    %v4827 = vmul.f32 %v4212, %v4066
    %v4828 = vmul.f32 %v4213, %v4067
    %v4829 = vmul.f32 %v4214, %v4068
    %v4830 = vmul.f32 %v4215, %v4069
    %v4832 = vsel %vm798, %v4827, 0
    %v4835 = vsel %vm798, %v4828, 0
    %v4838 = vsel %vm798, %v4829, 0
    %v4841 = vsel %vm798, %v4830, 0
    %4843 = vmatprep.subr.mxu0 %v80
    %4844 = vmatpush1.msra.mxu0 %v79
    %4845 = vmatprep.subr.mxu0 %v84
    %4846 = vmatpush1.msra.mxu0 %v83
    %4847 = vmatprep.subr.mxu0 %v88
    %4848 = vmatpush1.msra.mxu0 %v87
    %4849 = vmatprep.subr.mxu0 %v92
    %4850 = vmatpush1.msra.mxu0 %v91
    %4851 = vmatprep.subr.mxu0 %v96
    %4852 = vmatpush1.msra.mxu0 %v95
    %4853 = vmatprep.subr.mxu0 %v100
    %4854 = vmatpush1.msra.mxu0 %v99
    %4855 = vmatprep.subr.mxu0 %v104
    %4856 = vmatpush1.msra.mxu0 %v103
    %4857 = vmatprep.subr.mxu0 %v108
    %4858 = vmatpush1.msra.mxu0 %v107
    %4859 = vmatprep.subr.mxu0 0.0
    %4860 = vmatpush1.msra.mxu0 0.0
    %4861 = vmatprep.subr.mxu0 0.0
    %4862 = vmatpush1.msra.mxu0 0.0
    %4863 = vmatprep.subr.mxu0 0.0
    %4864 = vmatpush1.msra.mxu0 0.0
    %4865 = vmatprep.subr.mxu0 0.0
    %4866 = vmatpush1.msra.mxu0 0.0
    %4867 = vmatprep.subr.mxu0 0.0
    %4868 = vmatpush1.msra.mxu0 0.0
    %4869 = vmatprep.subr.mxu0 0.0
    %4870 = vmatpush1.msra.mxu0 0.0
    %4871 = vmatprep.subr.mxu0 0.0
    %4872 = vmatpush1.msra.mxu0 0.0
    %4873 = vmatprep.subr.mxu0 0.0
    %4874 = vmatpush1.msra.mxu0 0.0
    %4875 = vmatprep.subr.mxu0 0.0
    %4876 = vmatpush1.msra.mxu0 0.0
    %4877 = vmatprep.subr.mxu0 0.0
    %4878 = vmatpush1.msra.mxu0 0.0
    %4879 = vmatprep.subr.mxu0 0.0
    %4880 = vmatpush1.msra.mxu0 0.0
    %4881 = vmatprep.subr.mxu0 0.0
    %4882 = vmatpush1.msra.mxu0 0.0
    %4883 = vmatprep.subr.mxu0 0.0
    %4884 = vmatpush1.msra.mxu0 0.0
    %4885 = vmatprep.subr.mxu0 0.0
    %4886 = vmatpush1.msra.mxu0 0.0
    %4887 = vmatprep.subr.mxu0 0.0
    %4888 = vmatpush1.msra.mxu0 0.0
    %4889 = vmatprep.subr.mxu0 0.0
    %4890 = vmatpush1.msra.mxu0 0.0
    %4891 = vmatprep.subr.mxu0 0.0
    %4892 = vmatpush1.msra.mxu0 0.0
    %4893 = vmatprep.subr.mxu0 0.0
    %4894 = vmatpush1.msra.mxu0 0.0
    %4895 = vmatprep.subr.mxu0 0.0
    %4896 = vmatpush1.msra.mxu0 0.0
    %4897 = vmatprep.subr.mxu0 0.0
    %4898 = vmatpush1.msra.mxu0 0.0
    %4899 = vmatprep.subr.mxu0 0.0
    %4900 = vmatpush1.msra.mxu0 0.0
    %4901 = vmatprep.subr.mxu0 0.0
    %4902 = vmatpush1.msra.mxu0 0.0
    %4903 = vmatprep.subr.mxu0 0.0
    %4904 = vmatpush1.msra.mxu0 0.0
    %4905 = vmatprep.subr.mxu0 0.0
    %4906 = vmatpush1.msra.mxu0 0.0
    %4907 = vmatprep.mubr.f32.mxu0 0.0
    %4908 = vmatmul.mubr.f32.gmra.mrb[0].mxu0 %v4832
    %v4909 = vpop.f32.mrb[0].mxu0
    %v4910 = vadd.f32 0.0, %v4909
    %v4911 = vpop.f32.mrb[0].mxu0
    %v4912 = vadd.f32 0.0, %v4911
    %4913 = vmatprep.mubr.f32.mxu0 0.0
    %4914 = vmatmul.mubr.f32.gmra.mrb[0].mxu0 %v4835
    %v4915 = vpop.f32.mrb[0].mxu0
    %v4916 = vadd.f32 0.0, %v4915
    %v4917 = vpop.f32.mrb[0].mxu0
    %v4918 = vadd.f32 0.0, %v4917
    %4919 = vmatprep.mubr.f32.mxu0 0.0
    %4920 = vmatmul.mubr.f32.gmra.mrb[0].mxu0 %v4838
    %v4921 = vpop.f32.mrb[0].mxu0
    %v4922 = vadd.f32 0.0, %v4921
    %v4923 = vpop.f32.mrb[0].mxu0
    %v4924 = vadd.f32 0.0, %v4923
    %4925 = vmatprep.mubr.f32.mxu0 0.0
    %4926 = vmatmul.mubr.f32.gmra.mrb[0].mxu0 %v4841
    %v4927 = vpop.f32.mrb[0].mxu0
    %v4928 = vadd.f32 0.0, %v4927
    %v4929 = vpop.f32.mrb[0].mxu0
    %v4930 = vadd.f32 0.0, %v4929
    %4931 = vdwg.mxu0
    %4932 = vmatprep.subr.mxu0 %v82
    %4933 = vmatpush1.msra.mxu0 %v81
    %4934 = vmatprep.subr.mxu0 %v86
    %4935 = vmatpush1.msra.mxu0 %v85
    %4936 = vmatprep.subr.mxu0 %v90
    %4937 = vmatpush1.msra.mxu0 %v89
    %4938 = vmatprep.subr.mxu0 %v94
    %4939 = vmatpush1.msra.mxu0 %v93
    %4940 = vmatprep.subr.mxu0 %v98
    %4941 = vmatpush1.msra.mxu0 %v97
    %4942 = vmatprep.subr.mxu0 %v102
    %4943 = vmatpush1.msra.mxu0 %v101
    %4944 = vmatprep.subr.mxu0 %v106
    %4945 = vmatpush1.msra.mxu0 %v105
    %4946 = vmatprep.subr.mxu0 %v110
    %4947 = vmatpush1.msra.mxu0 %v109
    %4948 = vmatprep.subr.mxu0 0.0
    %4949 = vmatpush1.msra.mxu0 0.0
    %4950 = vmatprep.subr.mxu0 0.0
    %4951 = vmatpush1.msra.mxu0 0.0
    %4952 = vmatprep.subr.mxu0 0.0
    %4953 = vmatpush1.msra.mxu0 0.0
    %4954 = vmatprep.subr.mxu0 0.0
    %4955 = vmatpush1.msra.mxu0 0.0
    %4956 = vmatprep.subr.mxu0 0.0
    %4957 = vmatpush1.msra.mxu0 0.0
    %4958 = vmatprep.subr.mxu0 0.0
    %4959 = vmatpush1.msra.mxu0 0.0
    %4960 = vmatprep.subr.mxu0 0.0
    %4961 = vmatpush1.msra.mxu0 0.0
    %4962 = vmatprep.subr.mxu0 0.0
    %4963 = vmatpush1.msra.mxu0 0.0
    %4964 = vmatprep.subr.mxu0 0.0
    %4965 = vmatpush1.msra.mxu0 0.0
    %4966 = vmatprep.subr.mxu0 0.0
    %4967 = vmatpush1.msra.mxu0 0.0
    %4968 = vmatprep.subr.mxu0 0.0
    %4969 = vmatpush1.msra.mxu0 0.0
    %4970 = vmatprep.subr.mxu0 0.0
    %4971 = vmatpush1.msra.mxu0 0.0
    %4972 = vmatprep.subr.mxu0 0.0
    %4973 = vmatpush1.msra.mxu0 0.0
    %4974 = vmatprep.subr.mxu0 0.0
    %4975 = vmatpush1.msra.mxu0 0.0
    %4976 = vmatprep.subr.mxu0 0.0
    %4977 = vmatpush1.msra.mxu0 0.0
    %4978 = vmatprep.subr.mxu0 0.0
    %4979 = vmatpush1.msra.mxu0 0.0
    %4980 = vmatprep.subr.mxu0 0.0
    %4981 = vmatpush1.msra.mxu0 0.0
    %4982 = vmatprep.subr.mxu0 0.0
    %4983 = vmatpush1.msra.mxu0 0.0
    %4984 = vmatprep.subr.mxu0 0.0
    %4985 = vmatpush1.msra.mxu0 0.0
    %4986 = vmatprep.subr.mxu0 0.0
    %4987 = vmatpush1.msra.mxu0 0.0
    %4988 = vmatprep.subr.mxu0 0.0
    %4989 = vmatpush1.msra.mxu0 0.0
    %4990 = vmatprep.subr.mxu0 0.0
    %4991 = vmatpush1.msra.mxu0 0.0
    %4992 = vmatprep.subr.mxu0 0.0
    %4993 = vmatpush1.msra.mxu0 0.0
    %4994 = vmatprep.subr.mxu0 0.0
    %4995 = vmatpush1.msra.mxu0 0.0
    %4996 = vmatprep.mubr.f32.mxu0 0.0
    %4997 = vmatmul.mubr.f32.gmra.mrb[0].mxu0 %v4832
    %v4998 = vpop.f32.mrb[0].mxu0
    %v4999 = vadd.f32 0.0, %v4998
    %v5000 = vpop.f32.mrb[0].mxu0
    %v5001 = vadd.f32 0.0, %v5000
    %5002 = vmatprep.mubr.f32.mxu0 0.0
    %5003 = vmatmul.mubr.f32.gmra.mrb[0].mxu0 %v4835
    %v5004 = vpop.f32.mrb[0].mxu0
    %v5005 = vadd.f32 0.0, %v5004
    %v5006 = vpop.f32.mrb[0].mxu0
    %v5007 = vadd.f32 0.0, %v5006
    %5008 = vmatprep.mubr.f32.mxu0 0.0
    %5009 = vmatmul.mubr.f32.gmra.mrb[0].mxu0 %v4838
    %v5010 = vpop.f32.mrb[0].mxu0
    %v5011 = vadd.f32 0.0, %v5010
    %v5012 = vpop.f32.mrb[0].mxu0
    %v5013 = vadd.f32 0.0, %v5012
    %5014 = vmatprep.mubr.f32.mxu0 0.0
    %5015 = vmatmul.mubr.f32.gmra.mrb[0].mxu0 %v4841
    %v5016 = vpop.f32.mrb[0].mxu0
    %v5017 = vadd.f32 0.0, %v5016
    %v5018 = vpop.f32.mrb[0].mxu0
    %v5019 = vadd.f32 0.0, %v5018
    %5020 = vdwg.mxu0
    %s5021 = scalar_lea.vmem %s11, 4
    %v5022 = vld [vmem:[%s5021] sm:$0xf]
    %v5024 = vlaneseq
    %v5025 = vshrl.u32 %v5024, 7
    %v5026 = vsub.s32 0, %v5025
    %v5027 = vrot.slane %v5022, %v5026
    %v5028 = vlaneseq
    %v5029 = vshrl.u32 %v5028, 7
    %v5030 = vsub.s32 1, %v5029
    %v5031 = vrot.slane %v5022, %v5030
    %v5032 = vlaneseq
    %v5033 = vshrl.u32 %v5032, 7
    %v5034 = vsub.s32 2, %v5033
    %v5035 = vrot.slane %v5022, %v5034
    %v5036 = vlaneseq
    %v5037 = vshrl.u32 %v5036, 7
    %v5038 = vsub.s32 3, %v5037
    %v5039 = vrot.slane %v5022, %v5038
    %v5044 = vmul.f32 %v4716, %v5027
    %v5045 = vmul.f32 %v4718, %v5031
    %v5046 = vmul.f32 %v4805, %v5035
    %v5047 = vmul.f32 %v4807, %v5039
    %v5048 = vmul.f32 %v4722, %v5027
    %v5049 = vmul.f32 %v4724, %v5031
    %v5050 = vmul.f32 %v4811, %v5035
    %v5051 = vmul.f32 %v4813, %v5039
    %v5052 = vmul.f32 %v4728, %v5027
    %v5053 = vmul.f32 %v4730, %v5031
    %v5054 = vmul.f32 %v4817, %v5035
    %v5055 = vmul.f32 %v4819, %v5039
    %v5056 = vmul.f32 %v4734, %v5027
    %v5057 = vmul.f32 %v4736, %v5031
    %v5058 = vmul.f32 %v4823, %v5035
    %v5059 = vmul.f32 %v4825, %v5039
    %v5060 = vmul.f32 %v5044, 1.442695
    %v5061 = vpow.pop %v5060
    %v5062 = vmul.f32 %v5045, 1.442695
    %v5063 = vpow.pop %v5062
    %v5064 = vmul.f32 %v5046, 1.442695
    %v5065 = vpow.pop %v5064
    %v5066 = vmul.f32 %v5047, 1.442695
    %v5067 = vpow.pop %v5066
    %v5068 = vmul.f32 %v5048, 1.442695
    %v5069 = vpow.pop %v5068
    %v5070 = vmul.f32 %v5049, 1.442695
    %v5071 = vpow.pop %v5070
    %v5072 = vmul.f32 %v5050, 1.442695
    %v5073 = vpow.pop %v5072
    %v5074 = vmul.f32 %v5051, 1.442695
    %v5075 = vpow.pop %v5074
    %v5076 = vmul.f32 %v5052, 1.442695
    %v5077 = vpow.pop %v5076
    %v5078 = vmul.f32 %v5053, 1.442695
    %v5079 = vpow.pop %v5078
    %v5080 = vmul.f32 %v5054, 1.442695
    %v5081 = vpow.pop %v5080
    %v5082 = vmul.f32 %v5055, 1.442695
    %v5083 = vpow.pop %v5082
    %v5084 = vmul.f32 %v5056, 1.442695
    %v5085 = vpow.pop %v5084
    %v5086 = vmul.f32 %v5057, 1.442695
    %v5087 = vpow.pop %v5086
    %v5088 = vmul.f32 %v5058, 1.442695
    %v5089 = vpow.pop %v5088
    %v5090 = vmul.f32 %v5059, 1.442695
    %v5091 = vpow.pop %v5090
    %v5092 = vmul.f32 %v4910, %v4348
    %v5093 = vmul.f32 %v4912, %v4350
    %v5094 = vmul.f32 %v4999, %v4437
    %v5095 = vmul.f32 %v5001, %v4439
    %v5096 = vmul.f32 %v4916, %v4354
    %v5097 = vmul.f32 %v4918, %v4356
    %v5098 = vmul.f32 %v5005, %v4443
    %v5099 = vmul.f32 %v5007, %v4445
    %v5100 = vmul.f32 %v4922, %v4360
    %v5101 = vmul.f32 %v4924, %v4362
    %v5102 = vmul.f32 %v5011, %v4449
    %v5103 = vmul.f32 %v5013, %v4451
    %v5104 = vmul.f32 %v4928, %v4366
    %v5105 = vmul.f32 %v4930, %v4368
    %v5106 = vmul.f32 %v5017, %v4455
    %v5107 = vmul.f32 %v5019, %v4457
    %v5112 = vcombine.low %v5092, %v5093
    %v5113 = vcombine.low %v5094, %v5095
    %v5115 = vunpack.c.l.s4 1966171168
    %v5116 = vunpack.c.0.s8 %v5115
    %v5117 = vlaneseq
    %v5118 = vshrl.u32 %v5117, 7
    %v5119 = vsub.s32 %v5116, %v5118
    %v5120 = vrot.slane %v5112, %v5119
    %v5122 = vunpack.c.l.s4 1966171168
    %v5123 = vunpack.c.0.s8 %v5122
    %v5124 = vlaneseq
    %v5125 = vshrl.u32 %v5124, 7
    %v5126 = vsub.s32 %v5123, %v5125
    %v5127 = vrot.slane %v5113, %v5126
    %v5128 = vcombine.low %v5120, %v5127
    %v5130 = vunpack.c.l.s4 1966171168
    %v5131 = vunpack.c.0.s8 %v5130
    %v5132 = vlaneseq
    %v5133 = vshrl.u32 %v5132, 7
    %v5134 = vsub.s32 %v5131, %v5133
    %v5135 = vrot.slane %v5128, %v5134
    %5137 = vst.msk [vmem:[#allocation2] ss:$8 sm:$0xf] %vm1850, %v5135
    %5138 = vst.msk [vmem:[#allocation2] ss:$8 sm:$0x0] %vm1850, %v5135
    %v5139 = vrot.slane %v5092, 7
    %v5140 = vrot.slane %v5093, 7
    %v5141 = vrot.slane %v5094, 7
    %v5142 = vrot.slane %v5095, 7
    %v5147 = vmul.f32 %v5061, %v5139
    %v5148 = vmul.f32 %v5063, %v5140
    %v5149 = vmul.f32 %v5065, %v5141
    %v5150 = vmul.f32 %v5067, %v5142
    %v5151 = vadd.f32 %v5147, %v5092
    %v5152 = vadd.f32 %v5148, %v5093
    %v5153 = vadd.f32 %v5149, %v5094
    %v5154 = vadd.f32 %v5150, %v5095
    %v5159 = vcombine.low %v5151, %v5152
    %v5160 = vcombine.low %v5153, %v5154
    %v5162 = vunpack.c.l.s4 1966171168
    %v5163 = vunpack.c.0.s8 %v5162
    %v5164 = vlaneseq
    %v5165 = vshrl.u32 %v5164, 7
    %v5166 = vsub.s32 %v5163, %v5165
    %v5167 = vrot.slane %v5159, %v5166
    %v5169 = vunpack.c.l.s4 1966171168
    %v5170 = vunpack.c.0.s8 %v5169
    %v5171 = vlaneseq
    %v5172 = vshrl.u32 %v5171, 7
    %v5173 = vsub.s32 %v5170, %v5172
    %v5174 = vrot.slane %v5160, %v5173
    %v5175 = vcombine.high %v5167, %v5174
    %v5177 = vunpack.c.l.s4 1966171168
    %v5178 = vunpack.c.0.s8 %v5177
    %v5179 = vlaneseq
    %v5180 = vshrl.u32 %v5179, 7
    %v5181 = vsub.s32 %v5178, %v5180
    %v5182 = vrot.slane %v5175, %v5181
    %5184 = vst.msk [vmem:[%s1898] ss:$8 sm:$0xf] %vm1850, %v5182
    %5185 = vst.msk [vmem:[%s1898] ss:$8 sm:$0x0] %vm1850, %v5182
    %v5186 = vrot.slane %v5151, 7
    %v5187 = vrot.slane %v5152, 7
    %v5188 = vrot.slane %v5153, 7
    %v5189 = vrot.slane %v5154, 7
    %v5194 = vmul.f32 %v5061, %v5186
    %v5195 = vmul.f32 %v5063, %v5187
    %v5196 = vmul.f32 %v5065, %v5188
    %v5197 = vmul.f32 %v5067, %v5189
    %v5198 = vadd.f32 %v5194, %v5092
    %v5199 = vadd.f32 %v5195, %v5093
    %v5200 = vadd.f32 %v5196, %v5094
    %v5201 = vadd.f32 %v5197, %v5095
    %v5206 = vcombine.low %v5198, %v5199
    %v5207 = vcombine.low %v5200, %v5201
    %v5209 = vunpack.c.l.s4 1966171168
    %v5210 = vunpack.c.0.s8 %v5209
    %v5211 = vlaneseq
    %v5212 = vshrl.u32 %v5211, 7
    %v5213 = vsub.s32 %v5210, %v5212
    %v5214 = vrot.slane %v5206, %v5213
    %v5216 = vunpack.c.l.s4 1966171168
    %v5217 = vunpack.c.0.s8 %v5216
    %v5218 = vlaneseq
    %v5219 = vshrl.u32 %v5218, 7
    %v5220 = vsub.s32 %v5217, %v5219
    %v5221 = vrot.slane %v5207, %v5220
    %v5222 = vcombine.low %v5214, %v5221
    %v5224 = vunpack.c.l.s4 1966171168
    %v5225 = vunpack.c.0.s8 %v5224
    %v5226 = vlaneseq
    %v5227 = vshrl.u32 %v5226, 7
    %v5228 = vsub.s32 %v5225, %v5227
    %v5229 = vrot.slane %v5222, %v5228
    %v5230 = vcombine.high %v5229, %v5229
    %5232 = vst.msk [vmem:[%s1947] ss:$8 sm:$0xf] %vm1850, %v5230
    %5233 = vst.msk [vmem:[%s1947] ss:$8 sm:$0x0] %vm1850, %v5230
    %v5234 = vrot.slane %v5198, 7
    %v5235 = vrot.slane %v5199, 7
    %v5236 = vrot.slane %v5200, 7
    %v5237 = vrot.slane %v5201, 7
    %v5242 = vmul.f32 %v5061, %v5234
    %v5243 = vmul.f32 %v5063, %v5235
    %v5244 = vmul.f32 %v5065, %v5236
    %v5245 = vmul.f32 %v5067, %v5237
    %v5246 = vadd.f32 %v5242, %v5092
    %v5247 = vadd.f32 %v5243, %v5093
    %v5248 = vadd.f32 %v5244, %v5094
    %v5249 = vadd.f32 %v5245, %v5095
    %v5254 = vcombine.low %v5246, %v5247
    %v5255 = vcombine.low %v5248, %v5249
    %v5257 = vunpack.c.l.s4 1966171168
    %v5258 = vunpack.c.0.s8 %v5257
    %v5259 = vlaneseq
    %v5260 = vshrl.u32 %v5259, 7
    %v5261 = vsub.s32 %v5258, %v5260
    %v5262 = vrot.slane %v5254, %v5261
    %v5264 = vunpack.c.l.s4 1966171168
    %v5265 = vunpack.c.0.s8 %v5264
    %v5266 = vlaneseq
    %v5267 = vshrl.u32 %v5266, 7
    %v5268 = vsub.s32 %v5265, %v5267
    %v5269 = vrot.slane %v5255, %v5268
    %v5270 = vcombine.high %v5262, %v5269
    %v5272 = vunpack.c.l.s4 1966171168
    %v5273 = vunpack.c.0.s8 %v5272
    %v5274 = vlaneseq
    %v5275 = vshrl.u32 %v5274, 7
    %v5276 = vsub.s32 %v5273, %v5275
    %v5277 = vrot.slane %v5270, %v5276
    %v5278 = vcombine.high %v5277, %v5277
    %5280 = vst.msk [vmem:[%s1996] ss:$8 sm:$0xf] %vm1850, %v5278
    %5281 = vst.msk [vmem:[%s1996] ss:$8 sm:$0x0] %vm1850, %v5278
    %v5282 = vrot.slane %v5246, 7
    %v5283 = vrot.slane %v5247, 7
    %v5284 = vrot.slane %v5248, 7
    %v5285 = vrot.slane %v5249, 7
    %v5290 = vmul.f32 %v5061, %v5282
    %v5291 = vmul.f32 %v5063, %v5283
    %v5292 = vmul.f32 %v5065, %v5284
    %v5293 = vmul.f32 %v5067, %v5285
    %v5294 = vadd.f32 %v5290, %v5092
    %v5295 = vadd.f32 %v5291, %v5093
    %v5296 = vadd.f32 %v5292, %v5094
    %v5297 = vadd.f32 %v5293, %v5095
    %v5302 = vcombine.high %v5294, %v5295
    %v5303 = vcombine.high %v5296, %v5297
    %v5305 = vunpack.c.l.s4 1966171168
    %v5306 = vunpack.c.0.s8 %v5305
    %v5307 = vlaneseq
    %v5308 = vshrl.u32 %v5307, 7
    %v5309 = vsub.s32 %v5306, %v5308
    %v5310 = vrot.slane %v5302, %v5309
    %v5312 = vunpack.c.l.s4 1966171168
    %v5313 = vunpack.c.0.s8 %v5312
    %v5314 = vlaneseq
    %v5315 = vshrl.u32 %v5314, 7
    %v5316 = vsub.s32 %v5313, %v5315
    %v5317 = vrot.slane %v5303, %v5316
    %v5318 = vcombine.low %v5310, %v5317
    %v5320 = vunpack.c.l.s4 1966171168
    %v5321 = vunpack.c.0.s8 %v5320
    %v5322 = vlaneseq
    %v5323 = vshrl.u32 %v5322, 7
    %v5324 = vsub.s32 %v5321, %v5323
    %v5325 = vrot.slane %v5318, %v5324
    %5327 = vst.msk [vmem:[%s2044] ss:$8 sm:$0xf] %vm1850, %v5325
    %5328 = vst.msk [vmem:[%s2044] ss:$8 sm:$0x0] %vm1850, %v5325
    %v5329 = vrot.slane %v5294, 7
    %v5330 = vrot.slane %v5295, 7
    %v5331 = vrot.slane %v5296, 7
    %v5332 = vrot.slane %v5297, 7
    %v5337 = vmul.f32 %v5061, %v5329
    %v5338 = vmul.f32 %v5063, %v5330
    %v5339 = vmul.f32 %v5065, %v5331
    %v5340 = vmul.f32 %v5067, %v5332
    %v5341 = vadd.f32 %v5337, %v5092
    %v5342 = vadd.f32 %v5338, %v5093
    %v5343 = vadd.f32 %v5339, %v5094
    %v5344 = vadd.f32 %v5340, %v5095
    %v5349 = vcombine.high %v5341, %v5342
    %v5350 = vcombine.high %v5343, %v5344
    %v5352 = vunpack.c.l.s4 1966171168
    %v5353 = vunpack.c.0.s8 %v5352
    %v5354 = vlaneseq
    %v5355 = vshrl.u32 %v5354, 7
    %v5356 = vsub.s32 %v5353, %v5355
    %v5357 = vrot.slane %v5349, %v5356
    %v5359 = vunpack.c.l.s4 1966171168
    %v5360 = vunpack.c.0.s8 %v5359
    %v5361 = vlaneseq
    %v5362 = vshrl.u32 %v5361, 7
    %v5363 = vsub.s32 %v5360, %v5362
    %v5364 = vrot.slane %v5350, %v5363
    %v5365 = vcombine.high %v5357, %v5364
    %v5367 = vunpack.c.l.s4 1966171168
    %v5368 = vunpack.c.0.s8 %v5367
    %v5369 = vlaneseq
    %v5370 = vshrl.u32 %v5369, 7
    %v5371 = vsub.s32 %v5368, %v5370
    %v5372 = vrot.slane %v5365, %v5371
    %5374 = vst.msk [vmem:[%s2092] ss:$8 sm:$0xf] %vm1850, %v5372
    %5375 = vst.msk [vmem:[%s2092] ss:$8 sm:$0x0] %vm1850, %v5372
    %v5376 = vrot.slane %v5341, 7
    %v5377 = vrot.slane %v5342, 7
    %v5378 = vrot.slane %v5343, 7
    %v5379 = vrot.slane %v5344, 7
    %v5384 = vmul.f32 %v5061, %v5376
    %v5385 = vmul.f32 %v5063, %v5377
    %v5386 = vmul.f32 %v5065, %v5378
    %v5387 = vmul.f32 %v5067, %v5379
    %v5388 = vadd.f32 %v5384, %v5092
    %v5389 = vadd.f32 %v5385, %v5093
    %v5390 = vadd.f32 %v5386, %v5094
    %v5391 = vadd.f32 %v5387, %v5095
    %v5396 = vcombine.high %v5388, %v5389
    %v5397 = vcombine.high %v5390, %v5391
    %v5399 = vunpack.c.l.s4 1966171168
    %v5400 = vunpack.c.0.s8 %v5399
    %v5401 = vlaneseq
    %v5402 = vshrl.u32 %v5401, 7
    %v5403 = vsub.s32 %v5400, %v5402
    %v5404 = vrot.slane %v5396, %v5403
    %v5406 = vunpack.c.l.s4 1966171168
    %v5407 = vunpack.c.0.s8 %v5406
    %v5408 = vlaneseq
    %v5409 = vshrl.u32 %v5408, 7
    %v5410 = vsub.s32 %v5407, %v5409
    %v5411 = vrot.slane %v5397, %v5410
    %v5412 = vcombine.low %v5404, %v5411
    %v5414 = vunpack.c.l.s4 1966171168
    %v5415 = vunpack.c.0.s8 %v5414
    %v5416 = vlaneseq
    %v5417 = vshrl.u32 %v5416, 7
    %v5418 = vsub.s32 %v5415, %v5417
    %v5419 = vrot.slane %v5412, %v5418
    %v5420 = vcombine.high %v5419, %v5419
    %5422 = vst.msk [vmem:[%s2141] ss:$8 sm:$0xf] %vm1850, %v5420
    %5423 = vst.msk [vmem:[%s2141] ss:$8 sm:$0x0] %vm1850, %v5420
    %v5424 = vrot.slane %v5388, 7
    %v5425 = vrot.slane %v5389, 7
    %v5426 = vrot.slane %v5390, 7
    %v5427 = vrot.slane %v5391, 7
    %v5432 = vmul.f32 %v5061, %v5424
    %v5433 = vmul.f32 %v5063, %v5425
    %v5434 = vmul.f32 %v5065, %v5426
    %v5435 = vmul.f32 %v5067, %v5427
    %v5436 = vadd.f32 %v5432, %v5092
    %v5437 = vadd.f32 %v5433, %v5093
    %v5438 = vadd.f32 %v5434, %v5094
    %v5439 = vadd.f32 %v5435, %v5095
    %v5444 = vcombine.high %v5436, %v5437
    %v5445 = vcombine.high %v5438, %v5439
    %v5447 = vunpack.c.l.s4 1966171168
    %v5448 = vunpack.c.0.s8 %v5447
    %v5449 = vlaneseq
    %v5450 = vshrl.u32 %v5449, 7
    %v5451 = vsub.s32 %v5448, %v5450
    %v5452 = vrot.slane %v5444, %v5451
    %v5454 = vunpack.c.l.s4 1966171168
    %v5455 = vunpack.c.0.s8 %v5454
    %v5456 = vlaneseq
    %v5457 = vshrl.u32 %v5456, 7
    %v5458 = vsub.s32 %v5455, %v5457
    %v5459 = vrot.slane %v5445, %v5458
    %v5460 = vcombine.high %v5452, %v5459
    %v5462 = vunpack.c.l.s4 1966171168
    %v5463 = vunpack.c.0.s8 %v5462
    %v5464 = vlaneseq
    %v5465 = vshrl.u32 %v5464, 7
    %v5466 = vsub.s32 %v5463, %v5465
    %v5467 = vrot.slane %v5460, %v5466
    %v5468 = vcombine.high %v5467, %v5467
    %5470 = vst.msk [vmem:[%s2190] ss:$8 sm:$0xf] %vm1850, %v5468
    %5471 = vst.msk [vmem:[%s2190] ss:$8 sm:$0x0] %vm1850, %v5468
    %v5472 = vrot.slane %v5436, 7
    %v5473 = vrot.slane %v5437, 7
    %v5474 = vrot.slane %v5438, 7
    %v5475 = vrot.slane %v5439, 7
    %v5480 = vmul.f32 %v5069, %v5472
    %v5481 = vmul.f32 %v5071, %v5473
    %v5482 = vmul.f32 %v5073, %v5474
    %v5483 = vmul.f32 %v5075, %v5475
    %v5484 = vadd.f32 %v5480, %v5096
    %v5485 = vadd.f32 %v5481, %v5097
    %v5486 = vadd.f32 %v5482, %v5098
    %v5487 = vadd.f32 %v5483, %v5099
    %v5492 = vcombine.low %v5484, %v5485
    %v5493 = vcombine.low %v5486, %v5487
    %v5495 = vunpack.c.l.s4 1966171168
    %v5496 = vunpack.c.0.s8 %v5495
    %v5497 = vlaneseq
    %v5498 = vshrl.u32 %v5497, 7
    %v5499 = vsub.s32 %v5496, %v5498
    %v5500 = vrot.slane %v5492, %v5499
    %v5502 = vunpack.c.l.s4 1966171168
    %v5503 = vunpack.c.0.s8 %v5502
    %v5504 = vlaneseq
    %v5505 = vshrl.u32 %v5504, 7
    %v5506 = vsub.s32 %v5503, %v5505
    %v5507 = vrot.slane %v5493, %v5506
    %v5508 = vcombine.low %v5500, %v5507
    %v5510 = vunpack.c.l.s4 1966171168
    %v5511 = vunpack.c.0.s8 %v5510
    %v5512 = vlaneseq
    %v5513 = vshrl.u32 %v5512, 7
    %v5514 = vsub.s32 %v5511, %v5513
    %v5515 = vrot.slane %v5508, %v5514
    %5517 = vst.msk [vmem:[%s2238] ss:$8 sm:$0xf] %vm1850, %v5515
    %5518 = vst.msk [vmem:[%s2238] ss:$8 sm:$0x0] %vm1850, %v5515
    %v5519 = vrot.slane %v5484, 7
    %v5520 = vrot.slane %v5485, 7
    %v5521 = vrot.slane %v5486, 7
    %v5522 = vrot.slane %v5487, 7
    %v5527 = vmul.f32 %v5069, %v5519
    %v5528 = vmul.f32 %v5071, %v5520
    %v5529 = vmul.f32 %v5073, %v5521
    %v5530 = vmul.f32 %v5075, %v5522
    %v5531 = vadd.f32 %v5527, %v5096
    %v5532 = vadd.f32 %v5528, %v5097
    %v5533 = vadd.f32 %v5529, %v5098
    %v5534 = vadd.f32 %v5530, %v5099
    %v5539 = vcombine.low %v5531, %v5532
    %v5540 = vcombine.low %v5533, %v5534
    %v5542 = vunpack.c.l.s4 1966171168
    %v5543 = vunpack.c.0.s8 %v5542
    %v5544 = vlaneseq
    %v5545 = vshrl.u32 %v5544, 7
    %v5546 = vsub.s32 %v5543, %v5545
    %v5547 = vrot.slane %v5539, %v5546
    %v5549 = vunpack.c.l.s4 1966171168
    %v5550 = vunpack.c.0.s8 %v5549
    %v5551 = vlaneseq
    %v5552 = vshrl.u32 %v5551, 7
    %v5553 = vsub.s32 %v5550, %v5552
    %v5554 = vrot.slane %v5540, %v5553
    %v5555 = vcombine.high %v5547, %v5554
    %v5557 = vunpack.c.l.s4 1966171168
    %v5558 = vunpack.c.0.s8 %v5557
    %v5559 = vlaneseq
    %v5560 = vshrl.u32 %v5559, 7
    %v5561 = vsub.s32 %v5558, %v5560
    %v5562 = vrot.slane %v5555, %v5561
    %5564 = vst.msk [vmem:[%s2286] ss:$8 sm:$0xf] %vm1850, %v5562
    %5565 = vst.msk [vmem:[%s2286] ss:$8 sm:$0x0] %vm1850, %v5562
    %v5566 = vrot.slane %v5531, 7
    %v5567 = vrot.slane %v5532, 7
    %v5568 = vrot.slane %v5533, 7
    %v5569 = vrot.slane %v5534, 7
    %v5574 = vmul.f32 %v5069, %v5566
    %v5575 = vmul.f32 %v5071, %v5567
    %v5576 = vmul.f32 %v5073, %v5568
    %v5577 = vmul.f32 %v5075, %v5569
    %v5578 = vadd.f32 %v5574, %v5096
    %v5579 = vadd.f32 %v5575, %v5097
    %v5580 = vadd.f32 %v5576, %v5098
    %v5581 = vadd.f32 %v5577, %v5099
    %v5586 = vcombine.low %v5578, %v5579
    %v5587 = vcombine.low %v5580, %v5581
    %v5589 = vunpack.c.l.s4 1966171168
    %v5590 = vunpack.c.0.s8 %v5589
    %v5591 = vlaneseq
    %v5592 = vshrl.u32 %v5591, 7
    %v5593 = vsub.s32 %v5590, %v5592
    %v5594 = vrot.slane %v5586, %v5593
    %v5596 = vunpack.c.l.s4 1966171168
    %v5597 = vunpack.c.0.s8 %v5596
    %v5598 = vlaneseq
    %v5599 = vshrl.u32 %v5598, 7
    %v5600 = vsub.s32 %v5597, %v5599
    %v5601 = vrot.slane %v5587, %v5600
    %v5602 = vcombine.low %v5594, %v5601
    %v5604 = vunpack.c.l.s4 1966171168
    %v5605 = vunpack.c.0.s8 %v5604
    %v5606 = vlaneseq
    %v5607 = vshrl.u32 %v5606, 7
    %v5608 = vsub.s32 %v5605, %v5607
    %v5609 = vrot.slane %v5602, %v5608
    %v5610 = vcombine.high %v5609, %v5609
    %5612 = vst.msk [vmem:[%s2335] ss:$8 sm:$0xf] %vm1850, %v5610
    %5613 = vst.msk [vmem:[%s2335] ss:$8 sm:$0x0] %vm1850, %v5610
    %v5614 = vrot.slane %v5578, 7
    %v5615 = vrot.slane %v5579, 7
    %v5616 = vrot.slane %v5580, 7
    %v5617 = vrot.slane %v5581, 7
    %v5622 = vmul.f32 %v5069, %v5614
    %v5623 = vmul.f32 %v5071, %v5615
    %v5624 = vmul.f32 %v5073, %v5616
    %v5625 = vmul.f32 %v5075, %v5617
    %v5626 = vadd.f32 %v5622, %v5096
    %v5627 = vadd.f32 %v5623, %v5097
    %v5628 = vadd.f32 %v5624, %v5098
    %v5629 = vadd.f32 %v5625, %v5099
    %v5634 = vcombine.low %v5626, %v5627
    %v5635 = vcombine.low %v5628, %v5629
    %v5637 = vunpack.c.l.s4 1966171168
    %v5638 = vunpack.c.0.s8 %v5637
    %v5639 = vlaneseq
    %v5640 = vshrl.u32 %v5639, 7
    %v5641 = vsub.s32 %v5638, %v5640
    %v5642 = vrot.slane %v5634, %v5641
    %v5644 = vunpack.c.l.s4 1966171168
    %v5645 = vunpack.c.0.s8 %v5644
    %v5646 = vlaneseq
    %v5647 = vshrl.u32 %v5646, 7
    %v5648 = vsub.s32 %v5645, %v5647
    %v5649 = vrot.slane %v5635, %v5648
    %v5650 = vcombine.high %v5642, %v5649
    %v5652 = vunpack.c.l.s4 1966171168
    %v5653 = vunpack.c.0.s8 %v5652
    %v5654 = vlaneseq
    %v5655 = vshrl.u32 %v5654, 7
    %v5656 = vsub.s32 %v5653, %v5655
    %v5657 = vrot.slane %v5650, %v5656
    %v5658 = vcombine.high %v5657, %v5657
    %5660 = vst.msk [vmem:[%s2384] ss:$8 sm:$0xf] %vm1850, %v5658
    %5661 = vst.msk [vmem:[%s2384] ss:$8 sm:$0x0] %vm1850, %v5658
    %v5662 = vrot.slane %v5626, 7
    %v5663 = vrot.slane %v5627, 7
    %v5664 = vrot.slane %v5628, 7
    %v5665 = vrot.slane %v5629, 7
    %v5670 = vmul.f32 %v5069, %v5662
    %v5671 = vmul.f32 %v5071, %v5663
    %v5672 = vmul.f32 %v5073, %v5664
    %v5673 = vmul.f32 %v5075, %v5665
    %v5674 = vadd.f32 %v5670, %v5096
    %v5675 = vadd.f32 %v5671, %v5097
    %v5676 = vadd.f32 %v5672, %v5098
    %v5677 = vadd.f32 %v5673, %v5099
    %v5682 = vcombine.high %v5674, %v5675
    %v5683 = vcombine.high %v5676, %v5677
    %v5685 = vunpack.c.l.s4 1966171168
    %v5686 = vunpack.c.0.s8 %v5685
    %v5687 = vlaneseq
    %v5688 = vshrl.u32 %v5687, 7
    %v5689 = vsub.s32 %v5686, %v5688
    %v5690 = vrot.slane %v5682, %v5689
    %v5692 = vunpack.c.l.s4 1966171168
    %v5693 = vunpack.c.0.s8 %v5692
    %v5694 = vlaneseq
    %v5695 = vshrl.u32 %v5694, 7
    %v5696 = vsub.s32 %v5693, %v5695
    %v5697 = vrot.slane %v5683, %v5696
    %v5698 = vcombine.low %v5690, %v5697
    %v5700 = vunpack.c.l.s4 1966171168
    %v5701 = vunpack.c.0.s8 %v5700
    %v5702 = vlaneseq
    %v5703 = vshrl.u32 %v5702, 7
    %v5704 = vsub.s32 %v5701, %v5703
    %v5705 = vrot.slane %v5698, %v5704
    %5707 = vst.msk [vmem:[%s2432] ss:$8 sm:$0xf] %vm1850, %v5705
    %5708 = vst.msk [vmem:[%s2432] ss:$8 sm:$0x0] %vm1850, %v5705
    %v5709 = vrot.slane %v5674, 7
    %v5710 = vrot.slane %v5675, 7
    %v5711 = vrot.slane %v5676, 7
    %v5712 = vrot.slane %v5677, 7
    %v5717 = vmul.f32 %v5069, %v5709
    %v5718 = vmul.f32 %v5071, %v5710
    %v5719 = vmul.f32 %v5073, %v5711
    %v5720 = vmul.f32 %v5075, %v5712
    %v5721 = vadd.f32 %v5717, %v5096
    %v5722 = vadd.f32 %v5718, %v5097
    %v5723 = vadd.f32 %v5719, %v5098
    %v5724 = vadd.f32 %v5720, %v5099
    %v5729 = vcombine.high %v5721, %v5722
    %v5730 = vcombine.high %v5723, %v5724
    %v5732 = vunpack.c.l.s4 1966171168
    %v5733 = vunpack.c.0.s8 %v5732
    %v5734 = vlaneseq
    %v5735 = vshrl.u32 %v5734, 7
    %v5736 = vsub.s32 %v5733, %v5735
    %v5737 = vrot.slane %v5729, %v5736
    %v5739 = vunpack.c.l.s4 1966171168
    %v5740 = vunpack.c.0.s8 %v5739
    %v5741 = vlaneseq
    %v5742 = vshrl.u32 %v5741, 7
    %v5743 = vsub.s32 %v5740, %v5742
    %v5744 = vrot.slane %v5730, %v5743
    %v5745 = vcombine.high %v5737, %v5744
    %v5747 = vunpack.c.l.s4 1966171168
    %v5748 = vunpack.c.0.s8 %v5747
    %v5749 = vlaneseq
    %v5750 = vshrl.u32 %v5749, 7
    %v5751 = vsub.s32 %v5748, %v5750
    %v5752 = vrot.slane %v5745, %v5751
    %5754 = vst.msk [vmem:[%s2480] ss:$8 sm:$0xf] %vm1850, %v5752
    %5755 = vst.msk [vmem:[%s2480] ss:$8 sm:$0x0] %vm1850, %v5752
    %v5756 = vrot.slane %v5721, 7
    %v5757 = vrot.slane %v5722, 7
    %v5758 = vrot.slane %v5723, 7
    %v5759 = vrot.slane %v5724, 7
    %v5764 = vmul.f32 %v5069, %v5756
    %v5765 = vmul.f32 %v5071, %v5757
    %v5766 = vmul.f32 %v5073, %v5758
    %v5767 = vmul.f32 %v5075, %v5759
    %v5768 = vadd.f32 %v5764, %v5096
    %v5769 = vadd.f32 %v5765, %v5097
    %v5770 = vadd.f32 %v5766, %v5098
    %v5771 = vadd.f32 %v5767, %v5099
    %v5776 = vcombine.high %v5768, %v5769
    %v5777 = vcombine.high %v5770, %v5771
    %v5779 = vunpack.c.l.s4 1966171168
    %v5780 = vunpack.c.0.s8 %v5779
    %v5781 = vlaneseq
    %v5782 = vshrl.u32 %v5781, 7
    %v5783 = vsub.s32 %v5780, %v5782
    %v5784 = vrot.slane %v5776, %v5783
    %v5786 = vunpack.c.l.s4 1966171168
    %v5787 = vunpack.c.0.s8 %v5786
    %v5788 = vlaneseq
    %v5789 = vshrl.u32 %v5788, 7
    %v5790 = vsub.s32 %v5787, %v5789
    %v5791 = vrot.slane %v5777, %v5790
    %v5792 = vcombine.low %v5784, %v5791
    %v5794 = vunpack.c.l.s4 1966171168
    %v5795 = vunpack.c.0.s8 %v5794
    %v5796 = vlaneseq
    %v5797 = vshrl.u32 %v5796, 7
    %v5798 = vsub.s32 %v5795, %v5797
    %v5799 = vrot.slane %v5792, %v5798
    %v5800 = vcombine.high %v5799, %v5799
    %5802 = vst.msk [vmem:[%s2529] ss:$8 sm:$0xf] %vm1850, %v5800
    %5803 = vst.msk [vmem:[%s2529] ss:$8 sm:$0x0] %vm1850, %v5800
    %v5804 = vrot.slane %v5768, 7
    %v5805 = vrot.slane %v5769, 7
    %v5806 = vrot.slane %v5770, 7
    %v5807 = vrot.slane %v5771, 7
    %v5812 = vmul.f32 %v5069, %v5804
    %v5813 = vmul.f32 %v5071, %v5805
    %v5814 = vmul.f32 %v5073, %v5806
    %v5815 = vmul.f32 %v5075, %v5807
    %v5816 = vadd.f32 %v5812, %v5096
    %v5817 = vadd.f32 %v5813, %v5097
    %v5818 = vadd.f32 %v5814, %v5098
    %v5819 = vadd.f32 %v5815, %v5099
    %v5824 = vcombine.high %v5816, %v5817
    %v5825 = vcombine.high %v5818, %v5819
    %v5827 = vunpack.c.l.s4 1966171168
    %v5828 = vunpack.c.0.s8 %v5827
    %v5829 = vlaneseq
    %v5830 = vshrl.u32 %v5829, 7
    %v5831 = vsub.s32 %v5828, %v5830
    %v5832 = vrot.slane %v5824, %v5831
    %v5834 = vunpack.c.l.s4 1966171168
    %v5835 = vunpack.c.0.s8 %v5834
    %v5836 = vlaneseq
    %v5837 = vshrl.u32 %v5836, 7
    %v5838 = vsub.s32 %v5835, %v5837
    %v5839 = vrot.slane %v5825, %v5838
    %v5840 = vcombine.high %v5832, %v5839
    %v5842 = vunpack.c.l.s4 1966171168
    %v5843 = vunpack.c.0.s8 %v5842
    %v5844 = vlaneseq
    %v5845 = vshrl.u32 %v5844, 7
    %v5846 = vsub.s32 %v5843, %v5845
    %v5847 = vrot.slane %v5840, %v5846
    %v5848 = vcombine.high %v5847, %v5847
    %5850 = vst.msk [vmem:[%s2578] ss:$8 sm:$0xf] %vm1850, %v5848
    %5851 = vst.msk [vmem:[%s2578] ss:$8 sm:$0x0] %vm1850, %v5848
    %v5856 = vcombine.low %v5100, %v5101
    %v5857 = vcombine.low %v5102, %v5103
    %v5859 = vunpack.c.l.s4 1966171168
    %v5860 = vunpack.c.0.s8 %v5859
    %v5861 = vlaneseq
    %v5862 = vshrl.u32 %v5861, 7
    %v5863 = vsub.s32 %v5860, %v5862
    %v5864 = vrot.slane %v5856, %v5863
    %v5866 = vunpack.c.l.s4 1966171168
    %v5867 = vunpack.c.0.s8 %v5866
    %v5868 = vlaneseq
    %v5869 = vshrl.u32 %v5868, 7
    %v5870 = vsub.s32 %v5867, %v5869
    %v5871 = vrot.slane %v5857, %v5870
    %v5872 = vcombine.low %v5864, %v5871
    %v5874 = vunpack.c.l.s4 1966171168
    %v5875 = vunpack.c.0.s8 %v5874
    %v5876 = vlaneseq
    %v5877 = vshrl.u32 %v5876, 7
    %v5878 = vsub.s32 %v5875, %v5877
    %v5879 = vrot.slane %v5872, %v5878
    %5881 = vst.msk [vmem:[%s2610] ss:$8 sm:$0xf] %vm1850, %v5879
    %5882 = vst.msk [vmem:[%s2610] ss:$8 sm:$0x0] %vm1850, %v5879
    %v5883 = vrot.slane %v5100, 7
    %v5884 = vrot.slane %v5101, 7
    %v5885 = vrot.slane %v5102, 7
    %v5886 = vrot.slane %v5103, 7
    %v5891 = vmul.f32 %v5077, %v5883
    %v5892 = vmul.f32 %v5079, %v5884
    %v5893 = vmul.f32 %v5081, %v5885
    %v5894 = vmul.f32 %v5083, %v5886
    %v5895 = vadd.f32 %v5891, %v5100
    %v5896 = vadd.f32 %v5892, %v5101
    %v5897 = vadd.f32 %v5893, %v5102
    %v5898 = vadd.f32 %v5894, %v5103
    %v5903 = vcombine.low %v5895, %v5896
    %v5904 = vcombine.low %v5897, %v5898
    %v5906 = vunpack.c.l.s4 1966171168
    %v5907 = vunpack.c.0.s8 %v5906
    %v5908 = vlaneseq
    %v5909 = vshrl.u32 %v5908, 7
    %v5910 = vsub.s32 %v5907, %v5909
    %v5911 = vrot.slane %v5903, %v5910
    %v5913 = vunpack.c.l.s4 1966171168
    %v5914 = vunpack.c.0.s8 %v5913
    %v5915 = vlaneseq
    %v5916 = vshrl.u32 %v5915, 7
    %v5917 = vsub.s32 %v5914, %v5916
    %v5918 = vrot.slane %v5904, %v5917
    %v5919 = vcombine.high %v5911, %v5918
    %v5921 = vunpack.c.l.s4 1966171168
    %v5922 = vunpack.c.0.s8 %v5921
    %v5923 = vlaneseq
    %v5924 = vshrl.u32 %v5923, 7
    %v5925 = vsub.s32 %v5922, %v5924
    %v5926 = vrot.slane %v5919, %v5925
    %5928 = vst.msk [vmem:[%s2658] ss:$8 sm:$0xf] %vm1850, %v5926
    %5929 = vst.msk [vmem:[%s2658] ss:$8 sm:$0x0] %vm1850, %v5926
    %v5930 = vrot.slane %v5895, 7
    %v5931 = vrot.slane %v5896, 7
    %v5932 = vrot.slane %v5897, 7
    %v5933 = vrot.slane %v5898, 7
    %v5938 = vmul.f32 %v5077, %v5930
    %v5939 = vmul.f32 %v5079, %v5931
    %v5940 = vmul.f32 %v5081, %v5932
    %v5941 = vmul.f32 %v5083, %v5933
    %v5942 = vadd.f32 %v5938, %v5100
    %v5943 = vadd.f32 %v5939, %v5101
    %v5944 = vadd.f32 %v5940, %v5102
    %v5945 = vadd.f32 %v5941, %v5103
    %v5950 = vcombine.low %v5942, %v5943
    %v5951 = vcombine.low %v5944, %v5945
    %v5953 = vunpack.c.l.s4 1966171168
    %v5954 = vunpack.c.0.s8 %v5953
    %v5955 = vlaneseq
    %v5956 = vshrl.u32 %v5955, 7
    %v5957 = vsub.s32 %v5954, %v5956
    %v5958 = vrot.slane %v5950, %v5957
    %v5960 = vunpack.c.l.s4 1966171168
    %v5961 = vunpack.c.0.s8 %v5960
    %v5962 = vlaneseq
    %v5963 = vshrl.u32 %v5962, 7
    %v5964 = vsub.s32 %v5961, %v5963
    %v5965 = vrot.slane %v5951, %v5964
    %v5966 = vcombine.low %v5958, %v5965
    %v5968 = vunpack.c.l.s4 1966171168
    %v5969 = vunpack.c.0.s8 %v5968
    %v5970 = vlaneseq
    %v5971 = vshrl.u32 %v5970, 7
    %v5972 = vsub.s32 %v5969, %v5971
    %v5973 = vrot.slane %v5966, %v5972
    %v5974 = vcombine.high %v5973, %v5973
    %5976 = vst.msk [vmem:[%s2707] ss:$8 sm:$0xf] %vm1850, %v5974
    %5977 = vst.msk [vmem:[%s2707] ss:$8 sm:$0x0] %vm1850, %v5974
    %v5978 = vrot.slane %v5942, 7
    %v5979 = vrot.slane %v5943, 7
    %v5980 = vrot.slane %v5944, 7
    %v5981 = vrot.slane %v5945, 7
    %v5986 = vmul.f32 %v5077, %v5978
    %v5987 = vmul.f32 %v5079, %v5979
    %v5988 = vmul.f32 %v5081, %v5980
    %v5989 = vmul.f32 %v5083, %v5981
    %v5990 = vadd.f32 %v5986, %v5100
    %v5991 = vadd.f32 %v5987, %v5101
    %v5992 = vadd.f32 %v5988, %v5102
    %v5993 = vadd.f32 %v5989, %v5103
    %v5998 = vcombine.low %v5990, %v5991
    %v5999 = vcombine.low %v5992, %v5993
    %v6001 = vunpack.c.l.s4 1966171168
    %v6002 = vunpack.c.0.s8 %v6001
    %v6003 = vlaneseq
    %v6004 = vshrl.u32 %v6003, 7
    %v6005 = vsub.s32 %v6002, %v6004
    %v6006 = vrot.slane %v5998, %v6005
    %v6008 = vunpack.c.l.s4 1966171168
    %v6009 = vunpack.c.0.s8 %v6008
    %v6010 = vlaneseq
    %v6011 = vshrl.u32 %v6010, 7
    %v6012 = vsub.s32 %v6009, %v6011
    %v6013 = vrot.slane %v5999, %v6012
    %v6014 = vcombine.high %v6006, %v6013
    %v6016 = vunpack.c.l.s4 1966171168
    %v6017 = vunpack.c.0.s8 %v6016
    %v6018 = vlaneseq
    %v6019 = vshrl.u32 %v6018, 7
    %v6020 = vsub.s32 %v6017, %v6019
    %v6021 = vrot.slane %v6014, %v6020
    %v6022 = vcombine.high %v6021, %v6021
    %6024 = vst.msk [vmem:[%s2756] ss:$8 sm:$0xf] %vm1850, %v6022
    %6025 = vst.msk [vmem:[%s2756] ss:$8 sm:$0x0] %vm1850, %v6022
    %v6026 = vrot.slane %v5990, 7
    %v6027 = vrot.slane %v5991, 7
    %v6028 = vrot.slane %v5992, 7
    %v6029 = vrot.slane %v5993, 7
    %v6034 = vmul.f32 %v5077, %v6026
    %v6035 = vmul.f32 %v5079, %v6027
    %v6036 = vmul.f32 %v5081, %v6028
    %v6037 = vmul.f32 %v5083, %v6029
    %v6038 = vadd.f32 %v6034, %v5100
    %v6039 = vadd.f32 %v6035, %v5101
    %v6040 = vadd.f32 %v6036, %v5102
    %v6041 = vadd.f32 %v6037, %v5103
    %v6046 = vcombine.high %v6038, %v6039
    %v6047 = vcombine.high %v6040, %v6041
    %v6049 = vunpack.c.l.s4 1966171168
    %v6050 = vunpack.c.0.s8 %v6049
    %v6051 = vlaneseq
    %v6052 = vshrl.u32 %v6051, 7
    %v6053 = vsub.s32 %v6050, %v6052
    %v6054 = vrot.slane %v6046, %v6053
    %v6056 = vunpack.c.l.s4 1966171168
    %v6057 = vunpack.c.0.s8 %v6056
    %v6058 = vlaneseq
    %v6059 = vshrl.u32 %v6058, 7
    %v6060 = vsub.s32 %v6057, %v6059
    %v6061 = vrot.slane %v6047, %v6060
    %v6062 = vcombine.low %v6054, %v6061
    %v6064 = vunpack.c.l.s4 1966171168
    %v6065 = vunpack.c.0.s8 %v6064
    %v6066 = vlaneseq
    %v6067 = vshrl.u32 %v6066, 7
    %v6068 = vsub.s32 %v6065, %v6067
    %v6069 = vrot.slane %v6062, %v6068
    %6071 = vst.msk [vmem:[%s2804] ss:$8 sm:$0xf] %vm1850, %v6069
    %6072 = vst.msk [vmem:[%s2804] ss:$8 sm:$0x0] %vm1850, %v6069
    %v6073 = vrot.slane %v6038, 7
    %v6074 = vrot.slane %v6039, 7
    %v6075 = vrot.slane %v6040, 7
    %v6076 = vrot.slane %v6041, 7
    %v6081 = vmul.f32 %v5077, %v6073
    %v6082 = vmul.f32 %v5079, %v6074
    %v6083 = vmul.f32 %v5081, %v6075
    %v6084 = vmul.f32 %v5083, %v6076
    %v6085 = vadd.f32 %v6081, %v5100
    %v6086 = vadd.f32 %v6082, %v5101
    %v6087 = vadd.f32 %v6083, %v5102
    %v6088 = vadd.f32 %v6084, %v5103
    %v6093 = vcombine.high %v6085, %v6086
    %v6094 = vcombine.high %v6087, %v6088
    %v6096 = vunpack.c.l.s4 1966171168
    %v6097 = vunpack.c.0.s8 %v6096
    %v6098 = vlaneseq
    %v6099 = vshrl.u32 %v6098, 7
    %v6100 = vsub.s32 %v6097, %v6099
    %v6101 = vrot.slane %v6093, %v6100
    %v6103 = vunpack.c.l.s4 1966171168
    %v6104 = vunpack.c.0.s8 %v6103
    %v6105 = vlaneseq
    %v6106 = vshrl.u32 %v6105, 7
    %v6107 = vsub.s32 %v6104, %v6106
    %v6108 = vrot.slane %v6094, %v6107
    %v6109 = vcombine.high %v6101, %v6108
    %v6111 = vunpack.c.l.s4 1966171168
    %v6112 = vunpack.c.0.s8 %v6111
    %v6113 = vlaneseq
    %v6114 = vshrl.u32 %v6113, 7
    %v6115 = vsub.s32 %v6112, %v6114
    %v6116 = vrot.slane %v6109, %v6115
    %6118 = vst.msk [vmem:[%s2852] ss:$8 sm:$0xf] %vm1850, %v6116
    %6119 = vst.msk [vmem:[%s2852] ss:$8 sm:$0x0] %vm1850, %v6116
    %v6120 = vrot.slane %v6085, 7
    %v6121 = vrot.slane %v6086, 7
    %v6122 = vrot.slane %v6087, 7
    %v6123 = vrot.slane %v6088, 7
    %v6128 = vmul.f32 %v5077, %v6120
    %v6129 = vmul.f32 %v5079, %v6121
    %v6130 = vmul.f32 %v5081, %v6122
    %v6131 = vmul.f32 %v5083, %v6123
    %v6132 = vadd.f32 %v6128, %v5100
    %v6133 = vadd.f32 %v6129, %v5101
    %v6134 = vadd.f32 %v6130, %v5102
    %v6135 = vadd.f32 %v6131, %v5103
    %v6140 = vcombine.high %v6132, %v6133
    %v6141 = vcombine.high %v6134, %v6135
    %v6143 = vunpack.c.l.s4 1966171168
    %v6144 = vunpack.c.0.s8 %v6143
    %v6145 = vlaneseq
    %v6146 = vshrl.u32 %v6145, 7
    %v6147 = vsub.s32 %v6144, %v6146
    %v6148 = vrot.slane %v6140, %v6147
    %v6150 = vunpack.c.l.s4 1966171168
    %v6151 = vunpack.c.0.s8 %v6150
    %v6152 = vlaneseq
    %v6153 = vshrl.u32 %v6152, 7
    %v6154 = vsub.s32 %v6151, %v6153
    %v6155 = vrot.slane %v6141, %v6154
    %v6156 = vcombine.low %v6148, %v6155
    %v6158 = vunpack.c.l.s4 1966171168
    %v6159 = vunpack.c.0.s8 %v6158
    %v6160 = vlaneseq
    %v6161 = vshrl.u32 %v6160, 7
    %v6162 = vsub.s32 %v6159, %v6161
    %v6163 = vrot.slane %v6156, %v6162
    %v6164 = vcombine.high %v6163, %v6163
    %6166 = vst.msk [vmem:[%s2901] ss:$8 sm:$0xf] %vm1850, %v6164
    %6167 = vst.msk [vmem:[%s2901] ss:$8 sm:$0x0] %vm1850, %v6164
    %v6168 = vrot.slane %v6132, 7
    %v6169 = vrot.slane %v6133, 7
    %v6170 = vrot.slane %v6134, 7
    %v6171 = vrot.slane %v6135, 7
    %v6176 = vmul.f32 %v5077, %v6168
    %v6177 = vmul.f32 %v5079, %v6169
    %v6178 = vmul.f32 %v5081, %v6170
    %v6179 = vmul.f32 %v5083, %v6171
    %v6180 = vadd.f32 %v6176, %v5100
    %v6181 = vadd.f32 %v6177, %v5101
    %v6182 = vadd.f32 %v6178, %v5102
    %v6183 = vadd.f32 %v6179, %v5103
    %v6188 = vcombine.high %v6180, %v6181
    %v6189 = vcombine.high %v6182, %v6183
    %v6191 = vunpack.c.l.s4 1966171168
    %v6192 = vunpack.c.0.s8 %v6191
    %v6193 = vlaneseq
    %v6194 = vshrl.u32 %v6193, 7
    %v6195 = vsub.s32 %v6192, %v6194
    %v6196 = vrot.slane %v6188, %v6195
    %v6198 = vunpack.c.l.s4 1966171168
    %v6199 = vunpack.c.0.s8 %v6198
    %v6200 = vlaneseq
    %v6201 = vshrl.u32 %v6200, 7
    %v6202 = vsub.s32 %v6199, %v6201
    %v6203 = vrot.slane %v6189, %v6202
    %v6204 = vcombine.high %v6196, %v6203
    %v6206 = vunpack.c.l.s4 1966171168
    %v6207 = vunpack.c.0.s8 %v6206
    %v6208 = vlaneseq
    %v6209 = vshrl.u32 %v6208, 7
    %v6210 = vsub.s32 %v6207, %v6209
    %v6211 = vrot.slane %v6204, %v6210
    %v6212 = vcombine.high %v6211, %v6211
    %6214 = vst.msk [vmem:[%s2950] ss:$8 sm:$0xf] %vm1850, %v6212
    %6215 = vst.msk [vmem:[%s2950] ss:$8 sm:$0x0] %vm1850, %v6212
    %v6216 = vrot.slane %v6180, 7
    %v6217 = vrot.slane %v6181, 7
    %v6218 = vrot.slane %v6182, 7
    %v6219 = vrot.slane %v6183, 7
    %v6224 = vmul.f32 %v5085, %v6216
    %v6225 = vmul.f32 %v5087, %v6217
    %v6226 = vmul.f32 %v5089, %v6218
    %v6227 = vmul.f32 %v5091, %v6219
    %v6228 = vadd.f32 %v6224, %v5104
    %v6229 = vadd.f32 %v6225, %v5105
    %v6230 = vadd.f32 %v6226, %v5106
    %v6231 = vadd.f32 %v6227, %v5107
    %v6236 = vcombine.low %v6228, %v6229
    %v6237 = vcombine.low %v6230, %v6231
    %v6239 = vunpack.c.l.s4 1966171168
    %v6240 = vunpack.c.0.s8 %v6239
    %v6241 = vlaneseq
    %v6242 = vshrl.u32 %v6241, 7
    %v6243 = vsub.s32 %v6240, %v6242
    %v6244 = vrot.slane %v6236, %v6243
    %v6246 = vunpack.c.l.s4 1966171168
    %v6247 = vunpack.c.0.s8 %v6246
    %v6248 = vlaneseq
    %v6249 = vshrl.u32 %v6248, 7
    %v6250 = vsub.s32 %v6247, %v6249
    %v6251 = vrot.slane %v6237, %v6250
    %v6252 = vcombine.low %v6244, %v6251
    %v6254 = vunpack.c.l.s4 1966171168
    %v6255 = vunpack.c.0.s8 %v6254
    %v6256 = vlaneseq
    %v6257 = vshrl.u32 %v6256, 7
    %v6258 = vsub.s32 %v6255, %v6257
    %v6259 = vrot.slane %v6252, %v6258
    %6261 = vst.msk [vmem:[%s2998] ss:$8 sm:$0xf] %vm1850, %v6259
    %6262 = vst.msk [vmem:[%s2998] ss:$8 sm:$0x0] %vm1850, %v6259
    %v6263 = vrot.slane %v6228, 7
    %v6264 = vrot.slane %v6229, 7
    %v6265 = vrot.slane %v6230, 7
    %v6266 = vrot.slane %v6231, 7
    %v6271 = vmul.f32 %v5085, %v6263
    %v6272 = vmul.f32 %v5087, %v6264
    %v6273 = vmul.f32 %v5089, %v6265
    %v6274 = vmul.f32 %v5091, %v6266
    %v6275 = vadd.f32 %v6271, %v5104
    %v6276 = vadd.f32 %v6272, %v5105
    %v6277 = vadd.f32 %v6273, %v5106
    %v6278 = vadd.f32 %v6274, %v5107
    %v6283 = vcombine.low %v6275, %v6276
    %v6284 = vcombine.low %v6277, %v6278
    %v6286 = vunpack.c.l.s4 1966171168
    %v6287 = vunpack.c.0.s8 %v6286
    %v6288 = vlaneseq
    %v6289 = vshrl.u32 %v6288, 7
    %v6290 = vsub.s32 %v6287, %v6289
    %v6291 = vrot.slane %v6283, %v6290
    %v6293 = vunpack.c.l.s4 1966171168
    %v6294 = vunpack.c.0.s8 %v6293
    %v6295 = vlaneseq
    %v6296 = vshrl.u32 %v6295, 7
    %v6297 = vsub.s32 %v6294, %v6296
    %v6298 = vrot.slane %v6284, %v6297
    %v6299 = vcombine.high %v6291, %v6298
    %v6301 = vunpack.c.l.s4 1966171168
    %v6302 = vunpack.c.0.s8 %v6301
    %v6303 = vlaneseq
    %v6304 = vshrl.u32 %v6303, 7
    %v6305 = vsub.s32 %v6302, %v6304
    %v6306 = vrot.slane %v6299, %v6305
    %6308 = vst.msk [vmem:[%s3046] ss:$8 sm:$0xf] %vm1850, %v6306
    %6309 = vst.msk [vmem:[%s3046] ss:$8 sm:$0x0] %vm1850, %v6306
    %v6310 = vrot.slane %v6275, 7
    %v6311 = vrot.slane %v6276, 7
    %v6312 = vrot.slane %v6277, 7
    %v6313 = vrot.slane %v6278, 7
    %v6318 = vmul.f32 %v5085, %v6310
    %v6319 = vmul.f32 %v5087, %v6311
    %v6320 = vmul.f32 %v5089, %v6312
    %v6321 = vmul.f32 %v5091, %v6313
    %v6322 = vadd.f32 %v6318, %v5104
    %v6323 = vadd.f32 %v6319, %v5105
    %v6324 = vadd.f32 %v6320, %v5106
    %v6325 = vadd.f32 %v6321, %v5107
    %v6330 = vcombine.low %v6322, %v6323
    %v6331 = vcombine.low %v6324, %v6325
    %v6333 = vunpack.c.l.s4 1966171168
    %v6334 = vunpack.c.0.s8 %v6333
    %v6335 = vlaneseq
    %v6336 = vshrl.u32 %v6335, 7
    %v6337 = vsub.s32 %v6334, %v6336
    %v6338 = vrot.slane %v6330, %v6337
    %v6340 = vunpack.c.l.s4 1966171168
    %v6341 = vunpack.c.0.s8 %v6340
    %v6342 = vlaneseq
    %v6343 = vshrl.u32 %v6342, 7
    %v6344 = vsub.s32 %v6341, %v6343
    %v6345 = vrot.slane %v6331, %v6344
    %v6346 = vcombine.low %v6338, %v6345
    %v6348 = vunpack.c.l.s4 1966171168
    %v6349 = vunpack.c.0.s8 %v6348
    %v6350 = vlaneseq
    %v6351 = vshrl.u32 %v6350, 7
    %v6352 = vsub.s32 %v6349, %v6351
    %v6353 = vrot.slane %v6346, %v6352
    %v6354 = vcombine.high %v6353, %v6353
    %6356 = vst.msk [vmem:[%s3095] ss:$8 sm:$0xf] %vm1850, %v6354
    %6357 = vst.msk [vmem:[%s3095] ss:$8 sm:$0x0] %vm1850, %v6354
    %v6358 = vrot.slane %v6322, 7
    %v6359 = vrot.slane %v6323, 7
    %v6360 = vrot.slane %v6324, 7
    %v6361 = vrot.slane %v6325, 7
    %v6366 = vmul.f32 %v5085, %v6358
    %v6367 = vmul.f32 %v5087, %v6359
    %v6368 = vmul.f32 %v5089, %v6360
    %v6369 = vmul.f32 %v5091, %v6361
    %v6370 = vadd.f32 %v6366, %v5104
    %v6371 = vadd.f32 %v6367, %v5105
    %v6372 = vadd.f32 %v6368, %v5106
    %v6373 = vadd.f32 %v6369, %v5107
    %v6378 = vcombine.low %v6370, %v6371
    %v6379 = vcombine.low %v6372, %v6373
    %v6381 = vunpack.c.l.s4 1966171168
    %v6382 = vunpack.c.0.s8 %v6381
    %v6383 = vlaneseq
    %v6384 = vshrl.u32 %v6383, 7
    %v6385 = vsub.s32 %v6382, %v6384
    %v6386 = vrot.slane %v6378, %v6385
    %v6388 = vunpack.c.l.s4 1966171168
    %v6389 = vunpack.c.0.s8 %v6388
    %v6390 = vlaneseq
    %v6391 = vshrl.u32 %v6390, 7
    %v6392 = vsub.s32 %v6389, %v6391
    %v6393 = vrot.slane %v6379, %v6392
    %v6394 = vcombine.high %v6386, %v6393
    %v6396 = vunpack.c.l.s4 1966171168
    %v6397 = vunpack.c.0.s8 %v6396
    %v6398 = vlaneseq
    %v6399 = vshrl.u32 %v6398, 7
    %v6400 = vsub.s32 %v6397, %v6399
    %v6401 = vrot.slane %v6394, %v6400
    %v6402 = vcombine.high %v6401, %v6401
    %6404 = vst.msk [vmem:[%s3144] ss:$8 sm:$0xf] %vm1850, %v6402
    %6405 = vst.msk [vmem:[%s3144] ss:$8 sm:$0x0] %vm1850, %v6402
    %v6406 = vrot.slane %v6370, 7
    %v6407 = vrot.slane %v6371, 7
    %v6408 = vrot.slane %v6372, 7
    %v6409 = vrot.slane %v6373, 7
    %v6414 = vmul.f32 %v5085, %v6406
    %v6415 = vmul.f32 %v5087, %v6407
    %v6416 = vmul.f32 %v5089, %v6408
    %v6417 = vmul.f32 %v5091, %v6409
    %v6418 = vadd.f32 %v6414, %v5104
    %v6419 = vadd.f32 %v6415, %v5105
    %v6420 = vadd.f32 %v6416, %v5106
    %v6421 = vadd.f32 %v6417, %v5107
    %v6426 = vcombine.high %v6418, %v6419
    %v6427 = vcombine.high %v6420, %v6421
    %v6429 = vunpack.c.l.s4 1966171168
    %v6430 = vunpack.c.0.s8 %v6429
    %v6431 = vlaneseq
    %v6432 = vshrl.u32 %v6431, 7
    %v6433 = vsub.s32 %v6430, %v6432
    %v6434 = vrot.slane %v6426, %v6433
    %v6436 = vunpack.c.l.s4 1966171168
    %v6437 = vunpack.c.0.s8 %v6436
    %v6438 = vlaneseq
    %v6439 = vshrl.u32 %v6438, 7
    %v6440 = vsub.s32 %v6437, %v6439
    %v6441 = vrot.slane %v6427, %v6440
    %v6442 = vcombine.low %v6434, %v6441
    %v6444 = vunpack.c.l.s4 1966171168
    %v6445 = vunpack.c.0.s8 %v6444
    %v6446 = vlaneseq
    %v6447 = vshrl.u32 %v6446, 7
    %v6448 = vsub.s32 %v6445, %v6447
    %v6449 = vrot.slane %v6442, %v6448
    %6451 = vst.msk [vmem:[%s3192] ss:$8 sm:$0xf] %vm1850, %v6449
    %6452 = vst.msk [vmem:[%s3192] ss:$8 sm:$0x0] %vm1850, %v6449
    %v6453 = vrot.slane %v6418, 7
    %v6454 = vrot.slane %v6419, 7
    %v6455 = vrot.slane %v6420, 7
    %v6456 = vrot.slane %v6421, 7
    %v6461 = vmul.f32 %v5085, %v6453
    %v6462 = vmul.f32 %v5087, %v6454
    %v6463 = vmul.f32 %v5089, %v6455
    %v6464 = vmul.f32 %v5091, %v6456
    %v6465 = vadd.f32 %v6461, %v5104
    %v6466 = vadd.f32 %v6462, %v5105
    %v6467 = vadd.f32 %v6463, %v5106
    %v6468 = vadd.f32 %v6464, %v5107
    %v6473 = vcombine.high %v6465, %v6466
    %v6474 = vcombine.high %v6467, %v6468
    %v6476 = vunpack.c.l.s4 1966171168
    %v6477 = vunpack.c.0.s8 %v6476
    %v6478 = vlaneseq
    %v6479 = vshrl.u32 %v6478, 7
    %v6480 = vsub.s32 %v6477, %v6479
    %v6481 = vrot.slane %v6473, %v6480
    %v6483 = vunpack.c.l.s4 1966171168
    %v6484 = vunpack.c.0.s8 %v6483
    %v6485 = vlaneseq
    %v6486 = vshrl.u32 %v6485, 7
    %v6487 = vsub.s32 %v6484, %v6486
    %v6488 = vrot.slane %v6474, %v6487
    %v6489 = vcombine.high %v6481, %v6488
    %v6491 = vunpack.c.l.s4 1966171168
    %v6492 = vunpack.c.0.s8 %v6491
    %v6493 = vlaneseq
    %v6494 = vshrl.u32 %v6493, 7
    %v6495 = vsub.s32 %v6492, %v6494
    %v6496 = vrot.slane %v6489, %v6495
    %6498 = vst.msk [vmem:[%s3240] ss:$8 sm:$0xf] %vm1850, %v6496
    %6499 = vst.msk [vmem:[%s3240] ss:$8 sm:$0x0] %vm1850, %v6496
    %v6500 = vrot.slane %v6465, 7
    %v6501 = vrot.slane %v6466, 7
    %v6502 = vrot.slane %v6467, 7
    %v6503 = vrot.slane %v6468, 7
    %v6508 = vmul.f32 %v5085, %v6500
    %v6509 = vmul.f32 %v5087, %v6501
    %v6510 = vmul.f32 %v5089, %v6502
    %v6511 = vmul.f32 %v5091, %v6503
    %v6512 = vadd.f32 %v6508, %v5104
    %v6513 = vadd.f32 %v6509, %v5105
    %v6514 = vadd.f32 %v6510, %v5106
    %v6515 = vadd.f32 %v6511, %v5107
    %v6520 = vcombine.high %v6512, %v6513
    %v6521 = vcombine.high %v6514, %v6515
    %v6523 = vunpack.c.l.s4 1966171168
    %v6524 = vunpack.c.0.s8 %v6523
    %v6525 = vlaneseq
    %v6526 = vshrl.u32 %v6525, 7
    %v6527 = vsub.s32 %v6524, %v6526
    %v6528 = vrot.slane %v6520, %v6527
    %v6530 = vunpack.c.l.s4 1966171168
    %v6531 = vunpack.c.0.s8 %v6530
    %v6532 = vlaneseq
    %v6533 = vshrl.u32 %v6532, 7
    %v6534 = vsub.s32 %v6531, %v6533
    %v6535 = vrot.slane %v6521, %v6534
    %v6536 = vcombine.low %v6528, %v6535
    %v6538 = vunpack.c.l.s4 1966171168
    %v6539 = vunpack.c.0.s8 %v6538
    %v6540 = vlaneseq
    %v6541 = vshrl.u32 %v6540, 7
    %v6542 = vsub.s32 %v6539, %v6541
    %v6543 = vrot.slane %v6536, %v6542
    %v6544 = vcombine.high %v6543, %v6543
    %6546 = vst.msk [vmem:[%s3289] ss:$8 sm:$0xf] %vm1850, %v6544
    %6547 = vst.msk [vmem:[%s3289] ss:$8 sm:$0x0] %vm1850, %v6544
    %v6548 = vrot.slane %v6512, 7
    %v6549 = vrot.slane %v6513, 7
    %v6550 = vrot.slane %v6514, 7
    %v6551 = vrot.slane %v6515, 7
    %v6556 = vmul.f32 %v5085, %v6548
    %v6557 = vmul.f32 %v5087, %v6549
    %v6558 = vmul.f32 %v5089, %v6550
    %v6559 = vmul.f32 %v5091, %v6551
    %v6560 = vadd.f32 %v6556, %v5104
    %v6561 = vadd.f32 %v6557, %v5105
    %v6562 = vadd.f32 %v6558, %v5106
    %v6563 = vadd.f32 %v6559, %v5107
    %v6568 = vcombine.high %v6560, %v6561
    %v6569 = vcombine.high %v6562, %v6563
    %v6571 = vunpack.c.l.s4 1966171168
    %v6572 = vunpack.c.0.s8 %v6571
    %v6573 = vlaneseq
    %v6574 = vshrl.u32 %v6573, 7
    %v6575 = vsub.s32 %v6572, %v6574
    %v6576 = vrot.slane %v6568, %v6575
    %v6578 = vunpack.c.l.s4 1966171168
    %v6579 = vunpack.c.0.s8 %v6578
    %v6580 = vlaneseq
    %v6581 = vshrl.u32 %v6580, 7
    %v6582 = vsub.s32 %v6579, %v6581
    %v6583 = vrot.slane %v6569, %v6582
    %v6584 = vcombine.high %v6576, %v6583
    %v6586 = vunpack.c.l.s4 1966171168
    %v6587 = vunpack.c.0.s8 %v6586
    %v6588 = vlaneseq
    %v6589 = vshrl.u32 %v6588, 7
    %v6590 = vsub.s32 %v6587, %v6589
    %v6591 = vrot.slane %v6584, %v6590
    %v6592 = vcombine.high %v6591, %v6591
    %6594 = vst.msk [vmem:[%s3338] ss:$8 sm:$0xf] %vm1850, %v6592
    %6595 = vst.msk [vmem:[%s3338] ss:$8 sm:$0x0] %vm1850, %v6592
    %v6596 = vld [vmem:[#allocation2] sm:$0xff]
    %v6597 = vld [vmem:[#allocation2 + $0x8] sm:$0xff]
    %v6598 = vld [vmem:[#allocation2 + $0x10] sm:$0xff]
    %v6599 = vld [vmem:[#allocation2 + $0x18] sm:$0xff]
    %v6600 = vld [vmem:[#allocation2 + $0x20] sm:$0xff]
    %v6601 = vld [vmem:[#allocation2 + $0x28] sm:$0xff]
    %v6602 = vld [vmem:[#allocation2 + $0x30] sm:$0xff]
    %v6603 = vld [vmem:[#allocation2 + $0x38] sm:$0xff]
    %v6604 = vld [vmem:[#allocation2 + $0x40] sm:$0xff]
    %v6605 = vld [vmem:[#allocation2 + $0x48] sm:$0xff]
    %v6606 = vld [vmem:[#allocation2 + $0x50] sm:$0xff]
    %v6607 = vld [vmem:[#allocation2 + $0x58] sm:$0xff]
    %v6608 = vld [vmem:[#allocation2 + $0x60] sm:$0xff]
    %v6609 = vld [vmem:[#allocation2 + $0x68] sm:$0xff]
    %v6610 = vld [vmem:[#allocation2 + $0x70] sm:$0xff]
    %v6611 = vld [vmem:[#allocation2 + $0x78] sm:$0xff]
    %v6612 = vmul.f32 %v6596, %v4526
    %v6613 = vmul.f32 %v6597, %v4528
    %v6614 = vmul.f32 %v6598, %v4615
    %v6615 = vmul.f32 %v6599, %v4617
    %v6616 = vmul.f32 %v6600, %v4532
    %v6617 = vmul.f32 %v6601, %v4534
    %v6618 = vmul.f32 %v6602, %v4621
    %v6619 = vmul.f32 %v6603, %v4623
    %v6620 = vmul.f32 %v6604, %v4538
    %v6621 = vmul.f32 %v6605, %v4540
    %v6622 = vmul.f32 %v6606, %v4627
    %v6623 = vmul.f32 %v6607, %v4629
    %v6624 = vmul.f32 %v6608, %v4544
    %v6625 = vmul.f32 %v6609, %v4546
    %v6626 = vmul.f32 %v6610, %v4633
    %v6627 = vmul.f32 %v6611, %v4635
    %s6628 = scalar_lea.vmem %s14, 1
    %v6629 = vld [vmem:[%s6628] sm:$0x1]
    %v6631 = vlaneseq
    %v6632 = vshrl.u32 %v6631, 7
    %v6633 = vsub.s32 0, %v6632
    %v6634 = vrot.slane %v6629, %v6633
    %v6636 = vmul.f32 %v4066, %v6634
    %v6637 = vmul.f32 %v4067, %v6634
    %v6638 = vmul.f32 %v4068, %v6634
    %v6639 = vmul.f32 %v4069, %v6634
    %6640 = vmatprep.subr.mxu0 0.0
    %6641 = vmatpush1.msra.mxu0 %v111
    %6642 = vmatprep.subr.mxu0 0.0
    %6643 = vmatpush1.msra.mxu0 %v112
    %6644 = vmatprep.subr.mxu0 0.0
    %6645 = vmatpush1.msra.mxu0 %v113
    %6646 = vmatprep.subr.mxu0 0.0
    %6647 = vmatpush1.msra.mxu0 %v114
    %6648 = vmatprep.subr.mxu0 0.0
    %6649 = vmatpush1.msra.mxu0 %v115
    %6650 = vmatprep.subr.mxu0 0.0
    %6651 = vmatpush1.msra.mxu0 %v116
    %6652 = vmatprep.subr.mxu0 0.0
    %6653 = vmatpush1.msra.mxu0 %v117
    %6654 = vmatprep.subr.mxu0 0.0
    %6655 = vmatpush1.msra.mxu0 %v118
    %6656 = vmatprep.subr.mxu0 0.0
    %6657 = vmatpush1.msra.mxu0 %v119
    %6658 = vmatprep.subr.mxu0 0.0
    %6659 = vmatpush1.msra.mxu0 %v120
    %6660 = vmatprep.subr.mxu0 0.0
    %6661 = vmatpush1.msra.mxu0 %v121
    %6662 = vmatprep.subr.mxu0 0.0
    %6663 = vmatpush1.msra.mxu0 %v122
    %6664 = vmatprep.subr.mxu0 0.0
    %6665 = vmatpush1.msra.mxu0 %v123
    %6666 = vmatprep.subr.mxu0 0.0
    %6667 = vmatpush1.msra.mxu0 %v124
    %6668 = vmatprep.subr.mxu0 0.0
    %6669 = vmatpush1.msra.mxu0 %v125
    %6670 = vmatprep.subr.mxu0 0.0
    %6671 = vmatpush1.msra.mxu0 %v126
    %6672 = vmatprep.subr.mxu0 0.0
    %6673 = vmatpush1.msra.mxu0 %v127
    %6674 = vmatprep.subr.mxu0 0.0
    %6675 = vmatpush1.msra.mxu0 %v128
    %6676 = vmatprep.subr.mxu0 0.0
    %6677 = vmatpush1.msra.mxu0 %v129
    %6678 = vmatprep.subr.mxu0 0.0
    %6679 = vmatpush1.msra.mxu0 %v130
    %6680 = vmatprep.subr.mxu0 0.0
    %6681 = vmatpush1.msra.mxu0 %v131
    %6682 = vmatprep.subr.mxu0 0.0
    %6683 = vmatpush1.msra.mxu0 %v132
    %6684 = vmatprep.subr.mxu0 0.0
    %6685 = vmatpush1.msra.mxu0 %v133
    %6686 = vmatprep.subr.mxu0 0.0
    %6687 = vmatpush1.msra.mxu0 %v134
    %6688 = vmatprep.subr.mxu0 0.0
    %6689 = vmatpush1.msra.mxu0 %v135
    %6690 = vmatprep.subr.mxu0 0.0
    %6691 = vmatpush1.msra.mxu0 %v136
    %6692 = vmatprep.subr.mxu0 0.0
    %6693 = vmatpush1.msra.mxu0 %v137
    %6694 = vmatprep.subr.mxu0 0.0
    %6695 = vmatpush1.msra.mxu0 %v138
    %6696 = vmatprep.subr.mxu0 0.0
    %6697 = vmatpush1.msra.mxu0 %v139
    %6698 = vmatprep.subr.mxu0 0.0
    %6699 = vmatpush1.msra.mxu0 %v140
    %6700 = vmatprep.subr.mxu0 0.0
    %6701 = vmatpush1.msra.mxu0 %v141
    %6702 = vmatprep.subr.mxu0 0.0
    %6703 = vmatpush1.msra.mxu0 %v142
    %6704 = vmatprep.mubr.f32.mxu0 %v6613
    %6705 = vmatmul.mubr.f32.gmra.mrb[0].mxu0 %v6612
    %v6706 = vpop.f32.mrb[0].mxu0
    %v6707 = vadd.f32 %v6636, %v6706
    %v6708 = vpop.f32.mrb[0].mxu0
    %6709 = vmatprep.mubr.f32.mxu0 %v6617
    %6710 = vmatmul.mubr.f32.gmra.mrb[0].mxu0 %v6616
    %v6711 = vpop.f32.mrb[0].mxu0
    %v6712 = vadd.f32 %v6637, %v6711
    %v6713 = vpop.f32.mrb[0].mxu0
    %6714 = vmatprep.mubr.f32.mxu0 %v6621
    %6715 = vmatmul.mubr.f32.gmra.mrb[0].mxu0 %v6620
    %v6716 = vpop.f32.mrb[0].mxu0
    %v6717 = vadd.f32 %v6638, %v6716
    %v6718 = vpop.f32.mrb[0].mxu0
    %6719 = vmatprep.mubr.f32.mxu0 %v6625
    %6720 = vmatmul.mubr.f32.gmra.mrb[0].mxu0 %v6624
    %v6721 = vpop.f32.mrb[0].mxu0
    %v6722 = vadd.f32 %v6639, %v6721
    %v6723 = vpop.f32.mrb[0].mxu0
    %6724 = vdwg.mxu0
    %6725 = vmatprep.subr.mxu0 0.0
    %6726 = vmatpush1.msra.mxu0 %v143
    %6727 = vmatprep.subr.mxu0 0.0
    %6728 = vmatpush1.msra.mxu0 %v144
    %6729 = vmatprep.subr.mxu0 0.0
    %6730 = vmatpush1.msra.mxu0 %v145
    %6731 = vmatprep.subr.mxu0 0.0
    %6732 = vmatpush1.msra.mxu0 %v146
    %6733 = vmatprep.subr.mxu0 0.0
    %6734 = vmatpush1.msra.mxu0 %v147
    %6735 = vmatprep.subr.mxu0 0.0
    %6736 = vmatpush1.msra.mxu0 %v148
    %6737 = vmatprep.subr.mxu0 0.0
    %6738 = vmatpush1.msra.mxu0 %v149
    %6739 = vmatprep.subr.mxu0 0.0
    %6740 = vmatpush1.msra.mxu0 %v150
    %6741 = vmatprep.subr.mxu0 0.0
    %6742 = vmatpush1.msra.mxu0 %v151
    %6743 = vmatprep.subr.mxu0 0.0
    %6744 = vmatpush1.msra.mxu0 %v152
    %6745 = vmatprep.subr.mxu0 0.0
    %6746 = vmatpush1.msra.mxu0 %v153
    %6747 = vmatprep.subr.mxu0 0.0
    %6748 = vmatpush1.msra.mxu0 %v154
    %6749 = vmatprep.subr.mxu0 0.0
    %6750 = vmatpush1.msra.mxu0 %v155
    %6751 = vmatprep.subr.mxu0 0.0
    %6752 = vmatpush1.msra.mxu0 %v156
    %6753 = vmatprep.subr.mxu0 0.0
    %6754 = vmatpush1.msra.mxu0 %v157
    %6755 = vmatprep.subr.mxu0 0.0
    %6756 = vmatpush1.msra.mxu0 %v158
    %6757 = vmatprep.subr.mxu0 0.0
    %6758 = vmatpush1.msra.mxu0 %v159
    %6759 = vmatprep.subr.mxu0 0.0
    %6760 = vmatpush1.msra.mxu0 %v160
    %6761 = vmatprep.subr.mxu0 0.0
    %6762 = vmatpush1.msra.mxu0 %v161
    %6763 = vmatprep.subr.mxu0 0.0
    %6764 = vmatpush1.msra.mxu0 %v162
    %6765 = vmatprep.subr.mxu0 0.0
    %6766 = vmatpush1.msra.mxu0 %v163
    %6767 = vmatprep.subr.mxu0 0.0
    %6768 = vmatpush1.msra.mxu0 %v164
    %6769 = vmatprep.subr.mxu0 0.0
    %6770 = vmatpush1.msra.mxu0 %v165
    %6771 = vmatprep.subr.mxu0 0.0
    %6772 = vmatpush1.msra.mxu0 %v166
    %6773 = vmatprep.subr.mxu0 0.0
    %6774 = vmatpush1.msra.mxu0 %v167
    %6775 = vmatprep.subr.mxu0 0.0
    %6776 = vmatpush1.msra.mxu0 %v168
    %6777 = vmatprep.subr.mxu0 0.0
    %6778 = vmatpush1.msra.mxu0 %v169
    %6779 = vmatprep.subr.mxu0 0.0
    %6780 = vmatpush1.msra.mxu0 %v170
    %6781 = vmatprep.subr.mxu0 0.0
    %6782 = vmatpush1.msra.mxu0 %v171
    %6783 = vmatprep.subr.mxu0 0.0
    %6784 = vmatpush1.msra.mxu0 %v172
    %6785 = vmatprep.subr.mxu0 0.0
    %6786 = vmatpush1.msra.mxu0 %v173
    %6787 = vmatprep.subr.mxu0 0.0
    %6788 = vmatpush1.msra.mxu0 %v174
    %6789 = vmatprep.mubr.f32.mxu0 %v6615
    %6790 = vmatmul.mubr.f32.gmra.mrb[0].mxu0 %v6614
    %v6791 = vpop.f32.mrb[0].mxu0
    %v6792 = vadd.f32 %v6707, %v6791
    %v6793 = vpop.f32.mrb[0].mxu0
    %6794 = vmatprep.mubr.f32.mxu0 %v6619
    %6795 = vmatmul.mubr.f32.gmra.mrb[0].mxu0 %v6618
    %v6796 = vpop.f32.mrb[0].mxu0
    %v6797 = vadd.f32 %v6712, %v6796
    %v6798 = vpop.f32.mrb[0].mxu0
    %6799 = vmatprep.mubr.f32.mxu0 %v6623
    %6800 = vmatmul.mubr.f32.gmra.mrb[0].mxu0 %v6622
    %v6801 = vpop.f32.mrb[0].mxu0
    %v6802 = vadd.f32 %v6717, %v6801
    %v6803 = vpop.f32.mrb[0].mxu0
    %6804 = vmatprep.mubr.f32.mxu0 %v6627
    %6805 = vmatmul.mubr.f32.gmra.mrb[0].mxu0 %v6626
    %v6806 = vpop.f32.mrb[0].mxu0
    %v6807 = vadd.f32 %v6722, %v6806
    %v6808 = vpop.f32.mrb[0].mxu0
    %6809 = vdwg.mxu0
    %v6810 = vmul.f32 %v3865, 0.5
    %v6811 = vmul.f32 %v3870, 0.5
    %v6812 = vmul.f32 %v3875, 0.5
    %v6813 = vmul.f32 %v3880, 0.5
    %v6814 = vtanh.pop %v6810
    %v6815 = vtanh.pop %v6811
    %v6816 = vtanh.pop %v6812
    %v6817 = vtanh.pop %v6813
    %v6818 = vadd.f32 %v6814, 1.0
    %v6819 = vadd.f32 %v6815, 1.0
    %v6820 = vadd.f32 %v6816, 1.0
    %v6821 = vadd.f32 %v6817, 1.0
    %v6822 = vmul.f32 %v6810, %v6818
    %v6823 = vmul.f32 %v6811, %v6819
    %v6824 = vmul.f32 %v6812, %v6820
    %v6825 = vmul.f32 %v6813, %v6821
    %v6826 = vmul.f32 %v6792, %v6822
    %v6827 = vmul.f32 %v6797, %v6823
    %v6828 = vmul.f32 %v6802, %v6824
    %v6829 = vmul.f32 %v6807, %v6825
    %s6830 = scalar_lea.vmem %s15, 64
    %v6831 = vld [vmem:[%s6830] sm:$0xff]
    %v6832 = vld [vmem:[%s6830 + $0x8] sm:$0xff]
    %v6833 = vld [vmem:[%s6830 + $0x10] sm:$0xff]
    %v6834 = vld [vmem:[%s6830 + $0x18] sm:$0xff]
    %v6835 = vld [vmem:[%s6830 + $0x20] sm:$0xff]
    %v6836 = vld [vmem:[%s6830 + $0x28] sm:$0xff]
    %v6837 = vld [vmem:[%s6830 + $0x30] sm:$0xff]
    %v6838 = vld [vmem:[%s6830 + $0x38] sm:$0xff]
    %v6840 = vsel %vm798, %v6826, 0
    %v6843 = vsel %vm798, %v6827, 0
    %v6846 = vsel %vm798, %v6828, 0
    %v6849 = vsel %vm798, %v6829, 0
    %6851 = vmatprep.subr.mxu0 0.0
    %6852 = vmatpush1.msra.mxu0 %v6831
    %6853 = vmatprep.subr.mxu0 0.0
    %6854 = vmatpush1.msra.mxu0 %v6832
    %6855 = vmatprep.subr.mxu0 0.0
    %6856 = vmatpush1.msra.mxu0 %v6833
    %6857 = vmatprep.subr.mxu0 0.0
    %6858 = vmatpush1.msra.mxu0 %v6834
    %6859 = vmatprep.subr.mxu0 0.0
    %6860 = vmatpush1.msra.mxu0 %v6835
    %6861 = vmatprep.subr.mxu0 0.0
    %6862 = vmatpush1.msra.mxu0 %v6836
    %6863 = vmatprep.subr.mxu0 0.0
    %6864 = vmatpush1.msra.mxu0 %v6837
    %6865 = vmatprep.subr.mxu0 0.0
    %6866 = vmatpush1.msra.mxu0 %v6838
    %6867 = vmatprep.subr.mxu0 0.0
    %6868 = vmatpush1.msra.mxu0 0.0
    %6869 = vmatprep.subr.mxu0 0.0
    %6870 = vmatpush1.msra.mxu0 0.0
    %6871 = vmatprep.subr.mxu0 0.0
    %6872 = vmatpush1.msra.mxu0 0.0
    %6873 = vmatprep.subr.mxu0 0.0
    %6874 = vmatpush1.msra.mxu0 0.0
    %6875 = vmatprep.subr.mxu0 0.0
    %6876 = vmatpush1.msra.mxu0 0.0
    %6877 = vmatprep.subr.mxu0 0.0
    %6878 = vmatpush1.msra.mxu0 0.0
    %6879 = vmatprep.subr.mxu0 0.0
    %6880 = vmatpush1.msra.mxu0 0.0
    %6881 = vmatprep.subr.mxu0 0.0
    %6882 = vmatpush1.msra.mxu0 0.0
    %6883 = vmatprep.subr.mxu0 0.0
    %6884 = vmatpush1.msra.mxu0 0.0
    %6885 = vmatprep.subr.mxu0 0.0
    %6886 = vmatpush1.msra.mxu0 0.0
    %6887 = vmatprep.subr.mxu0 0.0
    %6888 = vmatpush1.msra.mxu0 0.0
    %6889 = vmatprep.subr.mxu0 0.0
    %6890 = vmatpush1.msra.mxu0 0.0
    %6891 = vmatprep.subr.mxu0 0.0
    %6892 = vmatpush1.msra.mxu0 0.0
    %6893 = vmatprep.subr.mxu0 0.0
    %6894 = vmatpush1.msra.mxu0 0.0
    %6895 = vmatprep.subr.mxu0 0.0
    %6896 = vmatpush1.msra.mxu0 0.0
    %6897 = vmatprep.subr.mxu0 0.0
    %6898 = vmatpush1.msra.mxu0 0.0
    %6899 = vmatprep.subr.mxu0 0.0
    %6900 = vmatpush1.msra.mxu0 0.0
    %6901 = vmatprep.subr.mxu0 0.0
    %6902 = vmatpush1.msra.mxu0 0.0
    %6903 = vmatprep.subr.mxu0 0.0
    %6904 = vmatpush1.msra.mxu0 0.0
    %6905 = vmatprep.subr.mxu0 0.0
    %6906 = vmatpush1.msra.mxu0 0.0
    %6907 = vmatprep.subr.mxu0 0.0
    %6908 = vmatpush1.msra.mxu0 0.0
    %6909 = vmatprep.subr.mxu0 0.0
    %6910 = vmatpush1.msra.mxu0 0.0
    %6911 = vmatprep.subr.mxu0 0.0
    %6912 = vmatpush1.msra.mxu0 0.0
    %6913 = vmatprep.subr.mxu0 0.0
    %6914 = vmatpush1.msra.mxu0 0.0
    %6915 = vmatprep.mubr.f32.mxu0 0.0
    %6916 = vmatmul.mubr.f32.gmra.mrb[0].mxu0 %v6840
    %v6917 = vpop.f32.mrb[0].mxu0
    %v6918 = vadd.f32 0.0, %v6917
    %v6919 = vpop.f32.mrb[0].mxu0
    %6920 = vmatprep.mubr.f32.mxu0 0.0
    %6921 = vmatmul.mubr.f32.gmra.mrb[0].mxu0 %v6843
    %v6922 = vpop.f32.mrb[0].mxu0
    %v6923 = vadd.f32 0.0, %v6922
    %v6924 = vpop.f32.mrb[0].mxu0
    %6925 = vmatprep.mubr.f32.mxu0 0.0
    %6926 = vmatmul.mubr.f32.gmra.mrb[0].mxu0 %v6846
    %v6927 = vpop.f32.mrb[0].mxu0
    %v6928 = vadd.f32 0.0, %v6927
    %v6929 = vpop.f32.mrb[0].mxu0
    %6930 = vmatprep.mubr.f32.mxu0 0.0
    %6931 = vmatmul.mubr.f32.gmra.mrb[0].mxu0 %v6849
    %v6932 = vpop.f32.mrb[0].mxu0
    %v6933 = vadd.f32 0.0, %v6932
    %v6934 = vpop.f32.mrb[0].mxu0
    %6935 = vdwg.mxu0
    %v6937 = vsel %vm189, %v6918, 0
    %v6940 = vsel %vm189, %v6923, 0
    %6942 = vmatprep.subr.mxu0 0.0
    %6943 = vmatpush1.xpose.msra.mxu0 %v6937
    %6944 = vmatprep.subr.mxu0 0.0
    %6945 = vmatpush1.xpose.msra.mxu0 %v6940
    %6946 = vmatprep.subr.mxu0 0.0
    %6947 = vmatpush1.xpose.msra.mxu0 0.0
    %6948 = vmatprep.subr.mxu0 0.0
    %6949 = vmatpush1.xpose.msra.mxu0 0.0
    %6950 = vmatprep.subr.mxu0 0.0
    %6951 = vmatpush1.xpose.msra.mxu0 0.0
    %6952 = vmatprep.subr.mxu0 0.0
    %6953 = vmatpush1.xpose.msra.mxu0 0.0
    %6954 = vmatprep.subr.mxu0 0.0
    %6955 = vmatpush1.xpose.msra.mxu0 0.0
    %6956 = vmatprep.subr.mxu0 0.0
    %6957 = vmatpush1.xpose.msra.mxu0 0.0
    %6958 = vmatprep.subr.mxu0 0.0
    %6959 = vmatpush1.xpose.msra.mxu0 0.0
    %6960 = vmatprep.subr.mxu0 0.0
    %6961 = vmatpush1.xpose.msra.mxu0 0.0
    %6962 = vmatprep.subr.mxu0 0.0
    %6963 = vmatpush1.xpose.msra.mxu0 0.0
    %6964 = vmatprep.subr.mxu0 0.0
    %6965 = vmatpush1.xpose.msra.mxu0 0.0
    %6966 = vmatprep.subr.mxu0 0.0
    %6967 = vmatpush1.xpose.msra.mxu0 0.0
    %6968 = vmatprep.subr.mxu0 0.0
    %6969 = vmatpush1.xpose.msra.mxu0 0.0
    %6970 = vmatprep.subr.mxu0 0.0
    %6971 = vmatpush1.xpose.msra.mxu0 0.0
    %6972 = vmatprep.subr.mxu0 0.0
    %6973 = vmatpush1.xpose.msra.mxu0 0.0
    %6974 = vmatprep.subr.mxu0 0.0
    %6975 = vmatpush1.xpose.msra.mxu0 0.0
    %6976 = vmatprep.subr.mxu0 0.0
    %6977 = vmatpush1.xpose.msra.mxu0 0.0
    %6978 = vmatprep.subr.mxu0 0.0
    %6979 = vmatpush1.xpose.msra.mxu0 0.0
    %6980 = vmatprep.subr.mxu0 0.0
    %6981 = vmatpush1.xpose.msra.mxu0 0.0
    %6982 = vmatprep.subr.mxu0 0.0
    %6983 = vmatpush1.xpose.msra.mxu0 0.0
    %6984 = vmatprep.subr.mxu0 0.0
    %6985 = vmatpush1.xpose.msra.mxu0 0.0
    %6986 = vmatprep.subr.mxu0 0.0
    %6987 = vmatpush1.xpose.msra.mxu0 0.0
    %6988 = vmatprep.subr.mxu0 0.0
    %6989 = vmatpush1.xpose.msra.mxu0 0.0
    %6990 = vmatprep.subr.mxu0 0.0
    %6991 = vmatpush1.xpose.msra.mxu0 0.0
    %6992 = vmatprep.subr.mxu0 0.0
    %6993 = vmatpush1.xpose.msra.mxu0 0.0
    %6994 = vmatprep.subr.mxu0 0.0
    %6995 = vmatpush1.xpose.msra.mxu0 0.0
    %6996 = vmatprep.subr.mxu0 0.0
    %6997 = vmatpush1.xpose.msra.mxu0 0.0
    %6998 = vmatprep.subr.mxu0 0.0
    %6999 = vmatpush1.xpose.msra.mxu0 0.0
    %7000 = vmatprep.subr.mxu0 0.0
    %7001 = vmatpush1.xpose.msra.mxu0 0.0
    %7002 = vmatprep.subr.mxu0 0.0
    %7003 = vmatpush1.xpose.msra.mxu0 0.0
    %7004 = vmatprep.subr.mxu0 0.0
    %7005 = vmatpush1.xpose.msra.mxu0 0.0
    %7006 = vmatprep.mubr.f32.mxu0 0.0
    %7007 = vmatmul.mubr.f32.gmra.mrb[0].mxu0 %v191
    %v7008 = vpop.f32.mrb[0].mxu0
    %v7009 = vadd.f32 0.0, %v7008
    %v7010 = vpop.f32.mrb[0].mxu0
    %7011 = vmatprep.mubr.f32.mxu0 0.0
    %7012 = vmatmul.mubr.f32.gmra.mrb[0].mxu0 %v194
    %v7013 = vpop.f32.mrb[0].mxu0
    %v7014 = vadd.f32 0.0, %v7013
    %v7015 = vpop.f32.mrb[0].mxu0
    %7016 = vdwg.mxu0
    %7017 = vst.msk [vmem:[#allocation6] sm:$0xff] %vm189, %v7009
    %7018 = vst.msk [vmem:[#allocation6 + $0x8] sm:$0xff] %vm189, %v7014
    %v7020 = vsel %vm189, %v6928, 0
    %v7023 = vsel %vm189, %v6933, 0
    %7025 = vmatprep.subr.mxu0 0.0
    %7026 = vmatpush1.xpose.msra.mxu0 %v7020
    %7027 = vmatprep.subr.mxu0 0.0
    %7028 = vmatpush1.xpose.msra.mxu0 %v7023
    %7029 = vmatprep.subr.mxu0 0.0
    %7030 = vmatpush1.xpose.msra.mxu0 0.0
    %7031 = vmatprep.subr.mxu0 0.0
    %7032 = vmatpush1.xpose.msra.mxu0 0.0
    %7033 = vmatprep.subr.mxu0 0.0
    %7034 = vmatpush1.xpose.msra.mxu0 0.0
    %7035 = vmatprep.subr.mxu0 0.0
    %7036 = vmatpush1.xpose.msra.mxu0 0.0
    %7037 = vmatprep.subr.mxu0 0.0
    %7038 = vmatpush1.xpose.msra.mxu0 0.0
    %7039 = vmatprep.subr.mxu0 0.0
    %7040 = vmatpush1.xpose.msra.mxu0 0.0
    %7041 = vmatprep.subr.mxu0 0.0
    %7042 = vmatpush1.xpose.msra.mxu0 0.0
    %7043 = vmatprep.subr.mxu0 0.0
    %7044 = vmatpush1.xpose.msra.mxu0 0.0
    %7045 = vmatprep.subr.mxu0 0.0
    %7046 = vmatpush1.xpose.msra.mxu0 0.0
    %7047 = vmatprep.subr.mxu0 0.0
    %7048 = vmatpush1.xpose.msra.mxu0 0.0
    %7049 = vmatprep.subr.mxu0 0.0
    %7050 = vmatpush1.xpose.msra.mxu0 0.0
    %7051 = vmatprep.subr.mxu0 0.0
    %7052 = vmatpush1.xpose.msra.mxu0 0.0
    %7053 = vmatprep.subr.mxu0 0.0
    %7054 = vmatpush1.xpose.msra.mxu0 0.0
    %7055 = vmatprep.subr.mxu0 0.0
    %7056 = vmatpush1.xpose.msra.mxu0 0.0
    %7057 = vmatprep.subr.mxu0 0.0
    %7058 = vmatpush1.xpose.msra.mxu0 0.0
    %7059 = vmatprep.subr.mxu0 0.0
    %7060 = vmatpush1.xpose.msra.mxu0 0.0
    %7061 = vmatprep.subr.mxu0 0.0
    %7062 = vmatpush1.xpose.msra.mxu0 0.0
    %7063 = vmatprep.subr.mxu0 0.0
    %7064 = vmatpush1.xpose.msra.mxu0 0.0
    %7065 = vmatprep.subr.mxu0 0.0
    %7066 = vmatpush1.xpose.msra.mxu0 0.0
    %7067 = vmatprep.subr.mxu0 0.0
    %7068 = vmatpush1.xpose.msra.mxu0 0.0
    %7069 = vmatprep.subr.mxu0 0.0
    %7070 = vmatpush1.xpose.msra.mxu0 0.0
    %7071 = vmatprep.subr.mxu0 0.0
    %7072 = vmatpush1.xpose.msra.mxu0 0.0
    %7073 = vmatprep.subr.mxu0 0.0
    %7074 = vmatpush1.xpose.msra.mxu0 0.0
    %7075 = vmatprep.subr.mxu0 0.0
    %7076 = vmatpush1.xpose.msra.mxu0 0.0
    %7077 = vmatprep.subr.mxu0 0.0
    %7078 = vmatpush1.xpose.msra.mxu0 0.0
    %7079 = vmatprep.subr.mxu0 0.0
    %7080 = vmatpush1.xpose.msra.mxu0 0.0
    %7081 = vmatprep.subr.mxu0 0.0
    %7082 = vmatpush1.xpose.msra.mxu0 0.0
    %7083 = vmatprep.subr.mxu0 0.0
    %7084 = vmatpush1.xpose.msra.mxu0 0.0
    %7085 = vmatprep.subr.mxu0 0.0
    %7086 = vmatpush1.xpose.msra.mxu0 0.0
    %7087 = vmatprep.subr.mxu0 0.0
    %7088 = vmatpush1.xpose.msra.mxu0 0.0
    %7089 = vmatprep.mubr.f32.mxu0 0.0
    %7090 = vmatmul.mubr.f32.gmra.mrb[0].mxu0 %v191
    %v7091 = vpop.f32.mrb[0].mxu0
    %v7092 = vadd.f32 0.0, %v7091
    %v7093 = vpop.f32.mrb[0].mxu0
    %7094 = vmatprep.mubr.f32.mxu0 0.0
    %7095 = vmatmul.mubr.f32.gmra.mrb[0].mxu0 %v194
    %v7096 = vpop.f32.mrb[0].mxu0
    %v7097 = vadd.f32 0.0, %v7096
    %v7098 = vpop.f32.mrb[0].mxu0
    %7099 = vdwg.mxu0
    %s7100 = scalar_lea.vmem [#allocation6], 16
    %7101 = vst.msk [vmem:[%s7100] sm:$0xff] %vm189, %v7092
    %7102 = vst.msk [vmem:[%s7100 + $0x8] sm:$0xff] %vm189, %v7097
    // Predicated region
    $region70: #{channel_mamba_layer_pallas.1} parent=1 // pred_check
      _
    $region71: #{channel_mamba_layer_pallas.1} parent=1 // pred_check_branch
      %7104 = sbr.rel (0) target = $region73
    $region72: #{channel_mamba_layer_pallas.1} parent=1 // pred_region
      %s7106 = ssub.s32 512, 512
      %7107 = vsyncadd [#allocation5], %s7106
      %s7108 = sshll.u32 [#allocation6], 4
      %s7109 = int_to_ptr.vmem [resolvable:$true] %s7108
      %7114 = dma.vmem_to_hbm [thread:$0]  %s7109, 512, %s16, [#allocation5], 128, 128, 8
    $region73: #{channel_mamba_layer_pallas.1} parent=1 // pred_fallthru
      _
    // Predicated region
    $region74: #{channel_mamba_layer_pallas.1} parent=1 // pred_check
      _
    $region75: #{channel_mamba_layer_pallas.1} parent=1 // pred_check_branch
      %7116 = sbr.rel (0) target = $region77
    $region76: #{channel_mamba_layer_pallas.1} parent=1 // pred_region
      %7117 = dma.done [#allocation5], 512
    $region77: #{channel_mamba_layer_pallas.1} parent=1 // pred_fallthru
      _
    %7118 = vsyncpa [#allocation4], 1
    %7119 = vsyncpa [#allocation5], 1

</llo_original>
